<compile_context>
chip_gen: v7x
topology: tpu7x:2x2x1
jax: 0.10.0
libtpu: 0.0.40
codegen_flags: <defaults>
</compile_context>

<pallas_src>
import functools

import jax
import jax.numpy as jnp
import numpy as np
from jax import lax
from jax.experimental import pallas as pl
from jax.experimental.pallas import tpu as pltpu

g_ch_y = 64

_TM_TARGET = 2048                    # rows per 1x1/FFN tile (mem-bound: bigger is better)
_VMEM_LIMIT = 32 * 1024 * 1024       # explicit scoped-VMEM limit (safe on v5e/v6e/v7x)
_DW_VMEM_BUDGET = 16 * 1024 * 1024   # budget for the fused-DepthConv in-kernel temporaries
_FORCE_TH = None                     # test hook: cap image-rows per DepthConv tile


def _cparams(n_grid):
    return pltpu.CompilerParams(
        dimension_semantics=("parallel",) * n_grid,
        vmem_limit_bytes=_VMEM_LIMIT,
    )


def _pick_tm(M, target=_TM_TARGET):
    """Row tile for the (M, C) matmul kernels: full M if small, else a
    multiple-of-8 divisor of M >= 256 near `target`, else `target` with a
    ragged last tile (Pallas masks the out-of-range rows on store)."""
    if M <= target:
        return M
    for cand in range(target, 255, -8):
        if M % cand == 0:
            return cand
    return target


def _dw_tap_dtype():
    """bf16 tap math on chips with a bf16 VALU (v6e/v7x); f32 elsewhere (v5e)."""
    try:
        kind = jax.devices()[0].device_kind.lower()
    except Exception:
        return jnp.float32
    return jnp.bfloat16 if ("v6" in kind or "v7" in kind) else jnp.float32


def _pick_th(H, W, C, tap_bytes):
    """Image-rows per fused-DepthConv tile: a divisor of H, capped by the
    VMEM budget for in-kernel temporaries and by ~4096 matmul rows."""
    per_row = W * C * (28 + 3 * tap_bytes)   # rough bytes of live temporaries per image-row
    cap = max(1, _DW_VMEM_BUDGET // max(per_row, 1))
    cap = min(cap, max(1, 4096 // max(W, 1)))
    if _FORCE_TH is not None:
        cap = min(cap, _FORCE_TH)
    cap = max(1, min(cap, H))
    th = 1
    for d in range(1, H + 1):
        if H % d == 0 and d <= cap:
            th = d
    return th


# ---------------------------------------------------------------------------
# Pallas kernels
# ---------------------------------------------------------------------------
def _depthconv_kernel(*refs, th, W, H, has_adaptor, tap_dtype):
    """Fused DepthConv on one tile of `th` image-rows (all-2D layout):
         t   = lrelu_0.01(x @ w1 + b1)                    (1x1 conv)
         d   = lrelu_0.01(dwconv3x3(t) + bd)              (depthwise, zero pad)
         out = d @ w2 + b2 + (x @ wa + ba  |  x)          (1x1 conv + residual)
       The rows above/below the tile arrive as two extra W-row halo inputs."""
    if has_adaptor:
        (x_ref, xt_ref, xb_ref, w1_ref, b1_ref, wd_ref, bd_ref,
         w2_ref, b2_ref, wa_ref, ba_ref, o_ref) = refs
    else:
        (x_ref, xt_ref, xb_ref, w1_ref, b1_ref, wd_ref, bd_ref,
         w2_ref, b2_ref, o_ref) = refs
        wa_ref = ba_ref = None

    cin = x_ref.shape[1]
    g0 = pl.program_id(1) * th                      # first image-row of this tile

    x = x_ref[...]                                  # (th*W, cin) bf16
    w1 = w1_ref[...]
    b1 = b1_ref[...].astype(jnp.float32)

    def conv1(v):                                   # 1x1 conv + LeakyReLU(0.01), f32 out
        y = jnp.dot(v, w1, preferred_element_type=jnp.float32) + b1
        return jnp.where(y >= 0, y, 0.01 * y)

    t_mid = conv1(x)                                              # (th*W, cin)
    t_top = jnp.where(g0 > 0, conv1(xt_ref[...]), 0.0)            # (W, cin); zero at image top
    t_bot = jnp.where(g0 + th < H, conv1(xb_ref[...]), 0.0)       # (W, cin); zero at image bottom

    # Depthwise 3x3 with zero padding.  Flattened rows are W-major, so the
    # horizontal (+-1 column) taps are +-1 flattened row: XLU roll + column
    # masks; the vertical taps are aligned W-row slices of the halo-extended
    # block (no big concatenated f32 halos, no unaligned sublane slices).
    t_ext = jnp.concatenate([t_top, t_mid, t_bot], axis=0)        # (R, cin) f32
    R = th * W + 2 * W
    col = lax.broadcasted_iota(jnp.int32, (R, cin), 0) % W
    t_c = t_ext.astype(tap_dtype)
    t_l = jnp.where(col > 0, pltpu.roll(t_ext, shift=1, axis=0), 0.0).astype(tap_dtype)
    t_r = jnp.where(col < W - 1, pltpu.roll(t_ext, shift=R - 1, axis=0), 0.0).astype(tap_dtype)

    wd = wd_ref[...].astype(tap_dtype)              # (3, 3, cin)
    acc = jnp.zeros((th * W, cin), jnp.float32)
    for dx, tc in enumerate((t_l, t_c, t_r)):       # dx: kernel column 0,1,2  (w-offset -1,0,+1)
        for dy in range(3):                         # dy: kernel row    0,1,2  (h-offset -1,0,+1)
            acc = acc + (tc[dy * W:dy * W + th * W] * wd[dy, dx]).astype(jnp.float32)
    acc = acc + bd_ref[...].astype(jnp.float32)
    acc = jnp.where(acc >= 0, acc, 0.01 * acc)

    # 1x1 conv2 (+ fused 1x1 adaptor residual, or identity residual)
    y = jnp.dot(acc.astype(w2_ref.dtype), w2_ref[...],
                preferred_element_type=jnp.float32) + b2_ref[...].astype(jnp.float32)
    if has_adaptor:
        y = y + jnp.dot(x, wa_ref[...], preferred_element_type=jnp.float32)
        y = y + ba_ref[...].astype(jnp.float32)
    else:
        y = y + x.astype(jnp.float32)
    o_ref[...] = y.astype(o_ref.dtype)


def _ffn_kernel(x_ref, w1_ref, b1_ref, w2_ref, b2_ref, o_ref, *, slope):
    """Fused ConvFFN: o = lrelu(lrelu(x@w1+b1) @ w2 + b2) + x.
    The wide intermediate stays on-chip; the input block is the residual."""
    x = x_ref[...]
    h = jnp.dot(x, w1_ref[...], preferred_element_type=jnp.float32) + b1_ref[...]
    h = jnp.where(h >= 0, h, slope * h)
    y = jnp.dot(h.astype(w2_ref.dtype), w2_ref[...],
                preferred_element_type=jnp.float32) + b2_ref[...]
    y = jnp.where(y >= 0, y, slope * y)
    y = y + x.astype(jnp.float32)
    o_ref[...] = y.astype(o_ref.dtype)


def _ffn_final_kernel(x_ref, w1_ref, b1_ref, w2_ref, b2_ref, wf_ref, bf_ref,
                      o_ref, *, slope):
    """ConvFFN fused with the model's final 1x1 conv (f32 output)."""
    x = x_ref[...]
    h = jnp.dot(x, w1_ref[...], preferred_element_type=jnp.float32) + b1_ref[...]
    h = jnp.where(h >= 0, h, slope * h)
    y = jnp.dot(h.astype(w2_ref.dtype), w2_ref[...],
                preferred_element_type=jnp.float32) + b2_ref[...]
    y = jnp.where(y >= 0, y, slope * y)
    y = y + x.astype(jnp.float32)
    z = jnp.dot(y.astype(wf_ref.dtype), wf_ref[...],
                preferred_element_type=jnp.float32) + bf_ref[...]
    o_ref[...] = z.astype(o_ref.dtype)


# ---------------------------------------------------------------------------
# Pallas wrappers
# ---------------------------------------------------------------------------
def depth_conv_fused(x2d, p, nhw, cin, cout):
    """Whole DepthConv (conv1 -> dw3x3 -> conv2 + residual) in one pallas_call.
    x2d: (N*H*W, cin) bf16, W-major flattened NHWC rows."""
    N, H, W = nhw
    # TODO(synk): pad W to a multiple of 8 outside the kernel for widths that
    # are not sublane-aligned (codec feature maps normally are).
    assert W % 8 == 0, "fused DepthConv kernel needs W to be a multiple of 8"
    M = N * H * W
    tap_dtype = _dw_tap_dtype()
    th = _pick_th(H, W, cin, 2 if tap_dtype == jnp.bfloat16 else 4)
    n_h = H // th
    row_blk = th * W
    has_adaptor = cin != cout

    kernel = functools.partial(_depthconv_kernel, th=th, W=W, H=H,
                               has_adaptor=has_adaptor, tap_dtype=tap_dtype)

    in_specs = [
        # tile of th image-rows
        pl.BlockSpec((row_blk, cin), lambda n, h: (n * n_h + h, 0)),
        # halo image-row above (clamped; zero-masked in-kernel at the image top)
        pl.BlockSpec((W, cin),
                     lambda n, h: (n * H + jnp.maximum(h * th - 1, 0), 0)),
        # halo image-row below (clamped; zero-masked in-kernel at the image bottom)
        pl.BlockSpec((W, cin),
                     lambda n, h: (n * H + jnp.minimum((h + 1) * th, H - 1), 0)),
        pl.BlockSpec((cin, cin), lambda n, h: (0, 0)),     # conv1 w
        pl.BlockSpec((1, cin), lambda n, h: (0, 0)),       # conv1 b
        pl.BlockSpec((3, 3, cin), lambda n, h: (0, 0, 0)),  # dw w
        pl.BlockSpec((1, cin), lambda n, h: (0, 0)),       # dw b
        pl.BlockSpec((cin, cout), lambda n, h: (0, 0)),    # conv2 w
        pl.BlockSpec((1, cout), lambda n, h: (0, 0)),      # conv2 b
    ]
    args = [x2d, x2d, x2d,
            p["dc_conv1_w"], p["dc_conv1_b"].reshape(1, cin),
            p["dc_dw_w"], p["dc_dw_b"].reshape(1, cin),
            p["dc_conv2_w"], p["dc_conv2_b"].reshape(1, cout)]
    if has_adaptor:
        in_specs += [pl.BlockSpec((cin, cout), lambda n, h: (0, 0)),
                     pl.BlockSpec((1, cout), lambda n, h: (0, 0))]
        args += [p["adaptor_w"], p["adaptor_b"].reshape(1, cout)]

    return pl.pallas_call(
        kernel,
        out_shape=jax.ShapeDtypeStruct((M, cout), x2d.dtype),
        grid=(N, n_h),
        in_specs=in_specs,
        out_specs=pl.BlockSpec((row_blk, cout), lambda n, h: (n * n_h + h, 0)),
        compiler_params=_cparams(2),
    )(*args)


def conv_ffn(x2d, w1, b1, w2, b2, *, slope=0.1):
    """Fused ConvFFN (expand -> lrelu -> project -> lrelu -> +x) in one call."""
    M, C = x2d.shape
    Ci = w1.shape[1]
    tm = _pick_tm(M)
    return pl.pallas_call(
        functools.partial(_ffn_kernel, slope=slope),
        out_shape=jax.ShapeDtypeStruct((M, C), x2d.dtype),
        grid=(pl.cdiv(M, tm),),
        in_specs=[
            pl.BlockSpec((tm, C), lambda i: (i, 0)),
            pl.BlockSpec((C, Ci), lambda i: (0, 0)),
            pl.BlockSpec((1, Ci), lambda i: (0, 0)),
            pl.BlockSpec((Ci, C), lambda i: (0, 0)),
            pl.BlockSpec((1, C), lambda i: (0, 0)),
        ],
        out_specs=pl.BlockSpec((tm, C), lambda i: (i, 0)),
        compiler_params=_cparams(1),
    )(x2d, w1, b1.reshape(1, Ci), w2, b2.reshape(1, C))


def conv_ffn_final(x2d, w1, b1, w2, b2, wf, bfin, *, slope=0.1,
                   out_dtype=jnp.float32):
    """ConvFFN fused with the final 1x1 conv: one fewer pass over activations."""
    M, C = x2d.shape
    Ci = w1.shape[1]
    Cf = wf.shape[1]
    tm = _pick_tm(M)
    return pl.pallas_call(
        functools.partial(_ffn_final_kernel, slope=slope),
        out_shape=jax.ShapeDtypeStruct((M, Cf), out_dtype),
        grid=(pl.cdiv(M, tm),),
        in_specs=[
            pl.BlockSpec((tm, C), lambda i: (i, 0)),
            pl.BlockSpec((C, Ci), lambda i: (0, 0)),
            pl.BlockSpec((1, Ci), lambda i: (0, 0)),
            pl.BlockSpec((Ci, C), lambda i: (0, 0)),
            pl.BlockSpec((1, C), lambda i: (0, 0)),
            pl.BlockSpec((C, Cf), lambda i: (0, 0)),
            pl.BlockSpec((1, Cf), lambda i: (0, 0)),
        ],
        out_specs=pl.BlockSpec((tm, Cf), lambda i: (i, 0)),
        compiler_params=_cparams(1),
    )(x2d, w1, b1.reshape(1, Ci), w2, b2.reshape(1, C), wf, bfin.reshape(1, Cf))


# ---------------------------------------------------------------------------
# Model composition (glue in plain JAX; hot path in the kernels above)
# ---------------------------------------------------------------------------
def spatial_prior(params, x_nchw):
    """SpatialPrior.forward.  Input NCHW (like PyTorch), output NCHW f32."""
    N, C, H, W = x_nchw.shape
    assert C == 4 * g_ch_y
    # bf16 streaming for activations/weights; all accumulation/VPU math is f32.
    p = jax.tree_util.tree_map(lambda a: a.astype(jnp.bfloat16), params)
    # cast BEFORE the layout change: halves the transpose's HBM traffic.
    x = jnp.transpose(x_nchw.astype(jnp.bfloat16), (0, 2, 3, 1))
    x2d = x.reshape(N * H * W, C)
    nhw = (N, H, W)

    # block 1: fused DepthConv (conv1 + dw3x3 + conv2 + adaptor residual), then fused ConvFFN
    b1p = p["block1"]
    x2d = depth_conv_fused(x2d, b1p, nhw, 4 * g_ch_y, 3 * g_ch_y)
    x2d = conv_ffn(x2d, b1p["ffn_w1"], b1p["ffn_b1"], b1p["ffn_w2"], b1p["ffn_b2"])

    # block 2: fused DepthConv (identity residual), then ConvFFN fused with the final 1x1 conv
    b2p = p["block2"]
    x2d = depth_conv_fused(x2d, b2p, nhw, 3 * g_ch_y, 3 * g_ch_y)
    out2d = conv_ffn_final(x2d, b2p["ffn_w1"], b2p["ffn_b1"],
                           b2p["ffn_w2"], b2p["ffn_b2"],
                           p["final_w"], p["final_b"],
                           out_dtype=x_nchw.dtype)
    return jnp.transpose(out2d.reshape(N, H, W, 2 * g_ch_y), (0, 3, 1, 2))


# ---------------------------------------------------------------------------
# Deterministic parameter init (synthetic weights, no checkpoint)
# ---------------------------------------------------------------------------
def init_params(key):
    cnt = [0]

    def nxt():
        cnt[0] += 1
        return jax.random.fold_in(key, cnt[0])

    def dense(cin, cout, wscale=0.05):
        w = jax.random.normal(nxt(), (cin, cout), jnp.float32) * wscale
        b = jax.random.normal(nxt(), (cout,), jnp.float32) * 0.01
        return w, b

    def dwp(c):
        w = jax.random.normal(nxt(), (3, 3, c), jnp.float32) * 0.1
        b = jax.random.normal(nxt(), (c,), jnp.float32) * 0.01
        return w, b

    def block(cin, cout):
        p = {}
        p["dc_conv1_w"], p["dc_conv1_b"] = dense(cin, cin)
        p["dc_dw_w"], p["dc_dw_b"] = dwp(cin)
        p["dc_conv2_w"], p["dc_conv2_b"] = dense(cin, cout)
        if cin != cout:
            p["adaptor_w"], p["adaptor_b"] = dense(cin, cout)
        internal = max(min(cout * 4, 1024), cout * 2)
        p["ffn_w1"], p["ffn_b1"] = dense(cout, internal)
        p["ffn_w2"], p["ffn_b2"] = dense(internal, cout)
        return p

    params = {
        "block1": block(4 * g_ch_y, 3 * g_ch_y),
        "block2": block(3 * g_ch_y, 3 * g_ch_y),
    }
    params["final_w"], params["final_b"] = dense(3 * g_ch_y, 2 * g_ch_y)
    return params


# ---------------------------------------------------------------------------
# Pure-JAX reference (for correctness check, f32)
# ---------------------------------------------------------------------------
def spatial_prior_ref(params, x_nchw):
    x = jnp.transpose(x_nchw, (0, 2, 3, 1))

    def c1(x, w, b, slope=None):
        y = jnp.einsum("nhwc,cd->nhwd", x, w) + b
        if slope is not None:
            y = jnp.where(y >= 0, y, slope * y)
        return y

    def dw(x, w, b, slope):
        C = x.shape[-1]
        k = w.reshape(3, 3, 1, C)
        y = lax.conv_general_dilated(
            x, k, (1, 1), "SAME",
            dimension_numbers=("NHWC", "HWIO", "NHWC"),
            feature_group_count=C)
        y = y + b
        return jnp.where(y >= 0, y, slope * y)

    def block(p, x, cin, cout):
        identity = x
        if cin != cout:
            identity = c1(x, p["adaptor_w"], p["adaptor_b"])
        t = c1(x, p["dc_conv1_w"], p["dc_conv1_b"], 0.01)
        t = dw(t, p["dc_dw_w"], p["dc_dw_b"], 0.01)
        x = c1(t, p["dc_conv2_w"], p["dc_conv2_b"]) + identity
        identity = x
        t = c1(x, p["ffn_w1"], p["ffn_b1"], 0.1)
        x = c1(t, p["ffn_w2"], p["ffn_b2"], 0.1) + identity
        return x

    x = block(params["block1"], x, 4 * g_ch_y, 3 * g_ch_y)
    x = block(params["block2"], x, 3 * g_ch_y, 3 * g_ch_y)
    x = c1(x, params["final_w"], params["final_b"])
    return jnp.transpose(x, (0, 3, 1, 2))


# ---------------------------------------------------------------------------
if __name__ == "__main__":
    key = jax.random.PRNGKey(0)
    pkey, xkey = jax.random.split(key)
    params = init_params(pkey)

    # Small test shape consistent with the module: channels fixed at 4*g_ch_y.
    N, H, W = 2, 8, 8
    x = jax.random.normal(xkey, (N, 4 * g_ch_y, H, W), jnp.float32)  # NCHW

    ref = jax.block_until_ready(spatial_prior_ref(params, x))

    # 1) default tiling (whole image per DepthConv tile at this tiny shape)
    fwd = jax.jit(spatial_prior)
    out = jax.block_until_ready(fwd(params, x))
    assert out.shape == (N, 2 * g_ch_y, H, W)
    assert out.dtype == jnp.float32
    # bf16 activation/weight streaming with f32 accumulation: looser tolerance.
    np.testing.assert_allclose(np.asarray(out), np.asarray(ref),
                               rtol=5e-2, atol=5e-2)

    # 2) force multiple H-tiles per image to exercise the halo-exchange path
    _FORCE_TH = 4
    out_tiled = jax.block_until_ready(spatial_prior(params, x))
    np.testing.assert_allclose(np.asarray(out_tiled), np.asarray(ref),
                               rtol=5e-2, atol=5e-2)
    _FORCE_TH = None

    print("KERNEL_OK")
</pallas_src>

<mosaic_0001>
module attributes {stable_mosaic.version = 11 : i64} {
  func.func @_depthconv_kernel(%arg0: i32, %arg1: i32, %arg2: memref<64x256xbf16, #tpu.memory_space<vmem>>, %arg3: memref<8x256xbf16, #tpu.memory_space<vmem>>, %arg4: memref<8x256xbf16, #tpu.memory_space<vmem>>, %arg5: memref<256x256xbf16, #tpu.memory_space<vmem>>, %arg6: memref<1x256xbf16, #tpu.memory_space<vmem>>, %arg7: memref<3x3x256xbf16, #tpu.memory_space<vmem>>, %arg8: memref<1x256xbf16, #tpu.memory_space<vmem>>, %arg9: memref<256x192xbf16, #tpu.memory_space<vmem>>, %arg10: memref<1x192xbf16, #tpu.memory_space<vmem>>, %arg11: memref<256x192xbf16, #tpu.memory_space<vmem>>, %arg12: memref<1x192xbf16, #tpu.memory_space<vmem>>, %arg13: memref<64x192xbf16, #tpu.memory_space<vmem>>) attributes {dimension_semantics = [#tpu.dimension_semantics<parallel>, #tpu.dimension_semantics<parallel>], iteration_bounds = array<i64: 2, 1>, scalar_prefetch = 0 : i64, scratch_operands = 0 : i64, tpu.core_type = #tpu.core_type<tc>, window_params = [{transform_indices = @transform_0, window_bounds = array<i64: 64, 256>}, {transform_indices = @transform_1, window_bounds = array<i64: 8, 256>}, {transform_indices = @transform_2, window_bounds = array<i64: 8, 256>}, {pipeline_mode = #tpu.pipeline_mode<synchronous>, transform_indices = @transform_3, window_bounds = array<i64: 256, 256>}, {pipeline_mode = #tpu.pipeline_mode<synchronous>, transform_indices = @transform_4, window_bounds = array<i64: 1, 256>}, {pipeline_mode = #tpu.pipeline_mode<synchronous>, transform_indices = @transform_5, window_bounds = array<i64: 3, 3, 256>}, {pipeline_mode = #tpu.pipeline_mode<synchronous>, transform_indices = @transform_6, window_bounds = array<i64: 1, 256>}, {pipeline_mode = #tpu.pipeline_mode<synchronous>, transform_indices = @transform_7, window_bounds = array<i64: 256, 192>}, {pipeline_mode = #tpu.pipeline_mode<synchronous>, transform_indices = @transform_8, window_bounds = array<i64: 1, 192>}, {pipeline_mode = #tpu.pipeline_mode<synchronous>, transform_indices = @transform_9, window_bounds = array<i64: 256, 192>}, {pipeline_mode = #tpu.pipeline_mode<synchronous>, transform_indices = @transform_10, window_bounds = array<i64: 1, 192>}, {transform_indices = @transform_11, window_bounds = array<i64: 64, 192>}]} {
    %c8_i32 = arith.constant 8 : i32
    %0 = arith.muli %arg1, %c8_i32 : i32
    %c0 = arith.constant 0 : index
    %c0_0 = arith.constant 0 : index
    %1 = vector.load %arg2[%c0, %c0_0] : memref<64x256xbf16, #tpu.memory_space<vmem>>, vector<64x256xbf16>
    %c0_1 = arith.constant 0 : index
    %c0_2 = arith.constant 0 : index
    %2 = vector.load %arg5[%c0_1, %c0_2] : memref<256x256xbf16, #tpu.memory_space<vmem>>, vector<256x256xbf16>
    %c0_3 = arith.constant 0 : index
    %c0_4 = arith.constant 0 : index
    %3 = vector.load %arg6[%c0_3, %c0_4] : memref<1x256xbf16, #tpu.memory_space<vmem>>, vector<1x256xbf16>
    %4 = arith.extf %3 : vector<1x256xbf16> to vector<1x256xf32>
    %cst = arith.constant dense<0.000000e+00> : vector<64x256xf32>
    %5 = tpu.matmul %1, %2, %cst {dimension_numbers = #tpu.dot_dimension_numbers<[1], [0], [0], [1], [0, 0, 1, 1], [], []>} : vector<64x256xbf16>, vector<256x256xbf16>, vector<64x256xf32> -> vector<64x256xf32>
    %6 = vector.broadcast %4 : vector<1x256xf32> to vector<64x256xf32>
    %7 = arith.addf %5, %6 : vector<64x256xf32>
    %cst_5 = arith.constant 0.000000e+00 : f32
    %8 = vector.broadcast %cst_5 : f32 to vector<64x256xf32>
    %9 = arith.cmpf oge, %7, %8 : vector<64x256xf32>
    %cst_6 = arith.constant 0.00999999977 : f32
    %10 = vector.broadcast %cst_6 : f32 to vector<64x256xf32>
    %11 = arith.mulf %10, %7 : vector<64x256xf32>
    %12 = arith.select %9, %7, %11 : vector<64x256xi1>, vector<64x256xf32>
    %c0_i32 = arith.constant 0 : i32
    %13 = arith.cmpi sgt, %0, %c0_i32 : i32
    %c0_7 = arith.constant 0 : index
    %c0_8 = arith.constant 0 : index
    %14 = vector.load %arg3[%c0_7, %c0_8] : memref<8x256xbf16, #tpu.memory_space<vmem>>, vector<8x256xbf16>
    %cst_9 = arith.constant dense<0.000000e+00> : vector<8x256xf32>
    %15 = tpu.matmul %14, %2, %cst_9 {dimension_numbers = #tpu.dot_dimension_numbers<[1], [0], [0], [1], [0, 0, 1, 1], [], []>} : vector<8x256xbf16>, vector<256x256xbf16>, vector<8x256xf32> -> vector<8x256xf32>
    %16 = vector.broadcast %4 : vector<1x256xf32> to vector<8x256xf32>
    %17 = arith.addf %15, %16 : vector<8x256xf32>
    %cst_10 = arith.constant 0.000000e+00 : f32
    %18 = vector.broadcast %cst_10 : f32 to vector<8x256xf32>
    %19 = arith.cmpf oge, %17, %18 : vector<8x256xf32>
    %cst_11 = arith.constant 0.00999999977 : f32
    %20 = vector.broadcast %cst_11 : f32 to vector<8x256xf32>
    %21 = arith.mulf %20, %17 : vector<8x256xf32>
    %22 = arith.select %19, %17, %21 : vector<8x256xi1>, vector<8x256xf32>
    %cst_12 = arith.constant 0.000000e+00 : f32
    %23 = vector.broadcast %cst_12 : f32 to vector<8x256xf32>
    %24 = arith.select %13, %22, %23 : vector<8x256xf32>
    %c8_i32_13 = arith.constant 8 : i32
    %25 = arith.addi %0, %c8_i32_13 : i32
    %c8_i32_14 = arith.constant 8 : i32
    %26 = arith.cmpi slt, %25, %c8_i32_14 : i32
    %c0_15 = arith.constant 0 : index
    %c0_16 = arith.constant 0 : index
    %27 = vector.load %arg4[%c0_15, %c0_16] : memref<8x256xbf16, #tpu.memory_space<vmem>>, vector<8x256xbf16>
    %cst_17 = arith.constant dense<0.000000e+00> : vector<8x256xf32>
    %28 = tpu.matmul %27, %2, %cst_17 {dimension_numbers = #tpu.dot_dimension_numbers<[1], [0], [0], [1], [0, 0, 1, 1], [], []>} : vector<8x256xbf16>, vector<256x256xbf16>, vector<8x256xf32> -> vector<8x256xf32>
    %29 = vector.broadcast %4 : vector<1x256xf32> to vector<8x256xf32>
    %30 = arith.addf %28, %29 : vector<8x256xf32>
    %cst_18 = arith.constant 0.000000e+00 : f32
    %31 = vector.broadcast %cst_18 : f32 to vector<8x256xf32>
    %32 = arith.cmpf oge, %30, %31 : vector<8x256xf32>
    %cst_19 = arith.constant 0.00999999977 : f32
    %33 = vector.broadcast %cst_19 : f32 to vector<8x256xf32>
    %34 = arith.mulf %33, %30 : vector<8x256xf32>
    %35 = arith.select %32, %30, %34 : vector<8x256xi1>, vector<8x256xf32>
    %cst_20 = arith.constant 0.000000e+00 : f32
    %36 = vector.broadcast %cst_20 : f32 to vector<8x256xf32>
    %37 = arith.select %26, %35, %36 : vector<8x256xf32>
    %38 = tpu.concatenate %24, %12, %37 in 0 : vector<8x256xf32>, vector<64x256xf32>, vector<8x256xf32> -> vector<80x256xf32>
    %39 = tpu.iota {dimensions = array<i32: 0>} : vector<80x256xi32>
    %c8_i32_21 = arith.constant 8 : i32
    %c0_i32_22 = arith.constant 0 : i32
    %40 = arith.cmpi eq, %c8_i32_21, %c0_i32_22 : i32
    %c1_i32 = arith.constant 1 : i32
    %41 = arith.select %40, %c1_i32, %c8_i32_21 : i32
    %42 = vector.broadcast %41 : i32 to vector<80x256xi32>
    %43 = arith.remsi %39, %42 : vector<80x256xi32>
    %c0_i32_23 = arith.constant 0 : i32
    %44 = vector.broadcast %c0_i32_23 : i32 to vector<80x256xi32>
    %45 = arith.cmpi ne, %43, %44 : vector<80x256xi32>
    %c0_i32_24 = arith.constant 0 : i32
    %46 = vector.broadcast %c0_i32_24 : i32 to vector<80x256xi32>
    %47 = arith.cmpi slt, %43, %46 : vector<80x256xi32>
    %c0_i32_25 = arith.constant 0 : i32
    %48 = arith.cmpi slt, %41, %c0_i32_25 : i32
    %49 = vector.broadcast %48 : i1 to vector<80x256xi1>
    %50 = vector.broadcast %49 : vector<80x256xi1> to vector<80x256xi1>
    %51 = arith.xori %47, %50 : vector<80x256xi1>
    %52 = arith.andi %51, %45 : vector<80x256xi1>
    %53 = vector.broadcast %41 : i32 to vector<80x256xi32>
    %54 = arith.addi %43, %53 : vector<80x256xi32>
    %55 = arith.select %52, %54, %43 : vector<80x256xi1>, vector<80x256xi32>
    %c0_i32_26 = arith.constant 0 : i32
    %56 = vector.broadcast %c0_i32_26 : i32 to vector<80x256xi32>
    %57 = arith.cmpi sgt, %55, %56 : vector<80x256xi32>
    %c1_i32_27 = arith.constant 1 : i32
    %58 = tpu.dynamic_rotate %38 by %c1_i32_27 dim 0 : vector<80x256xf32>, i32 -> vector<80x256xf32>
    %cst_28 = arith.constant 0.000000e+00 : f32
    %59 = vector.broadcast %cst_28 : f32 to vector<80x256xf32>
    %60 = arith.select %57, %58, %59 : vector<80x256xi1>, vector<80x256xf32>
    %c7_i32 = arith.constant 7 : i32
    %61 = vector.broadcast %c7_i32 : i32 to vector<80x256xi32>
    %62 = arith.cmpi slt, %55, %61 : vector<80x256xi32>
    %c79_i32 = arith.constant 79 : i32
    %63 = tpu.dynamic_rotate %38 by %c79_i32 dim 0 : vector<80x256xf32>, i32 -> vector<80x256xf32>
    %cst_29 = arith.constant 0.000000e+00 : f32
    %64 = vector.broadcast %cst_29 : f32 to vector<80x256xf32>
    %65 = arith.select %62, %63, %64 : vector<80x256xi1>, vector<80x256xf32>
    %c0_30 = arith.constant 0 : index
    %c0_31 = arith.constant 0 : index
    %c0_32 = arith.constant 0 : index
    %66 = vector.load %arg7[%c0_30, %c0_31, %c0_32] : memref<3x3x256xbf16, #tpu.memory_space<vmem>>, vector<3x3x256xbf16>
    %67 = arith.extf %66 : vector<3x3x256xbf16> to vector<3x3x256xf32>
    %cst_33 = arith.constant 0.000000e+00 : f32
    %68 = vector.broadcast %cst_33 : f32 to vector<64x256xf32>
    %69 = vector.extract_strided_slice %60 {offsets = [0, 0], sizes = [64, 256], strides = [1, 1]} : vector<80x256xf32> to vector<64x256xf32>
    %70 = vector.extract_strided_slice %67 {offsets = [0, 0, 0], sizes = [1, 1, 256], strides = [1, 1, 1]} : vector<3x3x256xf32> to vector<1x1x256xf32>
    %71 = vector.shape_cast %70 : vector<1x1x256xf32> to vector<256xf32>
    %72 = vector.shape_cast %71 : vector<256xf32> to vector<1x256xf32>
    %73 = vector.broadcast %72 : vector<1x256xf32> to vector<64x256xf32>
    %74 = arith.mulf %69, %73 : vector<64x256xf32>
    %75 = arith.addf %68, %74 : vector<64x256xf32>
    %76 = vector.extract_strided_slice %60 {offsets = [8, 0], sizes = [64, 256], strides = [1, 1]} : vector<80x256xf32> to vector<64x256xf32>
    %77 = vector.extract_strided_slice %67 {offsets = [1, 0, 0], sizes = [1, 1, 256], strides = [1, 1, 1]} : vector<3x3x256xf32> to vector<1x1x256xf32>
    %78 = vector.shape_cast %77 : vector<1x1x256xf32> to vector<256xf32>
    %79 = vector.shape_cast %78 : vector<256xf32> to vector<1x256xf32>
    %80 = vector.broadcast %79 : vector<1x256xf32> to vector<64x256xf32>
    %81 = arith.mulf %76, %80 : vector<64x256xf32>
    %82 = arith.addf %75, %81 : vector<64x256xf32>
    %83 = vector.extract_strided_slice %60 {offsets = [16, 0], sizes = [64, 256], strides = [1, 1]} : vector<80x256xf32> to vector<64x256xf32>
    %84 = vector.extract_strided_slice %67 {offsets = [2, 0, 0], sizes = [1, 1, 256], strides = [1, 1, 1]} : vector<3x3x256xf32> to vector<1x1x256xf32>
    %85 = vector.shape_cast %84 : vector<1x1x256xf32> to vector<256xf32>
    %86 = vector.shape_cast %85 : vector<256xf32> to vector<1x256xf32>
    %87 = vector.broadcast %86 : vector<1x256xf32> to vector<64x256xf32>
    %88 = arith.mulf %83, %87 : vector<64x256xf32>
    %89 = arith.addf %82, %88 : vector<64x256xf32>
    %90 = vector.extract_strided_slice %38 {offsets = [0, 0], sizes = [64, 256], strides = [1, 1]} : vector<80x256xf32> to vector<64x256xf32>
    %91 = vector.extract_strided_slice %67 {offsets = [0, 1, 0], sizes = [1, 1, 256], strides = [1, 1, 1]} : vector<3x3x256xf32> to vector<1x1x256xf32>
    %92 = vector.shape_cast %91 : vector<1x1x256xf32> to vector<256xf32>
    %93 = vector.shape_cast %92 : vector<256xf32> to vector<1x256xf32>
    %94 = vector.broadcast %93 : vector<1x256xf32> to vector<64x256xf32>
    %95 = arith.mulf %90, %94 : vector<64x256xf32>
    %96 = arith.addf %89, %95 : vector<64x256xf32>
    %97 = vector.extract_strided_slice %38 {offsets = [8, 0], sizes = [64, 256], strides = [1, 1]} : vector<80x256xf32> to vector<64x256xf32>
    %98 = vector.extract_strided_slice %67 {offsets = [1, 1, 0], sizes = [1, 1, 256], strides = [1, 1, 1]} : vector<3x3x256xf32> to vector<1x1x256xf32>
    %99 = vector.shape_cast %98 : vector<1x1x256xf32> to vector<256xf32>
    %100 = vector.shape_cast %99 : vector<256xf32> to vector<1x256xf32>
    %101 = vector.broadcast %100 : vector<1x256xf32> to vector<64x256xf32>
    %102 = arith.mulf %97, %101 : vector<64x256xf32>
    %103 = arith.addf %96, %102 : vector<64x256xf32>
    %104 = vector.extract_strided_slice %38 {offsets = [16, 0], sizes = [64, 256], strides = [1, 1]} : vector<80x256xf32> to vector<64x256xf32>
    %105 = vector.extract_strided_slice %67 {offsets = [2, 1, 0], sizes = [1, 1, 256], strides = [1, 1, 1]} : vector<3x3x256xf32> to vector<1x1x256xf32>
    %106 = vector.shape_cast %105 : vector<1x1x256xf32> to vector<256xf32>
    %107 = vector.shape_cast %106 : vector<256xf32> to vector<1x256xf32>
    %108 = vector.broadcast %107 : vector<1x256xf32> to vector<64x256xf32>
    %109 = arith.mulf %104, %108 : vector<64x256xf32>
    %110 = arith.addf %103, %109 : vector<64x256xf32>
    %111 = vector.extract_strided_slice %65 {offsets = [0, 0], sizes = [64, 256], strides = [1, 1]} : vector<80x256xf32> to vector<64x256xf32>
    %112 = vector.extract_strided_slice %67 {offsets = [0, 2, 0], sizes = [1, 1, 256], strides = [1, 1, 1]} : vector<3x3x256xf32> to vector<1x1x256xf32>
    %113 = vector.shape_cast %112 : vector<1x1x256xf32> to vector<256xf32>
    %114 = vector.shape_cast %113 : vector<256xf32> to vector<1x256xf32>
    %115 = vector.broadcast %114 : vector<1x256xf32> to vector<64x256xf32>
    %116 = arith.mulf %111, %115 : vector<64x256xf32>
    %117 = arith.addf %110, %116 : vector<64x256xf32>
    %118 = vector.extract_strided_slice %65 {offsets = [8, 0], sizes = [64, 256], strides = [1, 1]} : vector<80x256xf32> to vector<64x256xf32>
    %119 = vector.extract_strided_slice %67 {offsets = [1, 2, 0], sizes = [1, 1, 256], strides = [1, 1, 1]} : vector<3x3x256xf32> to vector<1x1x256xf32>
    %120 = vector.shape_cast %119 : vector<1x1x256xf32> to vector<256xf32>
    %121 = vector.shape_cast %120 : vector<256xf32> to vector<1x256xf32>
    %122 = vector.broadcast %121 : vector<1x256xf32> to vector<64x256xf32>
    %123 = arith.mulf %118, %122 : vector<64x256xf32>
    %124 = arith.addf %117, %123 : vector<64x256xf32>
    %125 = vector.extract_strided_slice %65 {offsets = [16, 0], sizes = [64, 256], strides = [1, 1]} : vector<80x256xf32> to vector<64x256xf32>
    %126 = vector.extract_strided_slice %67 {offsets = [2, 2, 0], sizes = [1, 1, 256], strides = [1, 1, 1]} : vector<3x3x256xf32> to vector<1x1x256xf32>
    %127 = vector.shape_cast %126 : vector<1x1x256xf32> to vector<256xf32>
    %128 = vector.shape_cast %127 : vector<256xf32> to vector<1x256xf32>
    %129 = vector.broadcast %128 : vector<1x256xf32> to vector<64x256xf32>
    %130 = arith.mulf %125, %129 : vector<64x256xf32>
    %131 = arith.addf %124, %130 : vector<64x256xf32>
    %c0_34 = arith.constant 0 : index
    %c0_35 = arith.constant 0 : index
    %132 = vector.load %arg8[%c0_34, %c0_35] : memref<1x256xbf16, #tpu.memory_space<vmem>>, vector<1x256xbf16>
    %133 = arith.extf %132 : vector<1x256xbf16> to vector<1x256xf32>
    %134 = vector.broadcast %133 : vector<1x256xf32> to vector<64x256xf32>
    %135 = arith.addf %131, %134 : vector<64x256xf32>
    %cst_36 = arith.constant 0.000000e+00 : f32
    %136 = vector.broadcast %cst_36 : f32 to vector<64x256xf32>
    %137 = arith.cmpf oge, %135, %136 : vector<64x256xf32>
    %cst_37 = arith.constant 0.00999999977 : f32
    %138 = vector.broadcast %cst_37 : f32 to vector<64x256xf32>
    %139 = arith.mulf %138, %135 : vector<64x256xf32>
    %140 = arith.select %137, %135, %139 : vector<64x256xi1>, vector<64x256xf32>
    %141 = arith.truncf %140 : vector<64x256xf32> to vector<64x256xbf16>
    %c0_38 = arith.constant 0 : index
    %c0_39 = arith.constant 0 : index
    %142 = vector.load %arg9[%c0_38, %c0_39] : memref<256x192xbf16, #tpu.memory_space<vmem>>, vector<256x192xbf16>
    %cst_40 = arith.constant dense<0.000000e+00> : vector<64x192xf32>
    %143 = tpu.matmul %141, %142, %cst_40 {dimension_numbers = #tpu.dot_dimension_numbers<[1], [0], [0], [1], [0, 0, 1, 1], [], []>} : vector<64x256xbf16>, vector<256x192xbf16>, vector<64x192xf32> -> vector<64x192xf32>
    %c0_41 = arith.constant 0 : index
    %c0_42 = arith.constant 0 : index
    %144 = vector.load %arg10[%c0_41, %c0_42] : memref<1x192xbf16, #tpu.memory_space<vmem>>, vector<1x192xbf16>
    %145 = arith.extf %144 : vector<1x192xbf16> to vector<1x192xf32>
    %146 = vector.broadcast %145 : vector<1x192xf32> to vector<64x192xf32>
    %147 = arith.addf %143, %146 : vector<64x192xf32>
    %c0_43 = arith.constant 0 : index
    %c0_44 = arith.constant 0 : index
    %148 = vector.load %arg11[%c0_43, %c0_44] : memref<256x192xbf16, #tpu.memory_space<vmem>>, vector<256x192xbf16>
    %cst_45 = arith.constant dense<0.000000e+00> : vector<64x192xf32>
    %149 = tpu.matmul %1, %148, %cst_45 {dimension_numbers = #tpu.dot_dimension_numbers<[1], [0], [0], [1], [0, 0, 1, 1], [], []>} : vector<64x256xbf16>, vector<256x192xbf16>, vector<64x192xf32> -> vector<64x192xf32>
    %150 = arith.addf %147, %149 : vector<64x192xf32>
    %c0_46 = arith.constant 0 : index
    %c0_47 = arith.constant 0 : index
    %151 = vector.load %arg12[%c0_46, %c0_47] : memref<1x192xbf16, #tpu.memory_space<vmem>>, vector<1x192xbf16>
    %152 = arith.extf %151 : vector<1x192xbf16> to vector<1x192xf32>
    %153 = vector.broadcast %152 : vector<1x192xf32> to vector<64x192xf32>
    %154 = arith.addf %150, %153 : vector<64x192xf32>
    %155 = arith.truncf %154 : vector<64x192xf32> to vector<64x192xbf16>
    %c0_48 = arith.constant 0 : index
    %c0_49 = arith.constant 0 : index
    %156 = vector.load %arg13[%c0_48, %c0_49] : memref<64x192xbf16, #tpu.memory_space<vmem>>, vector<64x192xbf16>
    tpu.vector_store %arg13[%c0_48, %c0_49], %155 {strides = array<i32>} : memref<64x192xbf16, #tpu.memory_space<vmem>>, vector<64x192xbf16>,
    return
  }
  func.func @transform_0(%arg0: i32, %arg1: i32) -> (i32, i32) {
    %c1_i32 = arith.constant 1 : i32
    %0 = arith.muli %arg0, %c1_i32 : i32
    %1 = arith.addi %0, %arg1 : i32
    %c0_i32 = arith.constant 0 : i32
    %c0_i32_0 = arith.constant 0 : i32
    return %1, %c0_i32 : i32, i32
  }
  func.func @transform_1(%arg0: i32, %arg1: i32) -> (i32, i32) {
    %c8_i32 = arith.constant 8 : i32
    %0 = arith.muli %arg0, %c8_i32 : i32
    %c8_i32_0 = arith.constant 8 : i32
    %1 = arith.muli %arg1, %c8_i32_0 : i32
    %c1_i32 = arith.constant 1 : i32
    %2 = arith.subi %1, %c1_i32 : i32
    %c0_i32 = arith.constant 0 : i32
    %3 = arith.maxsi %2, %c0_i32 : i32
    %4 = arith.addi %0, %3 : i32
    %c0_i32_1 = arith.constant 0 : i32
    %c0_i32_2 = arith.constant 0 : i32
    return %4, %c0_i32_1 : i32, i32
  }
  func.func @transform_2(%arg0: i32, %arg1: i32) -> (i32, i32) {
    %c8_i32 = arith.constant 8 : i32
    %0 = arith.muli %arg0, %c8_i32 : i32
    %c1_i32 = arith.constant 1 : i32
    %1 = arith.addi %arg1, %c1_i32 : i32
    %c8_i32_0 = arith.constant 8 : i32
    %2 = arith.muli %1, %c8_i32_0 : i32
    %c7_i32 = arith.constant 7 : i32
    %3 = arith.minsi %2, %c7_i32 : i32
    %4 = arith.addi %0, %3 : i32
    %c0_i32 = arith.constant 0 : i32
    %c0_i32_1 = arith.constant 0 : i32
    return %4, %c0_i32 : i32, i32
  }
  func.func @transform_3(%arg0: i32, %arg1: i32) -> (i32, i32) {
    %c0_i32 = arith.constant 0 : i32
    %c0_i32_0 = arith.constant 0 : i32
    %c0_i32_1 = arith.constant 0 : i32
    return %c0_i32, %c0_i32_0 : i32, i32
  }
  func.func @transform_4(%arg0: i32, %arg1: i32) -> (i32, i32) {
    %c0_i32 = arith.constant 0 : i32
    %c0_i32_0 = arith.constant 0 : i32
    %c0_i32_1 = arith.constant 0 : i32
    return %c0_i32, %c0_i32_0 : i32, i32
  }
  func.func @transform_5(%arg0: i32, %arg1: i32) -> (i32, i32, i32) {
    %c0_i32 = arith.constant 0 : i32
    %c0_i32_0 = arith.constant 0 : i32
    %c0_i32_1 = arith.constant 0 : i32
    %c0_i32_2 = arith.constant 0 : i32
    return %c0_i32, %c0_i32_0, %c0_i32_1 : i32, i32, i32
  }
  func.func @transform_6(%arg0: i32, %arg1: i32) -> (i32, i32) {
    %c0_i32 = arith.constant 0 : i32
    %c0_i32_0 = arith.constant 0 : i32
    %c0_i32_1 = arith.constant 0 : i32
    return %c0_i32, %c0_i32_0 : i32, i32
  }
  func.func @transform_7(%arg0: i32, %arg1: i32) -> (i32, i32) {
    %c0_i32 = arith.constant 0 : i32
    %c0_i32_0 = arith.constant 0 : i32
    %c0_i32_1 = arith.constant 0 : i32
    return %c0_i32, %c0_i32_0 : i32, i32
  }
  func.func @transform_8(%arg0: i32, %arg1: i32) -> (i32, i32) {
    %c0_i32 = arith.constant 0 : i32
    %c0_i32_0 = arith.constant 0 : i32
    %c0_i32_1 = arith.constant 0 : i32
    return %c0_i32, %c0_i32_0 : i32, i32
  }
  func.func @transform_9(%arg0: i32, %arg1: i32) -> (i32, i32) {
    %c0_i32 = arith.constant 0 : i32
    %c0_i32_0 = arith.constant 0 : i32
    %c0_i32_1 = arith.constant 0 : i32
    return %c0_i32, %c0_i32_0 : i32, i32
  }
  func.func @transform_10(%arg0: i32, %arg1: i32) -> (i32, i32) {
    %c0_i32 = arith.constant 0 : i32
    %c0_i32_0 = arith.constant 0 : i32
    %c0_i32_1 = arith.constant 0 : i32
    return %c0_i32, %c0_i32_0 : i32, i32
  }
  func.func @transform_11(%arg0: i32, %arg1: i32) -> (i32, i32) {
    %c1_i32 = arith.constant 1 : i32
    %0 = arith.muli %arg0, %c1_i32 : i32
    %1 = arith.addi %0, %arg1 : i32
    %c0_i32 = arith.constant 0 : i32
    %c0_i32_0 = arith.constant 0 : i32
    return %1, %c0_i32 : i32, i32
  }
}

module attributes {stable_mosaic.version = 11 : i64} {
  func.func @_ffn_kernel(%arg0: i32, %arg1: memref<128x192xbf16, #tpu.memory_space<vmem>>, %arg2: memref<192x768xbf16, #tpu.memory_space<vmem>>, %arg3: memref<1x768xbf16, #tpu.memory_space<vmem>>, %arg4: memref<768x192xbf16, #tpu.memory_space<vmem>>, %arg5: memref<1x192xbf16, #tpu.memory_space<vmem>>, %arg6: memref<128x192xbf16, #tpu.memory_space<vmem>>) attributes {dimension_semantics = [#tpu.dimension_semantics<parallel>], iteration_bounds = array<i64: 1>, scalar_prefetch = 0 : i64, scratch_operands = 0 : i64, tpu.core_type = #tpu.core_type<tc>, window_params = [{transform_indices = @transform_0, window_bounds = array<i64: 128, 192>}, {pipeline_mode = #tpu.pipeline_mode<synchronous>, transform_indices = @transform_1, window_bounds = array<i64: 192, 768>}, {pipeline_mode = #tpu.pipeline_mode<synchronous>, transform_indices = @transform_2, window_bounds = array<i64: 1, 768>}, {pipeline_mode = #tpu.pipeline_mode<synchronous>, transform_indices = @transform_3, window_bounds = array<i64: 768, 192>}, {pipeline_mode = #tpu.pipeline_mode<synchronous>, transform_indices = @transform_4, window_bounds = array<i64: 1, 192>}, {transform_indices = @transform_5, window_bounds = array<i64: 128, 192>}]} {
    %c0 = arith.constant 0 : index
    %c0_0 = arith.constant 0 : index
    %0 = vector.load %arg1[%c0, %c0_0] : memref<128x192xbf16, #tpu.memory_space<vmem>>, vector<128x192xbf16>
    %c0_1 = arith.constant 0 : index
    %c0_2 = arith.constant 0 : index
    %1 = vector.load %arg2[%c0_1, %c0_2] : memref<192x768xbf16, #tpu.memory_space<vmem>>, vector<192x768xbf16>
    %cst = arith.constant dense<0.000000e+00> : vector<128x768xf32>
    %2 = tpu.matmul %0, %1, %cst {dimension_numbers = #tpu.dot_dimension_numbers<[1], [0], [0], [1], [0, 0, 1, 1], [], []>} : vector<128x192xbf16>, vector<192x768xbf16>, vector<128x768xf32> -> vector<128x768xf32>
    %c0_3 = arith.constant 0 : index
    %c0_4 = arith.constant 0 : index
    %3 = vector.load %arg3[%c0_3, %c0_4] : memref<1x768xbf16, #tpu.memory_space<vmem>>, vector<1x768xbf16>
    %4 = arith.extf %3 : vector<1x768xbf16> to vector<1x768xf32>
    %5 = vector.broadcast %4 : vector<1x768xf32> to vector<128x768xf32>
    %6 = arith.addf %2, %5 : vector<128x768xf32>
    %cst_5 = arith.constant 0.000000e+00 : f32
    %7 = vector.broadcast %cst_5 : f32 to vector<128x768xf32>
    %8 = arith.cmpf oge, %6, %7 : vector<128x768xf32>
    %cst_6 = arith.constant 1.000000e-01 : f32
    %9 = vector.broadcast %cst_6 : f32 to vector<128x768xf32>
    %10 = arith.mulf %9, %6 : vector<128x768xf32>
    %11 = arith.select %8, %6, %10 : vector<128x768xi1>, vector<128x768xf32>
    %12 = arith.truncf %11 : vector<128x768xf32> to vector<128x768xbf16>
    %c0_7 = arith.constant 0 : index
    %c0_8 = arith.constant 0 : index
    %13 = vector.load %arg4[%c0_7, %c0_8] : memref<768x192xbf16, #tpu.memory_space<vmem>>, vector<768x192xbf16>
    %cst_9 = arith.constant dense<0.000000e+00> : vector<128x192xf32>
    %14 = tpu.matmul %12, %13, %cst_9 {dimension_numbers = #tpu.dot_dimension_numbers<[1], [0], [0], [1], [0, 0, 1, 1], [], []>} : vector<128x768xbf16>, vector<768x192xbf16>, vector<128x192xf32> -> vector<128x192xf32>
    %c0_10 = arith.constant 0 : index
    %c0_11 = arith.constant 0 : index
    %15 = vector.load %arg5[%c0_10, %c0_11] : memref<1x192xbf16, #tpu.memory_space<vmem>>, vector<1x192xbf16>
    %16 = arith.extf %15 : vector<1x192xbf16> to vector<1x192xf32>
    %17 = vector.broadcast %16 : vector<1x192xf32> to vector<128x192xf32>
    %18 = arith.addf %14, %17 : vector<128x192xf32>
    %cst_12 = arith.constant 0.000000e+00 : f32
    %19 = vector.broadcast %cst_12 : f32 to vector<128x192xf32>
    %20 = arith.cmpf oge, %18, %19 : vector<128x192xf32>
    %cst_13 = arith.constant 1.000000e-01 : f32
    %21 = vector.broadcast %cst_13 : f32 to vector<128x192xf32>
    %22 = arith.mulf %21, %18 : vector<128x192xf32>
    %23 = arith.select %20, %18, %22 : vector<128x192xi1>, vector<128x192xf32>
    %24 = arith.extf %0 : vector<128x192xbf16> to vector<128x192xf32>
    %25 = arith.addf %23, %24 : vector<128x192xf32>
    %26 = arith.truncf %25 : vector<128x192xf32> to vector<128x192xbf16>
    %c0_14 = arith.constant 0 : index
    %c0_15 = arith.constant 0 : index
    %27 = vector.load %arg6[%c0_14, %c0_15] : memref<128x192xbf16, #tpu.memory_space<vmem>>, vector<128x192xbf16>
    tpu.vector_store %arg6[%c0_14, %c0_15], %26 {strides = array<i32>} : memref<128x192xbf16, #tpu.memory_space<vmem>>, vector<128x192xbf16>,
    return
  }
  func.func @transform_0(%arg0: i32) -> (i32, i32) {
    %c0_i32 = arith.constant 0 : i32
    %c0_i32_0 = arith.constant 0 : i32
    return %arg0, %c0_i32 : i32, i32
  }
  func.func @transform_1(%arg0: i32) -> (i32, i32) {
    %c0_i32 = arith.constant 0 : i32
    %c0_i32_0 = arith.constant 0 : i32
    %c0_i32_1 = arith.constant 0 : i32
    return %c0_i32, %c0_i32_0 : i32, i32
  }
  func.func @transform_2(%arg0: i32) -> (i32, i32) {
    %c0_i32 = arith.constant 0 : i32
    %c0_i32_0 = arith.constant 0 : i32
    %c0_i32_1 = arith.constant 0 : i32
    return %c0_i32, %c0_i32_0 : i32, i32
  }
  func.func @transform_3(%arg0: i32) -> (i32, i32) {
    %c0_i32 = arith.constant 0 : i32
    %c0_i32_0 = arith.constant 0 : i32
    %c0_i32_1 = arith.constant 0 : i32
    return %c0_i32, %c0_i32_0 : i32, i32
  }
  func.func @transform_4(%arg0: i32) -> (i32, i32) {
    %c0_i32 = arith.constant 0 : i32
    %c0_i32_0 = arith.constant 0 : i32
    %c0_i32_1 = arith.constant 0 : i32
    return %c0_i32, %c0_i32_0 : i32, i32
  }
  func.func @transform_5(%arg0: i32) -> (i32, i32) {
    %c0_i32 = arith.constant 0 : i32
    %c0_i32_0 = arith.constant 0 : i32
    return %arg0, %c0_i32 : i32, i32
  }
}

module attributes {stable_mosaic.version = 11 : i64} {
  func.func @_ffn_final_kernel(%arg0: i32, %arg1: memref<128x192xbf16, #tpu.memory_space<vmem>>, %arg2: memref<192x768xbf16, #tpu.memory_space<vmem>>, %arg3: memref<1x768xbf16, #tpu.memory_space<vmem>>, %arg4: memref<768x192xbf16, #tpu.memory_space<vmem>>, %arg5: memref<1x192xbf16, #tpu.memory_space<vmem>>, %arg6: memref<192x128xbf16, #tpu.memory_space<vmem>>, %arg7: memref<1x128xbf16, #tpu.memory_space<vmem>>, %arg8: memref<128x128xf32, #tpu.memory_space<vmem>>) attributes {dimension_semantics = [#tpu.dimension_semantics<parallel>], iteration_bounds = array<i64: 1>, scalar_prefetch = 0 : i64, scratch_operands = 0 : i64, tpu.core_type = #tpu.core_type<tc>, window_params = [{transform_indices = @transform_0, window_bounds = array<i64: 128, 192>}, {pipeline_mode = #tpu.pipeline_mode<synchronous>, transform_indices = @transform_1, window_bounds = array<i64: 192, 768>}, {pipeline_mode = #tpu.pipeline_mode<synchronous>, transform_indices = @transform_2, window_bounds = array<i64: 1, 768>}, {pipeline_mode = #tpu.pipeline_mode<synchronous>, transform_indices = @transform_3, window_bounds = array<i64: 768, 192>}, {pipeline_mode = #tpu.pipeline_mode<synchronous>, transform_indices = @transform_4, window_bounds = array<i64: 1, 192>}, {pipeline_mode = #tpu.pipeline_mode<synchronous>, transform_indices = @transform_5, window_bounds = array<i64: 192, 128>}, {pipeline_mode = #tpu.pipeline_mode<synchronous>, transform_indices = @transform_6, window_bounds = array<i64: 1, 128>}, {transform_indices = @transform_7, window_bounds = array<i64: 128, 128>}]} {
    %c0 = arith.constant 0 : index
    %c0_0 = arith.constant 0 : index
    %0 = vector.load %arg1[%c0, %c0_0] : memref<128x192xbf16, #tpu.memory_space<vmem>>, vector<128x192xbf16>
    %c0_1 = arith.constant 0 : index
    %c0_2 = arith.constant 0 : index
    %1 = vector.load %arg2[%c0_1, %c0_2] : memref<192x768xbf16, #tpu.memory_space<vmem>>, vector<192x768xbf16>
    %cst = arith.constant dense<0.000000e+00> : vector<128x768xf32>
    %2 = tpu.matmul %0, %1, %cst {dimension_numbers = #tpu.dot_dimension_numbers<[1], [0], [0], [1], [0, 0, 1, 1], [], []>} : vector<128x192xbf16>, vector<192x768xbf16>, vector<128x768xf32> -> vector<128x768xf32>
    %c0_3 = arith.constant 0 : index
    %c0_4 = arith.constant 0 : index
    %3 = vector.load %arg3[%c0_3, %c0_4] : memref<1x768xbf16, #tpu.memory_space<vmem>>, vector<1x768xbf16>
    %4 = arith.extf %3 : vector<1x768xbf16> to vector<1x768xf32>
    %5 = vector.broadcast %4 : vector<1x768xf32> to vector<128x768xf32>
    %6 = arith.addf %2, %5 : vector<128x768xf32>
    %cst_5 = arith.constant 0.000000e+00 : f32
    %7 = vector.broadcast %cst_5 : f32 to vector<128x768xf32>
    %8 = arith.cmpf oge, %6, %7 : vector<128x768xf32>
    %cst_6 = arith.constant 1.000000e-01 : f32
    %9 = vector.broadcast %cst_6 : f32 to vector<128x768xf32>
    %10 = arith.mulf %9, %6 : vector<128x768xf32>
    %11 = arith.select %8, %6, %10 : vector<128x768xi1>, vector<128x768xf32>
    %12 = arith.truncf %11 : vector<128x768xf32> to vector<128x768xbf16>
    %c0_7 = arith.constant 0 : index
    %c0_8 = arith.constant 0 : index
    %13 = vector.load %arg4[%c0_7, %c0_8] : memref<768x192xbf16, #tpu.memory_space<vmem>>, vector<768x192xbf16>
    %cst_9 = arith.constant dense<0.000000e+00> : vector<128x192xf32>
    %14 = tpu.matmul %12, %13, %cst_9 {dimension_numbers = #tpu.dot_dimension_numbers<[1], [0], [0], [1], [0, 0, 1, 1], [], []>} : vector<128x768xbf16>, vector<768x192xbf16>, vector<128x192xf32> -> vector<128x192xf32>
    %c0_10 = arith.constant 0 : index
    %c0_11 = arith.constant 0 : index
    %15 = vector.load %arg5[%c0_10, %c0_11] : memref<1x192xbf16, #tpu.memory_space<vmem>>, vector<1x192xbf16>
    %16 = arith.extf %15 : vector<1x192xbf16> to vector<1x192xf32>
    %17 = vector.broadcast %16 : vector<1x192xf32> to vector<128x192xf32>
    %18 = arith.addf %14, %17 : vector<128x192xf32>
    %cst_12 = arith.constant 0.000000e+00 : f32
    %19 = vector.broadcast %cst_12 : f32 to vector<128x192xf32>
    %20 = arith.cmpf oge, %18, %19 : vector<128x192xf32>
    %cst_13 = arith.constant 1.000000e-01 : f32
    %21 = vector.broadcast %cst_13 : f32 to vector<128x192xf32>
    %22 = arith.mulf %21, %18 : vector<128x192xf32>
    %23 = arith.select %20, %18, %22 : vector<128x192xi1>, vector<128x192xf32>
    %24 = arith.extf %0 : vector<128x192xbf16> to vector<128x192xf32>
    %25 = arith.addf %23, %24 : vector<128x192xf32>
    %26 = arith.truncf %25 : vector<128x192xf32> to vector<128x192xbf16>
    %c0_14 = arith.constant 0 : index
    %c0_15 = arith.constant 0 : index
    %27 = vector.load %arg6[%c0_14, %c0_15] : memref<192x128xbf16, #tpu.memory_space<vmem>>, vector<192x128xbf16>
    %cst_16 = arith.constant dense<0.000000e+00> : vector<128x128xf32>
    %28 = tpu.matmul %26, %27, %cst_16 {dimension_numbers = #tpu.dot_dimension_numbers<[1], [0], [0], [1], [0, 0, 1, 1], [], []>} : vector<128x192xbf16>, vector<192x128xbf16>, vector<128x128xf32> -> vector<128x128xf32>
    %c0_17 = arith.constant 0 : index
    %c0_18 = arith.constant 0 : index
    %29 = vector.load %arg7[%c0_17, %c0_18] : memref<1x128xbf16, #tpu.memory_space<vmem>>, vector<1x128xbf16>
    %30 = arith.extf %29 : vector<1x128xbf16> to vector<1x128xf32>
    %31 = vector.broadcast %30 : vector<1x128xf32> to vector<128x128xf32>
    %32 = arith.addf %28, %31 : vector<128x128xf32>
    %c0_19 = arith.constant 0 : index
    %c0_20 = arith.constant 0 : index
    %33 = vector.load %arg8[%c0_19, %c0_20] : memref<128x128xf32, #tpu.memory_space<vmem>>, vector<128x128xf32>
    tpu.vector_store %arg8[%c0_19, %c0_20], %32 {strides = array<i32>} : memref<128x128xf32, #tpu.memory_space<vmem>>, vector<128x128xf32>,
    return
  }
  func.func @transform_0(%arg0: i32) -> (i32, i32) {
    %c0_i32 = arith.constant 0 : i32
    %c0_i32_0 = arith.constant 0 : i32
    return %arg0, %c0_i32 : i32, i32
  }
  func.func @transform_1(%arg0: i32) -> (i32, i32) {
    %c0_i32 = arith.constant 0 : i32
    %c0_i32_0 = arith.constant 0 : i32
    %c0_i32_1 = arith.constant 0 : i32
    return %c0_i32, %c0_i32_0 : i32, i32
  }
  func.func @transform_2(%arg0: i32) -> (i32, i32) {
    %c0_i32 = arith.constant 0 : i32
    %c0_i32_0 = arith.constant 0 : i32
    %c0_i32_1 = arith.constant 0 : i32
    return %c0_i32, %c0_i32_0 : i32, i32
  }
  func.func @transform_3(%arg0: i32) -> (i32, i32) {
    %c0_i32 = arith.constant 0 : i32
    %c0_i32_0 = arith.constant 0 : i32
    %c0_i32_1 = arith.constant 0 : i32
    return %c0_i32, %c0_i32_0 : i32, i32
  }
  func.func @transform_4(%arg0: i32) -> (i32, i32) {
    %c0_i32 = arith.constant 0 : i32
    %c0_i32_0 = arith.constant 0 : i32
    %c0_i32_1 = arith.constant 0 : i32
    return %c0_i32, %c0_i32_0 : i32, i32
  }
  func.func @transform_5(%arg0: i32) -> (i32, i32) {
    %c0_i32 = arith.constant 0 : i32
    %c0_i32_0 = arith.constant 0 : i32
    %c0_i32_1 = arith.constant 0 : i32
    return %c0_i32, %c0_i32_0 : i32, i32
  }
  func.func @transform_6(%arg0: i32) -> (i32, i32) {
    %c0_i32 = arith.constant 0 : i32
    %c0_i32_0 = arith.constant 0 : i32
    %c0_i32_1 = arith.constant 0 : i32
    return %c0_i32, %c0_i32_0 : i32, i32
  }
  func.func @transform_7(%arg0: i32) -> (i32, i32) {
    %c0_i32 = arith.constant 0 : i32
    %c0_i32_0 = arith.constant 0 : i32
    return %arg0, %c0_i32 : i32, i32
  }
}

module attributes {stable_mosaic.version = 11 : i64} {
  func.func @_depthconv_kernel(%arg0: i32, %arg1: i32, %arg2: memref<64x192xbf16, #tpu.memory_space<vmem>>, %arg3: memref<8x192xbf16, #tpu.memory_space<vmem>>, %arg4: memref<8x192xbf16, #tpu.memory_space<vmem>>, %arg5: memref<192x192xbf16, #tpu.memory_space<vmem>>, %arg6: memref<1x192xbf16, #tpu.memory_space<vmem>>, %arg7: memref<3x3x192xbf16, #tpu.memory_space<vmem>>, %arg8: memref<1x192xbf16, #tpu.memory_space<vmem>>, %arg9: memref<192x192xbf16, #tpu.memory_space<vmem>>, %arg10: memref<1x192xbf16, #tpu.memory_space<vmem>>, %arg11: memref<64x192xbf16, #tpu.memory_space<vmem>>) attributes {dimension_semantics = [#tpu.dimension_semantics<parallel>, #tpu.dimension_semantics<parallel>], iteration_bounds = array<i64: 2, 1>, scalar_prefetch = 0 : i64, scratch_operands = 0 : i64, tpu.core_type = #tpu.core_type<tc>, window_params = [{transform_indices = @transform_0, window_bounds = array<i64: 64, 192>}, {transform_indices = @transform_1, window_bounds = array<i64: 8, 192>}, {transform_indices = @transform_2, window_bounds = array<i64: 8, 192>}, {pipeline_mode = #tpu.pipeline_mode<synchronous>, transform_indices = @transform_3, window_bounds = array<i64: 192, 192>}, {pipeline_mode = #tpu.pipeline_mode<synchronous>, transform_indices = @transform_4, window_bounds = array<i64: 1, 192>}, {pipeline_mode = #tpu.pipeline_mode<synchronous>, transform_indices = @transform_5, window_bounds = array<i64: 3, 3, 192>}, {pipeline_mode = #tpu.pipeline_mode<synchronous>, transform_indices = @transform_6, window_bounds = array<i64: 1, 192>}, {pipeline_mode = #tpu.pipeline_mode<synchronous>, transform_indices = @transform_7, window_bounds = array<i64: 192, 192>}, {pipeline_mode = #tpu.pipeline_mode<synchronous>, transform_indices = @transform_8, window_bounds = array<i64: 1, 192>}, {transform_indices = @transform_9, window_bounds = array<i64: 64, 192>}]} {
    %c8_i32 = arith.constant 8 : i32
    %0 = arith.muli %arg1, %c8_i32 : i32
    %c0 = arith.constant 0 : index
    %c0_0 = arith.constant 0 : index
    %1 = vector.load %arg2[%c0, %c0_0] : memref<64x192xbf16, #tpu.memory_space<vmem>>, vector<64x192xbf16>
    %c0_1 = arith.constant 0 : index
    %c0_2 = arith.constant 0 : index
    %2 = vector.load %arg5[%c0_1, %c0_2] : memref<192x192xbf16, #tpu.memory_space<vmem>>, vector<192x192xbf16>
    %c0_3 = arith.constant 0 : index
    %c0_4 = arith.constant 0 : index
    %3 = vector.load %arg6[%c0_3, %c0_4] : memref<1x192xbf16, #tpu.memory_space<vmem>>, vector<1x192xbf16>
    %4 = arith.extf %3 : vector<1x192xbf16> to vector<1x192xf32>
    %cst = arith.constant dense<0.000000e+00> : vector<64x192xf32>
    %5 = tpu.matmul %1, %2, %cst {dimension_numbers = #tpu.dot_dimension_numbers<[1], [0], [0], [1], [0, 0, 1, 1], [], []>} : vector<64x192xbf16>, vector<192x192xbf16>, vector<64x192xf32> -> vector<64x192xf32>
    %6 = vector.broadcast %4 : vector<1x192xf32> to vector<64x192xf32>
    %7 = arith.addf %5, %6 : vector<64x192xf32>
    %cst_5 = arith.constant 0.000000e+00 : f32
    %8 = vector.broadcast %cst_5 : f32 to vector<64x192xf32>
    %9 = arith.cmpf oge, %7, %8 : vector<64x192xf32>
    %cst_6 = arith.constant 0.00999999977 : f32
    %10 = vector.broadcast %cst_6 : f32 to vector<64x192xf32>
    %11 = arith.mulf %10, %7 : vector<64x192xf32>
    %12 = arith.select %9, %7, %11 : vector<64x192xi1>, vector<64x192xf32>
    %c0_i32 = arith.constant 0 : i32
    %13 = arith.cmpi sgt, %0, %c0_i32 : i32
    %c0_7 = arith.constant 0 : index
    %c0_8 = arith.constant 0 : index
    %14 = vector.load %arg3[%c0_7, %c0_8] : memref<8x192xbf16, #tpu.memory_space<vmem>>, vector<8x192xbf16>
    %cst_9 = arith.constant dense<0.000000e+00> : vector<8x192xf32>
    %15 = tpu.matmul %14, %2, %cst_9 {dimension_numbers = #tpu.dot_dimension_numbers<[1], [0], [0], [1], [0, 0, 1, 1], [], []>} : vector<8x192xbf16>, vector<192x192xbf16>, vector<8x192xf32> -> vector<8x192xf32>
    %16 = vector.broadcast %4 : vector<1x192xf32> to vector<8x192xf32>
    %17 = arith.addf %15, %16 : vector<8x192xf32>
    %cst_10 = arith.constant 0.000000e+00 : f32
    %18 = vector.broadcast %cst_10 : f32 to vector<8x192xf32>
    %19 = arith.cmpf oge, %17, %18 : vector<8x192xf32>
    %cst_11 = arith.constant 0.00999999977 : f32
    %20 = vector.broadcast %cst_11 : f32 to vector<8x192xf32>
    %21 = arith.mulf %20, %17 : vector<8x192xf32>
    %22 = arith.select %19, %17, %21 : vector<8x192xi1>, vector<8x192xf32>
    %cst_12 = arith.constant 0.000000e+00 : f32
    %23 = vector.broadcast %cst_12 : f32 to vector<8x192xf32>
    %24 = arith.select %13, %22, %23 : vector<8x192xf32>
    %c8_i32_13 = arith.constant 8 : i32
    %25 = arith.addi %0, %c8_i32_13 : i32
    %c8_i32_14 = arith.constant 8 : i32
    %26 = arith.cmpi slt, %25, %c8_i32_14 : i32
    %c0_15 = arith.constant 0 : index
    %c0_16 = arith.constant 0 : index
    %27 = vector.load %arg4[%c0_15, %c0_16] : memref<8x192xbf16, #tpu.memory_space<vmem>>, vector<8x192xbf16>
    %cst_17 = arith.constant dense<0.000000e+00> : vector<8x192xf32>
    %28 = tpu.matmul %27, %2, %cst_17 {dimension_numbers = #tpu.dot_dimension_numbers<[1], [0], [0], [1], [0, 0, 1, 1], [], []>} : vector<8x192xbf16>, vector<192x192xbf16>, vector<8x192xf32> -> vector<8x192xf32>
    %29 = vector.broadcast %4 : vector<1x192xf32> to vector<8x192xf32>
    %30 = arith.addf %28, %29 : vector<8x192xf32>
    %cst_18 = arith.constant 0.000000e+00 : f32
    %31 = vector.broadcast %cst_18 : f32 to vector<8x192xf32>
    %32 = arith.cmpf oge, %30, %31 : vector<8x192xf32>
    %cst_19 = arith.constant 0.00999999977 : f32
    %33 = vector.broadcast %cst_19 : f32 to vector<8x192xf32>
    %34 = arith.mulf %33, %30 : vector<8x192xf32>
    %35 = arith.select %32, %30, %34 : vector<8x192xi1>, vector<8x192xf32>
    %cst_20 = arith.constant 0.000000e+00 : f32
    %36 = vector.broadcast %cst_20 : f32 to vector<8x192xf32>
    %37 = arith.select %26, %35, %36 : vector<8x192xf32>
    %38 = tpu.concatenate %24, %12, %37 in 0 : vector<8x192xf32>, vector<64x192xf32>, vector<8x192xf32> -> vector<80x192xf32>
    %39 = tpu.iota {dimensions = array<i32: 0>} : vector<80x192xi32>
    %c8_i32_21 = arith.constant 8 : i32
    %c0_i32_22 = arith.constant 0 : i32
    %40 = arith.cmpi eq, %c8_i32_21, %c0_i32_22 : i32
    %c1_i32 = arith.constant 1 : i32
    %41 = arith.select %40, %c1_i32, %c8_i32_21 : i32
    %42 = vector.broadcast %41 : i32 to vector<80x192xi32>
    %43 = arith.remsi %39, %42 : vector<80x192xi32>
    %c0_i32_23 = arith.constant 0 : i32
    %44 = vector.broadcast %c0_i32_23 : i32 to vector<80x192xi32>
    %45 = arith.cmpi ne, %43, %44 : vector<80x192xi32>
    %c0_i32_24 = arith.constant 0 : i32
    %46 = vector.broadcast %c0_i32_24 : i32 to vector<80x192xi32>
    %47 = arith.cmpi slt, %43, %46 : vector<80x192xi32>
    %c0_i32_25 = arith.constant 0 : i32
    %48 = arith.cmpi slt, %41, %c0_i32_25 : i32
    %49 = vector.broadcast %48 : i1 to vector<80x192xi1>
    %50 = vector.broadcast %49 : vector<80x192xi1> to vector<80x192xi1>
    %51 = arith.xori %47, %50 : vector<80x192xi1>
    %52 = arith.andi %51, %45 : vector<80x192xi1>
    %53 = vector.broadcast %41 : i32 to vector<80x192xi32>
    %54 = arith.addi %43, %53 : vector<80x192xi32>
    %55 = arith.select %52, %54, %43 : vector<80x192xi1>, vector<80x192xi32>
    %c0_i32_26 = arith.constant 0 : i32
    %56 = vector.broadcast %c0_i32_26 : i32 to vector<80x192xi32>
    %57 = arith.cmpi sgt, %55, %56 : vector<80x192xi32>
    %c1_i32_27 = arith.constant 1 : i32
    %58 = tpu.dynamic_rotate %38 by %c1_i32_27 dim 0 : vector<80x192xf32>, i32 -> vector<80x192xf32>
    %cst_28 = arith.constant 0.000000e+00 : f32
    %59 = vector.broadcast %cst_28 : f32 to vector<80x192xf32>
    %60 = arith.select %57, %58, %59 : vector<80x192xi1>, vector<80x192xf32>
    %c7_i32 = arith.constant 7 : i32
    %61 = vector.broadcast %c7_i32 : i32 to vector<80x192xi32>
    %62 = arith.cmpi slt, %55, %61 : vector<80x192xi32>
    %c79_i32 = arith.constant 79 : i32
    %63 = tpu.dynamic_rotate %38 by %c79_i32 dim 0 : vector<80x192xf32>, i32 -> vector<80x192xf32>
    %cst_29 = arith.constant 0.000000e+00 : f32
    %64 = vector.broadcast %cst_29 : f32 to vector<80x192xf32>
    %65 = arith.select %62, %63, %64 : vector<80x192xi1>, vector<80x192xf32>
    %c0_30 = arith.constant 0 : index
    %c0_31 = arith.constant 0 : index
    %c0_32 = arith.constant 0 : index
    %66 = vector.load %arg7[%c0_30, %c0_31, %c0_32] : memref<3x3x192xbf16, #tpu.memory_space<vmem>>, vector<3x3x192xbf16>
    %67 = arith.extf %66 : vector<3x3x192xbf16> to vector<3x3x192xf32>
    %cst_33 = arith.constant 0.000000e+00 : f32
    %68 = vector.broadcast %cst_33 : f32 to vector<64x192xf32>
    %69 = vector.extract_strided_slice %60 {offsets = [0, 0], sizes = [64, 192], strides = [1, 1]} : vector<80x192xf32> to vector<64x192xf32>
    %70 = vector.extract_strided_slice %67 {offsets = [0, 0, 0], sizes = [1, 1, 192], strides = [1, 1, 1]} : vector<3x3x192xf32> to vector<1x1x192xf32>
    %71 = vector.shape_cast %70 : vector<1x1x192xf32> to vector<192xf32>
    %72 = vector.shape_cast %71 : vector<192xf32> to vector<1x192xf32>
    %73 = vector.broadcast %72 : vector<1x192xf32> to vector<64x192xf32>
    %74 = arith.mulf %69, %73 : vector<64x192xf32>
    %75 = arith.addf %68, %74 : vector<64x192xf32>
    %76 = vector.extract_strided_slice %60 {offsets = [8, 0], sizes = [64, 192], strides = [1, 1]} : vector<80x192xf32> to vector<64x192xf32>
    %77 = vector.extract_strided_slice %67 {offsets = [1, 0, 0], sizes = [1, 1, 192], strides = [1, 1, 1]} : vector<3x3x192xf32> to vector<1x1x192xf32>
    %78 = vector.shape_cast %77 : vector<1x1x192xf32> to vector<192xf32>
    %79 = vector.shape_cast %78 : vector<192xf32> to vector<1x192xf32>
    %80 = vector.broadcast %79 : vector<1x192xf32> to vector<64x192xf32>
    %81 = arith.mulf %76, %80 : vector<64x192xf32>
    %82 = arith.addf %75, %81 : vector<64x192xf32>
    %83 = vector.extract_strided_slice %60 {offsets = [16, 0], sizes = [64, 192], strides = [1, 1]} : vector<80x192xf32> to vector<64x192xf32>
    %84 = vector.extract_strided_slice %67 {offsets = [2, 0, 0], sizes = [1, 1, 192], strides = [1, 1, 1]} : vector<3x3x192xf32> to vector<1x1x192xf32>
    %85 = vector.shape_cast %84 : vector<1x1x192xf32> to vector<192xf32>
    %86 = vector.shape_cast %85 : vector<192xf32> to vector<1x192xf32>
    %87 = vector.broadcast %86 : vector<1x192xf32> to vector<64x192xf32>
    %88 = arith.mulf %83, %87 : vector<64x192xf32>
    %89 = arith.addf %82, %88 : vector<64x192xf32>
    %90 = vector.extract_strided_slice %38 {offsets = [0, 0], sizes = [64, 192], strides = [1, 1]} : vector<80x192xf32> to vector<64x192xf32>
    %91 = vector.extract_strided_slice %67 {offsets = [0, 1, 0], sizes = [1, 1, 192], strides = [1, 1, 1]} : vector<3x3x192xf32> to vector<1x1x192xf32>
    %92 = vector.shape_cast %91 : vector<1x1x192xf32> to vector<192xf32>
    %93 = vector.shape_cast %92 : vector<192xf32> to vector<1x192xf32>
    %94 = vector.broadcast %93 : vector<1x192xf32> to vector<64x192xf32>
    %95 = arith.mulf %90, %94 : vector<64x192xf32>
    %96 = arith.addf %89, %95 : vector<64x192xf32>
    %97 = vector.extract_strided_slice %38 {offsets = [8, 0], sizes = [64, 192], strides = [1, 1]} : vector<80x192xf32> to vector<64x192xf32>
    %98 = vector.extract_strided_slice %67 {offsets = [1, 1, 0], sizes = [1, 1, 192], strides = [1, 1, 1]} : vector<3x3x192xf32> to vector<1x1x192xf32>
    %99 = vector.shape_cast %98 : vector<1x1x192xf32> to vector<192xf32>
    %100 = vector.shape_cast %99 : vector<192xf32> to vector<1x192xf32>
    %101 = vector.broadcast %100 : vector<1x192xf32> to vector<64x192xf32>
    %102 = arith.mulf %97, %101 : vector<64x192xf32>
    %103 = arith.addf %96, %102 : vector<64x192xf32>
    %104 = vector.extract_strided_slice %38 {offsets = [16, 0], sizes = [64, 192], strides = [1, 1]} : vector<80x192xf32> to vector<64x192xf32>
    %105 = vector.extract_strided_slice %67 {offsets = [2, 1, 0], sizes = [1, 1, 192], strides = [1, 1, 1]} : vector<3x3x192xf32> to vector<1x1x192xf32>
    %106 = vector.shape_cast %105 : vector<1x1x192xf32> to vector<192xf32>
    %107 = vector.shape_cast %106 : vector<192xf32> to vector<1x192xf32>
    %108 = vector.broadcast %107 : vector<1x192xf32> to vector<64x192xf32>
    %109 = arith.mulf %104, %108 : vector<64x192xf32>
    %110 = arith.addf %103, %109 : vector<64x192xf32>
    %111 = vector.extract_strided_slice %65 {offsets = [0, 0], sizes = [64, 192], strides = [1, 1]} : vector<80x192xf32> to vector<64x192xf32>
    %112 = vector.extract_strided_slice %67 {offsets = [0, 2, 0], sizes = [1, 1, 192], strides = [1, 1, 1]} : vector<3x3x192xf32> to vector<1x1x192xf32>
    %113 = vector.shape_cast %112 : vector<1x1x192xf32> to vector<192xf32>
    %114 = vector.shape_cast %113 : vector<192xf32> to vector<1x192xf32>
    %115 = vector.broadcast %114 : vector<1x192xf32> to vector<64x192xf32>
    %116 = arith.mulf %111, %115 : vector<64x192xf32>
    %117 = arith.addf %110, %116 : vector<64x192xf32>
    %118 = vector.extract_strided_slice %65 {offsets = [8, 0], sizes = [64, 192], strides = [1, 1]} : vector<80x192xf32> to vector<64x192xf32>
    %119 = vector.extract_strided_slice %67 {offsets = [1, 2, 0], sizes = [1, 1, 192], strides = [1, 1, 1]} : vector<3x3x192xf32> to vector<1x1x192xf32>
    %120 = vector.shape_cast %119 : vector<1x1x192xf32> to vector<192xf32>
    %121 = vector.shape_cast %120 : vector<192xf32> to vector<1x192xf32>
    %122 = vector.broadcast %121 : vector<1x192xf32> to vector<64x192xf32>
    %123 = arith.mulf %118, %122 : vector<64x192xf32>
    %124 = arith.addf %117, %123 : vector<64x192xf32>
    %125 = vector.extract_strided_slice %65 {offsets = [16, 0], sizes = [64, 192], strides = [1, 1]} : vector<80x192xf32> to vector<64x192xf32>
    %126 = vector.extract_strided_slice %67 {offsets = [2, 2, 0], sizes = [1, 1, 192], strides = [1, 1, 1]} : vector<3x3x192xf32> to vector<1x1x192xf32>
    %127 = vector.shape_cast %126 : vector<1x1x192xf32> to vector<192xf32>
    %128 = vector.shape_cast %127 : vector<192xf32> to vector<1x192xf32>
    %129 = vector.broadcast %128 : vector<1x192xf32> to vector<64x192xf32>
    %130 = arith.mulf %125, %129 : vector<64x192xf32>
    %131 = arith.addf %124, %130 : vector<64x192xf32>
    %c0_34 = arith.constant 0 : index
    %c0_35 = arith.constant 0 : index
    %132 = vector.load %arg8[%c0_34, %c0_35] : memref<1x192xbf16, #tpu.memory_space<vmem>>, vector<1x192xbf16>
    %133 = arith.extf %132 : vector<1x192xbf16> to vector<1x192xf32>
    %134 = vector.broadcast %133 : vector<1x192xf32> to vector<64x192xf32>
    %135 = arith.addf %131, %134 : vector<64x192xf32>
    %cst_36 = arith.constant 0.000000e+00 : f32
    %136 = vector.broadcast %cst_36 : f32 to vector<64x192xf32>
    %137 = arith.cmpf oge, %135, %136 : vector<64x192xf32>
    %cst_37 = arith.constant 0.00999999977 : f32
    %138 = vector.broadcast %cst_37 : f32 to vector<64x192xf32>
    %139 = arith.mulf %138, %135 : vector<64x192xf32>
    %140 = arith.select %137, %135, %139 : vector<64x192xi1>, vector<64x192xf32>
    %141 = arith.truncf %140 : vector<64x192xf32> to vector<64x192xbf16>
    %c0_38 = arith.constant 0 : index
    %c0_39 = arith.constant 0 : index
    %142 = vector.load %arg9[%c0_38, %c0_39] : memref<192x192xbf16, #tpu.memory_space<vmem>>, vector<192x192xbf16>
    %cst_40 = arith.constant dense<0.000000e+00> : vector<64x192xf32>
    %143 = tpu.matmul %141, %142, %cst_40 {dimension_numbers = #tpu.dot_dimension_numbers<[1], [0], [0], [1], [0, 0, 1, 1], [], []>} : vector<64x192xbf16>, vector<192x192xbf16>, vector<64x192xf32> -> vector<64x192xf32>
    %c0_41 = arith.constant 0 : index
    %c0_42 = arith.constant 0 : index
    %144 = vector.load %arg10[%c0_41, %c0_42] : memref<1x192xbf16, #tpu.memory_space<vmem>>, vector<1x192xbf16>
    %145 = arith.extf %144 : vector<1x192xbf16> to vector<1x192xf32>
    %146 = vector.broadcast %145 : vector<1x192xf32> to vector<64x192xf32>
    %147 = arith.addf %143, %146 : vector<64x192xf32>
    %148 = arith.extf %1 : vector<64x192xbf16> to vector<64x192xf32>
    %149 = arith.addf %147, %148 : vector<64x192xf32>
    %150 = arith.truncf %149 : vector<64x192xf32> to vector<64x192xbf16>
    %c0_43 = arith.constant 0 : index
    %c0_44 = arith.constant 0 : index
    %151 = vector.load %arg11[%c0_43, %c0_44] : memref<64x192xbf16, #tpu.memory_space<vmem>>, vector<64x192xbf16>
    tpu.vector_store %arg11[%c0_43, %c0_44], %150 {strides = array<i32>} : memref<64x192xbf16, #tpu.memory_space<vmem>>, vector<64x192xbf16>,
    return
  }
  func.func @transform_0(%arg0: i32, %arg1: i32) -> (i32, i32) {
    %c1_i32 = arith.constant 1 : i32
    %0 = arith.muli %arg0, %c1_i32 : i32
    %1 = arith.addi %0, %arg1 : i32
    %c0_i32 = arith.constant 0 : i32
    %c0_i32_0 = arith.constant 0 : i32
    return %1, %c0_i32 : i32, i32
  }
  func.func @transform_1(%arg0: i32, %arg1: i32) -> (i32, i32) {
    %c8_i32 = arith.constant 8 : i32
    %0 = arith.muli %arg0, %c8_i32 : i32
    %c8_i32_0 = arith.constant 8 : i32
    %1 = arith.muli %arg1, %c8_i32_0 : i32
    %c1_i32 = arith.constant 1 : i32
    %2 = arith.subi %1, %c1_i32 : i32
    %c0_i32 = arith.constant 0 : i32
    %3 = arith.maxsi %2, %c0_i32 : i32
    %4 = arith.addi %0, %3 : i32
    %c0_i32_1 = arith.constant 0 : i32
    %c0_i32_2 = arith.constant 0 : i32
    return %4, %c0_i32_1 : i32, i32
  }
  func.func @transform_2(%arg0: i32, %arg1: i32) -> (i32, i32) {
    %c8_i32 = arith.constant 8 : i32
    %0 = arith.muli %arg0, %c8_i32 : i32
    %c1_i32 = arith.constant 1 : i32
    %1 = arith.addi %arg1, %c1_i32 : i32
    %c8_i32_0 = arith.constant 8 : i32
    %2 = arith.muli %1, %c8_i32_0 : i32
    %c7_i32 = arith.constant 7 : i32
    %3 = arith.minsi %2, %c7_i32 : i32
    %4 = arith.addi %0, %3 : i32
    %c0_i32 = arith.constant 0 : i32
    %c0_i32_1 = arith.constant 0 : i32
    return %4, %c0_i32 : i32, i32
  }
  func.func @transform_3(%arg0: i32, %arg1: i32) -> (i32, i32) {
    %c0_i32 = arith.constant 0 : i32
    %c0_i32_0 = arith.constant 0 : i32
    %c0_i32_1 = arith.constant 0 : i32
    return %c0_i32, %c0_i32_0 : i32, i32
  }
  func.func @transform_4(%arg0: i32, %arg1: i32) -> (i32, i32) {
    %c0_i32 = arith.constant 0 : i32
    %c0_i32_0 = arith.constant 0 : i32
    %c0_i32_1 = arith.constant 0 : i32
    return %c0_i32, %c0_i32_0 : i32, i32
  }
  func.func @transform_5(%arg0: i32, %arg1: i32) -> (i32, i32, i32) {
    %c0_i32 = arith.constant 0 : i32
    %c0_i32_0 = arith.constant 0 : i32
    %c0_i32_1 = arith.constant 0 : i32
    %c0_i32_2 = arith.constant 0 : i32
    return %c0_i32, %c0_i32_0, %c0_i32_1 : i32, i32, i32
  }
  func.func @transform_6(%arg0: i32, %arg1: i32) -> (i32, i32) {
    %c0_i32 = arith.constant 0 : i32
    %c0_i32_0 = arith.constant 0 : i32
    %c0_i32_1 = arith.constant 0 : i32
    return %c0_i32, %c0_i32_0 : i32, i32
  }
  func.func @transform_7(%arg0: i32, %arg1: i32) -> (i32, i32) {
    %c0_i32 = arith.constant 0 : i32
    %c0_i32_0 = arith.constant 0 : i32
    %c0_i32_1 = arith.constant 0 : i32
    return %c0_i32, %c0_i32_0 : i32, i32
  }
  func.func @transform_8(%arg0: i32, %arg1: i32) -> (i32, i32) {
    %c0_i32 = arith.constant 0 : i32
    %c0_i32_0 = arith.constant 0 : i32
    %c0_i32_1 = arith.constant 0 : i32
    return %c0_i32, %c0_i32_0 : i32, i32
  }
  func.func @transform_9(%arg0: i32, %arg1: i32) -> (i32, i32) {
    %c1_i32 = arith.constant 1 : i32
    %0 = arith.muli %arg0, %c1_i32 : i32
    %1 = arith.addi %0, %arg1 : i32
    %c0_i32 = arith.constant 0 : i32
    %c0_i32_0 = arith.constant 0 : i32
    return %1, %c0_i32 : i32, i32
  }
}

</mosaic_0001>

<llo_original>
// kernel: spatial_prior.4
$region0: #{spatial_prior.4}
  #allocation0 [shape = 'u32[]', space=smem, size = 0x4, offset = 0x4, fixed_abs, tag = 'smem constant byte address 0x4 - core index']
  #allocation1 [shape = 'u32[144,128]{1,0:T(1,128)}', space=vmem, size = 0x12000, scoped, tag = 'internal scratch']
  %s0 = inlined_call_operand.vmem [shape: bf16[128,256], index: 0, kind: input, shape index: {}, may-alias: {0,1,2}]
  %s1 = inlined_call_operand.vmem [shape: bf16[128,256], index: 1, kind: input, shape index: {}, may-alias: {0,1,2}]
  %s2 = inlined_call_operand.vmem [shape: bf16[128,256], index: 2, kind: input, shape index: {}, may-alias: {0,1,2}]
  %s3 = inlined_call_operand.vmem [shape: bf16[256,256], index: 3, kind: input, shape index: {}]
  %s4 = inlined_call_operand.vmem [shape: bf16[1,256], index: 4, kind: input, shape index: {}]
  %s5 = inlined_call_operand.vmem [shape: bf16[3,3,256], index: 5, kind: input, shape index: {}]
  %s6 = inlined_call_operand.vmem [shape: bf16[1,256], index: 6, kind: input, shape index: {}]
  %s7 = inlined_call_operand.vmem [shape: bf16[256,192], index: 7, kind: input, shape index: {}]
  %s8 = inlined_call_operand.vmem [shape: bf16[1,192], index: 8, kind: input, shape index: {}]
  %s9 = inlined_call_operand.vmem [shape: bf16[256,192], index: 9, kind: input, shape index: {}]
  %s10 = inlined_call_operand.vmem [shape: bf16[1,192], index: 10, kind: input, shape index: {}]
  %s11 = inlined_call_operand.vmem [shape: bf16[128,192], index: 11, kind: output, shape index: {}]
  %s12 = sld [smem:[#allocation0]]
  $region77: #{spatial_prior.4} parent=0
    _
  %s14 = ssub.s32 1, %s12
  %s15 = scalar_select 0, %s14, %s12
  loop: start=0, step=1, limit=4
  $region2: #{spatial_prior.4} parent=0 // loop_pre_header
    _
  $region3: #{spatial_prior.4} parent=0 // loop_header
    %s17 = sphi 0, %s21
    %p18 = scmp.ge.s32.totalorder %s17, 4
    %s24 = sphi 0, %s36
    %s25 = sphi 0, %s32
    %s26 = sphi 0, %s24
    %s27 = sphi 0, %s25
    %s28 = sphi 0, %s26
    %s29 = sphi 0, %s27
    %s41 = sphi 0, %s43
    %s44 = sphi 0, %s41
    %s45 = sphi 0, %s44
    %s61 = sphi 0, %s45
    %s79 = sphi 0, %s81
    %s82 = sphi 0, %s79
    %s83 = sphi 0, %s82
    %s99 = sphi 0, %s83
    %s117 = sphi 0, %s119
    %s120 = sphi 0, %s117
    %s121 = sphi 0, %s120
    %s137 = sphi 0, %s121
    %s141 = sphi 0, %s141
    %s143 = sphi 0, %s141
    %s144 = sphi 0, %s143
    %s158 = sphi 0, %s144
    %s162 = sphi 0, %s162
    %s164 = sphi 0, %s162
    %s165 = sphi 0, %s164
    %s179 = sphi 0, %s165
    %s183 = sphi 0, %s183
    %s185 = sphi 0, %s183
    %s186 = sphi 0, %s185
    %s200 = sphi 0, %s186
    %s204 = sphi 0, %s204
    %s206 = sphi 0, %s204
    %s207 = sphi 0, %s206
    %s221 = sphi 0, %s207
    %s225 = sphi 0, %s225
    %s227 = sphi 0, %s225
    %s228 = sphi 0, %s227
    %s242 = sphi 0, %s228
    %s246 = sphi 0, %s246
    %s248 = sphi 0, %s246
    %s249 = sphi 0, %s248
    %s263 = sphi 0, %s249
    %s267 = sphi 0, %s267
    %s269 = sphi 0, %s267
    %s270 = sphi 0, %s269
    %s284 = sphi 0, %s270
    %s288 = sphi 0, %s288
    %s290 = sphi 0, %s288
    %s291 = sphi 0, %s290
    %s305 = sphi 0, %s291
    %s313 = sphi 0, %s315
    %s316 = sphi 0, %s313
    %s317 = sphi 0, %s316
    %s333 = sphi 0, %s317
  $region4: #{spatial_prior.4} parent=0 // loop_header_branch
    %20 = sbr.rel (%p18) target = $region8
  $region5: #{spatial_prior.4} parent=0 // loop_body
    %s22 = ssub.s32 %s17, 1
    %s23 = ssub.s32 %s17, 2
    %s30 = sadd.s32 1, %s25
    %p31 = scmp.ge.s32.totalorder %s30, 1
    %s32 = scalar_select %p31, 0, %s30
    %s33 = sadd.s32 1, %s24
    %s34 = scalar_select %p31, %s33, %s24
    %p35 = scmp.ge.s32.totalorder %s34, 2
    %s36 = scalar_select %p35, 0, %s34
    %s37 = sadd.s32 %s24, %s25
    %s38 = sadd.s32 %s36, %s32
    %s39 = ssub.s32 %s37, %s38
    %p40 = scmp.eq.s32.totalorder %s39, 0
    %s42 = sadd.s32 %s41, 1
    %s43 = scalar_select %p40, %s41, %s42
    %p46 = pneg %p40
    %p47 = scmp.eq.s32.totalorder %s17, 1
    %p48 = por %p46, %p47
    %p49 = scmp.ne.s32.totalorder %s41, %s44
    %p50 = scmp.eq.s32.totalorder %s17, 0
    %p51 = por %p49, %p50
    %p52 = scmp.ne.s32.totalorder %s41, %s44
    %p53 = scmp.eq.s32.totalorder %s22, 1
    %p54 = por %p52, %p53
    %p55 = scmp.ne.s32.totalorder %s44, %s45
    %p56 = scmp.eq.s32.totalorder %s22, 0
    %p57 = por %p55, %p56
    %p58 = scmp.ne.s32.totalorder %s44, %s45
    %p59 = scmp.eq.s32.totalorder %s23, 1
    %p60 = por %p58, %p59
    %p62 = scmp.ne.s32.totalorder %s45, %s61
    %p63 = scmp.eq.s32.totalorder %s23, 0
    %p64 = por %p62, %p63
    %s65 = smul.u32 %s24, 8
    %s66 = smul.u32 %s25, 8
    %s67 = ssub.s32 %s66, 1
    %p68 = scmp.gt.s32.totalorder %s67, 0
    %s69 = scalar_select %p68, %s67, 0
    %s70 = sadd.s32 %s65, %s69
    %s71 = smul.u32 %s36, 8
    %s72 = smul.u32 %s32, 8
    %s73 = ssub.s32 %s72, 1
    %p74 = scmp.gt.s32.totalorder %s73, 0
    %s75 = scalar_select %p74, %s73, 0
    %s76 = sadd.s32 %s71, %s75
    %s77 = ssub.s32 %s70, %s76
    %p78 = scmp.eq.s32.totalorder %s77, 0
    %s80 = sadd.s32 %s79, 1
    %s81 = scalar_select %p78, %s79, %s80
    %p84 = pneg %p78
    %p85 = scmp.eq.s32.totalorder %s17, 1
    %p86 = por %p84, %p85
    %p87 = scmp.ne.s32.totalorder %s79, %s82
    %p88 = scmp.eq.s32.totalorder %s17, 0
    %p89 = por %p87, %p88
    %p90 = scmp.ne.s32.totalorder %s79, %s82
    %p91 = scmp.eq.s32.totalorder %s22, 1
    %p92 = por %p90, %p91
    %p93 = scmp.ne.s32.totalorder %s82, %s83
    %p94 = scmp.eq.s32.totalorder %s22, 0
    %p95 = por %p93, %p94
    %p96 = scmp.ne.s32.totalorder %s82, %s83
    %p97 = scmp.eq.s32.totalorder %s23, 1
    %p98 = por %p96, %p97
    %p100 = scmp.ne.s32.totalorder %s83, %s99
    %p101 = scmp.eq.s32.totalorder %s23, 0
    %p102 = por %p100, %p101
    %s103 = smul.u32 %s24, 8
    %s104 = sadd.s32 %s25, 1
    %s105 = smul.u32 %s104, 8
    %p106 = scmp.lt.s32.totalorder %s105, 7
    %s107 = scalar_select %p106, %s105, 7
    %s108 = sadd.s32 %s103, %s107
    %s109 = smul.u32 %s36, 8
    %s110 = sadd.s32 %s32, 1
    %s111 = smul.u32 %s110, 8
    %p112 = scmp.lt.s32.totalorder %s111, 7
    %s113 = scalar_select %p112, %s111, 7
    %s114 = sadd.s32 %s109, %s113
    %s115 = ssub.s32 %s108, %s114
    %p116 = scmp.eq.s32.totalorder %s115, 0
    %s118 = sadd.s32 %s117, 1
    %s119 = scalar_select %p116, %s117, %s118
    %p122 = pneg %p116
    %p123 = scmp.eq.s32.totalorder %s17, 1
    %p124 = por %p122, %p123
    %p125 = scmp.ne.s32.totalorder %s117, %s120
    %p126 = scmp.eq.s32.totalorder %s17, 0
    %p127 = por %p125, %p126
    %p128 = scmp.ne.s32.totalorder %s117, %s120
    %p129 = scmp.eq.s32.totalorder %s22, 1
    %p130 = por %p128, %p129
    %p131 = scmp.ne.s32.totalorder %s120, %s121
    %p132 = scmp.eq.s32.totalorder %s22, 0
    %p133 = por %p131, %p132
    %p134 = scmp.ne.s32.totalorder %s120, %s121
    %p135 = scmp.eq.s32.totalorder %s23, 1
    %p136 = por %p134, %p135
    %p138 = scmp.ne.s32.totalorder %s121, %s137
    %p139 = scmp.eq.s32.totalorder %s23, 0
    %p140 = por %p138, %p139
    %s142 = sadd.s32 %s141, 1
    %p145 = scmp.eq.s32.totalorder %s17, 1
    %p146 = scmp.ne.s32.totalorder %s141, %s143
    %p147 = scmp.eq.s32.totalorder %s17, 0
    %p148 = por %p146, %p147
    %p149 = scmp.ne.s32.totalorder %s141, %s143
    %p150 = scmp.eq.s32.totalorder %s22, 1
    %p151 = por %p149, %p150
    %p152 = scmp.ne.s32.totalorder %s143, %s144
    %p153 = scmp.eq.s32.totalorder %s22, 0
    %p154 = por %p152, %p153
    %p155 = scmp.ne.s32.totalorder %s143, %s144
    %p156 = scmp.eq.s32.totalorder %s23, 1
    %p157 = por %p155, %p156
    %p159 = scmp.ne.s32.totalorder %s144, %s158
    %p160 = scmp.eq.s32.totalorder %s23, 0
    %p161 = por %p159, %p160
    %s163 = sadd.s32 %s162, 1
    %p166 = scmp.eq.s32.totalorder %s17, 1
    %p167 = scmp.ne.s32.totalorder %s162, %s164
    %p168 = scmp.eq.s32.totalorder %s17, 0
    %p169 = por %p167, %p168
    %p170 = scmp.ne.s32.totalorder %s162, %s164
    %p171 = scmp.eq.s32.totalorder %s22, 1
    %p172 = por %p170, %p171
    %p173 = scmp.ne.s32.totalorder %s164, %s165
    %p174 = scmp.eq.s32.totalorder %s22, 0
    %p175 = por %p173, %p174
    %p176 = scmp.ne.s32.totalorder %s164, %s165
    %p177 = scmp.eq.s32.totalorder %s23, 1
    %p178 = por %p176, %p177
    %p180 = scmp.ne.s32.totalorder %s165, %s179
    %p181 = scmp.eq.s32.totalorder %s23, 0
    %p182 = por %p180, %p181
    %s184 = sadd.s32 %s183, 1
    %p187 = scmp.eq.s32.totalorder %s17, 1
    %p188 = scmp.ne.s32.totalorder %s183, %s185
    %p189 = scmp.eq.s32.totalorder %s17, 0
    %p190 = por %p188, %p189
    %p191 = scmp.ne.s32.totalorder %s183, %s185
    %p192 = scmp.eq.s32.totalorder %s22, 1
    %p193 = por %p191, %p192
    %p194 = scmp.ne.s32.totalorder %s185, %s186
    %p195 = scmp.eq.s32.totalorder %s22, 0
    %p196 = por %p194, %p195
    %p197 = scmp.ne.s32.totalorder %s185, %s186
    %p198 = scmp.eq.s32.totalorder %s23, 1
    %p199 = por %p197, %p198
    %p201 = scmp.ne.s32.totalorder %s186, %s200
    %p202 = scmp.eq.s32.totalorder %s23, 0
    %p203 = por %p201, %p202
    %s205 = sadd.s32 %s204, 1
    %p208 = scmp.eq.s32.totalorder %s17, 1
    %p209 = scmp.ne.s32.totalorder %s204, %s206
    %p210 = scmp.eq.s32.totalorder %s17, 0
    %p211 = por %p209, %p210
    %p212 = scmp.ne.s32.totalorder %s204, %s206
    %p213 = scmp.eq.s32.totalorder %s22, 1
    %p214 = por %p212, %p213
    %p215 = scmp.ne.s32.totalorder %s206, %s207
    %p216 = scmp.eq.s32.totalorder %s22, 0
    %p217 = por %p215, %p216
    %p218 = scmp.ne.s32.totalorder %s206, %s207
    %p219 = scmp.eq.s32.totalorder %s23, 1
    %p220 = por %p218, %p219
    %p222 = scmp.ne.s32.totalorder %s207, %s221
    %p223 = scmp.eq.s32.totalorder %s23, 0
    %p224 = por %p222, %p223
    %s226 = sadd.s32 %s225, 1
    %p229 = scmp.eq.s32.totalorder %s17, 1
    %p230 = scmp.ne.s32.totalorder %s225, %s227
    %p231 = scmp.eq.s32.totalorder %s17, 0
    %p232 = por %p230, %p231
    %p233 = scmp.ne.s32.totalorder %s225, %s227
    %p234 = scmp.eq.s32.totalorder %s22, 1
    %p235 = por %p233, %p234
    %p236 = scmp.ne.s32.totalorder %s227, %s228
    %p237 = scmp.eq.s32.totalorder %s22, 0
    %p238 = por %p236, %p237
    %p239 = scmp.ne.s32.totalorder %s227, %s228
    %p240 = scmp.eq.s32.totalorder %s23, 1
    %p241 = por %p239, %p240
    %p243 = scmp.ne.s32.totalorder %s228, %s242
    %p244 = scmp.eq.s32.totalorder %s23, 0
    %p245 = por %p243, %p244
    %s247 = sadd.s32 %s246, 1
    %p250 = scmp.eq.s32.totalorder %s17, 1
    %p251 = scmp.ne.s32.totalorder %s246, %s248
    %p252 = scmp.eq.s32.totalorder %s17, 0
    %p253 = por %p251, %p252
    %p254 = scmp.ne.s32.totalorder %s246, %s248
    %p255 = scmp.eq.s32.totalorder %s22, 1
    %p256 = por %p254, %p255
    %p257 = scmp.ne.s32.totalorder %s248, %s249
    %p258 = scmp.eq.s32.totalorder %s22, 0
    %p259 = por %p257, %p258
    %p260 = scmp.ne.s32.totalorder %s248, %s249
    %p261 = scmp.eq.s32.totalorder %s23, 1
    %p262 = por %p260, %p261
    %p264 = scmp.ne.s32.totalorder %s249, %s263
    %p265 = scmp.eq.s32.totalorder %s23, 0
    %p266 = por %p264, %p265
    %s268 = sadd.s32 %s267, 1
    %p271 = scmp.eq.s32.totalorder %s17, 1
    %p272 = scmp.ne.s32.totalorder %s267, %s269
    %p273 = scmp.eq.s32.totalorder %s17, 0
    %p274 = por %p272, %p273
    %p275 = scmp.ne.s32.totalorder %s267, %s269
    %p276 = scmp.eq.s32.totalorder %s22, 1
    %p277 = por %p275, %p276
    %p278 = scmp.ne.s32.totalorder %s269, %s270
    %p279 = scmp.eq.s32.totalorder %s22, 0
    %p280 = por %p278, %p279
    %p281 = scmp.ne.s32.totalorder %s269, %s270
    %p282 = scmp.eq.s32.totalorder %s23, 1
    %p283 = por %p281, %p282
    %p285 = scmp.ne.s32.totalorder %s270, %s284
    %p286 = scmp.eq.s32.totalorder %s23, 0
    %p287 = por %p285, %p286
    %s289 = sadd.s32 %s288, 1
    %p292 = scmp.eq.s32.totalorder %s17, 1
    %p293 = scmp.ne.s32.totalorder %s288, %s290
    %p294 = scmp.eq.s32.totalorder %s17, 0
    %p295 = por %p293, %p294
    %p296 = scmp.ne.s32.totalorder %s288, %s290
    %p297 = scmp.eq.s32.totalorder %s22, 1
    %p298 = por %p296, %p297
    %p299 = scmp.ne.s32.totalorder %s290, %s291
    %p300 = scmp.eq.s32.totalorder %s22, 0
    %p301 = por %p299, %p300
    %p302 = scmp.ne.s32.totalorder %s290, %s291
    %p303 = scmp.eq.s32.totalorder %s23, 1
    %p304 = por %p302, %p303
    %p306 = scmp.ne.s32.totalorder %s291, %s305
    %p307 = scmp.eq.s32.totalorder %s23, 0
    %p308 = por %p306, %p307
    %s309 = sadd.s32 %s24, %s25
    %s310 = sadd.s32 %s36, %s32
    %s311 = ssub.s32 %s309, %s310
    %p312 = scmp.eq.s32.totalorder %s311, 0
    %s314 = sadd.s32 %s313, 1
    %s315 = scalar_select %p312, %s313, %s314
    %p318 = pneg %p312
    %p319 = scmp.eq.s32.totalorder %s17, 1
    %p320 = por %p318, %p319
    %p321 = scmp.ne.s32.totalorder %s313, %s316
    %p322 = scmp.eq.s32.totalorder %s17, 0
    %p323 = por %p321, %p322
    %p324 = scmp.ne.s32.totalorder %s313, %s316
    %p325 = scmp.eq.s32.totalorder %s22, 1
    %p326 = por %p324, %p325
    %p327 = scmp.ne.s32.totalorder %s316, %s317
    %p328 = scmp.eq.s32.totalorder %s22, 0
    %p329 = por %p327, %p328
    %p330 = scmp.ne.s32.totalorder %s316, %s317
    %p331 = scmp.eq.s32.totalorder %s23, 1
    %p332 = por %p330, %p331
    %p334 = scmp.ne.s32.totalorder %s317, %s333
    %p335 = scmp.eq.s32.totalorder %s23, 0
    %p336 = por %p334, %p335
    %p337 = scmp.le.s32.totalorder 1, %s17
    %p338 = scmp.lt.s32.totalorder %s17, 3
    %p339 = pnand %p337, %p338
    %p340 = pneg %p339
    // Predicated region
    $region9: #{spatial_prior.4} parent=5 // pred_check
      _
    $region10: #{spatial_prior.4} parent=5 // pred_check_branch
      %342 = sbr.rel (%p339) target = $region12
    $region11: #{spatial_prior.4} parent=5 // pred_region
      %s343 = ssub.s32 %s17, 1
      // Predicated region
      $region13: #{spatial_prior.4} parent=11 // pred_check
        %p344 = pneg %p154
      $region14: #{spatial_prior.4} parent=11 // pred_check_branch
        %346 = sbr.rel (%p344) target = $region16
      $region15: #{spatial_prior.4} parent=11 // pred_region
        _
      $region16: #{spatial_prior.4} parent=11 // pred_fallthru
        _
      // Predicated region
      $region17: #{spatial_prior.4} parent=11 // pred_check
        %p347 = pneg %p175
      $region18: #{spatial_prior.4} parent=11 // pred_check_branch
        %349 = sbr.rel (%p347) target = $region20
      $region19: #{spatial_prior.4} parent=11 // pred_region
        _
      $region20: #{spatial_prior.4} parent=11 // pred_fallthru
        _
      // Predicated region
      $region21: #{spatial_prior.4} parent=11 // pred_check
        %p350 = pneg %p196
      $region22: #{spatial_prior.4} parent=11 // pred_check_branch
        %352 = sbr.rel (%p350) target = $region24
      $region23: #{spatial_prior.4} parent=11 // pred_region
        _
      $region24: #{spatial_prior.4} parent=11 // pred_fallthru
        _
      // Predicated region
      $region25: #{spatial_prior.4} parent=11 // pred_check
        %p353 = pneg %p217
      $region26: #{spatial_prior.4} parent=11 // pred_check_branch
        %355 = sbr.rel (%p353) target = $region28
      $region27: #{spatial_prior.4} parent=11 // pred_region
        _
      $region28: #{spatial_prior.4} parent=11 // pred_fallthru
        _
      // Predicated region
      $region29: #{spatial_prior.4} parent=11 // pred_check
        %p356 = pneg %p238
      $region30: #{spatial_prior.4} parent=11 // pred_check_branch
        %358 = sbr.rel (%p356) target = $region32
      $region31: #{spatial_prior.4} parent=11 // pred_region
        _
      $region32: #{spatial_prior.4} parent=11 // pred_fallthru
        _
      // Predicated region
      $region33: #{spatial_prior.4} parent=11 // pred_check
        %p359 = pneg %p259
      $region34: #{spatial_prior.4} parent=11 // pred_check_branch
        %361 = sbr.rel (%p359) target = $region36
      $region35: #{spatial_prior.4} parent=11 // pred_region
        _
      $region36: #{spatial_prior.4} parent=11 // pred_fallthru
        _
      // Predicated region
      $region37: #{spatial_prior.4} parent=11 // pred_check
        %p362 = pneg %p280
      $region38: #{spatial_prior.4} parent=11 // pred_check_branch
        %364 = sbr.rel (%p362) target = $region40
      $region39: #{spatial_prior.4} parent=11 // pred_region
        _
      $region40: #{spatial_prior.4} parent=11 // pred_fallthru
        _
      // Predicated region
      $region41: #{spatial_prior.4} parent=11 // pred_check
        %p365 = pneg %p301
      $region42: #{spatial_prior.4} parent=11 // pred_check_branch
        %367 = sbr.rel (%p365) target = $region44
      $region43: #{spatial_prior.4} parent=11 // pred_region
        _
      $region44: #{spatial_prior.4} parent=11 // pred_fallthru
        _
    $region12: #{spatial_prior.4} parent=5 // pred_fallthru
      _
    %p368 = scmp.lt.s32.totalorder %s17, 2
    // Predicated region
    $region45: #{spatial_prior.4} parent=5 // pred_check
      %p369 = pneg %p368
    $region46: #{spatial_prior.4} parent=5 // pred_check_branch
      %371 = sbr.rel (%p369) target = $region48
    $region47: #{spatial_prior.4} parent=5 // pred_region
      // Predicated region
      $region49: #{spatial_prior.4} parent=47 // pred_check
        %p372 = pneg %p51
      $region50: #{spatial_prior.4} parent=47 // pred_check_branch
        %374 = sbr.rel (%p372) target = $region52
      $region51: #{spatial_prior.4} parent=47 // pred_region
        %s375 = sadd.s32 %s24, %s25
        %s376 = smul.u32 8, %s375
        %p377 = scmp.lt.s32.totalorder %s376, 15
        %s378 = scalar_select %p377, %s376, 15
        %s379 = smul.addr %s378, 2
        %s380 = smul.addr %s379, 4
        %s381 = scalar_lea.vmem %s0, %s380
        %s382 = sadd.s32 %s24, %s25
        %s383 = smul.u32 8, %s382
      $region52: #{spatial_prior.4} parent=47 // pred_fallthru
        _
      // Predicated region
      $region53: #{spatial_prior.4} parent=47 // pred_check
        %p384 = pneg %p89
      $region54: #{spatial_prior.4} parent=47 // pred_check_branch
        %386 = sbr.rel (%p384) target = $region56
      $region55: #{spatial_prior.4} parent=47 // pred_region
        %s387 = smul.u32 %s24, 8
        %s388 = smul.u32 %s25, 8
        %s389 = ssub.s32 %s388, 1
        %p390 = scmp.gt.s32.totalorder %s389, 0
        %s391 = scalar_select %p390, %s389, 0
        %s392 = sadd.s32 %s387, %s391
        %p393 = scmp.lt.s32.totalorder %s392, 15
        %s394 = scalar_select %p393, %s392, 15
        %s395 = smul.addr %s394, 2
        %s396 = smul.addr %s395, 4
        %s397 = scalar_lea.vmem %s1, %s396
        %s398 = smul.u32 %s24, 8
        %s399 = smul.u32 %s25, 8
        %s400 = ssub.s32 %s399, 1
        %p401 = scmp.gt.s32.totalorder %s400, 0
        %s402 = scalar_select %p401, %s400, 0
        %s403 = sadd.s32 %s398, %s402
      $region56: #{spatial_prior.4} parent=47 // pred_fallthru
        _
      // Predicated region
      $region57: #{spatial_prior.4} parent=47 // pred_check
        %p404 = pneg %p127
      $region58: #{spatial_prior.4} parent=47 // pred_check_branch
        %406 = sbr.rel (%p404) target = $region60
      $region59: #{spatial_prior.4} parent=47 // pred_region
        %s407 = smul.u32 %s24, 8
        %s408 = sadd.s32 %s25, 1
        %s409 = smul.u32 %s408, 8
        %p410 = scmp.lt.s32.totalorder %s409, 7
        %s411 = scalar_select %p410, %s409, 7
        %s412 = sadd.s32 %s407, %s411
        %p413 = scmp.lt.s32.totalorder %s412, 15
        %s414 = scalar_select %p413, %s412, 15
        %s415 = smul.addr %s414, 2
        %s416 = smul.addr %s415, 4
        %s417 = scalar_lea.vmem %s2, %s416
        %s418 = smul.u32 %s24, 8
        %s419 = sadd.s32 %s25, 1
        %s420 = smul.u32 %s419, 8
        %p421 = scmp.lt.s32.totalorder %s420, 7
        %s422 = scalar_select %p421, %s420, 7
        %s423 = sadd.s32 %s418, %s422
      $region60: #{spatial_prior.4} parent=47 // pred_fallthru
        _
    $region48: #{spatial_prior.4} parent=5 // pred_fallthru
      _
    %p424 = scmp.le.s32.totalorder 1, %s17
    %p425 = scmp.lt.s32.totalorder %s17, 3
    %p426 = pnand %p424, %p425
    %p427 = pneg %p426
    // Predicated region
    $region61: #{spatial_prior.4} parent=5 // pred_check
      _
    $region62: #{spatial_prior.4} parent=5 // pred_check_branch
      %429 = sbr.rel (%p426) target = $region64
    $region63: #{spatial_prior.4} parent=5 // pred_region
      %s430 = ssub.s32 %s17, 1
      %s431 = sadd.s32 %s26, %s27
      %s432 = smul.u32 8, %s431
      %p433 = scmp.lt.s32.totalorder %s432, 15
      %s434 = scalar_select %p433, %s432, 15
      %s435 = smul.addr %s434, 2
      %s436 = smul.addr %s435, 4
      %s437 = scalar_lea.vmem %s0, %s436
      %p438 = pneg %p57
      %p439 = pneg %p54
      %s440 = smul.u32 %s26, 8
      %s441 = smul.u32 %s27, 8
      %s442 = ssub.s32 %s441, 1
      %p443 = scmp.gt.s32.totalorder %s442, 0
      %s444 = scalar_select %p443, %s442, 0
      %s445 = sadd.s32 %s440, %s444
      %p446 = scmp.lt.s32.totalorder %s445, 15
      %s447 = scalar_select %p446, %s445, 15
      %s448 = smul.addr %s447, 2
      %s449 = smul.addr %s448, 4
      %s450 = scalar_lea.vmem %s1, %s449
      %p451 = pneg %p95
      %p452 = pneg %p92
      %s453 = smul.u32 %s26, 8
      %s454 = sadd.s32 %s27, 1
      %s455 = smul.u32 %s454, 8
      %p456 = scmp.lt.s32.totalorder %s455, 7
      %s457 = scalar_select %p456, %s455, 7
      %s458 = sadd.s32 %s453, %s457
      %p459 = scmp.lt.s32.totalorder %s458, 15
      %s460 = scalar_select %p459, %s458, 15
      %s461 = smul.addr %s460, 2
      %s462 = smul.addr %s461, 4
      %s463 = scalar_lea.vmem %s2, %s462
      %p464 = pneg %p133
      %p465 = pneg %p130
      %p466 = pneg %p154
      %p467 = pneg %p151
      %p468 = pneg %p175
      %p469 = pneg %p172
      %p470 = pneg %p196
      %p471 = pneg %p193
      %p472 = pneg %p217
      %p473 = pneg %p214
      %p474 = pneg %p238
      %p475 = pneg %p235
      %p476 = pneg %p259
      %p477 = pneg %p256
      %p478 = pneg %p280
      %p479 = pneg %p277
      %p480 = pneg %p301
      %p481 = pneg %p298
      %p482 = pneg %p329
      %p483 = pneg %p326
      %s484 = sadd.s32 %s26, %s27
      %s485 = smul.u32 8, %s484
      %p486 = scmp.lt.s32.totalorder %s485, 15
      %s487 = scalar_select %p486, %s485, 15
      %s488 = smul.addr %s487, 2
      %s489 = smul.addr %s488, 4
      %s490 = scalar_lea.vmem %s11, %s489
      %s491 = sadd.s32 %s26, %s27
      %s492 = smul.u32 8, %s491
      %p493 = scmp.lt.s32.totalorder %s492, 15
      %s494 = scalar_select %p493, %s492, 15
      %s495 = smul.addr %s494, 2
      %s496 = smul.addr %s495, 4
      %s497 = scalar_lea.vmem %s0, %s496
      %s498 = sadd.s32 %s26, %s27
      %s499 = smul.u32 8, %s498
      %s500 = smul.u32 %s26, 8
      %s501 = smul.u32 %s27, 8
      %s502 = ssub.s32 %s501, 1
      %p503 = scmp.gt.s32.totalorder %s502, 0
      %s504 = scalar_select %p503, %s502, 0
      %s505 = sadd.s32 %s500, %s504
      %p506 = scmp.lt.s32.totalorder %s505, 15
      %s507 = scalar_select %p506, %s505, 15
      %s508 = smul.addr %s507, 2
      %s509 = smul.addr %s508, 4
      %s510 = scalar_lea.vmem %s1, %s509
      %s511 = smul.u32 %s26, 8
      %s512 = smul.u32 %s27, 8
      %s513 = ssub.s32 %s512, 1
      %p514 = scmp.gt.s32.totalorder %s513, 0
      %s515 = scalar_select %p514, %s513, 0
      %s516 = sadd.s32 %s511, %s515
      %s517 = smul.u32 %s26, 8
      %s518 = sadd.s32 %s27, 1
      %s519 = smul.u32 %s518, 8
      %p520 = scmp.lt.s32.totalorder %s519, 7
      %s521 = scalar_select %p520, %s519, 7
      %s522 = sadd.s32 %s517, %s521
      %p523 = scmp.lt.s32.totalorder %s522, 15
      %s524 = scalar_select %p523, %s522, 15
      %s525 = smul.addr %s524, 2
      %s526 = smul.addr %s525, 4
      %s527 = scalar_lea.vmem %s2, %s526
      %s528 = smul.u32 %s26, 8
      %s529 = sadd.s32 %s27, 1
      %s530 = smul.u32 %s529, 8
      %p531 = scmp.lt.s32.totalorder %s530, 7
      %s532 = scalar_select %p531, %s530, 7
      %s533 = sadd.s32 %s528, %s532
      %s534 = sadd.s32 %s26, %s27
      %s535 = smul.u32 8, %s534
      %p536 = scmp.lt.s32.totalorder %s535, 15
      %s537 = scalar_select %p536, %s535, 15
      %s538 = smul.addr %s537, 2
      %s539 = smul.addr %s538, 4
      %s540 = scalar_lea.vmem %s11, %s539
      %s541 = sadd.s32 %s26, %s27
      %s542 = smul.u32 8, %s541
      %s543 = smul.u32 %s27, 8
      %v544 = vld [vmem:[%s497] sm:$0xff]
      %v545 = vld [vmem:[%s497 + $0x8] sm:$0xff]
      %v546 = vld [vmem:[%s497 + $0x10] sm:$0xff]
      %v547 = vld [vmem:[%s497 + $0x18] sm:$0xff]
      %v548 = vld [vmem:[%s497 + $0x20] sm:$0xff]
      %v549 = vld [vmem:[%s497 + $0x28] sm:$0xff]
      %v550 = vld [vmem:[%s497 + $0x30] sm:$0xff]
      %v551 = vld [vmem:[%s497 + $0x38] sm:$0xff]
      %v552 = vld [vmem:[%s3] sm:$0xff]
      %v553 = vld [vmem:[%s3 + $0x8] sm:$0xff]
      %v554 = vld [vmem:[%s3 + $0x10] sm:$0xff]
      %v555 = vld [vmem:[%s3 + $0x18] sm:$0xff]
      %v556 = vld [vmem:[%s3 + $0x20] sm:$0xff]
      %v557 = vld [vmem:[%s3 + $0x28] sm:$0xff]
      %v558 = vld [vmem:[%s3 + $0x30] sm:$0xff]
      %v559 = vld [vmem:[%s3 + $0x38] sm:$0xff]
      %v560 = vld [vmem:[%s3 + $0x40] sm:$0xff]
      %v561 = vld [vmem:[%s3 + $0x48] sm:$0xff]
      %v562 = vld [vmem:[%s3 + $0x50] sm:$0xff]
      %v563 = vld [vmem:[%s3 + $0x58] sm:$0xff]
      %v564 = vld [vmem:[%s3 + $0x60] sm:$0xff]
      %v565 = vld [vmem:[%s3 + $0x68] sm:$0xff]
      %v566 = vld [vmem:[%s3 + $0x70] sm:$0xff]
      %v567 = vld [vmem:[%s3 + $0x78] sm:$0xff]
      %v568 = vld [vmem:[%s3 + $0x80] sm:$0xff]
      %v569 = vld [vmem:[%s3 + $0x88] sm:$0xff]
      %v570 = vld [vmem:[%s3 + $0x90] sm:$0xff]
      %v571 = vld [vmem:[%s3 + $0x98] sm:$0xff]
      %v572 = vld [vmem:[%s3 + $0xa0] sm:$0xff]
      %v573 = vld [vmem:[%s3 + $0xa8] sm:$0xff]
      %v574 = vld [vmem:[%s3 + $0xb0] sm:$0xff]
      %v575 = vld [vmem:[%s3 + $0xb8] sm:$0xff]
      %v576 = vld [vmem:[%s3 + $0xc0] sm:$0xff]
      %v577 = vld [vmem:[%s3 + $0xc8] sm:$0xff]
      %v578 = vld [vmem:[%s3 + $0xd0] sm:$0xff]
      %v579 = vld [vmem:[%s3 + $0xd8] sm:$0xff]
      %v580 = vld [vmem:[%s3 + $0xe0] sm:$0xff]
      %v581 = vld [vmem:[%s3 + $0xe8] sm:$0xff]
      %v582 = vld [vmem:[%s3 + $0xf0] sm:$0xff]
      %v583 = vld [vmem:[%s3 + $0xf8] sm:$0xff]
      %v584 = vld [vmem:[%s4] sm:$0x3]
      %v585 = vunpack.c.l.bf16 %v584
      %v587 = vlaneseq
      %v588 = vshrl.u32 %v587, 7
      %v589 = vsub.s32 0, %v588
      %v590 = vrot.slane %v585, %v589
      %v591 = vlaneseq
      %v592 = vshrl.u32 %v591, 7
      %v593 = vsub.s32 2, %v592
      %v594 = vrot.slane %v585, %v593
      %v597 = vlaneseq
      %v598 = vshrl.u32 %v597, 7
      %v599 = vsub.s32 0, %v598
      %v600 = vrot.slane %v590, %v599
      %v601 = vlaneseq
      %v602 = vshrl.u32 %v601, 7
      %v603 = vsub.s32 0, %v602
      %v604 = vrot.slane %v594, %v603
      %v613 = vunpack.c.l.b16 %v544
      %v614 = vunpack.c.h.b16 %v544
      %v615 = vunpack.c.l.b16 %v545
      %v616 = vunpack.c.h.b16 %v545
      %v617 = vunpack.c.l.b16 %v546
      %v618 = vunpack.c.h.b16 %v546
      %v619 = vunpack.c.l.b16 %v547
      %v620 = vunpack.c.h.b16 %v547
      %v621 = vunpack.c.l.b16 %v548
      %v622 = vunpack.c.h.b16 %v548
      %v623 = vunpack.c.l.b16 %v549
      %v624 = vunpack.c.h.b16 %v549
      %v625 = vunpack.c.l.b16 %v550
      %v626 = vunpack.c.h.b16 %v550
      %v627 = vunpack.c.l.b16 %v551
      %v628 = vunpack.c.h.b16 %v551
      %v629 = vpack.c.b16 %v615, %v613
      %v630 = vpack.c.b16 %v616, %v614
      %v631 = vpack.c.b16 %v619, %v617
      %v632 = vpack.c.b16 %v620, %v618
      %v633 = vpack.c.b16 %v623, %v621
      %v634 = vpack.c.b16 %v624, %v622
      %v635 = vpack.c.b16 %v627, %v625
      %v636 = vpack.c.b16 %v628, %v626
      %v677 = vunpack.c.l.b16 %v552
      %v678 = vunpack.c.h.b16 %v552
      %v679 = vunpack.c.l.b16 %v553
      %v680 = vunpack.c.h.b16 %v553
      %v681 = vunpack.c.l.b16 %v554
      %v682 = vunpack.c.h.b16 %v554
      %v683 = vunpack.c.l.b16 %v555
      %v684 = vunpack.c.h.b16 %v555
      %v685 = vunpack.c.l.b16 %v556
      %v686 = vunpack.c.h.b16 %v556
      %v687 = vunpack.c.l.b16 %v557
      %v688 = vunpack.c.h.b16 %v557
      %v689 = vunpack.c.l.b16 %v558
      %v690 = vunpack.c.h.b16 %v558
      %v691 = vunpack.c.l.b16 %v559
      %v692 = vunpack.c.h.b16 %v559
      %v693 = vunpack.c.l.b16 %v560
      %v694 = vunpack.c.h.b16 %v560
      %v695 = vunpack.c.l.b16 %v561
      %v696 = vunpack.c.h.b16 %v561
      %v697 = vunpack.c.l.b16 %v562
      %v698 = vunpack.c.h.b16 %v562
      %v699 = vunpack.c.l.b16 %v563
      %v700 = vunpack.c.h.b16 %v563
      %v701 = vunpack.c.l.b16 %v564
      %v702 = vunpack.c.h.b16 %v564
      %v703 = vunpack.c.l.b16 %v565
      %v704 = vunpack.c.h.b16 %v565
      %v705 = vunpack.c.l.b16 %v566
      %v706 = vunpack.c.h.b16 %v566
      %v707 = vunpack.c.l.b16 %v567
      %v708 = vunpack.c.h.b16 %v567
      %v709 = vunpack.c.l.b16 %v568
      %v710 = vunpack.c.h.b16 %v568
      %v711 = vunpack.c.l.b16 %v569
      %v712 = vunpack.c.h.b16 %v569
      %v713 = vunpack.c.l.b16 %v570
      %v714 = vunpack.c.h.b16 %v570
      %v715 = vunpack.c.l.b16 %v571
      %v716 = vunpack.c.h.b16 %v571
      %v717 = vunpack.c.l.b16 %v572
      %v718 = vunpack.c.h.b16 %v572
      %v719 = vunpack.c.l.b16 %v573
      %v720 = vunpack.c.h.b16 %v573
      %v721 = vunpack.c.l.b16 %v574
      %v722 = vunpack.c.h.b16 %v574
      %v723 = vunpack.c.l.b16 %v575
      %v724 = vunpack.c.h.b16 %v575
      %v725 = vunpack.c.l.b16 %v576
      %v726 = vunpack.c.h.b16 %v576
      %v727 = vunpack.c.l.b16 %v577
      %v728 = vunpack.c.h.b16 %v577
      %v729 = vunpack.c.l.b16 %v578
      %v730 = vunpack.c.h.b16 %v578
      %v731 = vunpack.c.l.b16 %v579
      %v732 = vunpack.c.h.b16 %v579
      %v733 = vunpack.c.l.b16 %v580
      %v734 = vunpack.c.h.b16 %v580
      %v735 = vunpack.c.l.b16 %v581
      %v736 = vunpack.c.h.b16 %v581
      %v737 = vunpack.c.l.b16 %v582
      %v738 = vunpack.c.h.b16 %v582
      %v739 = vunpack.c.l.b16 %v583
      %v740 = vunpack.c.h.b16 %v583
      %v741 = vpack.c.b16 %v679, %v677
      %v742 = vpack.c.b16 %v680, %v678
      %v743 = vpack.c.b16 %v683, %v681
      %v744 = vpack.c.b16 %v684, %v682
      %v745 = vpack.c.b16 %v687, %v685
      %v746 = vpack.c.b16 %v688, %v686
      %v747 = vpack.c.b16 %v691, %v689
      %v748 = vpack.c.b16 %v692, %v690
      %v749 = vpack.c.b16 %v695, %v693
      %v750 = vpack.c.b16 %v696, %v694
      %v751 = vpack.c.b16 %v699, %v697
      %v752 = vpack.c.b16 %v700, %v698
      %v753 = vpack.c.b16 %v703, %v701
      %v754 = vpack.c.b16 %v704, %v702
      %v755 = vpack.c.b16 %v707, %v705
      %v756 = vpack.c.b16 %v708, %v706
      %v757 = vpack.c.b16 %v711, %v709
      %v758 = vpack.c.b16 %v712, %v710
      %v759 = vpack.c.b16 %v715, %v713
      %v760 = vpack.c.b16 %v716, %v714
      %v761 = vpack.c.b16 %v719, %v717
      %v762 = vpack.c.b16 %v720, %v718
      %v763 = vpack.c.b16 %v723, %v721
      %v764 = vpack.c.b16 %v724, %v722
      %v765 = vpack.c.b16 %v727, %v725
      %v766 = vpack.c.b16 %v728, %v726
      %v767 = vpack.c.b16 %v731, %v729
      %v768 = vpack.c.b16 %v732, %v730
      %v769 = vpack.c.b16 %v735, %v733
      %v770 = vpack.c.b16 %v736, %v734
      %v771 = vpack.c.b16 %v739, %v737
      %v772 = vpack.c.b16 %v740, %v738
      %805 = vmatprep.subr.bf16.mxu0 %v742
      %806 = vmatpush1.bf16.msra.mxu0 %v741
      %807 = vmatprep.subr.bf16.mxu0 %v744
      %808 = vmatpush1.bf16.msra.mxu0 %v743
      %809 = vmatprep.subr.bf16.mxu0 %v746
      %810 = vmatpush1.bf16.msra.mxu0 %v745
      %811 = vmatprep.subr.bf16.mxu0 %v748
      %812 = vmatpush1.bf16.msra.mxu0 %v747
      %813 = vmatprep.subr.bf16.mxu0 %v750
      %814 = vmatpush1.bf16.msra.mxu0 %v749
      %815 = vmatprep.subr.bf16.mxu0 %v752
      %816 = vmatpush1.bf16.msra.mxu0 %v751
      %817 = vmatprep.subr.bf16.mxu0 %v754
      %818 = vmatpush1.bf16.msra.mxu0 %v753
      %819 = vmatprep.subr.bf16.mxu0 %v756
      %820 = vmatpush1.bf16.msra.mxu0 %v755
      %821 = vmatprep.subr.bf16.mxu0 %v758
      %822 = vmatpush1.bf16.msra.mxu0 %v757
      %823 = vmatprep.subr.bf16.mxu0 %v760
      %824 = vmatpush1.bf16.msra.mxu0 %v759
      %825 = vmatprep.subr.bf16.mxu0 %v762
      %826 = vmatpush1.bf16.msra.mxu0 %v761
      %827 = vmatprep.subr.bf16.mxu0 %v764
      %828 = vmatpush1.bf16.msra.mxu0 %v763
      %829 = vmatprep.subr.bf16.mxu0 %v766
      %830 = vmatpush1.bf16.msra.mxu0 %v765
      %831 = vmatprep.subr.bf16.mxu0 %v768
      %832 = vmatpush1.bf16.msra.mxu0 %v767
      %833 = vmatprep.subr.bf16.mxu0 %v770
      %834 = vmatpush1.bf16.msra.mxu0 %v769
      %835 = vmatprep.subr.bf16.mxu0 %v772
      %836 = vmatpush1.bf16.msra.mxu0 %v771
      %837 = vmatprep.mubr.bf16.mxu0 %v630
      %838 = vmatmul.mubr.bf16.gmra.mrb[0].mxu0 %v629
      %v839 = vpop.f32.mrb[0].mxu0
      %v840 = vadd.f32 %v600, %v839
      %v841 = vpop.f32.mrb[0].mxu0
      %v842 = vadd.f32 %v604, %v841
      %v843 = vpop.f32.mrb[0].mxu0
      %v844 = vadd.f32 %v600, %v843
      %v845 = vpop.f32.mrb[0].mxu0
      %v846 = vadd.f32 %v604, %v845
      %847 = vmatprep.mubr.bf16.mxu0 %v632
      %848 = vmatmul.mubr.bf16.gmra.mrb[0].mxu0 %v631
      %v849 = vpop.f32.mrb[0].mxu0
      %v850 = vadd.f32 %v600, %v849
      %v851 = vpop.f32.mrb[0].mxu0
      %v852 = vadd.f32 %v604, %v851
      %v853 = vpop.f32.mrb[0].mxu0
      %v854 = vadd.f32 %v600, %v853
      %v855 = vpop.f32.mrb[0].mxu0
      %v856 = vadd.f32 %v604, %v855
      %857 = vmatprep.mubr.bf16.mxu0 %v634
      %858 = vmatmul.mubr.bf16.gmra.mrb[0].mxu0 %v633
      %v859 = vpop.f32.mrb[0].mxu0
      %v860 = vadd.f32 %v600, %v859
      %v861 = vpop.f32.mrb[0].mxu0
      %v862 = vadd.f32 %v604, %v861
      %v863 = vpop.f32.mrb[0].mxu0
      %v864 = vadd.f32 %v600, %v863
      %v865 = vpop.f32.mrb[0].mxu0
      %v866 = vadd.f32 %v604, %v865
      %867 = vmatprep.mubr.bf16.mxu0 %v636
      %868 = vmatmul.mubr.bf16.gmra.mrb[0].mxu0 %v635
      %v869 = vpop.f32.mrb[0].mxu0
      %v870 = vadd.f32 %v600, %v869
      %v871 = vpop.f32.mrb[0].mxu0
      %v872 = vadd.f32 %v604, %v871
      %v873 = vpop.f32.mrb[0].mxu0
      %v874 = vadd.f32 %v600, %v873
      %v875 = vpop.f32.mrb[0].mxu0
      %v876 = vadd.f32 %v604, %v875
      %877 = vdwg.mxu0
      %vm878 = vcmp.ge.f32.partialorder %v840, 0.0
      %vm879 = vcmp.ge.f32.partialorder %v842, 0.0
      %vm880 = vcmp.ge.f32.partialorder %v844, 0.0
      %vm881 = vcmp.ge.f32.partialorder %v846, 0.0
      %vm882 = vcmp.ge.f32.partialorder %v850, 0.0
      %vm883 = vcmp.ge.f32.partialorder %v852, 0.0
      %vm884 = vcmp.ge.f32.partialorder %v854, 0.0
      %vm885 = vcmp.ge.f32.partialorder %v856, 0.0
      %vm886 = vcmp.ge.f32.partialorder %v860, 0.0
      %vm887 = vcmp.ge.f32.partialorder %v862, 0.0
      %vm888 = vcmp.ge.f32.partialorder %v864, 0.0
      %vm889 = vcmp.ge.f32.partialorder %v866, 0.0
      %vm890 = vcmp.ge.f32.partialorder %v870, 0.0
      %vm891 = vcmp.ge.f32.partialorder %v872, 0.0
      %vm892 = vcmp.ge.f32.partialorder %v874, 0.0
      %vm893 = vcmp.ge.f32.partialorder %v876, 0.0
      %v894 = vmul.f32 %v840, 0.01
      %v895 = vmul.f32 %v842, 0.01
      %v896 = vmul.f32 %v844, 0.01
      %v897 = vmul.f32 %v846, 0.01
      %v898 = vmul.f32 %v850, 0.01
      %v899 = vmul.f32 %v852, 0.01
      %v900 = vmul.f32 %v854, 0.01
      %v901 = vmul.f32 %v856, 0.01
      %v902 = vmul.f32 %v860, 0.01
      %v903 = vmul.f32 %v862, 0.01
      %v904 = vmul.f32 %v864, 0.01
      %v905 = vmul.f32 %v866, 0.01
      %v906 = vmul.f32 %v870, 0.01
      %v907 = vmul.f32 %v872, 0.01
      %v908 = vmul.f32 %v874, 0.01
      %v909 = vmul.f32 %v876, 0.01
      %v910 = vsel %vm878, %v840, %v894
      %v911 = vsel %vm879, %v842, %v895
      %v912 = vsel %vm880, %v844, %v896
      %v913 = vsel %vm881, %v846, %v897
      %v914 = vsel %vm882, %v850, %v898
      %v915 = vsel %vm883, %v852, %v899
      %v916 = vsel %vm884, %v854, %v900
      %v917 = vsel %vm885, %v856, %v901
      %v918 = vsel %vm886, %v860, %v902
      %v919 = vsel %vm887, %v862, %v903
      %v920 = vsel %vm888, %v864, %v904
      %v921 = vsel %vm889, %v866, %v905
      %v922 = vsel %vm890, %v870, %v906
      %v923 = vsel %vm891, %v872, %v907
      %v924 = vsel %vm892, %v874, %v908
      %v925 = vsel %vm893, %v876, %v909
      %p926 = scmp.gt.s32.totalorder %s543, 0
      %v927 = vld [vmem:[%s510] sm:$0xff]
      %v929 = vunpack.c.l.b16 %v927
      %v930 = vunpack.c.h.b16 %v927
      %v931 = vpack.c.b16 %v929, %v929
      %v932 = vpack.c.b16 %v930, %v930
      %935 = vmatprep.subr.bf16.mxu0 %v742
      %936 = vmatpush1.bf16.msra.mxu0 %v741
      %937 = vmatprep.subr.bf16.mxu0 %v744
      %938 = vmatpush1.bf16.msra.mxu0 %v743
      %939 = vmatprep.subr.bf16.mxu0 %v746
      %940 = vmatpush1.bf16.msra.mxu0 %v745
      %941 = vmatprep.subr.bf16.mxu0 %v748
      %942 = vmatpush1.bf16.msra.mxu0 %v747
      %943 = vmatprep.subr.bf16.mxu0 %v750
      %944 = vmatpush1.bf16.msra.mxu0 %v749
      %945 = vmatprep.subr.bf16.mxu0 %v752
      %946 = vmatpush1.bf16.msra.mxu0 %v751
      %947 = vmatprep.subr.bf16.mxu0 %v754
      %948 = vmatpush1.bf16.msra.mxu0 %v753
      %949 = vmatprep.subr.bf16.mxu0 %v756
      %950 = vmatpush1.bf16.msra.mxu0 %v755
      %951 = vmatprep.subr.bf16.mxu0 %v758
      %952 = vmatpush1.bf16.msra.mxu0 %v757
      %953 = vmatprep.subr.bf16.mxu0 %v760
      %954 = vmatpush1.bf16.msra.mxu0 %v759
      %955 = vmatprep.subr.bf16.mxu0 %v762
      %956 = vmatpush1.bf16.msra.mxu0 %v761
      %957 = vmatprep.subr.bf16.mxu0 %v764
      %958 = vmatpush1.bf16.msra.mxu0 %v763
      %959 = vmatprep.subr.bf16.mxu0 %v766
      %960 = vmatpush1.bf16.msra.mxu0 %v765
      %961 = vmatprep.subr.bf16.mxu0 %v768
      %962 = vmatpush1.bf16.msra.mxu0 %v767
      %963 = vmatprep.subr.bf16.mxu0 %v770
      %964 = vmatpush1.bf16.msra.mxu0 %v769
      %965 = vmatprep.subr.bf16.mxu0 %v772
      %966 = vmatpush1.bf16.msra.mxu0 %v771
      %967 = vmatprep.mubr.bf16.mxu0 %v932
      %968 = vmatmul.mubr.bf16.gmra.mrb[0].mxu0 %v931
      %v969 = vpop.f32.mrb[0].mxu0
      %v970 = vadd.f32 %v600, %v969
      %v971 = vpop.f32.mrb[0].mxu0
      %v972 = vadd.f32 %v604, %v971
      %v973 = vpop.f32.mrb[0].mxu0
      %v974 = vpop.f32.mrb[0].mxu0
      %975 = vdwg.mxu0
      %vm976 = vcmp.ge.f32.partialorder %v970, 0.0
      %vm977 = vcmp.ge.f32.partialorder %v972, 0.0
      %v978 = vmul.f32 %v970, 0.01
      %v979 = vmul.f32 %v972, 0.01
      %v980 = vsel %vm976, %v970, %v978
      %v981 = vsel %vm977, %v972, %v979
      %s982 = scalar_select %p926, 1, 0
      %v983 = vstv %s982
      %vm984 = vcmp.eq.s32.totalorder %v983, 1
      %v985 = vsel %vm984, %v980, 0.0
      %v986 = vsel %vm984, %v981, 0.0
      %s987 = sadd.s32 %s543, 8
      %p988 = scmp.lt.s32.totalorder %s987, 8
      %v989 = vld [vmem:[%s527] sm:$0xff]
      %v991 = vunpack.c.l.b16 %v989
      %v992 = vunpack.c.h.b16 %v989
      %v993 = vpack.c.b16 %v991, %v991
      %v994 = vpack.c.b16 %v992, %v992
      %997 = vmatprep.subr.bf16.mxu0 %v742
      %998 = vmatpush1.bf16.msra.mxu0 %v741
      %999 = vmatprep.subr.bf16.mxu0 %v744
      %1000 = vmatpush1.bf16.msra.mxu0 %v743
      %1001 = vmatprep.subr.bf16.mxu0 %v746
      %1002 = vmatpush1.bf16.msra.mxu0 %v745
      %1003 = vmatprep.subr.bf16.mxu0 %v748
      %1004 = vmatpush1.bf16.msra.mxu0 %v747
      %1005 = vmatprep.subr.bf16.mxu0 %v750
      %1006 = vmatpush1.bf16.msra.mxu0 %v749
      %1007 = vmatprep.subr.bf16.mxu0 %v752
      %1008 = vmatpush1.bf16.msra.mxu0 %v751
      %1009 = vmatprep.subr.bf16.mxu0 %v754
      %1010 = vmatpush1.bf16.msra.mxu0 %v753
      %1011 = vmatprep.subr.bf16.mxu0 %v756
      %1012 = vmatpush1.bf16.msra.mxu0 %v755
      %1013 = vmatprep.subr.bf16.mxu0 %v758
      %1014 = vmatpush1.bf16.msra.mxu0 %v757
      %1015 = vmatprep.subr.bf16.mxu0 %v760
      %1016 = vmatpush1.bf16.msra.mxu0 %v759
      %1017 = vmatprep.subr.bf16.mxu0 %v762
      %1018 = vmatpush1.bf16.msra.mxu0 %v761
      %1019 = vmatprep.subr.bf16.mxu0 %v764
      %1020 = vmatpush1.bf16.msra.mxu0 %v763
      %1021 = vmatprep.subr.bf16.mxu0 %v766
      %1022 = vmatpush1.bf16.msra.mxu0 %v765
      %1023 = vmatprep.subr.bf16.mxu0 %v768
      %1024 = vmatpush1.bf16.msra.mxu0 %v767
      %1025 = vmatprep.subr.bf16.mxu0 %v770
      %1026 = vmatpush1.bf16.msra.mxu0 %v769
      %1027 = vmatprep.subr.bf16.mxu0 %v772
      %1028 = vmatpush1.bf16.msra.mxu0 %v771
      %1029 = vmatprep.mubr.bf16.mxu0 %v994
      %1030 = vmatmul.mubr.bf16.gmra.mrb[0].mxu0 %v993
      %v1031 = vpop.f32.mrb[0].mxu0
      %v1032 = vadd.f32 %v600, %v1031
      %v1033 = vpop.f32.mrb[0].mxu0
      %v1034 = vadd.f32 %v604, %v1033
      %v1035 = vpop.f32.mrb[0].mxu0
      %v1036 = vpop.f32.mrb[0].mxu0
      %1037 = vdwg.mxu0
      %vm1038 = vcmp.ge.f32.partialorder %v1032, 0.0
      %vm1039 = vcmp.ge.f32.partialorder %v1034, 0.0
      %v1040 = vmul.f32 %v1032, 0.01
      %v1041 = vmul.f32 %v1034, 0.01
      %v1042 = vsel %vm1038, %v1032, %v1040
      %v1043 = vsel %vm1039, %v1034, %v1041
      %s1044 = scalar_select %p988, 1, 0
      %v1045 = vstv %s1044
      %vm1046 = vcmp.eq.s32.totalorder %v1045, 1
      %v1047 = vsel %vm1046, %v1042, 0.0
      %v1048 = vsel %vm1046, %v1043, 0.0
      %v1049 = vlaneseq
      %v1050 = vshrl.u32 %v1049, 7
      %v1051 = vadd.s32 %v1050, 8
      %v1052 = vadd.s32 %v1050, 16
      %v1053 = vadd.s32 %v1050, 24
      %v1054 = vadd.s32 %v1050, 32
      %v1055 = vadd.s32 %v1050, 40
      %v1056 = vadd.s32 %v1050, 48
      %v1057 = vadd.s32 %v1050, 56
      %v1058 = vadd.s32 %v1050, 64
      %v1059 = vadd.s32 %v1050, 72
      %vm1060 = vcmp.lt.s32.totalorder %v1050, 0
      %v1061 = vsub.s32 0, %v1050
      %v1062 = vsel %vm1060, %v1061, %v1050
      %v1063 = vshrl.u32 %v1062, 3
      %v1064 = vand.u32 %v1062, 7
      %v1065 = vsub.s32 0, %v1064
      %v1066 = vsel %vm1060, %v1065, %v1064
      %vm1067 = vcmp.lt.s32.totalorder %v1051, 0
      %v1068 = vsub.s32 0, %v1051
      %v1069 = vsel %vm1067, %v1068, %v1051
      %v1070 = vshrl.u32 %v1069, 3
      %v1071 = vand.u32 %v1069, 7
      %v1072 = vsub.s32 0, %v1071
      %v1073 = vsel %vm1067, %v1072, %v1071
      %vm1074 = vcmp.lt.s32.totalorder %v1052, 0
      %v1075 = vsub.s32 0, %v1052
      %v1076 = vsel %vm1074, %v1075, %v1052
      %v1077 = vshrl.u32 %v1076, 3
      %v1078 = vand.u32 %v1076, 7
      %v1079 = vsub.s32 0, %v1078
      %v1080 = vsel %vm1074, %v1079, %v1078
      %vm1081 = vcmp.lt.s32.totalorder %v1053, 0
      %v1082 = vsub.s32 0, %v1053
      %v1083 = vsel %vm1081, %v1082, %v1053
      %v1084 = vshrl.u32 %v1083, 3
      %v1085 = vand.u32 %v1083, 7
      %v1086 = vsub.s32 0, %v1085
      %v1087 = vsel %vm1081, %v1086, %v1085
      %vm1088 = vcmp.lt.s32.totalorder %v1054, 0
      %v1089 = vsub.s32 0, %v1054
      %v1090 = vsel %vm1088, %v1089, %v1054
      %v1091 = vshrl.u32 %v1090, 3
      %v1092 = vand.u32 %v1090, 7
      %v1093 = vsub.s32 0, %v1092
      %v1094 = vsel %vm1088, %v1093, %v1092
      %vm1095 = vcmp.lt.s32.totalorder %v1055, 0
      %v1096 = vsub.s32 0, %v1055
      %v1097 = vsel %vm1095, %v1096, %v1055
      %v1098 = vshrl.u32 %v1097, 3
      %v1099 = vand.u32 %v1097, 7
      %v1100 = vsub.s32 0, %v1099
      %v1101 = vsel %vm1095, %v1100, %v1099
      %vm1102 = vcmp.lt.s32.totalorder %v1056, 0
      %v1103 = vsub.s32 0, %v1056
      %v1104 = vsel %vm1102, %v1103, %v1056
      %v1105 = vshrl.u32 %v1104, 3
      %v1106 = vand.u32 %v1104, 7
      %v1107 = vsub.s32 0, %v1106
      %v1108 = vsel %vm1102, %v1107, %v1106
      %vm1109 = vcmp.lt.s32.totalorder %v1057, 0
      %v1110 = vsub.s32 0, %v1057
      %v1111 = vsel %vm1109, %v1110, %v1057
      %v1112 = vshrl.u32 %v1111, 3
      %v1113 = vand.u32 %v1111, 7
      %v1114 = vsub.s32 0, %v1113
      %v1115 = vsel %vm1109, %v1114, %v1113
      %vm1116 = vcmp.lt.s32.totalorder %v1058, 0
      %v1117 = vsub.s32 0, %v1058
      %v1118 = vsel %vm1116, %v1117, %v1058
      %v1119 = vshrl.u32 %v1118, 3
      %v1120 = vand.u32 %v1118, 7
      %v1121 = vsub.s32 0, %v1120
      %v1122 = vsel %vm1116, %v1121, %v1120
      %vm1123 = vcmp.lt.s32.totalorder %v1059, 0
      %v1124 = vsub.s32 0, %v1059
      %v1125 = vsel %vm1123, %v1124, %v1059
      %v1126 = vshrl.u32 %v1125, 3
      %v1127 = vand.u32 %v1125, 7
      %v1128 = vsub.s32 0, %v1127
      %v1129 = vsel %vm1123, %v1128, %v1127
      %vm1130 = vcmp.ne.s32.totalorder %v1066, 0
      %vm1131 = vcmp.ne.s32.totalorder %v1073, 0
      %vm1132 = vcmp.ne.s32.totalorder %v1080, 0
      %vm1133 = vcmp.ne.s32.totalorder %v1087, 0
      %vm1134 = vcmp.ne.s32.totalorder %v1094, 0
      %vm1135 = vcmp.ne.s32.totalorder %v1101, 0
      %vm1136 = vcmp.ne.s32.totalorder %v1108, 0
      %vm1137 = vcmp.ne.s32.totalorder %v1115, 0
      %vm1138 = vcmp.ne.s32.totalorder %v1122, 0
      %vm1139 = vcmp.ne.s32.totalorder %v1129, 0
      %vm1140 = vcmp.lt.s32.totalorder %v1066, 0
      %vm1141 = vcmp.lt.s32.totalorder %v1073, 0
      %vm1142 = vcmp.lt.s32.totalorder %v1080, 0
      %vm1143 = vcmp.lt.s32.totalorder %v1087, 0
      %vm1144 = vcmp.lt.s32.totalorder %v1094, 0
      %vm1145 = vcmp.lt.s32.totalorder %v1101, 0
      %vm1146 = vcmp.lt.s32.totalorder %v1108, 0
      %vm1147 = vcmp.lt.s32.totalorder %v1115, 0
      %vm1148 = vcmp.lt.s32.totalorder %v1122, 0
      %vm1149 = vcmp.lt.s32.totalorder %v1129, 0
      %vm1150 = vmand %vm1140, %vm1130
      %vm1151 = vmand %vm1141, %vm1131
      %vm1152 = vmand %vm1142, %vm1132
      %vm1153 = vmand %vm1143, %vm1133
      %vm1154 = vmand %vm1144, %vm1134
      %vm1155 = vmand %vm1145, %vm1135
      %vm1156 = vmand %vm1146, %vm1136
      %vm1157 = vmand %vm1147, %vm1137
      %vm1158 = vmand %vm1148, %vm1138
      %vm1159 = vmand %vm1149, %vm1139
      %v1160 = vadd.s32 %v1066, 8
      %v1161 = vadd.s32 %v1073, 8
      %v1162 = vadd.s32 %v1080, 8
      %v1163 = vadd.s32 %v1087, 8
      %v1164 = vadd.s32 %v1094, 8
      %v1165 = vadd.s32 %v1101, 8
      %v1166 = vadd.s32 %v1108, 8
      %v1167 = vadd.s32 %v1115, 8
      %v1168 = vadd.s32 %v1122, 8
      %v1169 = vadd.s32 %v1129, 8
      %v1170 = vsel %vm1150, %v1160, %v1066
      %v1171 = vsel %vm1151, %v1161, %v1073
      %v1172 = vsel %vm1152, %v1162, %v1080
      %v1173 = vsel %vm1153, %v1163, %v1087
      %v1174 = vsel %vm1154, %v1164, %v1094
      %v1175 = vsel %vm1155, %v1165, %v1101
      %v1176 = vsel %vm1156, %v1166, %v1108
      %v1177 = vsel %vm1157, %v1167, %v1115
      %v1178 = vsel %vm1158, %v1168, %v1122
      %v1179 = vsel %vm1159, %v1169, %v1129
      %vm1180 = vcmp.gt.s32.totalorder %v1170, 0
      %vm1181 = vcmp.gt.s32.totalorder %v1171, 0
      %vm1182 = vcmp.gt.s32.totalorder %v1172, 0
      %vm1183 = vcmp.gt.s32.totalorder %v1173, 0
      %vm1184 = vcmp.gt.s32.totalorder %v1174, 0
      %vm1185 = vcmp.gt.s32.totalorder %v1175, 0
      %vm1186 = vcmp.gt.s32.totalorder %v1176, 0
      %vm1187 = vcmp.gt.s32.totalorder %v1177, 0
      %vm1188 = vcmp.gt.s32.totalorder %v1178, 0
      %vm1189 = vcmp.gt.s32.totalorder %v1179, 0
      %v1190 = vrot.slane %v985, 7
      %v1191 = vrot.slane %v986, 7
      %v1192 = vrot.slane %v910, 7
      %v1193 = vrot.slane %v911, 7
      %v1194 = vrot.slane %v912, 7
      %v1195 = vrot.slane %v913, 7
      %v1196 = vrot.slane %v914, 7
      %v1197 = vrot.slane %v915, 7
      %v1198 = vrot.slane %v916, 7
      %v1199 = vrot.slane %v917, 7
      %v1200 = vrot.slane %v918, 7
      %v1201 = vrot.slane %v919, 7
      %v1202 = vrot.slane %v920, 7
      %v1203 = vrot.slane %v921, 7
      %v1204 = vrot.slane %v922, 7
      %v1205 = vrot.slane %v923, 7
      %v1206 = vrot.slane %v924, 7
      %v1207 = vrot.slane %v925, 7
      %v1208 = vrot.slane %v1047, 7
      %v1209 = vrot.slane %v1048, 7
      %vm1210 = vcmp.lt.s32.totalorder %v1050, 1
      %v1211 = vsel %vm1210, %v1206, %v1208
      %v1212 = vsel %vm1210, %v1207, %v1209
      %v1213 = vsel %vm1210, %v1204, %v1206
      %v1214 = vsel %vm1210, %v1205, %v1207
      %v1215 = vsel %vm1210, %v1202, %v1204
      %v1216 = vsel %vm1210, %v1203, %v1205
      %v1217 = vsel %vm1210, %v1200, %v1202
      %v1218 = vsel %vm1210, %v1201, %v1203
      %v1219 = vsel %vm1210, %v1198, %v1200
      %v1220 = vsel %vm1210, %v1199, %v1201
      %v1221 = vsel %vm1210, %v1196, %v1198
      %v1222 = vsel %vm1210, %v1197, %v1199
      %v1223 = vsel %vm1210, %v1194, %v1196
      %v1224 = vsel %vm1210, %v1195, %v1197
      %v1225 = vsel %vm1210, %v1192, %v1194
      %v1226 = vsel %vm1210, %v1193, %v1195
      %v1227 = vsel %vm1210, %v1190, %v1192
      %v1228 = vsel %vm1210, %v1191, %v1193
      %v1229 = vsel %vm1210, %v1208, %v1190
      %v1230 = vsel %vm1210, %v1209, %v1191
      %v1231 = vsel %vm1180, %v1229, 0.0
      %v1232 = vsel %vm1180, %v1230, 0.0
      %v1233 = vsel %vm1181, %v1227, 0.0
      %v1234 = vsel %vm1181, %v1228, 0.0
      %v1235 = vsel %vm1182, %v1225, 0.0
      %v1236 = vsel %vm1182, %v1226, 0.0
      %v1237 = vsel %vm1183, %v1223, 0.0
      %v1238 = vsel %vm1183, %v1224, 0.0
      %v1239 = vsel %vm1184, %v1221, 0.0
      %v1240 = vsel %vm1184, %v1222, 0.0
      %v1241 = vsel %vm1185, %v1219, 0.0
      %v1242 = vsel %vm1185, %v1220, 0.0
      %v1243 = vsel %vm1186, %v1217, 0.0
      %v1244 = vsel %vm1186, %v1218, 0.0
      %v1245 = vsel %vm1187, %v1215, 0.0
      %v1246 = vsel %vm1187, %v1216, 0.0
      %v1247 = vsel %vm1188, %v1213, 0.0
      %v1248 = vsel %vm1188, %v1214, 0.0
      %v1249 = vsel %vm1189, %v1211, 0.0
      %v1250 = vsel %vm1189, %v1212, 0.0
      %vm1251 = vcmp.lt.s32.totalorder %v1170, 7
      %vm1252 = vcmp.lt.s32.totalorder %v1171, 7
      %vm1253 = vcmp.lt.s32.totalorder %v1172, 7
      %vm1254 = vcmp.lt.s32.totalorder %v1173, 7
      %vm1255 = vcmp.lt.s32.totalorder %v1174, 7
      %vm1256 = vcmp.lt.s32.totalorder %v1175, 7
      %vm1257 = vcmp.lt.s32.totalorder %v1176, 7
      %vm1258 = vcmp.lt.s32.totalorder %v1177, 7
      %vm1259 = vcmp.lt.s32.totalorder %v1178, 7
      %vm1260 = vcmp.lt.s32.totalorder %v1179, 7
      %v1261 = vrot.slane %v985, 1
      %v1262 = vrot.slane %v986, 1
      %v1263 = vrot.slane %v910, 1
      %v1264 = vrot.slane %v911, 1
      %v1265 = vrot.slane %v912, 1
      %v1266 = vrot.slane %v913, 1
      %v1267 = vrot.slane %v914, 1
      %v1268 = vrot.slane %v915, 1
      %v1269 = vrot.slane %v916, 1
      %v1270 = vrot.slane %v917, 1
      %v1271 = vrot.slane %v918, 1
      %v1272 = vrot.slane %v919, 1
      %v1273 = vrot.slane %v920, 1
      %v1274 = vrot.slane %v921, 1
      %v1275 = vrot.slane %v922, 1
      %v1276 = vrot.slane %v923, 1
      %v1277 = vrot.slane %v924, 1
      %v1278 = vrot.slane %v925, 1
      %v1279 = vrot.slane %v1047, 1
      %v1280 = vrot.slane %v1048, 1
      %vm1281 = vcmp.lt.s32.totalorder %v1050, 7
      %v1282 = vsel %vm1281, %v1277, %v1279
      %v1283 = vsel %vm1281, %v1278, %v1280
      %v1284 = vsel %vm1281, %v1275, %v1277
      %v1285 = vsel %vm1281, %v1276, %v1278
      %v1286 = vsel %vm1281, %v1273, %v1275
      %v1287 = vsel %vm1281, %v1274, %v1276
      %v1288 = vsel %vm1281, %v1271, %v1273
      %v1289 = vsel %vm1281, %v1272, %v1274
      %v1290 = vsel %vm1281, %v1269, %v1271
      %v1291 = vsel %vm1281, %v1270, %v1272
      %v1292 = vsel %vm1281, %v1267, %v1269
      %v1293 = vsel %vm1281, %v1268, %v1270
      %v1294 = vsel %vm1281, %v1265, %v1267
      %v1295 = vsel %vm1281, %v1266, %v1268
      %v1296 = vsel %vm1281, %v1263, %v1265
      %v1297 = vsel %vm1281, %v1264, %v1266
      %v1298 = vsel %vm1281, %v1261, %v1263
      %v1299 = vsel %vm1281, %v1262, %v1264
      %v1300 = vsel %vm1281, %v1279, %v1261
      %v1301 = vsel %vm1281, %v1280, %v1262
      %v1302 = vsel %vm1251, %v1298, 0.0
      %v1303 = vsel %vm1251, %v1299, 0.0
      %v1304 = vsel %vm1252, %v1296, 0.0
      %v1305 = vsel %vm1252, %v1297, 0.0
      %v1306 = vsel %vm1253, %v1294, 0.0
      %v1307 = vsel %vm1253, %v1295, 0.0
      %v1308 = vsel %vm1254, %v1292, 0.0
      %v1309 = vsel %vm1254, %v1293, 0.0
      %v1310 = vsel %vm1255, %v1290, 0.0
      %v1311 = vsel %vm1255, %v1291, 0.0
      %v1312 = vsel %vm1256, %v1288, 0.0
      %v1313 = vsel %vm1256, %v1289, 0.0
      %v1314 = vsel %vm1257, %v1286, 0.0
      %v1315 = vsel %vm1257, %v1287, 0.0
      %v1316 = vsel %vm1258, %v1284, 0.0
      %v1317 = vsel %vm1258, %v1285, 0.0
      %v1318 = vsel %vm1259, %v1282, 0.0
      %v1319 = vsel %vm1259, %v1283, 0.0
      %v1320 = vsel %vm1260, %v1300, 0.0
      %v1321 = vsel %vm1260, %v1301, 0.0
      %v1322 = vld [vmem:[%s5] sm:$0xf]
      %v1323 = vld [vmem:[%s5 + $0x4] sm:$0xf]
      %v1324 = vld [vmem:[%s5 + $0x8] sm:$0xf]
      %v1325 = vunpack.c.l.bf16 %v1322
      %v1326 = vunpack.c.l.bf16 %v1323
      %v1327 = vunpack.c.l.bf16 %v1324
      %v1329 = vlaneseq
      %v1330 = vshrl.u32 %v1329, 7
      %v1331 = vsub.s32 0, %v1330
      %v1332 = vrot.slane %v1325, %v1331
      %v1333 = vlaneseq
      %v1334 = vshrl.u32 %v1333, 7
      %v1335 = vsub.s32 4, %v1334
      %v1336 = vrot.slane %v1325, %v1335
      %v1339 = vlaneseq
      %v1340 = vshrl.u32 %v1339, 7
      %v1341 = vsub.s32 0, %v1340
      %v1342 = vrot.slane %v1332, %v1341
      %v1343 = vlaneseq
      %v1344 = vshrl.u32 %v1343, 7
      %v1345 = vsub.s32 0, %v1344
      %v1346 = vrot.slane %v1336, %v1345
      %v1347 = vmul.f32 %v1231, %v1342
      %v1348 = vmul.f32 %v1232, %v1346
      %v1349 = vmul.f32 %v1233, %v1342
      %v1350 = vmul.f32 %v1234, %v1346
      %v1351 = vmul.f32 %v1235, %v1342
      %v1352 = vmul.f32 %v1236, %v1346
      %v1353 = vmul.f32 %v1237, %v1342
      %v1354 = vmul.f32 %v1238, %v1346
      %v1355 = vmul.f32 %v1239, %v1342
      %v1356 = vmul.f32 %v1240, %v1346
      %v1357 = vmul.f32 %v1241, %v1342
      %v1358 = vmul.f32 %v1242, %v1346
      %v1359 = vmul.f32 %v1243, %v1342
      %v1360 = vmul.f32 %v1244, %v1346
      %v1361 = vmul.f32 %v1245, %v1342
      %v1362 = vmul.f32 %v1246, %v1346
      %v1363 = vadd.f32 %v1347, 0.0
      %v1364 = vadd.f32 %v1348, 0.0
      %v1365 = vadd.f32 %v1349, 0.0
      %v1366 = vadd.f32 %v1350, 0.0
      %v1367 = vadd.f32 %v1351, 0.0
      %v1368 = vadd.f32 %v1352, 0.0
      %v1369 = vadd.f32 %v1353, 0.0
      %v1370 = vadd.f32 %v1354, 0.0
      %v1371 = vadd.f32 %v1355, 0.0
      %v1372 = vadd.f32 %v1356, 0.0
      %v1373 = vadd.f32 %v1357, 0.0
      %v1374 = vadd.f32 %v1358, 0.0
      %v1375 = vadd.f32 %v1359, 0.0
      %v1376 = vadd.f32 %v1360, 0.0
      %v1377 = vadd.f32 %v1361, 0.0
      %v1378 = vadd.f32 %v1362, 0.0
      %v1380 = vlaneseq
      %v1381 = vshrl.u32 %v1380, 7
      %v1382 = vsub.s32 0, %v1381
      %v1383 = vrot.slane %v1326, %v1382
      %v1384 = vlaneseq
      %v1385 = vshrl.u32 %v1384, 7
      %v1386 = vsub.s32 4, %v1385
      %v1387 = vrot.slane %v1326, %v1386
      %v1390 = vlaneseq
      %v1391 = vshrl.u32 %v1390, 7
      %v1392 = vsub.s32 0, %v1391
      %v1393 = vrot.slane %v1383, %v1392
      %v1394 = vlaneseq
      %v1395 = vshrl.u32 %v1394, 7
      %v1396 = vsub.s32 0, %v1395
      %v1397 = vrot.slane %v1387, %v1396
      %v1398 = vmul.f32 %v1233, %v1393
      %v1399 = vmul.f32 %v1234, %v1397
      %v1400 = vmul.f32 %v1235, %v1393
      %v1401 = vmul.f32 %v1236, %v1397
      %v1402 = vmul.f32 %v1237, %v1393
      %v1403 = vmul.f32 %v1238, %v1397
      %v1404 = vmul.f32 %v1239, %v1393
      %v1405 = vmul.f32 %v1240, %v1397
      %v1406 = vmul.f32 %v1241, %v1393
      %v1407 = vmul.f32 %v1242, %v1397
      %v1408 = vmul.f32 %v1243, %v1393
      %v1409 = vmul.f32 %v1244, %v1397
      %v1410 = vmul.f32 %v1245, %v1393
      %v1411 = vmul.f32 %v1246, %v1397
      %v1412 = vmul.f32 %v1247, %v1393
      %v1413 = vmul.f32 %v1248, %v1397
      %v1414 = vadd.f32 %v1363, %v1398
      %v1415 = vadd.f32 %v1364, %v1399
      %v1416 = vadd.f32 %v1365, %v1400
      %v1417 = vadd.f32 %v1366, %v1401
      %v1418 = vadd.f32 %v1367, %v1402
      %v1419 = vadd.f32 %v1368, %v1403
      %v1420 = vadd.f32 %v1369, %v1404
      %v1421 = vadd.f32 %v1370, %v1405
      %v1422 = vadd.f32 %v1371, %v1406
      %v1423 = vadd.f32 %v1372, %v1407
      %v1424 = vadd.f32 %v1373, %v1408
      %v1425 = vadd.f32 %v1374, %v1409
      %v1426 = vadd.f32 %v1375, %v1410
      %v1427 = vadd.f32 %v1376, %v1411
      %v1428 = vadd.f32 %v1377, %v1412
      %v1429 = vadd.f32 %v1378, %v1413
      %v1431 = vlaneseq
      %v1432 = vshrl.u32 %v1431, 7
      %v1433 = vsub.s32 0, %v1432
      %v1434 = vrot.slane %v1327, %v1433
      %v1435 = vlaneseq
      %v1436 = vshrl.u32 %v1435, 7
      %v1437 = vsub.s32 4, %v1436
      %v1438 = vrot.slane %v1327, %v1437
      %v1441 = vlaneseq
      %v1442 = vshrl.u32 %v1441, 7
      %v1443 = vsub.s32 0, %v1442
      %v1444 = vrot.slane %v1434, %v1443
      %v1445 = vlaneseq
      %v1446 = vshrl.u32 %v1445, 7
      %v1447 = vsub.s32 0, %v1446
      %v1448 = vrot.slane %v1438, %v1447
      %v1449 = vmul.f32 %v1235, %v1444
      %v1450 = vmul.f32 %v1236, %v1448
      %v1451 = vmul.f32 %v1237, %v1444
      %v1452 = vmul.f32 %v1238, %v1448
      %v1453 = vmul.f32 %v1239, %v1444
      %v1454 = vmul.f32 %v1240, %v1448
      %v1455 = vmul.f32 %v1241, %v1444
      %v1456 = vmul.f32 %v1242, %v1448
      %v1457 = vmul.f32 %v1243, %v1444
      %v1458 = vmul.f32 %v1244, %v1448
      %v1459 = vmul.f32 %v1245, %v1444
      %v1460 = vmul.f32 %v1246, %v1448
      %v1461 = vmul.f32 %v1247, %v1444
      %v1462 = vmul.f32 %v1248, %v1448
      %v1463 = vmul.f32 %v1249, %v1444
      %v1464 = vmul.f32 %v1250, %v1448
      %v1465 = vadd.f32 %v1414, %v1449
      %v1466 = vadd.f32 %v1415, %v1450
      %v1467 = vadd.f32 %v1416, %v1451
      %v1468 = vadd.f32 %v1417, %v1452
      %v1469 = vadd.f32 %v1418, %v1453
      %v1470 = vadd.f32 %v1419, %v1454
      %v1471 = vadd.f32 %v1420, %v1455
      %v1472 = vadd.f32 %v1421, %v1456
      %v1473 = vadd.f32 %v1422, %v1457
      %v1474 = vadd.f32 %v1423, %v1458
      %v1475 = vadd.f32 %v1424, %v1459
      %v1476 = vadd.f32 %v1425, %v1460
      %v1477 = vadd.f32 %v1426, %v1461
      %v1478 = vadd.f32 %v1427, %v1462
      %v1479 = vadd.f32 %v1428, %v1463
      %v1480 = vadd.f32 %v1429, %v1464
      %v1481 = vlaneseq
      %v1482 = vshrl.u32 %v1481, 7
      %v1483 = vsub.s32 1, %v1482
      %v1484 = vrot.slane %v1325, %v1483
      %v1485 = vlaneseq
      %v1486 = vshrl.u32 %v1485, 7
      %v1487 = vsub.s32 5, %v1486
      %v1488 = vrot.slane %v1325, %v1487
      %v1491 = vlaneseq
      %v1492 = vshrl.u32 %v1491, 7
      %v1493 = vsub.s32 1, %v1492
      %v1494 = vrot.slane %v1484, %v1493
      %v1495 = vlaneseq
      %v1496 = vshrl.u32 %v1495, 7
      %v1497 = vsub.s32 1, %v1496
      %v1498 = vrot.slane %v1488, %v1497
      %v1499 = vmul.f32 %v985, %v1494
      %v1500 = vmul.f32 %v986, %v1498
      %v1501 = vmul.f32 %v910, %v1494
      %v1502 = vmul.f32 %v911, %v1498
      %v1503 = vmul.f32 %v912, %v1494
      %v1504 = vmul.f32 %v913, %v1498
      %v1505 = vmul.f32 %v914, %v1494
      %v1506 = vmul.f32 %v915, %v1498
      %v1507 = vmul.f32 %v916, %v1494
      %v1508 = vmul.f32 %v917, %v1498
      %v1509 = vmul.f32 %v918, %v1494
      %v1510 = vmul.f32 %v919, %v1498
      %v1511 = vmul.f32 %v920, %v1494
      %v1512 = vmul.f32 %v921, %v1498
      %v1513 = vmul.f32 %v922, %v1494
      %v1514 = vmul.f32 %v923, %v1498
      %v1515 = vadd.f32 %v1465, %v1499
      %v1516 = vadd.f32 %v1466, %v1500
      %v1517 = vadd.f32 %v1467, %v1501
      %v1518 = vadd.f32 %v1468, %v1502
      %v1519 = vadd.f32 %v1469, %v1503
      %v1520 = vadd.f32 %v1470, %v1504
      %v1521 = vadd.f32 %v1471, %v1505
      %v1522 = vadd.f32 %v1472, %v1506
      %v1523 = vadd.f32 %v1473, %v1507
      %v1524 = vadd.f32 %v1474, %v1508
      %v1525 = vadd.f32 %v1475, %v1509
      %v1526 = vadd.f32 %v1476, %v1510
      %v1527 = vadd.f32 %v1477, %v1511
      %v1528 = vadd.f32 %v1478, %v1512
      %v1529 = vadd.f32 %v1479, %v1513
      %v1530 = vadd.f32 %v1480, %v1514
      %v1531 = vlaneseq
      %v1532 = vshrl.u32 %v1531, 7
      %v1533 = vsub.s32 1, %v1532
      %v1534 = vrot.slane %v1326, %v1533
      %v1535 = vlaneseq
      %v1536 = vshrl.u32 %v1535, 7
      %v1537 = vsub.s32 5, %v1536
      %v1538 = vrot.slane %v1326, %v1537
      %v1541 = vlaneseq
      %v1542 = vshrl.u32 %v1541, 7
      %v1543 = vsub.s32 1, %v1542
      %v1544 = vrot.slane %v1534, %v1543
      %v1545 = vlaneseq
      %v1546 = vshrl.u32 %v1545, 7
      %v1547 = vsub.s32 1, %v1546
      %v1548 = vrot.slane %v1538, %v1547
      %v1549 = vmul.f32 %v910, %v1544
      %v1550 = vmul.f32 %v911, %v1548
      %v1551 = vmul.f32 %v912, %v1544
      %v1552 = vmul.f32 %v913, %v1548
      %v1553 = vmul.f32 %v914, %v1544
      %v1554 = vmul.f32 %v915, %v1548
      %v1555 = vmul.f32 %v916, %v1544
      %v1556 = vmul.f32 %v917, %v1548
      %v1557 = vmul.f32 %v918, %v1544
      %v1558 = vmul.f32 %v919, %v1548
      %v1559 = vmul.f32 %v920, %v1544
      %v1560 = vmul.f32 %v921, %v1548
      %v1561 = vmul.f32 %v922, %v1544
      %v1562 = vmul.f32 %v923, %v1548
      %v1563 = vmul.f32 %v924, %v1544
      %v1564 = vmul.f32 %v925, %v1548
      %v1565 = vadd.f32 %v1515, %v1549
      %v1566 = vadd.f32 %v1516, %v1550
      %v1567 = vadd.f32 %v1517, %v1551
      %v1568 = vadd.f32 %v1518, %v1552
      %v1569 = vadd.f32 %v1519, %v1553
      %v1570 = vadd.f32 %v1520, %v1554
      %v1571 = vadd.f32 %v1521, %v1555
      %v1572 = vadd.f32 %v1522, %v1556
      %v1573 = vadd.f32 %v1523, %v1557
      %v1574 = vadd.f32 %v1524, %v1558
      %v1575 = vadd.f32 %v1525, %v1559
      %v1576 = vadd.f32 %v1526, %v1560
      %v1577 = vadd.f32 %v1527, %v1561
      %v1578 = vadd.f32 %v1528, %v1562
      %v1579 = vadd.f32 %v1529, %v1563
      %v1580 = vadd.f32 %v1530, %v1564
      %v1581 = vlaneseq
      %v1582 = vshrl.u32 %v1581, 7
      %v1583 = vsub.s32 1, %v1582
      %v1584 = vrot.slane %v1327, %v1583
      %v1585 = vlaneseq
      %v1586 = vshrl.u32 %v1585, 7
      %v1587 = vsub.s32 5, %v1586
      %v1588 = vrot.slane %v1327, %v1587
      %v1591 = vlaneseq
      %v1592 = vshrl.u32 %v1591, 7
      %v1593 = vsub.s32 1, %v1592
      %v1594 = vrot.slane %v1584, %v1593
      %v1595 = vlaneseq
      %v1596 = vshrl.u32 %v1595, 7
      %v1597 = vsub.s32 1, %v1596
      %v1598 = vrot.slane %v1588, %v1597
      %v1599 = vmul.f32 %v912, %v1594
      %v1600 = vmul.f32 %v913, %v1598
      %v1601 = vmul.f32 %v914, %v1594
      %v1602 = vmul.f32 %v915, %v1598
      %v1603 = vmul.f32 %v916, %v1594
      %v1604 = vmul.f32 %v917, %v1598
      %v1605 = vmul.f32 %v918, %v1594
      %v1606 = vmul.f32 %v919, %v1598
      %v1607 = vmul.f32 %v920, %v1594
      %v1608 = vmul.f32 %v921, %v1598
      %v1609 = vmul.f32 %v922, %v1594
      %v1610 = vmul.f32 %v923, %v1598
      %v1611 = vmul.f32 %v924, %v1594
      %v1612 = vmul.f32 %v925, %v1598
      %v1613 = vmul.f32 %v1047, %v1594
      %v1614 = vmul.f32 %v1048, %v1598
      %v1615 = vadd.f32 %v1565, %v1599
      %v1616 = vadd.f32 %v1566, %v1600
      %v1617 = vadd.f32 %v1567, %v1601
      %v1618 = vadd.f32 %v1568, %v1602
      %v1619 = vadd.f32 %v1569, %v1603
      %v1620 = vadd.f32 %v1570, %v1604
      %v1621 = vadd.f32 %v1571, %v1605
      %v1622 = vadd.f32 %v1572, %v1606
      %v1623 = vadd.f32 %v1573, %v1607
      %v1624 = vadd.f32 %v1574, %v1608
      %v1625 = vadd.f32 %v1575, %v1609
      %v1626 = vadd.f32 %v1576, %v1610
      %v1627 = vadd.f32 %v1577, %v1611
      %v1628 = vadd.f32 %v1578, %v1612
      %v1629 = vadd.f32 %v1579, %v1613
      %v1630 = vadd.f32 %v1580, %v1614
      %v1631 = vlaneseq
      %v1632 = vshrl.u32 %v1631, 7
      %v1633 = vsub.s32 2, %v1632
      %v1634 = vrot.slane %v1325, %v1633
      %v1635 = vlaneseq
      %v1636 = vshrl.u32 %v1635, 7
      %v1637 = vsub.s32 6, %v1636
      %v1638 = vrot.slane %v1325, %v1637
      %v1641 = vlaneseq
      %v1642 = vshrl.u32 %v1641, 7
      %v1643 = vsub.s32 2, %v1642
      %v1644 = vrot.slane %v1634, %v1643
      %v1645 = vlaneseq
      %v1646 = vshrl.u32 %v1645, 7
      %v1647 = vsub.s32 2, %v1646
      %v1648 = vrot.slane %v1638, %v1647
      %v1649 = vmul.f32 %v1302, %v1644
      %v1650 = vmul.f32 %v1303, %v1648
      %v1651 = vmul.f32 %v1304, %v1644
      %v1652 = vmul.f32 %v1305, %v1648
      %v1653 = vmul.f32 %v1306, %v1644
      %v1654 = vmul.f32 %v1307, %v1648
      %v1655 = vmul.f32 %v1308, %v1644
      %v1656 = vmul.f32 %v1309, %v1648
      %v1657 = vmul.f32 %v1310, %v1644
      %v1658 = vmul.f32 %v1311, %v1648
      %v1659 = vmul.f32 %v1312, %v1644
      %v1660 = vmul.f32 %v1313, %v1648
      %v1661 = vmul.f32 %v1314, %v1644
      %v1662 = vmul.f32 %v1315, %v1648
      %v1663 = vmul.f32 %v1316, %v1644
      %v1664 = vmul.f32 %v1317, %v1648
      %v1665 = vadd.f32 %v1615, %v1649
      %v1666 = vadd.f32 %v1616, %v1650
      %v1667 = vadd.f32 %v1617, %v1651
      %v1668 = vadd.f32 %v1618, %v1652
      %v1669 = vadd.f32 %v1619, %v1653
      %v1670 = vadd.f32 %v1620, %v1654
      %v1671 = vadd.f32 %v1621, %v1655
      %v1672 = vadd.f32 %v1622, %v1656
      %v1673 = vadd.f32 %v1623, %v1657
      %v1674 = vadd.f32 %v1624, %v1658
      %v1675 = vadd.f32 %v1625, %v1659
      %v1676 = vadd.f32 %v1626, %v1660
      %v1677 = vadd.f32 %v1627, %v1661
      %v1678 = vadd.f32 %v1628, %v1662
      %v1679 = vadd.f32 %v1629, %v1663
      %v1680 = vadd.f32 %v1630, %v1664
      %v1681 = vlaneseq
      %v1682 = vshrl.u32 %v1681, 7
      %v1683 = vsub.s32 2, %v1682
      %v1684 = vrot.slane %v1326, %v1683
      %v1685 = vlaneseq
      %v1686 = vshrl.u32 %v1685, 7
      %v1687 = vsub.s32 6, %v1686
      %v1688 = vrot.slane %v1326, %v1687
      %v1691 = vlaneseq
      %v1692 = vshrl.u32 %v1691, 7
      %v1693 = vsub.s32 2, %v1692
      %v1694 = vrot.slane %v1684, %v1693
      %v1695 = vlaneseq
      %v1696 = vshrl.u32 %v1695, 7
      %v1697 = vsub.s32 2, %v1696
      %v1698 = vrot.slane %v1688, %v1697
      %v1699 = vmul.f32 %v1304, %v1694
      %v1700 = vmul.f32 %v1305, %v1698
      %v1701 = vmul.f32 %v1306, %v1694
      %v1702 = vmul.f32 %v1307, %v1698
      %v1703 = vmul.f32 %v1308, %v1694
      %v1704 = vmul.f32 %v1309, %v1698
      %v1705 = vmul.f32 %v1310, %v1694
      %v1706 = vmul.f32 %v1311, %v1698
      %v1707 = vmul.f32 %v1312, %v1694
      %v1708 = vmul.f32 %v1313, %v1698
      %v1709 = vmul.f32 %v1314, %v1694
      %v1710 = vmul.f32 %v1315, %v1698
      %v1711 = vmul.f32 %v1316, %v1694
      %v1712 = vmul.f32 %v1317, %v1698
      %v1713 = vmul.f32 %v1318, %v1694
      %v1714 = vmul.f32 %v1319, %v1698
      %v1715 = vadd.f32 %v1665, %v1699
      %v1716 = vadd.f32 %v1666, %v1700
      %v1717 = vadd.f32 %v1667, %v1701
      %v1718 = vadd.f32 %v1668, %v1702
      %v1719 = vadd.f32 %v1669, %v1703
      %v1720 = vadd.f32 %v1670, %v1704
      %v1721 = vadd.f32 %v1671, %v1705
      %v1722 = vadd.f32 %v1672, %v1706
      %v1723 = vadd.f32 %v1673, %v1707
      %v1724 = vadd.f32 %v1674, %v1708
      %v1725 = vadd.f32 %v1675, %v1709
      %v1726 = vadd.f32 %v1676, %v1710
      %v1727 = vadd.f32 %v1677, %v1711
      %v1728 = vadd.f32 %v1678, %v1712
      %v1729 = vadd.f32 %v1679, %v1713
      %v1730 = vadd.f32 %v1680, %v1714
      %v1731 = vlaneseq
      %v1732 = vshrl.u32 %v1731, 7
      %v1733 = vsub.s32 2, %v1732
      %v1734 = vrot.slane %v1327, %v1733
      %v1735 = vlaneseq
      %v1736 = vshrl.u32 %v1735, 7
      %v1737 = vsub.s32 6, %v1736
      %v1738 = vrot.slane %v1327, %v1737
      %v1741 = vlaneseq
      %v1742 = vshrl.u32 %v1741, 7
      %v1743 = vsub.s32 2, %v1742
      %v1744 = vrot.slane %v1734, %v1743
      %v1745 = vlaneseq
      %v1746 = vshrl.u32 %v1745, 7
      %v1747 = vsub.s32 2, %v1746
      %v1748 = vrot.slane %v1738, %v1747
      %v1749 = vmul.f32 %v1306, %v1744
      %v1750 = vmul.f32 %v1307, %v1748
      %v1751 = vmul.f32 %v1308, %v1744
      %v1752 = vmul.f32 %v1309, %v1748
      %v1753 = vmul.f32 %v1310, %v1744
      %v1754 = vmul.f32 %v1311, %v1748
      %v1755 = vmul.f32 %v1312, %v1744
      %v1756 = vmul.f32 %v1313, %v1748
      %v1757 = vmul.f32 %v1314, %v1744
      %v1758 = vmul.f32 %v1315, %v1748
      %v1759 = vmul.f32 %v1316, %v1744
      %v1760 = vmul.f32 %v1317, %v1748
      %v1761 = vmul.f32 %v1318, %v1744
      %v1762 = vmul.f32 %v1319, %v1748
      %v1763 = vmul.f32 %v1320, %v1744
      %v1764 = vmul.f32 %v1321, %v1748
      %v1765 = vadd.f32 %v1715, %v1749
      %v1766 = vadd.f32 %v1716, %v1750
      %v1767 = vadd.f32 %v1717, %v1751
      %v1768 = vadd.f32 %v1718, %v1752
      %v1769 = vadd.f32 %v1719, %v1753
      %v1770 = vadd.f32 %v1720, %v1754
      %v1771 = vadd.f32 %v1721, %v1755
      %v1772 = vadd.f32 %v1722, %v1756
      %v1773 = vadd.f32 %v1723, %v1757
      %v1774 = vadd.f32 %v1724, %v1758
      %v1775 = vadd.f32 %v1725, %v1759
      %v1776 = vadd.f32 %v1726, %v1760
      %v1777 = vadd.f32 %v1727, %v1761
      %v1778 = vadd.f32 %v1728, %v1762
      %v1779 = vadd.f32 %v1729, %v1763
      %v1780 = vadd.f32 %v1730, %v1764
      %v1781 = vld [vmem:[%s6] sm:$0x3]
      %v1782 = vunpack.c.l.bf16 %v1781
      %v1784 = vlaneseq
      %v1785 = vshrl.u32 %v1784, 7
      %v1786 = vsub.s32 0, %v1785
      %v1787 = vrot.slane %v1782, %v1786
      %v1788 = vlaneseq
      %v1789 = vshrl.u32 %v1788, 7
      %v1790 = vsub.s32 2, %v1789
      %v1791 = vrot.slane %v1782, %v1790
      %v1794 = vlaneseq
      %v1795 = vshrl.u32 %v1794, 7
      %v1796 = vsub.s32 0, %v1795
      %v1797 = vrot.slane %v1787, %v1796
      %v1798 = vlaneseq
      %v1799 = vshrl.u32 %v1798, 7
      %v1800 = vsub.s32 0, %v1799
      %v1801 = vrot.slane %v1791, %v1800
      %v1802 = vadd.f32 %v1765, %v1797
      %v1803 = vadd.f32 %v1766, %v1801
      %v1804 = vadd.f32 %v1767, %v1797
      %v1805 = vadd.f32 %v1768, %v1801
      %v1806 = vadd.f32 %v1769, %v1797
      %v1807 = vadd.f32 %v1770, %v1801
      %v1808 = vadd.f32 %v1771, %v1797
      %v1809 = vadd.f32 %v1772, %v1801
      %v1810 = vadd.f32 %v1773, %v1797
      %v1811 = vadd.f32 %v1774, %v1801
      %v1812 = vadd.f32 %v1775, %v1797
      %v1813 = vadd.f32 %v1776, %v1801
      %v1814 = vadd.f32 %v1777, %v1797
      %v1815 = vadd.f32 %v1778, %v1801
      %v1816 = vadd.f32 %v1779, %v1797
      %v1817 = vadd.f32 %v1780, %v1801
      %vm1818 = vcmp.ge.f32.partialorder %v1802, 0.0
      %vm1819 = vcmp.ge.f32.partialorder %v1803, 0.0
      %vm1820 = vcmp.ge.f32.partialorder %v1804, 0.0
      %vm1821 = vcmp.ge.f32.partialorder %v1805, 0.0
      %vm1822 = vcmp.ge.f32.partialorder %v1806, 0.0
      %vm1823 = vcmp.ge.f32.partialorder %v1807, 0.0
      %vm1824 = vcmp.ge.f32.partialorder %v1808, 0.0
      %vm1825 = vcmp.ge.f32.partialorder %v1809, 0.0
      %vm1826 = vcmp.ge.f32.partialorder %v1810, 0.0
      %vm1827 = vcmp.ge.f32.partialorder %v1811, 0.0
      %vm1828 = vcmp.ge.f32.partialorder %v1812, 0.0
      %vm1829 = vcmp.ge.f32.partialorder %v1813, 0.0
      %vm1830 = vcmp.ge.f32.partialorder %v1814, 0.0
      %vm1831 = vcmp.ge.f32.partialorder %v1815, 0.0
      %vm1832 = vcmp.ge.f32.partialorder %v1816, 0.0
      %vm1833 = vcmp.ge.f32.partialorder %v1817, 0.0
      %v1834 = vmul.f32 %v1802, 0.01
      %v1835 = vmul.f32 %v1803, 0.01
      %v1836 = vmul.f32 %v1804, 0.01
      %v1837 = vmul.f32 %v1805, 0.01
      %v1838 = vmul.f32 %v1806, 0.01
      %v1839 = vmul.f32 %v1807, 0.01
      %v1840 = vmul.f32 %v1808, 0.01
      %v1841 = vmul.f32 %v1809, 0.01
      %v1842 = vmul.f32 %v1810, 0.01
      %v1843 = vmul.f32 %v1811, 0.01
      %v1844 = vmul.f32 %v1812, 0.01
      %v1845 = vmul.f32 %v1813, 0.01
      %v1846 = vmul.f32 %v1814, 0.01
      %v1847 = vmul.f32 %v1815, 0.01
      %v1848 = vmul.f32 %v1816, 0.01
      %v1849 = vmul.f32 %v1817, 0.01
      %v1850 = vsel %vm1818, %v1802, %v1834
      %v1851 = vsel %vm1819, %v1803, %v1835
      %v1852 = vsel %vm1820, %v1804, %v1836
      %v1853 = vsel %vm1821, %v1805, %v1837
      %v1854 = vsel %vm1822, %v1806, %v1838
      %v1855 = vsel %vm1823, %v1807, %v1839
      %v1856 = vsel %vm1824, %v1808, %v1840
      %v1857 = vsel %vm1825, %v1809, %v1841
      %v1858 = vsel %vm1826, %v1810, %v1842
      %v1859 = vsel %vm1827, %v1811, %v1843
      %v1860 = vsel %vm1828, %v1812, %v1844
      %v1861 = vsel %vm1829, %v1813, %v1845
      %v1862 = vsel %vm1830, %v1814, %v1846
      %v1863 = vsel %vm1831, %v1815, %v1847
      %v1864 = vsel %vm1832, %v1816, %v1848
      %v1865 = vsel %vm1833, %v1817, %v1849
      %v1866 = vpack.c.bf16 %v1852, %v1850
      %v1867 = vpack.c.bf16 %v1853, %v1851
      %v1868 = vpack.c.bf16 %v1856, %v1854
      %v1869 = vpack.c.bf16 %v1857, %v1855
      %v1870 = vpack.c.bf16 %v1860, %v1858
      %v1871 = vpack.c.bf16 %v1861, %v1859
      %v1872 = vpack.c.bf16 %v1864, %v1862
      %v1873 = vpack.c.bf16 %v1865, %v1863
      %v1874 = vld [vmem:[%s7] sm:$0xff]
      %v1875 = vld [vmem:[%s7 + $0x8] sm:$0xff]
      %v1876 = vld [vmem:[%s7 + $0x10] sm:$0xff]
      %v1877 = vld [vmem:[%s7 + $0x18] sm:$0xff]
      %v1878 = vld [vmem:[%s7 + $0x20] sm:$0xff]
      %v1879 = vld [vmem:[%s7 + $0x28] sm:$0xff]
      %v1880 = vld [vmem:[%s7 + $0x30] sm:$0xff]
      %v1881 = vld [vmem:[%s7 + $0x38] sm:$0xff]
      %v1882 = vld [vmem:[%s7 + $0x40] sm:$0xff]
      %v1883 = vld [vmem:[%s7 + $0x48] sm:$0xff]
      %v1884 = vld [vmem:[%s7 + $0x50] sm:$0xff]
      %v1885 = vld [vmem:[%s7 + $0x58] sm:$0xff]
      %v1886 = vld [vmem:[%s7 + $0x60] sm:$0xff]
      %v1887 = vld [vmem:[%s7 + $0x68] sm:$0xff]
      %v1888 = vld [vmem:[%s7 + $0x70] sm:$0xff]
      %v1889 = vld [vmem:[%s7 + $0x78] sm:$0xff]
      %v1890 = vld [vmem:[%s7 + $0x80] sm:$0xff]
      %v1891 = vld [vmem:[%s7 + $0x88] sm:$0xff]
      %v1892 = vld [vmem:[%s7 + $0x90] sm:$0xff]
      %v1893 = vld [vmem:[%s7 + $0x98] sm:$0xff]
      %v1894 = vld [vmem:[%s7 + $0xa0] sm:$0xff]
      %v1895 = vld [vmem:[%s7 + $0xa8] sm:$0xff]
      %v1896 = vld [vmem:[%s7 + $0xb0] sm:$0xff]
      %v1897 = vld [vmem:[%s7 + $0xb8] sm:$0xff]
      %v1898 = vld [vmem:[%s7 + $0xc0] sm:$0xff]
      %v1899 = vld [vmem:[%s7 + $0xc8] sm:$0xff]
      %v1900 = vld [vmem:[%s7 + $0xd0] sm:$0xff]
      %v1901 = vld [vmem:[%s7 + $0xd8] sm:$0xff]
      %v1902 = vld [vmem:[%s7 + $0xe0] sm:$0xff]
      %v1903 = vld [vmem:[%s7 + $0xe8] sm:$0xff]
      %v1904 = vld [vmem:[%s7 + $0xf0] sm:$0xff]
      %v1905 = vld [vmem:[%s7 + $0xf8] sm:$0xff]
      %v1906 = vld [vmem:[%s8] sm:$0x3]
      %v1907 = vunpack.c.l.bf16 %v1906
      %v1909 = vlaneseq
      %v1910 = vshrl.u32 %v1909, 7
      %v1911 = vsub.s32 0, %v1910
      %v1912 = vrot.slane %v1907, %v1911
      %v1913 = vlaneseq
      %v1914 = vshrl.u32 %v1913, 7
      %v1915 = vsub.s32 2, %v1914
      %v1916 = vrot.slane %v1907, %v1915
      %v1919 = vlaneseq
      %v1920 = vshrl.u32 %v1919, 7
      %v1921 = vsub.s32 0, %v1920
      %v1922 = vrot.slane %v1912, %v1921
      %v1923 = vlaneseq
      %v1924 = vshrl.u32 %v1923, 7
      %v1925 = vsub.s32 0, %v1924
      %v1926 = vrot.slane %v1916, %v1925
      %v1959 = vunpack.c.l.b16 %v1874
      %v1960 = vunpack.c.h.b16 %v1874
      %v1961 = vunpack.c.l.b16 %v1875
      %v1962 = vunpack.c.h.b16 %v1875
      %v1963 = vunpack.c.l.b16 %v1876
      %v1964 = vunpack.c.h.b16 %v1876
      %v1965 = vunpack.c.l.b16 %v1877
      %v1966 = vunpack.c.h.b16 %v1877
      %v1967 = vunpack.c.l.b16 %v1878
      %v1968 = vunpack.c.h.b16 %v1878
      %v1969 = vunpack.c.l.b16 %v1879
      %v1970 = vunpack.c.h.b16 %v1879
      %v1971 = vunpack.c.l.b16 %v1880
      %v1972 = vunpack.c.h.b16 %v1880
      %v1973 = vunpack.c.l.b16 %v1881
      %v1974 = vunpack.c.h.b16 %v1881
      %v1975 = vunpack.c.l.b16 %v1882
      %v1976 = vunpack.c.h.b16 %v1882
      %v1977 = vunpack.c.l.b16 %v1883
      %v1978 = vunpack.c.h.b16 %v1883
      %v1979 = vunpack.c.l.b16 %v1884
      %v1980 = vunpack.c.h.b16 %v1884
      %v1981 = vunpack.c.l.b16 %v1885
      %v1982 = vunpack.c.h.b16 %v1885
      %v1983 = vunpack.c.l.b16 %v1886
      %v1984 = vunpack.c.h.b16 %v1886
      %v1985 = vunpack.c.l.b16 %v1887
      %v1986 = vunpack.c.h.b16 %v1887
      %v1987 = vunpack.c.l.b16 %v1888
      %v1988 = vunpack.c.h.b16 %v1888
      %v1989 = vunpack.c.l.b16 %v1889
      %v1990 = vunpack.c.h.b16 %v1889
      %v1991 = vunpack.c.l.b16 %v1890
      %v1992 = vunpack.c.h.b16 %v1890
      %v1993 = vunpack.c.l.b16 %v1891
      %v1994 = vunpack.c.h.b16 %v1891
      %v1995 = vunpack.c.l.b16 %v1892
      %v1996 = vunpack.c.h.b16 %v1892
      %v1997 = vunpack.c.l.b16 %v1893
      %v1998 = vunpack.c.h.b16 %v1893
      %v1999 = vunpack.c.l.b16 %v1894
      %v2000 = vunpack.c.h.b16 %v1894
      %v2001 = vunpack.c.l.b16 %v1895
      %v2002 = vunpack.c.h.b16 %v1895
      %v2003 = vunpack.c.l.b16 %v1896
      %v2004 = vunpack.c.h.b16 %v1896
      %v2005 = vunpack.c.l.b16 %v1897
      %v2006 = vunpack.c.h.b16 %v1897
      %v2007 = vunpack.c.l.b16 %v1898
      %v2008 = vunpack.c.h.b16 %v1898
      %v2009 = vunpack.c.l.b16 %v1899
      %v2010 = vunpack.c.h.b16 %v1899
      %v2011 = vunpack.c.l.b16 %v1900
      %v2012 = vunpack.c.h.b16 %v1900
      %v2013 = vunpack.c.l.b16 %v1901
      %v2014 = vunpack.c.h.b16 %v1901
      %v2015 = vunpack.c.l.b16 %v1902
      %v2016 = vunpack.c.h.b16 %v1902
      %v2017 = vunpack.c.l.b16 %v1903
      %v2018 = vunpack.c.h.b16 %v1903
      %v2019 = vunpack.c.l.b16 %v1904
      %v2020 = vunpack.c.h.b16 %v1904
      %v2021 = vunpack.c.l.b16 %v1905
      %v2022 = vunpack.c.h.b16 %v1905
      %v2023 = vpack.c.b16 %v1961, %v1959
      %v2024 = vpack.c.b16 %v1962, %v1960
      %v2025 = vpack.c.b16 %v1965, %v1963
      %v2026 = vpack.c.b16 %v1966, %v1964
      %v2027 = vpack.c.b16 %v1969, %v1967
      %v2028 = vpack.c.b16 %v1970, %v1968
      %v2029 = vpack.c.b16 %v1973, %v1971
      %v2030 = vpack.c.b16 %v1974, %v1972
      %v2031 = vpack.c.b16 %v1977, %v1975
      %v2032 = vpack.c.b16 %v1978, %v1976
      %v2033 = vpack.c.b16 %v1981, %v1979
      %v2034 = vpack.c.b16 %v1982, %v1980
      %v2035 = vpack.c.b16 %v1985, %v1983
      %v2036 = vpack.c.b16 %v1986, %v1984
      %v2037 = vpack.c.b16 %v1989, %v1987
      %v2038 = vpack.c.b16 %v1990, %v1988
      %v2039 = vpack.c.b16 %v1993, %v1991
      %v2040 = vpack.c.b16 %v1994, %v1992
      %v2041 = vpack.c.b16 %v1997, %v1995
      %v2042 = vpack.c.b16 %v1998, %v1996
      %v2043 = vpack.c.b16 %v2001, %v1999
      %v2044 = vpack.c.b16 %v2002, %v2000
      %v2045 = vpack.c.b16 %v2005, %v2003
      %v2046 = vpack.c.b16 %v2006, %v2004
      %v2047 = vpack.c.b16 %v2009, %v2007
      %v2048 = vpack.c.b16 %v2010, %v2008
      %v2049 = vpack.c.b16 %v2013, %v2011
      %v2050 = vpack.c.b16 %v2014, %v2012
      %v2051 = vpack.c.b16 %v2017, %v2015
      %v2052 = vpack.c.b16 %v2018, %v2016
      %v2053 = vpack.c.b16 %v2021, %v2019
      %v2054 = vpack.c.b16 %v2022, %v2020
      %2087 = vmatprep.subr.bf16.mxu0 %v2024
      %2088 = vmatpush1.bf16.msra.mxu0 %v2023
      %2089 = vmatprep.subr.bf16.mxu0 %v2026
      %2090 = vmatpush1.bf16.msra.mxu0 %v2025
      %2091 = vmatprep.subr.bf16.mxu0 %v2028
      %2092 = vmatpush1.bf16.msra.mxu0 %v2027
      %2093 = vmatprep.subr.bf16.mxu0 %v2030
      %2094 = vmatpush1.bf16.msra.mxu0 %v2029
      %2095 = vmatprep.subr.bf16.mxu0 %v2032
      %2096 = vmatpush1.bf16.msra.mxu0 %v2031
      %2097 = vmatprep.subr.bf16.mxu0 %v2034
      %2098 = vmatpush1.bf16.msra.mxu0 %v2033
      %2099 = vmatprep.subr.bf16.mxu0 %v2036
      %2100 = vmatpush1.bf16.msra.mxu0 %v2035
      %2101 = vmatprep.subr.bf16.mxu0 %v2038
      %2102 = vmatpush1.bf16.msra.mxu0 %v2037
      %2103 = vmatprep.subr.bf16.mxu0 %v2040
      %2104 = vmatpush1.bf16.msra.mxu0 %v2039
      %2105 = vmatprep.subr.bf16.mxu0 %v2042
      %2106 = vmatpush1.bf16.msra.mxu0 %v2041
      %2107 = vmatprep.subr.bf16.mxu0 %v2044
      %2108 = vmatpush1.bf16.msra.mxu0 %v2043
      %2109 = vmatprep.subr.bf16.mxu0 %v2046
      %2110 = vmatpush1.bf16.msra.mxu0 %v2045
      %2111 = vmatprep.subr.bf16.mxu0 %v2048
      %2112 = vmatpush1.bf16.msra.mxu0 %v2047
      %2113 = vmatprep.subr.bf16.mxu0 %v2050
      %2114 = vmatpush1.bf16.msra.mxu0 %v2049
      %2115 = vmatprep.subr.bf16.mxu0 %v2052
      %2116 = vmatpush1.bf16.msra.mxu0 %v2051
      %2117 = vmatprep.subr.bf16.mxu0 %v2054
      %2118 = vmatpush1.bf16.msra.mxu0 %v2053
      %2119 = vmatprep.mubr.bf16.mxu0 %v1867
      %2120 = vmatmul.mubr.bf16.gmra.mrb[0].mxu0 %v1866
      %v2121 = vpop.f32.mrb[0].mxu0
      %v2122 = vadd.f32 %v1922, %v2121
      %v2123 = vpop.f32.mrb[0].mxu0
      %v2124 = vadd.f32 %v1926, %v2123
      %v2125 = vpop.f32.mrb[0].mxu0
      %v2126 = vadd.f32 %v1922, %v2125
      %v2127 = vpop.f32.mrb[0].mxu0
      %v2128 = vadd.f32 %v1926, %v2127
      %2129 = vmatprep.mubr.bf16.mxu0 %v1869
      %2130 = vmatmul.mubr.bf16.gmra.mrb[0].mxu0 %v1868
      %v2131 = vpop.f32.mrb[0].mxu0
      %v2132 = vadd.f32 %v1922, %v2131
      %v2133 = vpop.f32.mrb[0].mxu0
      %v2134 = vadd.f32 %v1926, %v2133
      %v2135 = vpop.f32.mrb[0].mxu0
      %v2136 = vadd.f32 %v1922, %v2135
      %v2137 = vpop.f32.mrb[0].mxu0
      %v2138 = vadd.f32 %v1926, %v2137
      %2139 = vmatprep.mubr.bf16.mxu0 %v1871
      %2140 = vmatmul.mubr.bf16.gmra.mrb[0].mxu0 %v1870
      %v2141 = vpop.f32.mrb[0].mxu0
      %v2142 = vadd.f32 %v1922, %v2141
      %v2143 = vpop.f32.mrb[0].mxu0
      %v2144 = vadd.f32 %v1926, %v2143
      %v2145 = vpop.f32.mrb[0].mxu0
      %v2146 = vadd.f32 %v1922, %v2145
      %v2147 = vpop.f32.mrb[0].mxu0
      %v2148 = vadd.f32 %v1926, %v2147
      %2149 = vmatprep.mubr.bf16.mxu0 %v1873
      %2150 = vmatmul.mubr.bf16.gmra.mrb[0].mxu0 %v1872
      %v2151 = vpop.f32.mrb[0].mxu0
      %v2152 = vadd.f32 %v1922, %v2151
      %v2153 = vpop.f32.mrb[0].mxu0
      %v2154 = vadd.f32 %v1926, %v2153
      %v2155 = vpop.f32.mrb[0].mxu0
      %v2156 = vadd.f32 %v1922, %v2155
      %v2157 = vpop.f32.mrb[0].mxu0
      %v2158 = vadd.f32 %v1926, %v2157
      %2159 = vdwg.mxu0
      %v2160 = vld [vmem:[%s9] sm:$0xff]
      %v2161 = vld [vmem:[%s9 + $0x8] sm:$0xff]
      %v2162 = vld [vmem:[%s9 + $0x10] sm:$0xff]
      %v2163 = vld [vmem:[%s9 + $0x18] sm:$0xff]
      %v2164 = vld [vmem:[%s9 + $0x20] sm:$0xff]
      %v2165 = vld [vmem:[%s9 + $0x28] sm:$0xff]
      %v2166 = vld [vmem:[%s9 + $0x30] sm:$0xff]
      %v2167 = vld [vmem:[%s9 + $0x38] sm:$0xff]
      %v2168 = vld [vmem:[%s9 + $0x40] sm:$0xff]
      %v2169 = vld [vmem:[%s9 + $0x48] sm:$0xff]
      %v2170 = vld [vmem:[%s9 + $0x50] sm:$0xff]
      %v2171 = vld [vmem:[%s9 + $0x58] sm:$0xff]
      %v2172 = vld [vmem:[%s9 + $0x60] sm:$0xff]
      %v2173 = vld [vmem:[%s9 + $0x68] sm:$0xff]
      %v2174 = vld [vmem:[%s9 + $0x70] sm:$0xff]
      %v2175 = vld [vmem:[%s9 + $0x78] sm:$0xff]
      %v2176 = vld [vmem:[%s9 + $0x80] sm:$0xff]
      %v2177 = vld [vmem:[%s9 + $0x88] sm:$0xff]
      %v2178 = vld [vmem:[%s9 + $0x90] sm:$0xff]
      %v2179 = vld [vmem:[%s9 + $0x98] sm:$0xff]
      %v2180 = vld [vmem:[%s9 + $0xa0] sm:$0xff]
      %v2181 = vld [vmem:[%s9 + $0xa8] sm:$0xff]
      %v2182 = vld [vmem:[%s9 + $0xb0] sm:$0xff]
      %v2183 = vld [vmem:[%s9 + $0xb8] sm:$0xff]
      %v2184 = vld [vmem:[%s9 + $0xc0] sm:$0xff]
      %v2185 = vld [vmem:[%s9 + $0xc8] sm:$0xff]
      %v2186 = vld [vmem:[%s9 + $0xd0] sm:$0xff]
      %v2187 = vld [vmem:[%s9 + $0xd8] sm:$0xff]
      %v2188 = vld [vmem:[%s9 + $0xe0] sm:$0xff]
      %v2189 = vld [vmem:[%s9 + $0xe8] sm:$0xff]
      %v2190 = vld [vmem:[%s9 + $0xf0] sm:$0xff]
      %v2191 = vld [vmem:[%s9 + $0xf8] sm:$0xff]
      %v2224 = vunpack.c.l.b16 %v2160
      %v2225 = vunpack.c.h.b16 %v2160
      %v2226 = vunpack.c.l.b16 %v2161
      %v2227 = vunpack.c.h.b16 %v2161
      %v2228 = vunpack.c.l.b16 %v2162
      %v2229 = vunpack.c.h.b16 %v2162
      %v2230 = vunpack.c.l.b16 %v2163
      %v2231 = vunpack.c.h.b16 %v2163
      %v2232 = vunpack.c.l.b16 %v2164
      %v2233 = vunpack.c.h.b16 %v2164
      %v2234 = vunpack.c.l.b16 %v2165
      %v2235 = vunpack.c.h.b16 %v2165
      %v2236 = vunpack.c.l.b16 %v2166
      %v2237 = vunpack.c.h.b16 %v2166
      %v2238 = vunpack.c.l.b16 %v2167
      %v2239 = vunpack.c.h.b16 %v2167
      %v2240 = vunpack.c.l.b16 %v2168
      %v2241 = vunpack.c.h.b16 %v2168
      %v2242 = vunpack.c.l.b16 %v2169
      %v2243 = vunpack.c.h.b16 %v2169
      %v2244 = vunpack.c.l.b16 %v2170
      %v2245 = vunpack.c.h.b16 %v2170
      %v2246 = vunpack.c.l.b16 %v2171
      %v2247 = vunpack.c.h.b16 %v2171
      %v2248 = vunpack.c.l.b16 %v2172
      %v2249 = vunpack.c.h.b16 %v2172
      %v2250 = vunpack.c.l.b16 %v2173
      %v2251 = vunpack.c.h.b16 %v2173
      %v2252 = vunpack.c.l.b16 %v2174
      %v2253 = vunpack.c.h.b16 %v2174
      %v2254 = vunpack.c.l.b16 %v2175
      %v2255 = vunpack.c.h.b16 %v2175
      %v2256 = vunpack.c.l.b16 %v2176
      %v2257 = vunpack.c.h.b16 %v2176
      %v2258 = vunpack.c.l.b16 %v2177
      %v2259 = vunpack.c.h.b16 %v2177
      %v2260 = vunpack.c.l.b16 %v2178
      %v2261 = vunpack.c.h.b16 %v2178
      %v2262 = vunpack.c.l.b16 %v2179
      %v2263 = vunpack.c.h.b16 %v2179
      %v2264 = vunpack.c.l.b16 %v2180
      %v2265 = vunpack.c.h.b16 %v2180
      %v2266 = vunpack.c.l.b16 %v2181
      %v2267 = vunpack.c.h.b16 %v2181
      %v2268 = vunpack.c.l.b16 %v2182
      %v2269 = vunpack.c.h.b16 %v2182
      %v2270 = vunpack.c.l.b16 %v2183
      %v2271 = vunpack.c.h.b16 %v2183
      %v2272 = vunpack.c.l.b16 %v2184
      %v2273 = vunpack.c.h.b16 %v2184
      %v2274 = vunpack.c.l.b16 %v2185
      %v2275 = vunpack.c.h.b16 %v2185
      %v2276 = vunpack.c.l.b16 %v2186
      %v2277 = vunpack.c.h.b16 %v2186
      %v2278 = vunpack.c.l.b16 %v2187
      %v2279 = vunpack.c.h.b16 %v2187
      %v2280 = vunpack.c.l.b16 %v2188
      %v2281 = vunpack.c.h.b16 %v2188
      %v2282 = vunpack.c.l.b16 %v2189
      %v2283 = vunpack.c.h.b16 %v2189
      %v2284 = vunpack.c.l.b16 %v2190
      %v2285 = vunpack.c.h.b16 %v2190
      %v2286 = vunpack.c.l.b16 %v2191
      %v2287 = vunpack.c.h.b16 %v2191
      %v2288 = vpack.c.b16 %v2226, %v2224
      %v2289 = vpack.c.b16 %v2227, %v2225
      %v2290 = vpack.c.b16 %v2230, %v2228
      %v2291 = vpack.c.b16 %v2231, %v2229
      %v2292 = vpack.c.b16 %v2234, %v2232
      %v2293 = vpack.c.b16 %v2235, %v2233
      %v2294 = vpack.c.b16 %v2238, %v2236
      %v2295 = vpack.c.b16 %v2239, %v2237
      %v2296 = vpack.c.b16 %v2242, %v2240
      %v2297 = vpack.c.b16 %v2243, %v2241
      %v2298 = vpack.c.b16 %v2246, %v2244
      %v2299 = vpack.c.b16 %v2247, %v2245
      %v2300 = vpack.c.b16 %v2250, %v2248
      %v2301 = vpack.c.b16 %v2251, %v2249
      %v2302 = vpack.c.b16 %v2254, %v2252
      %v2303 = vpack.c.b16 %v2255, %v2253
      %v2304 = vpack.c.b16 %v2258, %v2256
      %v2305 = vpack.c.b16 %v2259, %v2257
      %v2306 = vpack.c.b16 %v2262, %v2260
      %v2307 = vpack.c.b16 %v2263, %v2261
      %v2308 = vpack.c.b16 %v2266, %v2264
      %v2309 = vpack.c.b16 %v2267, %v2265
      %v2310 = vpack.c.b16 %v2270, %v2268
      %v2311 = vpack.c.b16 %v2271, %v2269
      %v2312 = vpack.c.b16 %v2274, %v2272
      %v2313 = vpack.c.b16 %v2275, %v2273
      %v2314 = vpack.c.b16 %v2278, %v2276
      %v2315 = vpack.c.b16 %v2279, %v2277
      %v2316 = vpack.c.b16 %v2282, %v2280
      %v2317 = vpack.c.b16 %v2283, %v2281
      %v2318 = vpack.c.b16 %v2286, %v2284
      %v2319 = vpack.c.b16 %v2287, %v2285
      %2352 = vmatprep.subr.bf16.mxu0 %v2289
      %2353 = vmatpush1.bf16.msra.mxu0 %v2288
      %2354 = vmatprep.subr.bf16.mxu0 %v2291
      %2355 = vmatpush1.bf16.msra.mxu0 %v2290
      %2356 = vmatprep.subr.bf16.mxu0 %v2293
      %2357 = vmatpush1.bf16.msra.mxu0 %v2292
      %2358 = vmatprep.subr.bf16.mxu0 %v2295
      %2359 = vmatpush1.bf16.msra.mxu0 %v2294
      %2360 = vmatprep.subr.bf16.mxu0 %v2297
      %2361 = vmatpush1.bf16.msra.mxu0 %v2296
      %2362 = vmatprep.subr.bf16.mxu0 %v2299
      %2363 = vmatpush1.bf16.msra.mxu0 %v2298
      %2364 = vmatprep.subr.bf16.mxu0 %v2301
      %2365 = vmatpush1.bf16.msra.mxu0 %v2300
      %2366 = vmatprep.subr.bf16.mxu0 %v2303
      %2367 = vmatpush1.bf16.msra.mxu0 %v2302
      %2368 = vmatprep.subr.bf16.mxu0 %v2305
      %2369 = vmatpush1.bf16.msra.mxu0 %v2304
      %2370 = vmatprep.subr.bf16.mxu0 %v2307
      %2371 = vmatpush1.bf16.msra.mxu0 %v2306
      %2372 = vmatprep.subr.bf16.mxu0 %v2309
      %2373 = vmatpush1.bf16.msra.mxu0 %v2308
      %2374 = vmatprep.subr.bf16.mxu0 %v2311
      %2375 = vmatpush1.bf16.msra.mxu0 %v2310
      %2376 = vmatprep.subr.bf16.mxu0 %v2313
      %2377 = vmatpush1.bf16.msra.mxu0 %v2312
      %2378 = vmatprep.subr.bf16.mxu0 %v2315
      %2379 = vmatpush1.bf16.msra.mxu0 %v2314
      %2380 = vmatprep.subr.bf16.mxu0 %v2317
      %2381 = vmatpush1.bf16.msra.mxu0 %v2316
      %2382 = vmatprep.subr.bf16.mxu0 %v2319
      %2383 = vmatpush1.bf16.msra.mxu0 %v2318
      %2384 = vmatprep.mubr.bf16.mxu0 %v630
      %2385 = vmatmul.mubr.bf16.gmra.mrb[0].mxu0 %v629
      %v2386 = vpop.f32.mrb[0].mxu0
      %v2387 = vadd.f32 0.0, %v2386
      %v2388 = vpop.f32.mrb[0].mxu0
      %v2389 = vadd.f32 0.0, %v2388
      %v2390 = vpop.f32.mrb[0].mxu0
      %v2391 = vadd.f32 0.0, %v2390
      %v2392 = vpop.f32.mrb[0].mxu0
      %v2393 = vadd.f32 0.0, %v2392
      %2394 = vmatprep.mubr.bf16.mxu0 %v632
      %2395 = vmatmul.mubr.bf16.gmra.mrb[0].mxu0 %v631
      %v2396 = vpop.f32.mrb[0].mxu0
      %v2397 = vadd.f32 0.0, %v2396
      %v2398 = vpop.f32.mrb[0].mxu0
      %v2399 = vadd.f32 0.0, %v2398
      %v2400 = vpop.f32.mrb[0].mxu0
      %v2401 = vadd.f32 0.0, %v2400
      %v2402 = vpop.f32.mrb[0].mxu0
      %v2403 = vadd.f32 0.0, %v2402
      %2404 = vmatprep.mubr.bf16.mxu0 %v634
      %2405 = vmatmul.mubr.bf16.gmra.mrb[0].mxu0 %v633
      %v2406 = vpop.f32.mrb[0].mxu0
      %v2407 = vadd.f32 0.0, %v2406
      %v2408 = vpop.f32.mrb[0].mxu0
      %v2409 = vadd.f32 0.0, %v2408
      %v2410 = vpop.f32.mrb[0].mxu0
      %v2411 = vadd.f32 0.0, %v2410
      %v2412 = vpop.f32.mrb[0].mxu0
      %v2413 = vadd.f32 0.0, %v2412
      %2414 = vmatprep.mubr.bf16.mxu0 %v636
      %2415 = vmatmul.mubr.bf16.gmra.mrb[0].mxu0 %v635
      %v2416 = vpop.f32.mrb[0].mxu0
      %v2417 = vadd.f32 0.0, %v2416
      %v2418 = vpop.f32.mrb[0].mxu0
      %v2419 = vadd.f32 0.0, %v2418
      %v2420 = vpop.f32.mrb[0].mxu0
      %v2421 = vadd.f32 0.0, %v2420
      %v2422 = vpop.f32.mrb[0].mxu0
      %v2423 = vadd.f32 0.0, %v2422
      %2424 = vdwg.mxu0
      %v2425 = vadd.f32 %v2122, %v2387
      %v2426 = vadd.f32 %v2124, %v2389
      %v2427 = vadd.f32 %v2126, %v2391
      %v2428 = vadd.f32 %v2128, %v2393
      %v2429 = vadd.f32 %v2132, %v2397
      %v2430 = vadd.f32 %v2134, %v2399
      %v2431 = vadd.f32 %v2136, %v2401
      %v2432 = vadd.f32 %v2138, %v2403
      %v2433 = vadd.f32 %v2142, %v2407
      %v2434 = vadd.f32 %v2144, %v2409
      %v2435 = vadd.f32 %v2146, %v2411
      %v2436 = vadd.f32 %v2148, %v2413
      %v2437 = vadd.f32 %v2152, %v2417
      %v2438 = vadd.f32 %v2154, %v2419
      %v2439 = vadd.f32 %v2156, %v2421
      %v2440 = vadd.f32 %v2158, %v2423
      %v2441 = vld [vmem:[%s10] sm:$0x3]
      %v2442 = vunpack.c.l.bf16 %v2441
      %v2444 = vlaneseq
      %v2445 = vshrl.u32 %v2444, 7
      %v2446 = vsub.s32 0, %v2445
      %v2447 = vrot.slane %v2442, %v2446
      %v2448 = vlaneseq
      %v2449 = vshrl.u32 %v2448, 7
      %v2450 = vsub.s32 2, %v2449
      %v2451 = vrot.slane %v2442, %v2450
      %v2454 = vlaneseq
      %v2455 = vshrl.u32 %v2454, 7
      %v2456 = vsub.s32 0, %v2455
      %v2457 = vrot.slane %v2447, %v2456
      %v2458 = vlaneseq
      %v2459 = vshrl.u32 %v2458, 7
      %v2460 = vsub.s32 0, %v2459
      %v2461 = vrot.slane %v2451, %v2460
      %v2462 = vadd.f32 %v2425, %v2457
      %v2463 = vadd.f32 %v2426, %v2461
      %v2464 = vadd.f32 %v2427, %v2457
      %v2465 = vadd.f32 %v2428, %v2461
      %v2466 = vadd.f32 %v2429, %v2457
      %v2467 = vadd.f32 %v2430, %v2461
      %v2468 = vadd.f32 %v2431, %v2457
      %v2469 = vadd.f32 %v2432, %v2461
      %v2470 = vadd.f32 %v2433, %v2457
      %v2471 = vadd.f32 %v2434, %v2461
      %v2472 = vadd.f32 %v2435, %v2457
      %v2473 = vadd.f32 %v2436, %v2461
      %v2474 = vadd.f32 %v2437, %v2457
      %v2475 = vadd.f32 %v2438, %v2461
      %v2476 = vadd.f32 %v2439, %v2457
      %v2477 = vadd.f32 %v2440, %v2461
      %v2478 = vpack.c.bf16 %v2464, %v2462
      %v2479 = vpack.c.bf16 %v2465, %v2463
      %v2480 = vpack.c.bf16 %v2468, %v2466
      %v2481 = vpack.c.bf16 %v2469, %v2467
      %v2482 = vpack.c.bf16 %v2472, %v2470
      %v2483 = vpack.c.bf16 %v2473, %v2471
      %v2484 = vpack.c.bf16 %v2476, %v2474
      %v2485 = vpack.c.bf16 %v2477, %v2475
      %v2494 = vunpack.c.l.b16 %v2478
      %v2495 = vunpack.c.l.b16 %v2479
      %v2496 = vunpack.c.h.b16 %v2478
      %v2497 = vunpack.c.h.b16 %v2479
      %v2498 = vunpack.c.l.b16 %v2480
      %v2499 = vunpack.c.l.b16 %v2481
      %v2500 = vunpack.c.h.b16 %v2480
      %v2501 = vunpack.c.h.b16 %v2481
      %v2502 = vunpack.c.l.b16 %v2482
      %v2503 = vunpack.c.l.b16 %v2483
      %v2504 = vunpack.c.h.b16 %v2482
      %v2505 = vunpack.c.h.b16 %v2483
      %v2506 = vunpack.c.l.b16 %v2484
      %v2507 = vunpack.c.l.b16 %v2485
      %v2508 = vunpack.c.h.b16 %v2484
      %v2509 = vunpack.c.h.b16 %v2485
      %v2510 = vpack.c.b16 %v2495, %v2494
      %v2511 = vpack.c.b16 %v2497, %v2496
      %v2512 = vpack.c.b16 %v2499, %v2498
      %v2513 = vpack.c.b16 %v2501, %v2500
      %v2514 = vpack.c.b16 %v2503, %v2502
      %v2515 = vpack.c.b16 %v2505, %v2504
      %v2516 = vpack.c.b16 %v2507, %v2506
      %v2517 = vpack.c.b16 %v2509, %v2508
      %vm2526 = vcmask 1043456
      %vm2527 = vcmask 523268
      %vm2528 = vmor %vm2527, %vm2526
      %2529 = vst.msk [vmem:[%s540] sm:$0xff] %vm2528, %v2510
      %2530 = vst.msk [vmem:[%s540 + $0x8] sm:$0xff] %vm2528, %v2511
      %2531 = vst.msk [vmem:[%s540 + $0x10] sm:$0xff] %vm2528, %v2512
      %2532 = vst.msk [vmem:[%s540 + $0x18] sm:$0xff] %vm2528, %v2513
      %2533 = vst.msk [vmem:[%s540 + $0x20] sm:$0xff] %vm2528, %v2514
      %2534 = vst.msk [vmem:[%s540 + $0x28] sm:$0xff] %vm2528, %v2515
      %2535 = vst.msk [vmem:[%s540 + $0x30] sm:$0xff] %vm2528, %v2516
      %2536 = vst.msk [vmem:[%s540 + $0x38] sm:$0xff] %vm2528, %v2517
      %s2537 = sadd.s32 %s26, %s27
      %s2538 = smul.u32 8, %s2537
      %p2539 = scmp.lt.s32.totalorder %s2538, 15
      %s2540 = scalar_select %p2539, %s2538, 15
      %s2541 = smul.addr %s2540, 2
      %s2542 = smul.addr %s2541, 4
      %s2543 = scalar_lea.vmem %s11, %s2542
      // Predicated region
      $region65: #{spatial_prior.4} parent=63 // pred_check
        %p2544 = pneg %p326
      $region66: #{spatial_prior.4} parent=63 // pred_check_branch
        %2546 = sbr.rel (%p2544) target = $region68
      $region67: #{spatial_prior.4} parent=63 // pred_region
        %s2547 = sadd.s32 %s26, %s27
        %s2548 = smul.u32 8, %s2547
      $region68: #{spatial_prior.4} parent=63 // pred_fallthru
        _
    $region64: #{spatial_prior.4} parent=5 // pred_fallthru
      _
    %p2549 = scmp.le.s32.totalorder 2, %s17
    // Predicated region
    $region69: #{spatial_prior.4} parent=5 // pred_check
      %p2550 = pneg %p2549
    $region70: #{spatial_prior.4} parent=5 // pred_check_branch
      %2552 = sbr.rel (%p2550) target = $region72
    $region71: #{spatial_prior.4} parent=5 // pred_region
      %s2553 = ssub.s32 %s17, 2
      // Predicated region
      $region73: #{spatial_prior.4} parent=71 // pred_check
        %p2554 = pneg %p332
      $region74: #{spatial_prior.4} parent=71 // pred_check_branch
        %2556 = sbr.rel (%p2554) target = $region76
      $region75: #{spatial_prior.4} parent=71 // pred_region
        %s2557 = sadd.s32 %s28, %s29
        %s2558 = smul.u32 8, %s2557
        %p2559 = scmp.lt.s32.totalorder %s2558, 15
        %s2560 = scalar_select %p2559, %s2558, 15
        %s2561 = smul.addr %s2560, 2
        %s2562 = smul.addr %s2561, 4
        %s2563 = scalar_lea.vmem %s11, %s2562
      $region76: #{spatial_prior.4} parent=71 // pred_fallthru
        _
    $region72: #{spatial_prior.4} parent=5 // pred_fallthru
      _
  $region6: #{spatial_prior.4} parent=0 // loop_footer
    %s21 = sadd.s32 1, %s17
  $region7: #{spatial_prior.4} parent=0 // loop_footer_branch
    %16 = sbr.rel target = $region3
  $region8: #{spatial_prior.4} parent=0 // loop_exit
    _

// kernel: spatial_prior.5
$region0: #{spatial_prior.5}
  #allocation0 [shape = 'u32[]', space=smem, size = 0x4, offset = 0x4, fixed_abs, tag = 'smem constant byte address 0x4 - core index']
  #allocation1 [shape = 'u32[144,128]{1,0:T(1,128)}', space=vmem, size = 0x12000, scoped, tag = 'internal scratch']
  %s0 = inlined_call_operand.vmem [shape: bf16[128,192], index: 0, kind: input, shape index: {}]
  %s1 = inlined_call_operand.vmem [shape: bf16[192,768], index: 1, kind: input, shape index: {}]
  %s2 = inlined_call_operand.vmem [shape: bf16[1,768], index: 2, kind: input, shape index: {}]
  %s3 = inlined_call_operand.vmem [shape: bf16[768,192], index: 3, kind: input, shape index: {}]
  %s4 = inlined_call_operand.vmem [shape: bf16[1,192], index: 4, kind: input, shape index: {}]
  %s5 = inlined_call_operand.vmem [shape: bf16[128,192], index: 5, kind: output, shape index: {}]
  %s6 = sld [smem:[#allocation0]]
  $region30: #{spatial_prior.5} parent=0
    _
  %s8 = ssub.s32 1, %s6
  %s9 = scalar_select 0, %s8, %s6
  // Predicated region
  $region2: #{spatial_prior.5} parent=0 // pred_check
    _
  $region3: #{spatial_prior.5} parent=0 // pred_check_branch
    %11 = sbr.rel (0) target = $region5
  $region4: #{spatial_prior.5} parent=0 // pred_region
    _
  $region5: #{spatial_prior.5} parent=0 // pred_fallthru
    _
  // Predicated region
  $region6: #{spatial_prior.5} parent=0 // pred_check
    _
  $region7: #{spatial_prior.5} parent=0 // pred_check_branch
    %13 = sbr.rel (0) target = $region9
  $region8: #{spatial_prior.5} parent=0 // pred_region
    _
  $region9: #{spatial_prior.5} parent=0 // pred_fallthru
    _
  // Predicated region
  $region10: #{spatial_prior.5} parent=0 // pred_check
    _
  $region11: #{spatial_prior.5} parent=0 // pred_check_branch
    %15 = sbr.rel (0) target = $region13
  $region12: #{spatial_prior.5} parent=0 // pred_region
    _
  $region13: #{spatial_prior.5} parent=0 // pred_fallthru
    _
  // Predicated region
  $region14: #{spatial_prior.5} parent=0 // pred_check
    _
  $region15: #{spatial_prior.5} parent=0 // pred_check_branch
    %17 = sbr.rel (0) target = $region17
  $region16: #{spatial_prior.5} parent=0 // pred_region
    _
  $region17: #{spatial_prior.5} parent=0 // pred_fallthru
    _
  // Predicated region
  $region18: #{spatial_prior.5} parent=0 // pred_check
    _
  $region19: #{spatial_prior.5} parent=0 // pred_check_branch
    %19 = sbr.rel (0) target = $region21
  $region20: #{spatial_prior.5} parent=0 // pred_region
    _
  $region21: #{spatial_prior.5} parent=0 // pred_fallthru
    _
  %v21 = vld [vmem:[%s0] sm:$0xff]
  %v22 = vld [vmem:[%s0 + $0x8] sm:$0xff]
  %v23 = vld [vmem:[%s0 + $0x10] sm:$0xff]
  %v24 = vld [vmem:[%s0 + $0x18] sm:$0xff]
  %v25 = vld [vmem:[%s0 + $0x20] sm:$0xff]
  %v26 = vld [vmem:[%s0 + $0x28] sm:$0xff]
  %v27 = vld [vmem:[%s0 + $0x30] sm:$0xff]
  %v28 = vld [vmem:[%s0 + $0x38] sm:$0xff]
  %v29 = vld [vmem:[%s0 + $0x40] sm:$0xff]
  %v30 = vld [vmem:[%s0 + $0x48] sm:$0xff]
  %v31 = vld [vmem:[%s0 + $0x50] sm:$0xff]
  %v32 = vld [vmem:[%s0 + $0x58] sm:$0xff]
  %v33 = vld [vmem:[%s0 + $0x60] sm:$0xff]
  %v34 = vld [vmem:[%s0 + $0x68] sm:$0xff]
  %v35 = vld [vmem:[%s0 + $0x70] sm:$0xff]
  %v36 = vld [vmem:[%s0 + $0x78] sm:$0xff]
  %v37 = vld [vmem:[%s1] sm:$0xff]
  %v38 = vld [vmem:[%s1 + $0x8] sm:$0xff]
  %v39 = vld [vmem:[%s1 + $0x10] sm:$0xff]
  %v40 = vld [vmem:[%s1 + $0x18] sm:$0xff]
  %v41 = vld [vmem:[%s1 + $0x20] sm:$0xff]
  %v42 = vld [vmem:[%s1 + $0x28] sm:$0xff]
  %v43 = vld [vmem:[%s1 + $0x30] sm:$0xff]
  %v44 = vld [vmem:[%s1 + $0x38] sm:$0xff]
  %v45 = vld [vmem:[%s1 + $0x40] sm:$0xff]
  %v46 = vld [vmem:[%s1 + $0x48] sm:$0xff]
  %v47 = vld [vmem:[%s1 + $0x50] sm:$0xff]
  %v48 = vld [vmem:[%s1 + $0x58] sm:$0xff]
  %v49 = vld [vmem:[%s1 + $0x60] sm:$0xff]
  %v50 = vld [vmem:[%s1 + $0x68] sm:$0xff]
  %v51 = vld [vmem:[%s1 + $0x70] sm:$0xff]
  %v52 = vld [vmem:[%s1 + $0x78] sm:$0xff]
  %v53 = vld [vmem:[%s1 + $0x80] sm:$0xff]
  %v54 = vld [vmem:[%s1 + $0x88] sm:$0xff]
  %v55 = vld [vmem:[%s1 + $0x90] sm:$0xff]
  %v56 = vld [vmem:[%s1 + $0x98] sm:$0xff]
  %v57 = vld [vmem:[%s1 + $0xa0] sm:$0xff]
  %v58 = vld [vmem:[%s1 + $0xa8] sm:$0xff]
  %v59 = vld [vmem:[%s1 + $0xb0] sm:$0xff]
  %v60 = vld [vmem:[%s1 + $0xb8] sm:$0xff]
  %v61 = vld [vmem:[%s1 + $0xc0] sm:$0xff]
  %v62 = vld [vmem:[%s1 + $0xc8] sm:$0xff]
  %v63 = vld [vmem:[%s1 + $0xd0] sm:$0xff]
  %v64 = vld [vmem:[%s1 + $0xd8] sm:$0xff]
  %v65 = vld [vmem:[%s1 + $0xe0] sm:$0xff]
  %v66 = vld [vmem:[%s1 + $0xe8] sm:$0xff]
  %v67 = vld [vmem:[%s1 + $0xf0] sm:$0xff]
  %v68 = vld [vmem:[%s1 + $0xf8] sm:$0xff]
  %v69 = vld [vmem:[%s1 + $0x100] sm:$0xff]
  %v70 = vld [vmem:[%s1 + $0x108] sm:$0xff]
  %v71 = vld [vmem:[%s1 + $0x110] sm:$0xff]
  %v72 = vld [vmem:[%s1 + $0x118] sm:$0xff]
  %v73 = vld [vmem:[%s1 + $0x120] sm:$0xff]
  %v74 = vld [vmem:[%s1 + $0x128] sm:$0xff]
  %v75 = vld [vmem:[%s1 + $0x130] sm:$0xff]
  %v76 = vld [vmem:[%s1 + $0x138] sm:$0xff]
  %v77 = vld [vmem:[%s1 + $0x140] sm:$0xff]
  %v78 = vld [vmem:[%s1 + $0x148] sm:$0xff]
  %v79 = vld [vmem:[%s1 + $0x150] sm:$0xff]
  %v80 = vld [vmem:[%s1 + $0x158] sm:$0xff]
  %v81 = vld [vmem:[%s1 + $0x160] sm:$0xff]
  %v82 = vld [vmem:[%s1 + $0x168] sm:$0xff]
  %v83 = vld [vmem:[%s1 + $0x170] sm:$0xff]
  %v84 = vld [vmem:[%s1 + $0x178] sm:$0xff]
  %v85 = vld [vmem:[%s1 + $0x180] sm:$0xff]
  %v86 = vld [vmem:[%s1 + $0x188] sm:$0xff]
  %v87 = vld [vmem:[%s1 + $0x190] sm:$0xff]
  %v88 = vld [vmem:[%s1 + $0x198] sm:$0xff]
  %v89 = vld [vmem:[%s1 + $0x1a0] sm:$0xff]
  %v90 = vld [vmem:[%s1 + $0x1a8] sm:$0xff]
  %v91 = vld [vmem:[%s1 + $0x1b0] sm:$0xff]
  %v92 = vld [vmem:[%s1 + $0x1b8] sm:$0xff]
  %v93 = vld [vmem:[%s1 + $0x1c0] sm:$0xff]
  %v94 = vld [vmem:[%s1 + $0x1c8] sm:$0xff]
  %v95 = vld [vmem:[%s1 + $0x1d0] sm:$0xff]
  %v96 = vld [vmem:[%s1 + $0x1d8] sm:$0xff]
  %v97 = vld [vmem:[%s1 + $0x1e0] sm:$0xff]
  %v98 = vld [vmem:[%s1 + $0x1e8] sm:$0xff]
  %v99 = vld [vmem:[%s1 + $0x1f0] sm:$0xff]
  %v100 = vld [vmem:[%s1 + $0x1f8] sm:$0xff]
  %v101 = vld [vmem:[%s1 + $0x200] sm:$0xff]
  %v102 = vld [vmem:[%s1 + $0x208] sm:$0xff]
  %v103 = vld [vmem:[%s1 + $0x210] sm:$0xff]
  %v104 = vld [vmem:[%s1 + $0x218] sm:$0xff]
  %v105 = vld [vmem:[%s1 + $0x220] sm:$0xff]
  %v106 = vld [vmem:[%s1 + $0x228] sm:$0xff]
  %v107 = vld [vmem:[%s1 + $0x230] sm:$0xff]
  %v108 = vld [vmem:[%s1 + $0x238] sm:$0xff]
  %v109 = vld [vmem:[%s2] sm:$0x3f]
  %v110 = vunpack.c.l.bf16 %v109
  %v111 = vunpack.c.h.bf16 %v109
  %v114 = vlaneseq
  %v115 = vshrl.u32 %v114, 7
  %v116 = vsub.s32 0, %v115
  %v117 = vrot.slane %v110, %v116
  %v118 = vlaneseq
  %v119 = vshrl.u32 %v118, 7
  %v120 = vsub.s32 2, %v119
  %v121 = vrot.slane %v110, %v120
  %v122 = vlaneseq
  %v123 = vshrl.u32 %v122, 7
  %v124 = vsub.s32 4, %v123
  %v125 = vrot.slane %v110, %v124
  %v126 = vlaneseq
  %v127 = vshrl.u32 %v126, 7
  %v128 = vsub.s32 6, %v127
  %v129 = vrot.slane %v110, %v128
  %v130 = vlaneseq
  %v131 = vshrl.u32 %v130, 7
  %v132 = vsub.s32 0, %v131
  %v133 = vrot.slane %v111, %v132
  %v134 = vlaneseq
  %v135 = vshrl.u32 %v134, 7
  %v136 = vsub.s32 2, %v135
  %v137 = vrot.slane %v111, %v136
  %v144 = vlaneseq
  %v145 = vshrl.u32 %v144, 7
  %v146 = vsub.s32 0, %v145
  %v147 = vrot.slane %v117, %v146
  %v148 = vlaneseq
  %v149 = vshrl.u32 %v148, 7
  %v150 = vsub.s32 0, %v149
  %v151 = vrot.slane %v121, %v150
  %v152 = vlaneseq
  %v153 = vshrl.u32 %v152, 7
  %v154 = vsub.s32 0, %v153
  %v155 = vrot.slane %v125, %v154
  %v156 = vlaneseq
  %v157 = vshrl.u32 %v156, 7
  %v158 = vsub.s32 0, %v157
  %v159 = vrot.slane %v129, %v158
  %v160 = vlaneseq
  %v161 = vshrl.u32 %v160, 7
  %v162 = vsub.s32 0, %v161
  %v163 = vrot.slane %v133, %v162
  %v164 = vlaneseq
  %v165 = vshrl.u32 %v164, 7
  %v166 = vsub.s32 0, %v165
  %v167 = vrot.slane %v137, %v166
  %v184 = vunpack.c.l.b16 %v21
  %v185 = vunpack.c.h.b16 %v21
  %v186 = vunpack.c.l.b16 %v22
  %v187 = vunpack.c.h.b16 %v22
  %v188 = vunpack.c.l.b16 %v23
  %v189 = vunpack.c.h.b16 %v23
  %v190 = vunpack.c.l.b16 %v24
  %v191 = vunpack.c.h.b16 %v24
  %v192 = vunpack.c.l.b16 %v25
  %v193 = vunpack.c.h.b16 %v25
  %v194 = vunpack.c.l.b16 %v26
  %v195 = vunpack.c.h.b16 %v26
  %v196 = vunpack.c.l.b16 %v27
  %v197 = vunpack.c.h.b16 %v27
  %v198 = vunpack.c.l.b16 %v28
  %v199 = vunpack.c.h.b16 %v28
  %v200 = vunpack.c.l.b16 %v29
  %v201 = vunpack.c.h.b16 %v29
  %v202 = vunpack.c.l.b16 %v30
  %v203 = vunpack.c.h.b16 %v30
  %v204 = vunpack.c.l.b16 %v31
  %v205 = vunpack.c.h.b16 %v31
  %v206 = vunpack.c.l.b16 %v32
  %v207 = vunpack.c.h.b16 %v32
  %v208 = vunpack.c.l.b16 %v33
  %v209 = vunpack.c.h.b16 %v33
  %v210 = vunpack.c.l.b16 %v34
  %v211 = vunpack.c.h.b16 %v34
  %v212 = vunpack.c.l.b16 %v35
  %v213 = vunpack.c.h.b16 %v35
  %v214 = vunpack.c.l.b16 %v36
  %v215 = vunpack.c.h.b16 %v36
  %v216 = vpack.c.b16 %v186, %v184
  %v217 = vpack.c.b16 %v187, %v185
  %v218 = vpack.c.b16 %v190, %v188
  %v219 = vpack.c.b16 %v191, %v189
  %v220 = vpack.c.b16 %v194, %v192
  %v221 = vpack.c.b16 %v195, %v193
  %v222 = vpack.c.b16 %v198, %v196
  %v223 = vpack.c.b16 %v199, %v197
  %v224 = vpack.c.b16 %v202, %v200
  %v225 = vpack.c.b16 %v203, %v201
  %v226 = vpack.c.b16 %v206, %v204
  %v227 = vpack.c.b16 %v207, %v205
  %v228 = vpack.c.b16 %v210, %v208
  %v229 = vpack.c.b16 %v211, %v209
  %v230 = vpack.c.b16 %v214, %v212
  %v231 = vpack.c.b16 %v215, %v213
  %v312 = vunpack.c.l.b16 %v37
  %v313 = vunpack.c.h.b16 %v37
  %v314 = vunpack.c.l.b16 %v38
  %v315 = vunpack.c.h.b16 %v38
  %v316 = vunpack.c.l.b16 %v39
  %v317 = vunpack.c.h.b16 %v39
  %v318 = vunpack.c.l.b16 %v40
  %v319 = vunpack.c.h.b16 %v40
  %v320 = vunpack.c.l.b16 %v41
  %v321 = vunpack.c.h.b16 %v41
  %v322 = vunpack.c.l.b16 %v42
  %v323 = vunpack.c.h.b16 %v42
  %v324 = vunpack.c.l.b16 %v43
  %v325 = vunpack.c.h.b16 %v43
  %v326 = vunpack.c.l.b16 %v44
  %v327 = vunpack.c.h.b16 %v44
  %v328 = vunpack.c.l.b16 %v45
  %v329 = vunpack.c.h.b16 %v45
  %v330 = vunpack.c.l.b16 %v46
  %v331 = vunpack.c.h.b16 %v46
  %v332 = vunpack.c.l.b16 %v47
  %v333 = vunpack.c.h.b16 %v47
  %v334 = vunpack.c.l.b16 %v48
  %v335 = vunpack.c.h.b16 %v48
  %v336 = vunpack.c.l.b16 %v49
  %v337 = vunpack.c.h.b16 %v49
  %v338 = vunpack.c.l.b16 %v50
  %v339 = vunpack.c.h.b16 %v50
  %v340 = vunpack.c.l.b16 %v51
  %v341 = vunpack.c.h.b16 %v51
  %v342 = vunpack.c.l.b16 %v52
  %v343 = vunpack.c.h.b16 %v52
  %v344 = vunpack.c.l.b16 %v53
  %v345 = vunpack.c.h.b16 %v53
  %v346 = vunpack.c.l.b16 %v54
  %v347 = vunpack.c.h.b16 %v54
  %v348 = vunpack.c.l.b16 %v55
  %v349 = vunpack.c.h.b16 %v55
  %v350 = vunpack.c.l.b16 %v56
  %v351 = vunpack.c.h.b16 %v56
  %v352 = vunpack.c.l.b16 %v57
  %v353 = vunpack.c.h.b16 %v57
  %v354 = vunpack.c.l.b16 %v58
  %v355 = vunpack.c.h.b16 %v58
  %v356 = vunpack.c.l.b16 %v59
  %v357 = vunpack.c.h.b16 %v59
  %v358 = vunpack.c.l.b16 %v60
  %v359 = vunpack.c.h.b16 %v60
  %v360 = vunpack.c.l.b16 %v61
  %v361 = vunpack.c.h.b16 %v61
  %v362 = vunpack.c.l.b16 %v62
  %v363 = vunpack.c.h.b16 %v62
  %v364 = vunpack.c.l.b16 %v63
  %v365 = vunpack.c.h.b16 %v63
  %v366 = vunpack.c.l.b16 %v64
  %v367 = vunpack.c.h.b16 %v64
  %v368 = vunpack.c.l.b16 %v65
  %v369 = vunpack.c.h.b16 %v65
  %v370 = vunpack.c.l.b16 %v66
  %v371 = vunpack.c.h.b16 %v66
  %v372 = vunpack.c.l.b16 %v67
  %v373 = vunpack.c.h.b16 %v67
  %v374 = vunpack.c.l.b16 %v68
  %v375 = vunpack.c.h.b16 %v68
  %v376 = vunpack.c.l.b16 %v69
  %v377 = vunpack.c.h.b16 %v69
  %v378 = vunpack.c.l.b16 %v70
  %v379 = vunpack.c.h.b16 %v70
  %v380 = vunpack.c.l.b16 %v71
  %v381 = vunpack.c.h.b16 %v71
  %v382 = vunpack.c.l.b16 %v72
  %v383 = vunpack.c.h.b16 %v72
  %v384 = vunpack.c.l.b16 %v73
  %v385 = vunpack.c.h.b16 %v73
  %v386 = vunpack.c.l.b16 %v74
  %v387 = vunpack.c.h.b16 %v74
  %v388 = vunpack.c.l.b16 %v75
  %v389 = vunpack.c.h.b16 %v75
  %v390 = vunpack.c.l.b16 %v76
  %v391 = vunpack.c.h.b16 %v76
  %v392 = vunpack.c.l.b16 %v77
  %v393 = vunpack.c.h.b16 %v77
  %v394 = vunpack.c.l.b16 %v78
  %v395 = vunpack.c.h.b16 %v78
  %v396 = vunpack.c.l.b16 %v79
  %v397 = vunpack.c.h.b16 %v79
  %v398 = vunpack.c.l.b16 %v80
  %v399 = vunpack.c.h.b16 %v80
  %v400 = vunpack.c.l.b16 %v81
  %v401 = vunpack.c.h.b16 %v81
  %v402 = vunpack.c.l.b16 %v82
  %v403 = vunpack.c.h.b16 %v82
  %v404 = vunpack.c.l.b16 %v83
  %v405 = vunpack.c.h.b16 %v83
  %v406 = vunpack.c.l.b16 %v84
  %v407 = vunpack.c.h.b16 %v84
  %v408 = vunpack.c.l.b16 %v85
  %v409 = vunpack.c.h.b16 %v85
  %v410 = vunpack.c.l.b16 %v86
  %v411 = vunpack.c.h.b16 %v86
  %v412 = vunpack.c.l.b16 %v87
  %v413 = vunpack.c.h.b16 %v87
  %v414 = vunpack.c.l.b16 %v88
  %v415 = vunpack.c.h.b16 %v88
  %v416 = vunpack.c.l.b16 %v89
  %v417 = vunpack.c.h.b16 %v89
  %v418 = vunpack.c.l.b16 %v90
  %v419 = vunpack.c.h.b16 %v90
  %v420 = vunpack.c.l.b16 %v91
  %v421 = vunpack.c.h.b16 %v91
  %v422 = vunpack.c.l.b16 %v92
  %v423 = vunpack.c.h.b16 %v92
  %v424 = vunpack.c.l.b16 %v93
  %v425 = vunpack.c.h.b16 %v93
  %v426 = vunpack.c.l.b16 %v94
  %v427 = vunpack.c.h.b16 %v94
  %v428 = vunpack.c.l.b16 %v95
  %v429 = vunpack.c.h.b16 %v95
  %v430 = vunpack.c.l.b16 %v96
  %v431 = vunpack.c.h.b16 %v96
  %v432 = vunpack.c.l.b16 %v97
  %v433 = vunpack.c.h.b16 %v97
  %v434 = vunpack.c.l.b16 %v98
  %v435 = vunpack.c.h.b16 %v98
  %v436 = vunpack.c.l.b16 %v99
  %v437 = vunpack.c.h.b16 %v99
  %v438 = vunpack.c.l.b16 %v100
  %v439 = vunpack.c.h.b16 %v100
  %v440 = vunpack.c.l.b16 %v101
  %v441 = vunpack.c.h.b16 %v101
  %v442 = vunpack.c.l.b16 %v102
  %v443 = vunpack.c.h.b16 %v102
  %v444 = vunpack.c.l.b16 %v103
  %v445 = vunpack.c.h.b16 %v103
  %v446 = vunpack.c.l.b16 %v104
  %v447 = vunpack.c.h.b16 %v104
  %v448 = vunpack.c.l.b16 %v105
  %v449 = vunpack.c.h.b16 %v105
  %v450 = vunpack.c.l.b16 %v106
  %v451 = vunpack.c.h.b16 %v106
  %v452 = vunpack.c.l.b16 %v107
  %v453 = vunpack.c.h.b16 %v107
  %v454 = vunpack.c.l.b16 %v108
  %v455 = vunpack.c.h.b16 %v108
  %v456 = vpack.c.b16 %v318, %v312
  %v457 = vpack.c.b16 %v319, %v313
  %v458 = vpack.c.b16 %v320, %v314
  %v459 = vpack.c.b16 %v321, %v315
  %v460 = vpack.c.b16 %v322, %v316
  %v461 = vpack.c.b16 %v323, %v317
  %v462 = vpack.c.b16 %v330, %v324
  %v463 = vpack.c.b16 %v331, %v325
  %v464 = vpack.c.b16 %v332, %v326
  %v465 = vpack.c.b16 %v333, %v327
  %v466 = vpack.c.b16 %v334, %v328
  %v467 = vpack.c.b16 %v335, %v329
  %v468 = vpack.c.b16 %v342, %v336
  %v469 = vpack.c.b16 %v343, %v337
  %v470 = vpack.c.b16 %v344, %v338
  %v471 = vpack.c.b16 %v345, %v339
  %v472 = vpack.c.b16 %v346, %v340
  %v473 = vpack.c.b16 %v347, %v341
  %v474 = vpack.c.b16 %v354, %v348
  %v475 = vpack.c.b16 %v355, %v349
  %v476 = vpack.c.b16 %v356, %v350
  %v477 = vpack.c.b16 %v357, %v351
  %v478 = vpack.c.b16 %v358, %v352
  %v479 = vpack.c.b16 %v359, %v353
  %v480 = vpack.c.b16 %v366, %v360
  %v481 = vpack.c.b16 %v367, %v361
  %v482 = vpack.c.b16 %v368, %v362
  %v483 = vpack.c.b16 %v369, %v363
  %v484 = vpack.c.b16 %v370, %v364
  %v485 = vpack.c.b16 %v371, %v365
  %v486 = vpack.c.b16 %v378, %v372
  %v487 = vpack.c.b16 %v379, %v373
  %v488 = vpack.c.b16 %v380, %v374
  %v489 = vpack.c.b16 %v381, %v375
  %v490 = vpack.c.b16 %v382, %v376
  %v491 = vpack.c.b16 %v383, %v377
  %v492 = vpack.c.b16 %v390, %v384
  %v493 = vpack.c.b16 %v391, %v385
  %v494 = vpack.c.b16 %v392, %v386
  %v495 = vpack.c.b16 %v393, %v387
  %v496 = vpack.c.b16 %v394, %v388
  %v497 = vpack.c.b16 %v395, %v389
  %v498 = vpack.c.b16 %v402, %v396
  %v499 = vpack.c.b16 %v403, %v397
  %v500 = vpack.c.b16 %v404, %v398
  %v501 = vpack.c.b16 %v405, %v399
  %v502 = vpack.c.b16 %v406, %v400
  %v503 = vpack.c.b16 %v407, %v401
  %v504 = vpack.c.b16 %v414, %v408
  %v505 = vpack.c.b16 %v415, %v409
  %v506 = vpack.c.b16 %v416, %v410
  %v507 = vpack.c.b16 %v417, %v411
  %v508 = vpack.c.b16 %v418, %v412
  %v509 = vpack.c.b16 %v419, %v413
  %v510 = vpack.c.b16 %v426, %v420
  %v511 = vpack.c.b16 %v427, %v421
  %v512 = vpack.c.b16 %v428, %v422
  %v513 = vpack.c.b16 %v429, %v423
  %v514 = vpack.c.b16 %v430, %v424
  %v515 = vpack.c.b16 %v431, %v425
  %v516 = vpack.c.b16 %v438, %v432
  %v517 = vpack.c.b16 %v439, %v433
  %v518 = vpack.c.b16 %v440, %v434
  %v519 = vpack.c.b16 %v441, %v435
  %v520 = vpack.c.b16 %v442, %v436
  %v521 = vpack.c.b16 %v443, %v437
  %v522 = vpack.c.b16 %v450, %v444
  %v523 = vpack.c.b16 %v451, %v445
  %v524 = vpack.c.b16 %v452, %v446
  %v525 = vpack.c.b16 %v453, %v447
  %v526 = vpack.c.b16 %v454, %v448
  %v527 = vpack.c.b16 %v455, %v449
  %vm600 = vcmask 523264
  %v602 = vsel %vm600, %v217, 0
  %v605 = vsel %vm600, %v219, 0
  %v608 = vsel %vm600, %v221, 0
  %v611 = vsel %vm600, %v223, 0
  %v614 = vsel %vm600, %v225, 0
  %v617 = vsel %vm600, %v227, 0
  %v620 = vsel %vm600, %v229, 0
  %v623 = vsel %vm600, %v231, 0
  %625 = vmatprep.subr.bf16.mxu0 %v457
  %626 = vmatpush1.bf16.msra.mxu0 %v456
  %627 = vmatprep.subr.bf16.mxu0 %v463
  %628 = vmatpush1.bf16.msra.mxu0 %v462
  %629 = vmatprep.subr.bf16.mxu0 %v469
  %630 = vmatpush1.bf16.msra.mxu0 %v468
  %631 = vmatprep.subr.bf16.mxu0 %v475
  %632 = vmatpush1.bf16.msra.mxu0 %v474
  %633 = vmatprep.subr.bf16.mxu0 %v481
  %634 = vmatpush1.bf16.msra.mxu0 %v480
  %635 = vmatprep.subr.bf16.mxu0 %v487
  %636 = vmatpush1.bf16.msra.mxu0 %v486
  %637 = vmatprep.subr.bf16.mxu0 %v493
  %638 = vmatpush1.bf16.msra.mxu0 %v492
  %639 = vmatprep.subr.bf16.mxu0 %v499
  %640 = vmatpush1.bf16.msra.mxu0 %v498
  %641 = vmatprep.subr.bf16.mxu0 %v505
  %642 = vmatpush1.bf16.msra.mxu0 %v504
  %643 = vmatprep.subr.bf16.mxu0 %v511
  %644 = vmatpush1.bf16.msra.mxu0 %v510
  %645 = vmatprep.subr.bf16.mxu0 %v517
  %646 = vmatpush1.bf16.msra.mxu0 %v516
  %647 = vmatprep.subr.bf16.mxu0 %v523
  %648 = vmatpush1.bf16.msra.mxu0 %v522
  %649 = vmatprep.subr.bf16.mxu0 0
  %650 = vmatpush1.bf16.msra.mxu0 0
  %651 = vmatprep.subr.bf16.mxu0 0
  %652 = vmatpush1.bf16.msra.mxu0 0
  %653 = vmatprep.subr.bf16.mxu0 0
  %654 = vmatpush1.bf16.msra.mxu0 0
  %655 = vmatprep.subr.bf16.mxu0 0
  %656 = vmatpush1.bf16.msra.mxu0 0
  %657 = vmatprep.mubr.bf16.mxu0 %v602
  %658 = vmatmul.mubr.bf16.gmra.mrb[0].mxu0 %v216
  %v659 = vpop.f32.mrb[0].mxu0
  %v660 = vadd.f32 %v147, %v659
  %v661 = vpop.f32.mrb[0].mxu0
  %v662 = vadd.f32 %v151, %v661
  %v663 = vpop.f32.mrb[0].mxu0
  %v664 = vadd.f32 %v147, %v663
  %v665 = vpop.f32.mrb[0].mxu0
  %v666 = vadd.f32 %v151, %v665
  %667 = vmatprep.mubr.bf16.mxu0 %v605
  %668 = vmatmul.mubr.bf16.gmra.mrb[0].mxu0 %v218
  %v669 = vpop.f32.mrb[0].mxu0
  %v670 = vadd.f32 %v147, %v669
  %v671 = vpop.f32.mrb[0].mxu0
  %v672 = vadd.f32 %v151, %v671
  %v673 = vpop.f32.mrb[0].mxu0
  %v674 = vadd.f32 %v147, %v673
  %v675 = vpop.f32.mrb[0].mxu0
  %v676 = vadd.f32 %v151, %v675
  %677 = vmatprep.mubr.bf16.mxu0 %v608
  %678 = vmatmul.mubr.bf16.gmra.mrb[0].mxu0 %v220
  %v679 = vpop.f32.mrb[0].mxu0
  %v680 = vadd.f32 %v147, %v679
  %v681 = vpop.f32.mrb[0].mxu0
  %v682 = vadd.f32 %v151, %v681
  %v683 = vpop.f32.mrb[0].mxu0
  %v684 = vadd.f32 %v147, %v683
  %v685 = vpop.f32.mrb[0].mxu0
  %v686 = vadd.f32 %v151, %v685
  %687 = vmatprep.mubr.bf16.mxu0 %v611
  %688 = vmatmul.mubr.bf16.gmra.mrb[0].mxu0 %v222
  %v689 = vpop.f32.mrb[0].mxu0
  %v690 = vadd.f32 %v147, %v689
  %v691 = vpop.f32.mrb[0].mxu0
  %v692 = vadd.f32 %v151, %v691
  %v693 = vpop.f32.mrb[0].mxu0
  %v694 = vadd.f32 %v147, %v693
  %v695 = vpop.f32.mrb[0].mxu0
  %v696 = vadd.f32 %v151, %v695
  %697 = vmatprep.mubr.bf16.mxu0 %v614
  %698 = vmatmul.mubr.bf16.gmra.mrb[0].mxu0 %v224
  %v699 = vpop.f32.mrb[0].mxu0
  %v700 = vadd.f32 %v147, %v699
  %v701 = vpop.f32.mrb[0].mxu0
  %v702 = vadd.f32 %v151, %v701
  %v703 = vpop.f32.mrb[0].mxu0
  %v704 = vadd.f32 %v147, %v703
  %v705 = vpop.f32.mrb[0].mxu0
  %v706 = vadd.f32 %v151, %v705
  %707 = vmatprep.mubr.bf16.mxu0 %v617
  %708 = vmatmul.mubr.bf16.gmra.mrb[0].mxu0 %v226
  %v709 = vpop.f32.mrb[0].mxu0
  %v710 = vadd.f32 %v147, %v709
  %v711 = vpop.f32.mrb[0].mxu0
  %v712 = vadd.f32 %v151, %v711
  %v713 = vpop.f32.mrb[0].mxu0
  %v714 = vadd.f32 %v147, %v713
  %v715 = vpop.f32.mrb[0].mxu0
  %v716 = vadd.f32 %v151, %v715
  %717 = vmatprep.mubr.bf16.mxu0 %v620
  %718 = vmatmul.mubr.bf16.gmra.mrb[0].mxu0 %v228
  %v719 = vpop.f32.mrb[0].mxu0
  %v720 = vadd.f32 %v147, %v719
  %v721 = vpop.f32.mrb[0].mxu0
  %v722 = vadd.f32 %v151, %v721
  %v723 = vpop.f32.mrb[0].mxu0
  %v724 = vadd.f32 %v147, %v723
  %v725 = vpop.f32.mrb[0].mxu0
  %v726 = vadd.f32 %v151, %v725
  %727 = vmatprep.mubr.bf16.mxu0 %v623
  %728 = vmatmul.mubr.bf16.gmra.mrb[0].mxu0 %v230
  %v729 = vpop.f32.mrb[0].mxu0
  %v730 = vadd.f32 %v147, %v729
  %v731 = vpop.f32.mrb[0].mxu0
  %v732 = vadd.f32 %v151, %v731
  %v733 = vpop.f32.mrb[0].mxu0
  %v734 = vadd.f32 %v147, %v733
  %v735 = vpop.f32.mrb[0].mxu0
  %v736 = vadd.f32 %v151, %v735
  %737 = vdwg.mxu0
  %738 = vmatprep.subr.bf16.mxu0 %v459
  %739 = vmatpush1.bf16.msra.mxu0 %v458
  %740 = vmatprep.subr.bf16.mxu0 %v465
  %741 = vmatpush1.bf16.msra.mxu0 %v464
  %742 = vmatprep.subr.bf16.mxu0 %v471
  %743 = vmatpush1.bf16.msra.mxu0 %v470
  %744 = vmatprep.subr.bf16.mxu0 %v477
  %745 = vmatpush1.bf16.msra.mxu0 %v476
  %746 = vmatprep.subr.bf16.mxu0 %v483
  %747 = vmatpush1.bf16.msra.mxu0 %v482
  %748 = vmatprep.subr.bf16.mxu0 %v489
  %749 = vmatpush1.bf16.msra.mxu0 %v488
  %750 = vmatprep.subr.bf16.mxu0 %v495
  %751 = vmatpush1.bf16.msra.mxu0 %v494
  %752 = vmatprep.subr.bf16.mxu0 %v501
  %753 = vmatpush1.bf16.msra.mxu0 %v500
  %754 = vmatprep.subr.bf16.mxu0 %v507
  %755 = vmatpush1.bf16.msra.mxu0 %v506
  %756 = vmatprep.subr.bf16.mxu0 %v513
  %757 = vmatpush1.bf16.msra.mxu0 %v512
  %758 = vmatprep.subr.bf16.mxu0 %v519
  %759 = vmatpush1.bf16.msra.mxu0 %v518
  %760 = vmatprep.subr.bf16.mxu0 %v525
  %761 = vmatpush1.bf16.msra.mxu0 %v524
  %762 = vmatprep.subr.bf16.mxu0 0
  %763 = vmatpush1.bf16.msra.mxu0 0
  %764 = vmatprep.subr.bf16.mxu0 0
  %765 = vmatpush1.bf16.msra.mxu0 0
  %766 = vmatprep.subr.bf16.mxu0 0
  %767 = vmatpush1.bf16.msra.mxu0 0
  %768 = vmatprep.subr.bf16.mxu0 0
  %769 = vmatpush1.bf16.msra.mxu0 0
  %770 = vmatprep.mubr.bf16.mxu0 %v602
  %771 = vmatmul.mubr.bf16.gmra.mrb[0].mxu0 %v216
  %v772 = vpop.f32.mrb[0].mxu0
  %v773 = vadd.f32 %v155, %v772
  %v774 = vpop.f32.mrb[0].mxu0
  %v775 = vadd.f32 %v159, %v774
  %v776 = vpop.f32.mrb[0].mxu0
  %v777 = vadd.f32 %v155, %v776
  %v778 = vpop.f32.mrb[0].mxu0
  %v779 = vadd.f32 %v159, %v778
  %780 = vmatprep.mubr.bf16.mxu0 %v605
  %781 = vmatmul.mubr.bf16.gmra.mrb[0].mxu0 %v218
  %v782 = vpop.f32.mrb[0].mxu0
  %v783 = vadd.f32 %v155, %v782
  %v784 = vpop.f32.mrb[0].mxu0
  %v785 = vadd.f32 %v159, %v784
  %v786 = vpop.f32.mrb[0].mxu0
  %v787 = vadd.f32 %v155, %v786
  %v788 = vpop.f32.mrb[0].mxu0
  %v789 = vadd.f32 %v159, %v788
  %790 = vmatprep.mubr.bf16.mxu0 %v608
  %791 = vmatmul.mubr.bf16.gmra.mrb[0].mxu0 %v220
  %v792 = vpop.f32.mrb[0].mxu0
  %v793 = vadd.f32 %v155, %v792
  %v794 = vpop.f32.mrb[0].mxu0
  %v795 = vadd.f32 %v159, %v794
  %v796 = vpop.f32.mrb[0].mxu0
  %v797 = vadd.f32 %v155, %v796
  %v798 = vpop.f32.mrb[0].mxu0
  %v799 = vadd.f32 %v159, %v798
  %800 = vmatprep.mubr.bf16.mxu0 %v611
  %801 = vmatmul.mubr.bf16.gmra.mrb[0].mxu0 %v222
  %v802 = vpop.f32.mrb[0].mxu0
  %v803 = vadd.f32 %v155, %v802
  %v804 = vpop.f32.mrb[0].mxu0
  %v805 = vadd.f32 %v159, %v804
  %v806 = vpop.f32.mrb[0].mxu0
  %v807 = vadd.f32 %v155, %v806
  %v808 = vpop.f32.mrb[0].mxu0
  %v809 = vadd.f32 %v159, %v808
  %810 = vmatprep.mubr.bf16.mxu0 %v614
  %811 = vmatmul.mubr.bf16.gmra.mrb[0].mxu0 %v224
  %v812 = vpop.f32.mrb[0].mxu0
  %v813 = vadd.f32 %v155, %v812
  %v814 = vpop.f32.mrb[0].mxu0
  %v815 = vadd.f32 %v159, %v814
  %v816 = vpop.f32.mrb[0].mxu0
  %v817 = vadd.f32 %v155, %v816
  %v818 = vpop.f32.mrb[0].mxu0
  %v819 = vadd.f32 %v159, %v818
  %820 = vmatprep.mubr.bf16.mxu0 %v617
  %821 = vmatmul.mubr.bf16.gmra.mrb[0].mxu0 %v226
  %v822 = vpop.f32.mrb[0].mxu0
  %v823 = vadd.f32 %v155, %v822
  %v824 = vpop.f32.mrb[0].mxu0
  %v825 = vadd.f32 %v159, %v824
  %v826 = vpop.f32.mrb[0].mxu0
  %v827 = vadd.f32 %v155, %v826
  %v828 = vpop.f32.mrb[0].mxu0
  %v829 = vadd.f32 %v159, %v828
  %830 = vmatprep.mubr.bf16.mxu0 %v620
  %831 = vmatmul.mubr.bf16.gmra.mrb[0].mxu0 %v228
  %v832 = vpop.f32.mrb[0].mxu0
  %v833 = vadd.f32 %v155, %v832
  %v834 = vpop.f32.mrb[0].mxu0
  %v835 = vadd.f32 %v159, %v834
  %v836 = vpop.f32.mrb[0].mxu0
  %v837 = vadd.f32 %v155, %v836
  %v838 = vpop.f32.mrb[0].mxu0
  %v839 = vadd.f32 %v159, %v838
  %840 = vmatprep.mubr.bf16.mxu0 %v623
  %841 = vmatmul.mubr.bf16.gmra.mrb[0].mxu0 %v230
  %v842 = vpop.f32.mrb[0].mxu0
  %v843 = vadd.f32 %v155, %v842
  %v844 = vpop.f32.mrb[0].mxu0
  %v845 = vadd.f32 %v159, %v844
  %v846 = vpop.f32.mrb[0].mxu0
  %v847 = vadd.f32 %v155, %v846
  %v848 = vpop.f32.mrb[0].mxu0
  %v849 = vadd.f32 %v159, %v848
  %850 = vdwg.mxu0
  %851 = vmatprep.subr.bf16.mxu0 %v461
  %852 = vmatpush1.bf16.msra.mxu0 %v460
  %853 = vmatprep.subr.bf16.mxu0 %v467
  %854 = vmatpush1.bf16.msra.mxu0 %v466
  %855 = vmatprep.subr.bf16.mxu0 %v473
  %856 = vmatpush1.bf16.msra.mxu0 %v472
  %857 = vmatprep.subr.bf16.mxu0 %v479
  %858 = vmatpush1.bf16.msra.mxu0 %v478
  %859 = vmatprep.subr.bf16.mxu0 %v485
  %860 = vmatpush1.bf16.msra.mxu0 %v484
  %861 = vmatprep.subr.bf16.mxu0 %v491
  %862 = vmatpush1.bf16.msra.mxu0 %v490
  %863 = vmatprep.subr.bf16.mxu0 %v497
  %864 = vmatpush1.bf16.msra.mxu0 %v496
  %865 = vmatprep.subr.bf16.mxu0 %v503
  %866 = vmatpush1.bf16.msra.mxu0 %v502
  %867 = vmatprep.subr.bf16.mxu0 %v509
  %868 = vmatpush1.bf16.msra.mxu0 %v508
  %869 = vmatprep.subr.bf16.mxu0 %v515
  %870 = vmatpush1.bf16.msra.mxu0 %v514
  %871 = vmatprep.subr.bf16.mxu0 %v521
  %872 = vmatpush1.bf16.msra.mxu0 %v520
  %873 = vmatprep.subr.bf16.mxu0 %v527
  %874 = vmatpush1.bf16.msra.mxu0 %v526
  %875 = vmatprep.subr.bf16.mxu0 0
  %876 = vmatpush1.bf16.msra.mxu0 0
  %877 = vmatprep.subr.bf16.mxu0 0
  %878 = vmatpush1.bf16.msra.mxu0 0
  %879 = vmatprep.subr.bf16.mxu0 0
  %880 = vmatpush1.bf16.msra.mxu0 0
  %881 = vmatprep.subr.bf16.mxu0 0
  %882 = vmatpush1.bf16.msra.mxu0 0
  %883 = vmatprep.mubr.bf16.mxu0 %v602
  %884 = vmatmul.mubr.bf16.gmra.mrb[0].mxu0 %v216
  %v885 = vpop.f32.mrb[0].mxu0
  %v886 = vadd.f32 %v163, %v885
  %v887 = vpop.f32.mrb[0].mxu0
  %v888 = vadd.f32 %v167, %v887
  %v889 = vpop.f32.mrb[0].mxu0
  %v890 = vadd.f32 %v163, %v889
  %v891 = vpop.f32.mrb[0].mxu0
  %v892 = vadd.f32 %v167, %v891
  %893 = vmatprep.mubr.bf16.mxu0 %v605
  %894 = vmatmul.mubr.bf16.gmra.mrb[0].mxu0 %v218
  %v895 = vpop.f32.mrb[0].mxu0
  %v896 = vadd.f32 %v163, %v895
  %v897 = vpop.f32.mrb[0].mxu0
  %v898 = vadd.f32 %v167, %v897
  %v899 = vpop.f32.mrb[0].mxu0
  %v900 = vadd.f32 %v163, %v899
  %v901 = vpop.f32.mrb[0].mxu0
  %v902 = vadd.f32 %v167, %v901
  %903 = vmatprep.mubr.bf16.mxu0 %v608
  %904 = vmatmul.mubr.bf16.gmra.mrb[0].mxu0 %v220
  %v905 = vpop.f32.mrb[0].mxu0
  %v906 = vadd.f32 %v163, %v905
  %v907 = vpop.f32.mrb[0].mxu0
  %v908 = vadd.f32 %v167, %v907
  %v909 = vpop.f32.mrb[0].mxu0
  %v910 = vadd.f32 %v163, %v909
  %v911 = vpop.f32.mrb[0].mxu0
  %v912 = vadd.f32 %v167, %v911
  %913 = vmatprep.mubr.bf16.mxu0 %v611
  %914 = vmatmul.mubr.bf16.gmra.mrb[0].mxu0 %v222
  %v915 = vpop.f32.mrb[0].mxu0
  %v916 = vadd.f32 %v163, %v915
  %v917 = vpop.f32.mrb[0].mxu0
  %v918 = vadd.f32 %v167, %v917
  %v919 = vpop.f32.mrb[0].mxu0
  %v920 = vadd.f32 %v163, %v919
  %v921 = vpop.f32.mrb[0].mxu0
  %v922 = vadd.f32 %v167, %v921
  %923 = vmatprep.mubr.bf16.mxu0 %v614
  %924 = vmatmul.mubr.bf16.gmra.mrb[0].mxu0 %v224
  %v925 = vpop.f32.mrb[0].mxu0
  %v926 = vadd.f32 %v163, %v925
  %v927 = vpop.f32.mrb[0].mxu0
  %v928 = vadd.f32 %v167, %v927
  %v929 = vpop.f32.mrb[0].mxu0
  %v930 = vadd.f32 %v163, %v929
  %v931 = vpop.f32.mrb[0].mxu0
  %v932 = vadd.f32 %v167, %v931
  %933 = vmatprep.mubr.bf16.mxu0 %v617
  %934 = vmatmul.mubr.bf16.gmra.mrb[0].mxu0 %v226
  %v935 = vpop.f32.mrb[0].mxu0
  %v936 = vadd.f32 %v163, %v935
  %v937 = vpop.f32.mrb[0].mxu0
  %v938 = vadd.f32 %v167, %v937
  %v939 = vpop.f32.mrb[0].mxu0
  %v940 = vadd.f32 %v163, %v939
  %v941 = vpop.f32.mrb[0].mxu0
  %v942 = vadd.f32 %v167, %v941
  %943 = vmatprep.mubr.bf16.mxu0 %v620
  %944 = vmatmul.mubr.bf16.gmra.mrb[0].mxu0 %v228
  %v945 = vpop.f32.mrb[0].mxu0
  %v946 = vadd.f32 %v163, %v945
  %v947 = vpop.f32.mrb[0].mxu0
  %v948 = vadd.f32 %v167, %v947
  %v949 = vpop.f32.mrb[0].mxu0
  %v950 = vadd.f32 %v163, %v949
  %v951 = vpop.f32.mrb[0].mxu0
  %v952 = vadd.f32 %v167, %v951
  %953 = vmatprep.mubr.bf16.mxu0 %v623
  %954 = vmatmul.mubr.bf16.gmra.mrb[0].mxu0 %v230
  %v955 = vpop.f32.mrb[0].mxu0
  %v956 = vadd.f32 %v163, %v955
  %v957 = vpop.f32.mrb[0].mxu0
  %v958 = vadd.f32 %v167, %v957
  %v959 = vpop.f32.mrb[0].mxu0
  %v960 = vadd.f32 %v163, %v959
  %v961 = vpop.f32.mrb[0].mxu0
  %v962 = vadd.f32 %v167, %v961
  %963 = vdwg.mxu0
  %vm964 = vcmp.ge.f32.partialorder %v660, 0.0
  %vm965 = vcmp.ge.f32.partialorder %v662, 0.0
  %vm966 = vcmp.ge.f32.partialorder %v773, 0.0
  %vm967 = vcmp.ge.f32.partialorder %v775, 0.0
  %vm968 = vcmp.ge.f32.partialorder %v886, 0.0
  %vm969 = vcmp.ge.f32.partialorder %v888, 0.0
  %vm970 = vcmp.ge.f32.partialorder %v664, 0.0
  %vm971 = vcmp.ge.f32.partialorder %v666, 0.0
  %vm972 = vcmp.ge.f32.partialorder %v777, 0.0
  %vm973 = vcmp.ge.f32.partialorder %v779, 0.0
  %vm974 = vcmp.ge.f32.partialorder %v890, 0.0
  %vm975 = vcmp.ge.f32.partialorder %v892, 0.0
  %vm976 = vcmp.ge.f32.partialorder %v670, 0.0
  %vm977 = vcmp.ge.f32.partialorder %v672, 0.0
  %vm978 = vcmp.ge.f32.partialorder %v783, 0.0
  %vm979 = vcmp.ge.f32.partialorder %v785, 0.0
  %vm980 = vcmp.ge.f32.partialorder %v896, 0.0
  %vm981 = vcmp.ge.f32.partialorder %v898, 0.0
  %vm982 = vcmp.ge.f32.partialorder %v674, 0.0
  %vm983 = vcmp.ge.f32.partialorder %v676, 0.0
  %vm984 = vcmp.ge.f32.partialorder %v787, 0.0
  %vm985 = vcmp.ge.f32.partialorder %v789, 0.0
  %vm986 = vcmp.ge.f32.partialorder %v900, 0.0
  %vm987 = vcmp.ge.f32.partialorder %v902, 0.0
  %vm988 = vcmp.ge.f32.partialorder %v680, 0.0
  %vm989 = vcmp.ge.f32.partialorder %v682, 0.0
  %vm990 = vcmp.ge.f32.partialorder %v793, 0.0
  %vm991 = vcmp.ge.f32.partialorder %v795, 0.0
  %vm992 = vcmp.ge.f32.partialorder %v906, 0.0
  %vm993 = vcmp.ge.f32.partialorder %v908, 0.0
  %vm994 = vcmp.ge.f32.partialorder %v684, 0.0
  %vm995 = vcmp.ge.f32.partialorder %v686, 0.0
  %vm996 = vcmp.ge.f32.partialorder %v797, 0.0
  %vm997 = vcmp.ge.f32.partialorder %v799, 0.0
  %vm998 = vcmp.ge.f32.partialorder %v910, 0.0
  %vm999 = vcmp.ge.f32.partialorder %v912, 0.0
  %vm1000 = vcmp.ge.f32.partialorder %v690, 0.0
  %vm1001 = vcmp.ge.f32.partialorder %v692, 0.0
  %vm1002 = vcmp.ge.f32.partialorder %v803, 0.0
  %vm1003 = vcmp.ge.f32.partialorder %v805, 0.0
  %vm1004 = vcmp.ge.f32.partialorder %v916, 0.0
  %vm1005 = vcmp.ge.f32.partialorder %v918, 0.0
  %vm1006 = vcmp.ge.f32.partialorder %v694, 0.0
  %vm1007 = vcmp.ge.f32.partialorder %v696, 0.0
  %vm1008 = vcmp.ge.f32.partialorder %v807, 0.0
  %vm1009 = vcmp.ge.f32.partialorder %v809, 0.0
  %vm1010 = vcmp.ge.f32.partialorder %v920, 0.0
  %vm1011 = vcmp.ge.f32.partialorder %v922, 0.0
  %vm1012 = vcmp.ge.f32.partialorder %v700, 0.0
  %vm1013 = vcmp.ge.f32.partialorder %v702, 0.0
  %vm1014 = vcmp.ge.f32.partialorder %v813, 0.0
  %vm1015 = vcmp.ge.f32.partialorder %v815, 0.0
  %vm1016 = vcmp.ge.f32.partialorder %v926, 0.0
  %vm1017 = vcmp.ge.f32.partialorder %v928, 0.0
  %vm1018 = vcmp.ge.f32.partialorder %v704, 0.0
  %vm1019 = vcmp.ge.f32.partialorder %v706, 0.0
  %vm1020 = vcmp.ge.f32.partialorder %v817, 0.0
  %vm1021 = vcmp.ge.f32.partialorder %v819, 0.0
  %vm1022 = vcmp.ge.f32.partialorder %v930, 0.0
  %vm1023 = vcmp.ge.f32.partialorder %v932, 0.0
  %vm1024 = vcmp.ge.f32.partialorder %v710, 0.0
  %vm1025 = vcmp.ge.f32.partialorder %v712, 0.0
  %vm1026 = vcmp.ge.f32.partialorder %v823, 0.0
  %vm1027 = vcmp.ge.f32.partialorder %v825, 0.0
  %vm1028 = vcmp.ge.f32.partialorder %v936, 0.0
  %vm1029 = vcmp.ge.f32.partialorder %v938, 0.0
  %vm1030 = vcmp.ge.f32.partialorder %v714, 0.0
  %vm1031 = vcmp.ge.f32.partialorder %v716, 0.0
  %vm1032 = vcmp.ge.f32.partialorder %v827, 0.0
  %vm1033 = vcmp.ge.f32.partialorder %v829, 0.0
  %vm1034 = vcmp.ge.f32.partialorder %v940, 0.0
  %vm1035 = vcmp.ge.f32.partialorder %v942, 0.0
  %vm1036 = vcmp.ge.f32.partialorder %v720, 0.0
  %vm1037 = vcmp.ge.f32.partialorder %v722, 0.0
  %vm1038 = vcmp.ge.f32.partialorder %v833, 0.0
  %vm1039 = vcmp.ge.f32.partialorder %v835, 0.0
  %vm1040 = vcmp.ge.f32.partialorder %v946, 0.0
  %vm1041 = vcmp.ge.f32.partialorder %v948, 0.0
  %vm1042 = vcmp.ge.f32.partialorder %v724, 0.0
  %vm1043 = vcmp.ge.f32.partialorder %v726, 0.0
  %vm1044 = vcmp.ge.f32.partialorder %v837, 0.0
  %vm1045 = vcmp.ge.f32.partialorder %v839, 0.0
  %vm1046 = vcmp.ge.f32.partialorder %v950, 0.0
  %vm1047 = vcmp.ge.f32.partialorder %v952, 0.0
  %vm1048 = vcmp.ge.f32.partialorder %v730, 0.0
  %vm1049 = vcmp.ge.f32.partialorder %v732, 0.0
  %vm1050 = vcmp.ge.f32.partialorder %v843, 0.0
  %vm1051 = vcmp.ge.f32.partialorder %v845, 0.0
  %vm1052 = vcmp.ge.f32.partialorder %v956, 0.0
  %vm1053 = vcmp.ge.f32.partialorder %v958, 0.0
  %vm1054 = vcmp.ge.f32.partialorder %v734, 0.0
  %vm1055 = vcmp.ge.f32.partialorder %v736, 0.0
  %vm1056 = vcmp.ge.f32.partialorder %v847, 0.0
  %vm1057 = vcmp.ge.f32.partialorder %v849, 0.0
  %vm1058 = vcmp.ge.f32.partialorder %v960, 0.0
  %vm1059 = vcmp.ge.f32.partialorder %v962, 0.0
  %v1060 = vmul.f32 %v660, 0.1
  %v1061 = vmul.f32 %v662, 0.1
  %v1062 = vmul.f32 %v773, 0.1
  %v1063 = vmul.f32 %v775, 0.1
  %v1064 = vmul.f32 %v886, 0.1
  %v1065 = vmul.f32 %v888, 0.1
  %v1066 = vmul.f32 %v664, 0.1
  %v1067 = vmul.f32 %v666, 0.1
  %v1068 = vmul.f32 %v777, 0.1
  %v1069 = vmul.f32 %v779, 0.1
  %v1070 = vmul.f32 %v890, 0.1
  %v1071 = vmul.f32 %v892, 0.1
  %v1072 = vmul.f32 %v670, 0.1
  %v1073 = vmul.f32 %v672, 0.1
  %v1074 = vmul.f32 %v783, 0.1
  %v1075 = vmul.f32 %v785, 0.1
  %v1076 = vmul.f32 %v896, 0.1
  %v1077 = vmul.f32 %v898, 0.1
  %v1078 = vmul.f32 %v674, 0.1
  %v1079 = vmul.f32 %v676, 0.1
  %v1080 = vmul.f32 %v787, 0.1
  %v1081 = vmul.f32 %v789, 0.1
  %v1082 = vmul.f32 %v900, 0.1
  %v1083 = vmul.f32 %v902, 0.1
  %v1084 = vmul.f32 %v680, 0.1
  %v1085 = vmul.f32 %v682, 0.1
  %v1086 = vmul.f32 %v793, 0.1
  %v1087 = vmul.f32 %v795, 0.1
  %v1088 = vmul.f32 %v906, 0.1
  %v1089 = vmul.f32 %v908, 0.1
  %v1090 = vmul.f32 %v684, 0.1
  %v1091 = vmul.f32 %v686, 0.1
  %v1092 = vmul.f32 %v797, 0.1
  %v1093 = vmul.f32 %v799, 0.1
  %v1094 = vmul.f32 %v910, 0.1
  %v1095 = vmul.f32 %v912, 0.1
  %v1096 = vmul.f32 %v690, 0.1
  %v1097 = vmul.f32 %v692, 0.1
  %v1098 = vmul.f32 %v803, 0.1
  %v1099 = vmul.f32 %v805, 0.1
  %v1100 = vmul.f32 %v916, 0.1
  %v1101 = vmul.f32 %v918, 0.1
  %v1102 = vmul.f32 %v694, 0.1
  %v1103 = vmul.f32 %v696, 0.1
  %v1104 = vmul.f32 %v807, 0.1
  %v1105 = vmul.f32 %v809, 0.1
  %v1106 = vmul.f32 %v920, 0.1
  %v1107 = vmul.f32 %v922, 0.1
  %v1108 = vmul.f32 %v700, 0.1
  %v1109 = vmul.f32 %v702, 0.1
  %v1110 = vmul.f32 %v813, 0.1
  %v1111 = vmul.f32 %v815, 0.1
  %v1112 = vmul.f32 %v926, 0.1
  %v1113 = vmul.f32 %v928, 0.1
  %v1114 = vmul.f32 %v704, 0.1
  %v1115 = vmul.f32 %v706, 0.1
  %v1116 = vmul.f32 %v817, 0.1
  %v1117 = vmul.f32 %v819, 0.1
  %v1118 = vmul.f32 %v930, 0.1
  %v1119 = vmul.f32 %v932, 0.1
  %v1120 = vmul.f32 %v710, 0.1
  %v1121 = vmul.f32 %v712, 0.1
  %v1122 = vmul.f32 %v823, 0.1
  %v1123 = vmul.f32 %v825, 0.1
  %v1124 = vmul.f32 %v936, 0.1
  %v1125 = vmul.f32 %v938, 0.1
  %v1126 = vmul.f32 %v714, 0.1
  %v1127 = vmul.f32 %v716, 0.1
  %v1128 = vmul.f32 %v827, 0.1
  %v1129 = vmul.f32 %v829, 0.1
  %v1130 = vmul.f32 %v940, 0.1
  %v1131 = vmul.f32 %v942, 0.1
  %v1132 = vmul.f32 %v720, 0.1
  %v1133 = vmul.f32 %v722, 0.1
  %v1134 = vmul.f32 %v833, 0.1
  %v1135 = vmul.f32 %v835, 0.1
  %v1136 = vmul.f32 %v946, 0.1
  %v1137 = vmul.f32 %v948, 0.1
  %v1138 = vmul.f32 %v724, 0.1
  %v1139 = vmul.f32 %v726, 0.1
  %v1140 = vmul.f32 %v837, 0.1
  %v1141 = vmul.f32 %v839, 0.1
  %v1142 = vmul.f32 %v950, 0.1
  %v1143 = vmul.f32 %v952, 0.1
  %v1144 = vmul.f32 %v730, 0.1
  %v1145 = vmul.f32 %v732, 0.1
  %v1146 = vmul.f32 %v843, 0.1
  %v1147 = vmul.f32 %v845, 0.1
  %v1148 = vmul.f32 %v956, 0.1
  %v1149 = vmul.f32 %v958, 0.1
  %v1150 = vmul.f32 %v734, 0.1
  %v1151 = vmul.f32 %v736, 0.1
  %v1152 = vmul.f32 %v847, 0.1
  %v1153 = vmul.f32 %v849, 0.1
  %v1154 = vmul.f32 %v960, 0.1
  %v1155 = vmul.f32 %v962, 0.1
  %v1156 = vsel %vm964, %v660, %v1060
  %v1157 = vsel %vm965, %v662, %v1061
  %v1158 = vsel %vm966, %v773, %v1062
  %v1159 = vsel %vm967, %v775, %v1063
  %v1160 = vsel %vm968, %v886, %v1064
  %v1161 = vsel %vm969, %v888, %v1065
  %v1162 = vsel %vm970, %v664, %v1066
  %v1163 = vsel %vm971, %v666, %v1067
  %v1164 = vsel %vm972, %v777, %v1068
  %v1165 = vsel %vm973, %v779, %v1069
  %v1166 = vsel %vm974, %v890, %v1070
  %v1167 = vsel %vm975, %v892, %v1071
  %v1168 = vsel %vm976, %v670, %v1072
  %v1169 = vsel %vm977, %v672, %v1073
  %v1170 = vsel %vm978, %v783, %v1074
  %v1171 = vsel %vm979, %v785, %v1075
  %v1172 = vsel %vm980, %v896, %v1076
  %v1173 = vsel %vm981, %v898, %v1077
  %v1174 = vsel %vm982, %v674, %v1078
  %v1175 = vsel %vm983, %v676, %v1079
  %v1176 = vsel %vm984, %v787, %v1080
  %v1177 = vsel %vm985, %v789, %v1081
  %v1178 = vsel %vm986, %v900, %v1082
  %v1179 = vsel %vm987, %v902, %v1083
  %v1180 = vsel %vm988, %v680, %v1084
  %v1181 = vsel %vm989, %v682, %v1085
  %v1182 = vsel %vm990, %v793, %v1086
  %v1183 = vsel %vm991, %v795, %v1087
  %v1184 = vsel %vm992, %v906, %v1088
  %v1185 = vsel %vm993, %v908, %v1089
  %v1186 = vsel %vm994, %v684, %v1090
  %v1187 = vsel %vm995, %v686, %v1091
  %v1188 = vsel %vm996, %v797, %v1092
  %v1189 = vsel %vm997, %v799, %v1093
  %v1190 = vsel %vm998, %v910, %v1094
  %v1191 = vsel %vm999, %v912, %v1095
  %v1192 = vsel %vm1000, %v690, %v1096
  %v1193 = vsel %vm1001, %v692, %v1097
  %v1194 = vsel %vm1002, %v803, %v1098
  %v1195 = vsel %vm1003, %v805, %v1099
  %v1196 = vsel %vm1004, %v916, %v1100
  %v1197 = vsel %vm1005, %v918, %v1101
  %v1198 = vsel %vm1006, %v694, %v1102
  %v1199 = vsel %vm1007, %v696, %v1103
  %v1200 = vsel %vm1008, %v807, %v1104
  %v1201 = vsel %vm1009, %v809, %v1105
  %v1202 = vsel %vm1010, %v920, %v1106
  %v1203 = vsel %vm1011, %v922, %v1107
  %v1204 = vsel %vm1012, %v700, %v1108
  %v1205 = vsel %vm1013, %v702, %v1109
  %v1206 = vsel %vm1014, %v813, %v1110
  %v1207 = vsel %vm1015, %v815, %v1111
  %v1208 = vsel %vm1016, %v926, %v1112
  %v1209 = vsel %vm1017, %v928, %v1113
  %v1210 = vsel %vm1018, %v704, %v1114
  %v1211 = vsel %vm1019, %v706, %v1115
  %v1212 = vsel %vm1020, %v817, %v1116
  %v1213 = vsel %vm1021, %v819, %v1117
  %v1214 = vsel %vm1022, %v930, %v1118
  %v1215 = vsel %vm1023, %v932, %v1119
  %v1216 = vsel %vm1024, %v710, %v1120
  %v1217 = vsel %vm1025, %v712, %v1121
  %v1218 = vsel %vm1026, %v823, %v1122
  %v1219 = vsel %vm1027, %v825, %v1123
  %v1220 = vsel %vm1028, %v936, %v1124
  %v1221 = vsel %vm1029, %v938, %v1125
  %v1222 = vsel %vm1030, %v714, %v1126
  %v1223 = vsel %vm1031, %v716, %v1127
  %v1224 = vsel %vm1032, %v827, %v1128
  %v1225 = vsel %vm1033, %v829, %v1129
  %v1226 = vsel %vm1034, %v940, %v1130
  %v1227 = vsel %vm1035, %v942, %v1131
  %v1228 = vsel %vm1036, %v720, %v1132
  %v1229 = vsel %vm1037, %v722, %v1133
  %v1230 = vsel %vm1038, %v833, %v1134
  %v1231 = vsel %vm1039, %v835, %v1135
  %v1232 = vsel %vm1040, %v946, %v1136
  %v1233 = vsel %vm1041, %v948, %v1137
  %v1234 = vsel %vm1042, %v724, %v1138
  %v1235 = vsel %vm1043, %v726, %v1139
  %v1236 = vsel %vm1044, %v837, %v1140
  %v1237 = vsel %vm1045, %v839, %v1141
  %v1238 = vsel %vm1046, %v950, %v1142
  %v1239 = vsel %vm1047, %v952, %v1143
  %v1240 = vsel %vm1048, %v730, %v1144
  %v1241 = vsel %vm1049, %v732, %v1145
  %v1242 = vsel %vm1050, %v843, %v1146
  %v1243 = vsel %vm1051, %v845, %v1147
  %v1244 = vsel %vm1052, %v956, %v1148
  %v1245 = vsel %vm1053, %v958, %v1149
  %v1246 = vsel %vm1054, %v734, %v1150
  %v1247 = vsel %vm1055, %v736, %v1151
  %v1248 = vsel %vm1056, %v847, %v1152
  %v1249 = vsel %vm1057, %v849, %v1153
  %v1250 = vsel %vm1058, %v960, %v1154
  %v1251 = vsel %vm1059, %v962, %v1155
  %v1252 = vpack.c.bf16 %v1162, %v1156
  %v1253 = vpack.c.bf16 %v1163, %v1157
  %v1254 = vpack.c.bf16 %v1164, %v1158
  %v1255 = vpack.c.bf16 %v1165, %v1159
  %v1256 = vpack.c.bf16 %v1166, %v1160
  %v1257 = vpack.c.bf16 %v1167, %v1161
  %v1258 = vpack.c.bf16 %v1174, %v1168
  %v1259 = vpack.c.bf16 %v1175, %v1169
  %v1260 = vpack.c.bf16 %v1176, %v1170
  %v1261 = vpack.c.bf16 %v1177, %v1171
  %v1262 = vpack.c.bf16 %v1178, %v1172
  %v1263 = vpack.c.bf16 %v1179, %v1173
  %v1264 = vpack.c.bf16 %v1186, %v1180
  %v1265 = vpack.c.bf16 %v1187, %v1181
  %v1266 = vpack.c.bf16 %v1188, %v1182
  %v1267 = vpack.c.bf16 %v1189, %v1183
  %v1268 = vpack.c.bf16 %v1190, %v1184
  %v1269 = vpack.c.bf16 %v1191, %v1185
  %v1270 = vpack.c.bf16 %v1198, %v1192
  %v1271 = vpack.c.bf16 %v1199, %v1193
  %v1272 = vpack.c.bf16 %v1200, %v1194
  %v1273 = vpack.c.bf16 %v1201, %v1195
  %v1274 = vpack.c.bf16 %v1202, %v1196
  %v1275 = vpack.c.bf16 %v1203, %v1197
  %v1276 = vpack.c.bf16 %v1210, %v1204
  %v1277 = vpack.c.bf16 %v1211, %v1205
  %v1278 = vpack.c.bf16 %v1212, %v1206
  %v1279 = vpack.c.bf16 %v1213, %v1207
  %v1280 = vpack.c.bf16 %v1214, %v1208
  %v1281 = vpack.c.bf16 %v1215, %v1209
  %v1282 = vpack.c.bf16 %v1222, %v1216
  %v1283 = vpack.c.bf16 %v1223, %v1217
  %v1284 = vpack.c.bf16 %v1224, %v1218
  %v1285 = vpack.c.bf16 %v1225, %v1219
  %v1286 = vpack.c.bf16 %v1226, %v1220
  %v1287 = vpack.c.bf16 %v1227, %v1221
  %v1288 = vpack.c.bf16 %v1234, %v1228
  %v1289 = vpack.c.bf16 %v1235, %v1229
  %v1290 = vpack.c.bf16 %v1236, %v1230
  %v1291 = vpack.c.bf16 %v1237, %v1231
  %v1292 = vpack.c.bf16 %v1238, %v1232
  %v1293 = vpack.c.bf16 %v1239, %v1233
  %v1294 = vpack.c.bf16 %v1246, %v1240
  %v1295 = vpack.c.bf16 %v1247, %v1241
  %v1296 = vpack.c.bf16 %v1248, %v1242
  %v1297 = vpack.c.bf16 %v1249, %v1243
  %v1298 = vpack.c.bf16 %v1250, %v1244
  %v1299 = vpack.c.bf16 %v1251, %v1245
  %v1300 = vld [vmem:[%s3] sm:$0xff]
  %v1301 = vld [vmem:[%s3 + $0x8] sm:$0xff]
  %v1302 = vld [vmem:[%s3 + $0x10] sm:$0xff]
  %v1303 = vld [vmem:[%s3 + $0x18] sm:$0xff]
  %v1304 = vld [vmem:[%s3 + $0x20] sm:$0xff]
  %v1305 = vld [vmem:[%s3 + $0x28] sm:$0xff]
  %v1306 = vld [vmem:[%s3 + $0x30] sm:$0xff]
  %v1307 = vld [vmem:[%s3 + $0x38] sm:$0xff]
  %v1308 = vld [vmem:[%s3 + $0x40] sm:$0xff]
  %v1309 = vld [vmem:[%s3 + $0x48] sm:$0xff]
  %v1310 = vld [vmem:[%s3 + $0x50] sm:$0xff]
  %v1311 = vld [vmem:[%s3 + $0x58] sm:$0xff]
  %v1312 = vld [vmem:[%s3 + $0x60] sm:$0xff]
  %v1313 = vld [vmem:[%s3 + $0x68] sm:$0xff]
  %v1314 = vld [vmem:[%s3 + $0x70] sm:$0xff]
  %v1315 = vld [vmem:[%s3 + $0x78] sm:$0xff]
  %v1316 = vld [vmem:[%s3 + $0x80] sm:$0xff]
  %v1317 = vld [vmem:[%s3 + $0x88] sm:$0xff]
  %v1318 = vld [vmem:[%s3 + $0x90] sm:$0xff]
  %v1319 = vld [vmem:[%s3 + $0x98] sm:$0xff]
  %v1320 = vld [vmem:[%s3 + $0xa0] sm:$0xff]
  %v1321 = vld [vmem:[%s3 + $0xa8] sm:$0xff]
  %v1322 = vld [vmem:[%s3 + $0xb0] sm:$0xff]
  %v1323 = vld [vmem:[%s3 + $0xb8] sm:$0xff]
  %v1324 = vld [vmem:[%s3 + $0xc0] sm:$0xff]
  %v1325 = vld [vmem:[%s3 + $0xc8] sm:$0xff]
  %v1326 = vld [vmem:[%s3 + $0xd0] sm:$0xff]
  %v1327 = vld [vmem:[%s3 + $0xd8] sm:$0xff]
  %v1328 = vld [vmem:[%s3 + $0xe0] sm:$0xff]
  %v1329 = vld [vmem:[%s3 + $0xe8] sm:$0xff]
  %v1330 = vld [vmem:[%s3 + $0xf0] sm:$0xff]
  %v1331 = vld [vmem:[%s3 + $0xf8] sm:$0xff]
  %v1332 = vld [vmem:[%s3 + $0x100] sm:$0xff]
  %v1333 = vld [vmem:[%s3 + $0x108] sm:$0xff]
  %v1334 = vld [vmem:[%s3 + $0x110] sm:$0xff]
  %v1335 = vld [vmem:[%s3 + $0x118] sm:$0xff]
  %v1336 = vld [vmem:[%s3 + $0x120] sm:$0xff]
  %v1337 = vld [vmem:[%s3 + $0x128] sm:$0xff]
  %v1338 = vld [vmem:[%s3 + $0x130] sm:$0xff]
  %v1339 = vld [vmem:[%s3 + $0x138] sm:$0xff]
  %v1340 = vld [vmem:[%s3 + $0x140] sm:$0xff]
  %v1341 = vld [vmem:[%s3 + $0x148] sm:$0xff]
  %v1342 = vld [vmem:[%s3 + $0x150] sm:$0xff]
  %v1343 = vld [vmem:[%s3 + $0x158] sm:$0xff]
  %v1344 = vld [vmem:[%s3 + $0x160] sm:$0xff]
  %v1345 = vld [vmem:[%s3 + $0x168] sm:$0xff]
  %v1346 = vld [vmem:[%s3 + $0x170] sm:$0xff]
  %v1347 = vld [vmem:[%s3 + $0x178] sm:$0xff]
  %v1348 = vld [vmem:[%s3 + $0x180] sm:$0xff]
  %v1349 = vld [vmem:[%s3 + $0x188] sm:$0xff]
  %v1350 = vld [vmem:[%s3 + $0x190] sm:$0xff]
  %v1351 = vld [vmem:[%s3 + $0x198] sm:$0xff]
  %v1352 = vld [vmem:[%s3 + $0x1a0] sm:$0xff]
  %v1353 = vld [vmem:[%s3 + $0x1a8] sm:$0xff]
  %v1354 = vld [vmem:[%s3 + $0x1b0] sm:$0xff]
  %v1355 = vld [vmem:[%s3 + $0x1b8] sm:$0xff]
  %v1356 = vld [vmem:[%s3 + $0x1c0] sm:$0xff]
  %v1357 = vld [vmem:[%s3 + $0x1c8] sm:$0xff]
  %v1358 = vld [vmem:[%s3 + $0x1d0] sm:$0xff]
  %v1359 = vld [vmem:[%s3 + $0x1d8] sm:$0xff]
  %v1360 = vld [vmem:[%s3 + $0x1e0] sm:$0xff]
  %v1361 = vld [vmem:[%s3 + $0x1e8] sm:$0xff]
  %v1362 = vld [vmem:[%s3 + $0x1f0] sm:$0xff]
  %v1363 = vld [vmem:[%s3 + $0x1f8] sm:$0xff]
  %v1364 = vld [vmem:[%s3 + $0x200] sm:$0xff]
  %v1365 = vld [vmem:[%s3 + $0x208] sm:$0xff]
  %v1366 = vld [vmem:[%s3 + $0x210] sm:$0xff]
  %v1367 = vld [vmem:[%s3 + $0x218] sm:$0xff]
  %v1368 = vld [vmem:[%s3 + $0x220] sm:$0xff]
  %v1369 = vld [vmem:[%s3 + $0x228] sm:$0xff]
  %v1370 = vld [vmem:[%s3 + $0x230] sm:$0xff]
  %v1371 = vld [vmem:[%s3 + $0x238] sm:$0xff]
  %v1372 = vld [vmem:[%s3 + $0x240] sm:$0xff]
  %v1373 = vld [vmem:[%s3 + $0x248] sm:$0xff]
  %v1374 = vld [vmem:[%s3 + $0x250] sm:$0xff]
  %v1375 = vld [vmem:[%s3 + $0x258] sm:$0xff]
  %v1376 = vld [vmem:[%s3 + $0x260] sm:$0xff]
  %v1377 = vld [vmem:[%s3 + $0x268] sm:$0xff]
  %v1378 = vld [vmem:[%s3 + $0x270] sm:$0xff]
  %v1379 = vld [vmem:[%s3 + $0x278] sm:$0xff]
  %v1380 = vld [vmem:[%s3 + $0x280] sm:$0xff]
  %v1381 = vld [vmem:[%s3 + $0x288] sm:$0xff]
  %v1382 = vld [vmem:[%s3 + $0x290] sm:$0xff]
  %v1383 = vld [vmem:[%s3 + $0x298] sm:$0xff]
  %v1384 = vld [vmem:[%s3 + $0x2a0] sm:$0xff]
  %v1385 = vld [vmem:[%s3 + $0x2a8] sm:$0xff]
  %v1386 = vld [vmem:[%s3 + $0x2b0] sm:$0xff]
  %v1387 = vld [vmem:[%s3 + $0x2b8] sm:$0xff]
  %v1388 = vld [vmem:[%s3 + $0x2c0] sm:$0xff]
  %v1389 = vld [vmem:[%s3 + $0x2c8] sm:$0xff]
  %v1390 = vld [vmem:[%s3 + $0x2d0] sm:$0xff]
  %v1391 = vld [vmem:[%s3 + $0x2d8] sm:$0xff]
  %v1392 = vld [vmem:[%s3 + $0x2e0] sm:$0xff]
  %v1393 = vld [vmem:[%s3 + $0x2e8] sm:$0xff]
  %v1394 = vld [vmem:[%s3 + $0x2f0] sm:$0xff]
  %v1395 = vld [vmem:[%s3 + $0x2f8] sm:$0xff]
  %v1396 = vld [vmem:[%s4] sm:$0x3]
  %v1397 = vunpack.c.l.bf16 %v1396
  %v1399 = vlaneseq
  %v1400 = vshrl.u32 %v1399, 7
  %v1401 = vsub.s32 0, %v1400
  %v1402 = vrot.slane %v1397, %v1401
  %v1403 = vlaneseq
  %v1404 = vshrl.u32 %v1403, 7
  %v1405 = vsub.s32 2, %v1404
  %v1406 = vrot.slane %v1397, %v1405
  %v1409 = vlaneseq
  %v1410 = vshrl.u32 %v1409, 7
  %v1411 = vsub.s32 0, %v1410
  %v1412 = vrot.slane %v1402, %v1411
  %v1413 = vlaneseq
  %v1414 = vshrl.u32 %v1413, 7
  %v1415 = vsub.s32 0, %v1414
  %v1416 = vrot.slane %v1406, %v1415
  %v1513 = vunpack.c.l.b16 %v1300
  %v1514 = vunpack.c.h.b16 %v1300
  %v1515 = vunpack.c.l.b16 %v1301
  %v1516 = vunpack.c.h.b16 %v1301
  %v1517 = vunpack.c.l.b16 %v1302
  %v1518 = vunpack.c.h.b16 %v1302
  %v1519 = vunpack.c.l.b16 %v1303
  %v1520 = vunpack.c.h.b16 %v1303
  %v1521 = vunpack.c.l.b16 %v1304
  %v1522 = vunpack.c.h.b16 %v1304
  %v1523 = vunpack.c.l.b16 %v1305
  %v1524 = vunpack.c.h.b16 %v1305
  %v1525 = vunpack.c.l.b16 %v1306
  %v1526 = vunpack.c.h.b16 %v1306
  %v1527 = vunpack.c.l.b16 %v1307
  %v1528 = vunpack.c.h.b16 %v1307
  %v1529 = vunpack.c.l.b16 %v1308
  %v1530 = vunpack.c.h.b16 %v1308
  %v1531 = vunpack.c.l.b16 %v1309
  %v1532 = vunpack.c.h.b16 %v1309
  %v1533 = vunpack.c.l.b16 %v1310
  %v1534 = vunpack.c.h.b16 %v1310
  %v1535 = vunpack.c.l.b16 %v1311
  %v1536 = vunpack.c.h.b16 %v1311
  %v1537 = vunpack.c.l.b16 %v1312
  %v1538 = vunpack.c.h.b16 %v1312
  %v1539 = vunpack.c.l.b16 %v1313
  %v1540 = vunpack.c.h.b16 %v1313
  %v1541 = vunpack.c.l.b16 %v1314
  %v1542 = vunpack.c.h.b16 %v1314
  %v1543 = vunpack.c.l.b16 %v1315
  %v1544 = vunpack.c.h.b16 %v1315
  %v1545 = vunpack.c.l.b16 %v1316
  %v1546 = vunpack.c.h.b16 %v1316
  %v1547 = vunpack.c.l.b16 %v1317
  %v1548 = vunpack.c.h.b16 %v1317
  %v1549 = vunpack.c.l.b16 %v1318
  %v1550 = vunpack.c.h.b16 %v1318
  %v1551 = vunpack.c.l.b16 %v1319
  %v1552 = vunpack.c.h.b16 %v1319
  %v1553 = vunpack.c.l.b16 %v1320
  %v1554 = vunpack.c.h.b16 %v1320
  %v1555 = vunpack.c.l.b16 %v1321
  %v1556 = vunpack.c.h.b16 %v1321
  %v1557 = vunpack.c.l.b16 %v1322
  %v1558 = vunpack.c.h.b16 %v1322
  %v1559 = vunpack.c.l.b16 %v1323
  %v1560 = vunpack.c.h.b16 %v1323
  %v1561 = vunpack.c.l.b16 %v1324
  %v1562 = vunpack.c.h.b16 %v1324
  %v1563 = vunpack.c.l.b16 %v1325
  %v1564 = vunpack.c.h.b16 %v1325
  %v1565 = vunpack.c.l.b16 %v1326
  %v1566 = vunpack.c.h.b16 %v1326
  %v1567 = vunpack.c.l.b16 %v1327
  %v1568 = vunpack.c.h.b16 %v1327
  %v1569 = vunpack.c.l.b16 %v1328
  %v1570 = vunpack.c.h.b16 %v1328
  %v1571 = vunpack.c.l.b16 %v1329
  %v1572 = vunpack.c.h.b16 %v1329
  %v1573 = vunpack.c.l.b16 %v1330
  %v1574 = vunpack.c.h.b16 %v1330
  %v1575 = vunpack.c.l.b16 %v1331
  %v1576 = vunpack.c.h.b16 %v1331
  %v1577 = vunpack.c.l.b16 %v1332
  %v1578 = vunpack.c.h.b16 %v1332
  %v1579 = vunpack.c.l.b16 %v1333
  %v1580 = vunpack.c.h.b16 %v1333
  %v1581 = vunpack.c.l.b16 %v1334
  %v1582 = vunpack.c.h.b16 %v1334
  %v1583 = vunpack.c.l.b16 %v1335
  %v1584 = vunpack.c.h.b16 %v1335
  %v1585 = vunpack.c.l.b16 %v1336
  %v1586 = vunpack.c.h.b16 %v1336
  %v1587 = vunpack.c.l.b16 %v1337
  %v1588 = vunpack.c.h.b16 %v1337
  %v1589 = vunpack.c.l.b16 %v1338
  %v1590 = vunpack.c.h.b16 %v1338
  %v1591 = vunpack.c.l.b16 %v1339
  %v1592 = vunpack.c.h.b16 %v1339
  %v1593 = vunpack.c.l.b16 %v1340
  %v1594 = vunpack.c.h.b16 %v1340
  %v1595 = vunpack.c.l.b16 %v1341
  %v1596 = vunpack.c.h.b16 %v1341
  %v1597 = vunpack.c.l.b16 %v1342
  %v1598 = vunpack.c.h.b16 %v1342
  %v1599 = vunpack.c.l.b16 %v1343
  %v1600 = vunpack.c.h.b16 %v1343
  %v1601 = vunpack.c.l.b16 %v1344
  %v1602 = vunpack.c.h.b16 %v1344
  %v1603 = vunpack.c.l.b16 %v1345
  %v1604 = vunpack.c.h.b16 %v1345
  %v1605 = vunpack.c.l.b16 %v1346
  %v1606 = vunpack.c.h.b16 %v1346
  %v1607 = vunpack.c.l.b16 %v1347
  %v1608 = vunpack.c.h.b16 %v1347
  %v1609 = vunpack.c.l.b16 %v1348
  %v1610 = vunpack.c.h.b16 %v1348
  %v1611 = vunpack.c.l.b16 %v1349
  %v1612 = vunpack.c.h.b16 %v1349
  %v1613 = vunpack.c.l.b16 %v1350
  %v1614 = vunpack.c.h.b16 %v1350
  %v1615 = vunpack.c.l.b16 %v1351
  %v1616 = vunpack.c.h.b16 %v1351
  %v1617 = vunpack.c.l.b16 %v1352
  %v1618 = vunpack.c.h.b16 %v1352
  %v1619 = vunpack.c.l.b16 %v1353
  %v1620 = vunpack.c.h.b16 %v1353
  %v1621 = vunpack.c.l.b16 %v1354
  %v1622 = vunpack.c.h.b16 %v1354
  %v1623 = vunpack.c.l.b16 %v1355
  %v1624 = vunpack.c.h.b16 %v1355
  %v1625 = vunpack.c.l.b16 %v1356
  %v1626 = vunpack.c.h.b16 %v1356
  %v1627 = vunpack.c.l.b16 %v1357
  %v1628 = vunpack.c.h.b16 %v1357
  %v1629 = vunpack.c.l.b16 %v1358
  %v1630 = vunpack.c.h.b16 %v1358
  %v1631 = vunpack.c.l.b16 %v1359
  %v1632 = vunpack.c.h.b16 %v1359
  %v1633 = vunpack.c.l.b16 %v1360
  %v1634 = vunpack.c.h.b16 %v1360
  %v1635 = vunpack.c.l.b16 %v1361
  %v1636 = vunpack.c.h.b16 %v1361
  %v1637 = vunpack.c.l.b16 %v1362
  %v1638 = vunpack.c.h.b16 %v1362
  %v1639 = vunpack.c.l.b16 %v1363
  %v1640 = vunpack.c.h.b16 %v1363
  %v1641 = vunpack.c.l.b16 %v1364
  %v1642 = vunpack.c.h.b16 %v1364
  %v1643 = vunpack.c.l.b16 %v1365
  %v1644 = vunpack.c.h.b16 %v1365
  %v1645 = vunpack.c.l.b16 %v1366
  %v1646 = vunpack.c.h.b16 %v1366
  %v1647 = vunpack.c.l.b16 %v1367
  %v1648 = vunpack.c.h.b16 %v1367
  %v1649 = vunpack.c.l.b16 %v1368
  %v1650 = vunpack.c.h.b16 %v1368
  %v1651 = vunpack.c.l.b16 %v1369
  %v1652 = vunpack.c.h.b16 %v1369
  %v1653 = vunpack.c.l.b16 %v1370
  %v1654 = vunpack.c.h.b16 %v1370
  %v1655 = vunpack.c.l.b16 %v1371
  %v1656 = vunpack.c.h.b16 %v1371
  %v1657 = vunpack.c.l.b16 %v1372
  %v1658 = vunpack.c.h.b16 %v1372
  %v1659 = vunpack.c.l.b16 %v1373
  %v1660 = vunpack.c.h.b16 %v1373
  %v1661 = vunpack.c.l.b16 %v1374
  %v1662 = vunpack.c.h.b16 %v1374
  %v1663 = vunpack.c.l.b16 %v1375
  %v1664 = vunpack.c.h.b16 %v1375
  %v1665 = vunpack.c.l.b16 %v1376
  %v1666 = vunpack.c.h.b16 %v1376
  %v1667 = vunpack.c.l.b16 %v1377
  %v1668 = vunpack.c.h.b16 %v1377
  %v1669 = vunpack.c.l.b16 %v1378
  %v1670 = vunpack.c.h.b16 %v1378
  %v1671 = vunpack.c.l.b16 %v1379
  %v1672 = vunpack.c.h.b16 %v1379
  %v1673 = vunpack.c.l.b16 %v1380
  %v1674 = vunpack.c.h.b16 %v1380
  %v1675 = vunpack.c.l.b16 %v1381
  %v1676 = vunpack.c.h.b16 %v1381
  %v1677 = vunpack.c.l.b16 %v1382
  %v1678 = vunpack.c.h.b16 %v1382
  %v1679 = vunpack.c.l.b16 %v1383
  %v1680 = vunpack.c.h.b16 %v1383
  %v1681 = vunpack.c.l.b16 %v1384
  %v1682 = vunpack.c.h.b16 %v1384
  %v1683 = vunpack.c.l.b16 %v1385
  %v1684 = vunpack.c.h.b16 %v1385
  %v1685 = vunpack.c.l.b16 %v1386
  %v1686 = vunpack.c.h.b16 %v1386
  %v1687 = vunpack.c.l.b16 %v1387
  %v1688 = vunpack.c.h.b16 %v1387
  %v1689 = vunpack.c.l.b16 %v1388
  %v1690 = vunpack.c.h.b16 %v1388
  %v1691 = vunpack.c.l.b16 %v1389
  %v1692 = vunpack.c.h.b16 %v1389
  %v1693 = vunpack.c.l.b16 %v1390
  %v1694 = vunpack.c.h.b16 %v1390
  %v1695 = vunpack.c.l.b16 %v1391
  %v1696 = vunpack.c.h.b16 %v1391
  %v1697 = vunpack.c.l.b16 %v1392
  %v1698 = vunpack.c.h.b16 %v1392
  %v1699 = vunpack.c.l.b16 %v1393
  %v1700 = vunpack.c.h.b16 %v1393
  %v1701 = vunpack.c.l.b16 %v1394
  %v1702 = vunpack.c.h.b16 %v1394
  %v1703 = vunpack.c.l.b16 %v1395
  %v1704 = vunpack.c.h.b16 %v1395
  %v1705 = vpack.c.b16 %v1515, %v1513
  %v1706 = vpack.c.b16 %v1516, %v1514
  %v1707 = vpack.c.b16 %v1519, %v1517
  %v1708 = vpack.c.b16 %v1520, %v1518
  %v1709 = vpack.c.b16 %v1523, %v1521
  %v1710 = vpack.c.b16 %v1524, %v1522
  %v1711 = vpack.c.b16 %v1527, %v1525
  %v1712 = vpack.c.b16 %v1528, %v1526
  %v1713 = vpack.c.b16 %v1531, %v1529
  %v1714 = vpack.c.b16 %v1532, %v1530
  %v1715 = vpack.c.b16 %v1535, %v1533
  %v1716 = vpack.c.b16 %v1536, %v1534
  %v1717 = vpack.c.b16 %v1539, %v1537
  %v1718 = vpack.c.b16 %v1540, %v1538
  %v1719 = vpack.c.b16 %v1543, %v1541
  %v1720 = vpack.c.b16 %v1544, %v1542
  %v1721 = vpack.c.b16 %v1547, %v1545
  %v1722 = vpack.c.b16 %v1548, %v1546
  %v1723 = vpack.c.b16 %v1551, %v1549
  %v1724 = vpack.c.b16 %v1552, %v1550
  %v1725 = vpack.c.b16 %v1555, %v1553
  %v1726 = vpack.c.b16 %v1556, %v1554
  %v1727 = vpack.c.b16 %v1559, %v1557
  %v1728 = vpack.c.b16 %v1560, %v1558
  %v1729 = vpack.c.b16 %v1563, %v1561
  %v1730 = vpack.c.b16 %v1564, %v1562
  %v1731 = vpack.c.b16 %v1567, %v1565
  %v1732 = vpack.c.b16 %v1568, %v1566
  %v1733 = vpack.c.b16 %v1571, %v1569
  %v1734 = vpack.c.b16 %v1572, %v1570
  %v1735 = vpack.c.b16 %v1575, %v1573
  %v1736 = vpack.c.b16 %v1576, %v1574
  %v1737 = vpack.c.b16 %v1579, %v1577
  %v1738 = vpack.c.b16 %v1580, %v1578
  %v1739 = vpack.c.b16 %v1583, %v1581
  %v1740 = vpack.c.b16 %v1584, %v1582
  %v1741 = vpack.c.b16 %v1587, %v1585
  %v1742 = vpack.c.b16 %v1588, %v1586
  %v1743 = vpack.c.b16 %v1591, %v1589
  %v1744 = vpack.c.b16 %v1592, %v1590
  %v1745 = vpack.c.b16 %v1595, %v1593
  %v1746 = vpack.c.b16 %v1596, %v1594
  %v1747 = vpack.c.b16 %v1599, %v1597
  %v1748 = vpack.c.b16 %v1600, %v1598
  %v1749 = vpack.c.b16 %v1603, %v1601
  %v1750 = vpack.c.b16 %v1604, %v1602
  %v1751 = vpack.c.b16 %v1607, %v1605
  %v1752 = vpack.c.b16 %v1608, %v1606
  %v1753 = vpack.c.b16 %v1611, %v1609
  %v1754 = vpack.c.b16 %v1612, %v1610
  %v1755 = vpack.c.b16 %v1615, %v1613
  %v1756 = vpack.c.b16 %v1616, %v1614
  %v1757 = vpack.c.b16 %v1619, %v1617
  %v1758 = vpack.c.b16 %v1620, %v1618
  %v1759 = vpack.c.b16 %v1623, %v1621
  %v1760 = vpack.c.b16 %v1624, %v1622
  %v1761 = vpack.c.b16 %v1627, %v1625
  %v1762 = vpack.c.b16 %v1628, %v1626
  %v1763 = vpack.c.b16 %v1631, %v1629
  %v1764 = vpack.c.b16 %v1632, %v1630
  %v1765 = vpack.c.b16 %v1635, %v1633
  %v1766 = vpack.c.b16 %v1636, %v1634
  %v1767 = vpack.c.b16 %v1639, %v1637
  %v1768 = vpack.c.b16 %v1640, %v1638
  %v1769 = vpack.c.b16 %v1643, %v1641
  %v1770 = vpack.c.b16 %v1644, %v1642
  %v1771 = vpack.c.b16 %v1647, %v1645
  %v1772 = vpack.c.b16 %v1648, %v1646
  %v1773 = vpack.c.b16 %v1651, %v1649
  %v1774 = vpack.c.b16 %v1652, %v1650
  %v1775 = vpack.c.b16 %v1655, %v1653
  %v1776 = vpack.c.b16 %v1656, %v1654
  %v1777 = vpack.c.b16 %v1659, %v1657
  %v1778 = vpack.c.b16 %v1660, %v1658
  %v1779 = vpack.c.b16 %v1663, %v1661
  %v1780 = vpack.c.b16 %v1664, %v1662
  %v1781 = vpack.c.b16 %v1667, %v1665
  %v1782 = vpack.c.b16 %v1668, %v1666
  %v1783 = vpack.c.b16 %v1671, %v1669
  %v1784 = vpack.c.b16 %v1672, %v1670
  %v1785 = vpack.c.b16 %v1675, %v1673
  %v1786 = vpack.c.b16 %v1676, %v1674
  %v1787 = vpack.c.b16 %v1679, %v1677
  %v1788 = vpack.c.b16 %v1680, %v1678
  %v1789 = vpack.c.b16 %v1683, %v1681
  %v1790 = vpack.c.b16 %v1684, %v1682
  %v1791 = vpack.c.b16 %v1687, %v1685
  %v1792 = vpack.c.b16 %v1688, %v1686
  %v1793 = vpack.c.b16 %v1691, %v1689
  %v1794 = vpack.c.b16 %v1692, %v1690
  %v1795 = vpack.c.b16 %v1695, %v1693
  %v1796 = vpack.c.b16 %v1696, %v1694
  %v1797 = vpack.c.b16 %v1699, %v1697
  %v1798 = vpack.c.b16 %v1700, %v1698
  %v1799 = vpack.c.b16 %v1703, %v1701
  %v1800 = vpack.c.b16 %v1704, %v1702
  %1897 = vmatprep.subr.bf16.mxu0 %v1706
  %1898 = vmatpush1.bf16.msra.mxu0 %v1705
  %1899 = vmatprep.subr.bf16.mxu0 %v1708
  %1900 = vmatpush1.bf16.msra.mxu0 %v1707
  %1901 = vmatprep.subr.bf16.mxu0 %v1710
  %1902 = vmatpush1.bf16.msra.mxu0 %v1709
  %1903 = vmatprep.subr.bf16.mxu0 %v1712
  %1904 = vmatpush1.bf16.msra.mxu0 %v1711
  %1905 = vmatprep.subr.bf16.mxu0 %v1714
  %1906 = vmatpush1.bf16.msra.mxu0 %v1713
  %1907 = vmatprep.subr.bf16.mxu0 %v1716
  %1908 = vmatpush1.bf16.msra.mxu0 %v1715
  %1909 = vmatprep.subr.bf16.mxu0 %v1718
  %1910 = vmatpush1.bf16.msra.mxu0 %v1717
  %1911 = vmatprep.subr.bf16.mxu0 %v1720
  %1912 = vmatpush1.bf16.msra.mxu0 %v1719
  %1913 = vmatprep.subr.bf16.mxu0 %v1722
  %1914 = vmatpush1.bf16.msra.mxu0 %v1721
  %1915 = vmatprep.subr.bf16.mxu0 %v1724
  %1916 = vmatpush1.bf16.msra.mxu0 %v1723
  %1917 = vmatprep.subr.bf16.mxu0 %v1726
  %1918 = vmatpush1.bf16.msra.mxu0 %v1725
  %1919 = vmatprep.subr.bf16.mxu0 %v1728
  %1920 = vmatpush1.bf16.msra.mxu0 %v1727
  %1921 = vmatprep.subr.bf16.mxu0 %v1730
  %1922 = vmatpush1.bf16.msra.mxu0 %v1729
  %1923 = vmatprep.subr.bf16.mxu0 %v1732
  %1924 = vmatpush1.bf16.msra.mxu0 %v1731
  %1925 = vmatprep.subr.bf16.mxu0 %v1734
  %1926 = vmatpush1.bf16.msra.mxu0 %v1733
  %1927 = vmatprep.subr.bf16.mxu0 %v1736
  %1928 = vmatpush1.bf16.msra.mxu0 %v1735
  %1929 = vmatprep.mubr.bf16.mxu0 %v1253
  %1930 = vmatmul.mubr.bf16.gmra.mrb[0].mxu0 %v1252
  %v1931 = vpop.f32.mrb[0].mxu0
  %v1932 = vadd.f32 %v1412, %v1931
  %v1933 = vpop.f32.mrb[0].mxu0
  %v1934 = vadd.f32 %v1416, %v1933
  %v1935 = vpop.f32.mrb[0].mxu0
  %v1936 = vadd.f32 %v1412, %v1935
  %v1937 = vpop.f32.mrb[0].mxu0
  %v1938 = vadd.f32 %v1416, %v1937
  %1939 = vmatprep.mubr.bf16.mxu0 %v1259
  %1940 = vmatmul.mubr.bf16.gmra.mrb[0].mxu0 %v1258
  %v1941 = vpop.f32.mrb[0].mxu0
  %v1942 = vadd.f32 %v1412, %v1941
  %v1943 = vpop.f32.mrb[0].mxu0
  %v1944 = vadd.f32 %v1416, %v1943
  %v1945 = vpop.f32.mrb[0].mxu0
  %v1946 = vadd.f32 %v1412, %v1945
  %v1947 = vpop.f32.mrb[0].mxu0
  %v1948 = vadd.f32 %v1416, %v1947
  %1949 = vmatprep.mubr.bf16.mxu0 %v1265
  %1950 = vmatmul.mubr.bf16.gmra.mrb[0].mxu0 %v1264
  %v1951 = vpop.f32.mrb[0].mxu0
  %v1952 = vadd.f32 %v1412, %v1951
  %v1953 = vpop.f32.mrb[0].mxu0
  %v1954 = vadd.f32 %v1416, %v1953
  %v1955 = vpop.f32.mrb[0].mxu0
  %v1956 = vadd.f32 %v1412, %v1955
  %v1957 = vpop.f32.mrb[0].mxu0
  %v1958 = vadd.f32 %v1416, %v1957
  %1959 = vmatprep.mubr.bf16.mxu0 %v1271
  %1960 = vmatmul.mubr.bf16.gmra.mrb[0].mxu0 %v1270
  %v1961 = vpop.f32.mrb[0].mxu0
  %v1962 = vadd.f32 %v1412, %v1961
  %v1963 = vpop.f32.mrb[0].mxu0
  %v1964 = vadd.f32 %v1416, %v1963
  %v1965 = vpop.f32.mrb[0].mxu0
  %v1966 = vadd.f32 %v1412, %v1965
  %v1967 = vpop.f32.mrb[0].mxu0
  %v1968 = vadd.f32 %v1416, %v1967
  %1969 = vmatprep.mubr.bf16.mxu0 %v1277
  %1970 = vmatmul.mubr.bf16.gmra.mrb[0].mxu0 %v1276
  %v1971 = vpop.f32.mrb[0].mxu0
  %v1972 = vadd.f32 %v1412, %v1971
  %v1973 = vpop.f32.mrb[0].mxu0
  %v1974 = vadd.f32 %v1416, %v1973
  %v1975 = vpop.f32.mrb[0].mxu0
  %v1976 = vadd.f32 %v1412, %v1975
  %v1977 = vpop.f32.mrb[0].mxu0
  %v1978 = vadd.f32 %v1416, %v1977
  %1979 = vmatprep.mubr.bf16.mxu0 %v1283
  %1980 = vmatmul.mubr.bf16.gmra.mrb[0].mxu0 %v1282
  %v1981 = vpop.f32.mrb[0].mxu0
  %v1982 = vadd.f32 %v1412, %v1981
  %v1983 = vpop.f32.mrb[0].mxu0
  %v1984 = vadd.f32 %v1416, %v1983
  %v1985 = vpop.f32.mrb[0].mxu0
  %v1986 = vadd.f32 %v1412, %v1985
  %v1987 = vpop.f32.mrb[0].mxu0
  %v1988 = vadd.f32 %v1416, %v1987
  %1989 = vmatprep.mubr.bf16.mxu0 %v1289
  %1990 = vmatmul.mubr.bf16.gmra.mrb[0].mxu0 %v1288
  %v1991 = vpop.f32.mrb[0].mxu0
  %v1992 = vadd.f32 %v1412, %v1991
  %v1993 = vpop.f32.mrb[0].mxu0
  %v1994 = vadd.f32 %v1416, %v1993
  %v1995 = vpop.f32.mrb[0].mxu0
  %v1996 = vadd.f32 %v1412, %v1995
  %v1997 = vpop.f32.mrb[0].mxu0
  %v1998 = vadd.f32 %v1416, %v1997
  %1999 = vmatprep.mubr.bf16.mxu0 %v1295
  %2000 = vmatmul.mubr.bf16.gmra.mrb[0].mxu0 %v1294
  %v2001 = vpop.f32.mrb[0].mxu0
  %v2002 = vadd.f32 %v1412, %v2001
  %v2003 = vpop.f32.mrb[0].mxu0
  %v2004 = vadd.f32 %v1416, %v2003
  %v2005 = vpop.f32.mrb[0].mxu0
  %v2006 = vadd.f32 %v1412, %v2005
  %v2007 = vpop.f32.mrb[0].mxu0
  %v2008 = vadd.f32 %v1416, %v2007
  %2009 = vdwg.mxu0
  %2010 = vmatprep.subr.bf16.mxu0 %v1738
  %2011 = vmatpush1.bf16.msra.mxu0 %v1737
  %2012 = vmatprep.subr.bf16.mxu0 %v1740
  %2013 = vmatpush1.bf16.msra.mxu0 %v1739
  %2014 = vmatprep.subr.bf16.mxu0 %v1742
  %2015 = vmatpush1.bf16.msra.mxu0 %v1741
  %2016 = vmatprep.subr.bf16.mxu0 %v1744
  %2017 = vmatpush1.bf16.msra.mxu0 %v1743
  %2018 = vmatprep.subr.bf16.mxu0 %v1746
  %2019 = vmatpush1.bf16.msra.mxu0 %v1745
  %2020 = vmatprep.subr.bf16.mxu0 %v1748
  %2021 = vmatpush1.bf16.msra.mxu0 %v1747
  %2022 = vmatprep.subr.bf16.mxu0 %v1750
  %2023 = vmatpush1.bf16.msra.mxu0 %v1749
  %2024 = vmatprep.subr.bf16.mxu0 %v1752
  %2025 = vmatpush1.bf16.msra.mxu0 %v1751
  %2026 = vmatprep.subr.bf16.mxu0 %v1754
  %2027 = vmatpush1.bf16.msra.mxu0 %v1753
  %2028 = vmatprep.subr.bf16.mxu0 %v1756
  %2029 = vmatpush1.bf16.msra.mxu0 %v1755
  %2030 = vmatprep.subr.bf16.mxu0 %v1758
  %2031 = vmatpush1.bf16.msra.mxu0 %v1757
  %2032 = vmatprep.subr.bf16.mxu0 %v1760
  %2033 = vmatpush1.bf16.msra.mxu0 %v1759
  %2034 = vmatprep.subr.bf16.mxu0 %v1762
  %2035 = vmatpush1.bf16.msra.mxu0 %v1761
  %2036 = vmatprep.subr.bf16.mxu0 %v1764
  %2037 = vmatpush1.bf16.msra.mxu0 %v1763
  %2038 = vmatprep.subr.bf16.mxu0 %v1766
  %2039 = vmatpush1.bf16.msra.mxu0 %v1765
  %2040 = vmatprep.subr.bf16.mxu0 %v1768
  %2041 = vmatpush1.bf16.msra.mxu0 %v1767
  %2042 = vmatprep.mubr.bf16.mxu0 %v1255
  %2043 = vmatmul.mubr.bf16.gmra.mrb[0].mxu0 %v1254
  %v2044 = vpop.f32.mrb[0].mxu0
  %v2045 = vadd.f32 %v1932, %v2044
  %v2046 = vpop.f32.mrb[0].mxu0
  %v2047 = vadd.f32 %v1934, %v2046
  %v2048 = vpop.f32.mrb[0].mxu0
  %v2049 = vadd.f32 %v1936, %v2048
  %v2050 = vpop.f32.mrb[0].mxu0
  %v2051 = vadd.f32 %v1938, %v2050
  %2052 = vmatprep.mubr.bf16.mxu0 %v1261
  %2053 = vmatmul.mubr.bf16.gmra.mrb[0].mxu0 %v1260
  %v2054 = vpop.f32.mrb[0].mxu0
  %v2055 = vadd.f32 %v1942, %v2054
  %v2056 = vpop.f32.mrb[0].mxu0
  %v2057 = vadd.f32 %v1944, %v2056
  %v2058 = vpop.f32.mrb[0].mxu0
  %v2059 = vadd.f32 %v1946, %v2058
  %v2060 = vpop.f32.mrb[0].mxu0
  %v2061 = vadd.f32 %v1948, %v2060
  %2062 = vmatprep.mubr.bf16.mxu0 %v1267
  %2063 = vmatmul.mubr.bf16.gmra.mrb[0].mxu0 %v1266
  %v2064 = vpop.f32.mrb[0].mxu0
  %v2065 = vadd.f32 %v1952, %v2064
  %v2066 = vpop.f32.mrb[0].mxu0
  %v2067 = vadd.f32 %v1954, %v2066
  %v2068 = vpop.f32.mrb[0].mxu0
  %v2069 = vadd.f32 %v1956, %v2068
  %v2070 = vpop.f32.mrb[0].mxu0
  %v2071 = vadd.f32 %v1958, %v2070
  %2072 = vmatprep.mubr.bf16.mxu0 %v1273
  %2073 = vmatmul.mubr.bf16.gmra.mrb[0].mxu0 %v1272
  %v2074 = vpop.f32.mrb[0].mxu0
  %v2075 = vadd.f32 %v1962, %v2074
  %v2076 = vpop.f32.mrb[0].mxu0
  %v2077 = vadd.f32 %v1964, %v2076
  %v2078 = vpop.f32.mrb[0].mxu0
  %v2079 = vadd.f32 %v1966, %v2078
  %v2080 = vpop.f32.mrb[0].mxu0
  %v2081 = vadd.f32 %v1968, %v2080
  %2082 = vmatprep.mubr.bf16.mxu0 %v1279
  %2083 = vmatmul.mubr.bf16.gmra.mrb[0].mxu0 %v1278
  %v2084 = vpop.f32.mrb[0].mxu0
  %v2085 = vadd.f32 %v1972, %v2084
  %v2086 = vpop.f32.mrb[0].mxu0
  %v2087 = vadd.f32 %v1974, %v2086
  %v2088 = vpop.f32.mrb[0].mxu0
  %v2089 = vadd.f32 %v1976, %v2088
  %v2090 = vpop.f32.mrb[0].mxu0
  %v2091 = vadd.f32 %v1978, %v2090
  %2092 = vmatprep.mubr.bf16.mxu0 %v1285
  %2093 = vmatmul.mubr.bf16.gmra.mrb[0].mxu0 %v1284
  %v2094 = vpop.f32.mrb[0].mxu0
  %v2095 = vadd.f32 %v1982, %v2094
  %v2096 = vpop.f32.mrb[0].mxu0
  %v2097 = vadd.f32 %v1984, %v2096
  %v2098 = vpop.f32.mrb[0].mxu0
  %v2099 = vadd.f32 %v1986, %v2098
  %v2100 = vpop.f32.mrb[0].mxu0
  %v2101 = vadd.f32 %v1988, %v2100
  %2102 = vmatprep.mubr.bf16.mxu0 %v1291
  %2103 = vmatmul.mubr.bf16.gmra.mrb[0].mxu0 %v1290
  %v2104 = vpop.f32.mrb[0].mxu0
  %v2105 = vadd.f32 %v1992, %v2104
  %v2106 = vpop.f32.mrb[0].mxu0
  %v2107 = vadd.f32 %v1994, %v2106
  %v2108 = vpop.f32.mrb[0].mxu0
  %v2109 = vadd.f32 %v1996, %v2108
  %v2110 = vpop.f32.mrb[0].mxu0
  %v2111 = vadd.f32 %v1998, %v2110
  %2112 = vmatprep.mubr.bf16.mxu0 %v1297
  %2113 = vmatmul.mubr.bf16.gmra.mrb[0].mxu0 %v1296
  %v2114 = vpop.f32.mrb[0].mxu0
  %v2115 = vadd.f32 %v2002, %v2114
  %v2116 = vpop.f32.mrb[0].mxu0
  %v2117 = vadd.f32 %v2004, %v2116
  %v2118 = vpop.f32.mrb[0].mxu0
  %v2119 = vadd.f32 %v2006, %v2118
  %v2120 = vpop.f32.mrb[0].mxu0
  %v2121 = vadd.f32 %v2008, %v2120
  %2122 = vdwg.mxu0
  %2123 = vmatprep.subr.bf16.mxu0 %v1770
  %2124 = vmatpush1.bf16.msra.mxu0 %v1769
  %2125 = vmatprep.subr.bf16.mxu0 %v1772
  %2126 = vmatpush1.bf16.msra.mxu0 %v1771
  %2127 = vmatprep.subr.bf16.mxu0 %v1774
  %2128 = vmatpush1.bf16.msra.mxu0 %v1773
  %2129 = vmatprep.subr.bf16.mxu0 %v1776
  %2130 = vmatpush1.bf16.msra.mxu0 %v1775
  %2131 = vmatprep.subr.bf16.mxu0 %v1778
  %2132 = vmatpush1.bf16.msra.mxu0 %v1777
  %2133 = vmatprep.subr.bf16.mxu0 %v1780
  %2134 = vmatpush1.bf16.msra.mxu0 %v1779
  %2135 = vmatprep.subr.bf16.mxu0 %v1782
  %2136 = vmatpush1.bf16.msra.mxu0 %v1781
  %2137 = vmatprep.subr.bf16.mxu0 %v1784
  %2138 = vmatpush1.bf16.msra.mxu0 %v1783
  %2139 = vmatprep.subr.bf16.mxu0 %v1786
  %2140 = vmatpush1.bf16.msra.mxu0 %v1785
  %2141 = vmatprep.subr.bf16.mxu0 %v1788
  %2142 = vmatpush1.bf16.msra.mxu0 %v1787
  %2143 = vmatprep.subr.bf16.mxu0 %v1790
  %2144 = vmatpush1.bf16.msra.mxu0 %v1789
  %2145 = vmatprep.subr.bf16.mxu0 %v1792
  %2146 = vmatpush1.bf16.msra.mxu0 %v1791
  %2147 = vmatprep.subr.bf16.mxu0 %v1794
  %2148 = vmatpush1.bf16.msra.mxu0 %v1793
  %2149 = vmatprep.subr.bf16.mxu0 %v1796
  %2150 = vmatpush1.bf16.msra.mxu0 %v1795
  %2151 = vmatprep.subr.bf16.mxu0 %v1798
  %2152 = vmatpush1.bf16.msra.mxu0 %v1797
  %2153 = vmatprep.subr.bf16.mxu0 %v1800
  %2154 = vmatpush1.bf16.msra.mxu0 %v1799
  %2155 = vmatprep.mubr.bf16.mxu0 %v1257
  %2156 = vmatmul.mubr.bf16.gmra.mrb[0].mxu0 %v1256
  %v2157 = vpop.f32.mrb[0].mxu0
  %v2158 = vadd.f32 %v2045, %v2157
  %v2159 = vpop.f32.mrb[0].mxu0
  %v2160 = vadd.f32 %v2047, %v2159
  %v2161 = vpop.f32.mrb[0].mxu0
  %v2162 = vadd.f32 %v2049, %v2161
  %v2163 = vpop.f32.mrb[0].mxu0
  %v2164 = vadd.f32 %v2051, %v2163
  %2165 = vmatprep.mubr.bf16.mxu0 %v1263
  %2166 = vmatmul.mubr.bf16.gmra.mrb[0].mxu0 %v1262
  %v2167 = vpop.f32.mrb[0].mxu0
  %v2168 = vadd.f32 %v2055, %v2167
  %v2169 = vpop.f32.mrb[0].mxu0
  %v2170 = vadd.f32 %v2057, %v2169
  %v2171 = vpop.f32.mrb[0].mxu0
  %v2172 = vadd.f32 %v2059, %v2171
  %v2173 = vpop.f32.mrb[0].mxu0
  %v2174 = vadd.f32 %v2061, %v2173
  %2175 = vmatprep.mubr.bf16.mxu0 %v1269
  %2176 = vmatmul.mubr.bf16.gmra.mrb[0].mxu0 %v1268
  %v2177 = vpop.f32.mrb[0].mxu0
  %v2178 = vadd.f32 %v2065, %v2177
  %v2179 = vpop.f32.mrb[0].mxu0
  %v2180 = vadd.f32 %v2067, %v2179
  %v2181 = vpop.f32.mrb[0].mxu0
  %v2182 = vadd.f32 %v2069, %v2181
  %v2183 = vpop.f32.mrb[0].mxu0
  %v2184 = vadd.f32 %v2071, %v2183
  %2185 = vmatprep.mubr.bf16.mxu0 %v1275
  %2186 = vmatmul.mubr.bf16.gmra.mrb[0].mxu0 %v1274
  %v2187 = vpop.f32.mrb[0].mxu0
  %v2188 = vadd.f32 %v2075, %v2187
  %v2189 = vpop.f32.mrb[0].mxu0
  %v2190 = vadd.f32 %v2077, %v2189
  %v2191 = vpop.f32.mrb[0].mxu0
  %v2192 = vadd.f32 %v2079, %v2191
  %v2193 = vpop.f32.mrb[0].mxu0
  %v2194 = vadd.f32 %v2081, %v2193
  %2195 = vmatprep.mubr.bf16.mxu0 %v1281
  %2196 = vmatmul.mubr.bf16.gmra.mrb[0].mxu0 %v1280
  %v2197 = vpop.f32.mrb[0].mxu0
  %v2198 = vadd.f32 %v2085, %v2197
  %v2199 = vpop.f32.mrb[0].mxu0
  %v2200 = vadd.f32 %v2087, %v2199
  %v2201 = vpop.f32.mrb[0].mxu0
  %v2202 = vadd.f32 %v2089, %v2201
  %v2203 = vpop.f32.mrb[0].mxu0
  %v2204 = vadd.f32 %v2091, %v2203
  %2205 = vmatprep.mubr.bf16.mxu0 %v1287
  %2206 = vmatmul.mubr.bf16.gmra.mrb[0].mxu0 %v1286
  %v2207 = vpop.f32.mrb[0].mxu0
  %v2208 = vadd.f32 %v2095, %v2207
  %v2209 = vpop.f32.mrb[0].mxu0
  %v2210 = vadd.f32 %v2097, %v2209
  %v2211 = vpop.f32.mrb[0].mxu0
  %v2212 = vadd.f32 %v2099, %v2211
  %v2213 = vpop.f32.mrb[0].mxu0
  %v2214 = vadd.f32 %v2101, %v2213
  %2215 = vmatprep.mubr.bf16.mxu0 %v1293
  %2216 = vmatmul.mubr.bf16.gmra.mrb[0].mxu0 %v1292
  %v2217 = vpop.f32.mrb[0].mxu0
  %v2218 = vadd.f32 %v2105, %v2217
  %v2219 = vpop.f32.mrb[0].mxu0
  %v2220 = vadd.f32 %v2107, %v2219
  %v2221 = vpop.f32.mrb[0].mxu0
  %v2222 = vadd.f32 %v2109, %v2221
  %v2223 = vpop.f32.mrb[0].mxu0
  %v2224 = vadd.f32 %v2111, %v2223
  %2225 = vmatprep.mubr.bf16.mxu0 %v1299
  %2226 = vmatmul.mubr.bf16.gmra.mrb[0].mxu0 %v1298
  %v2227 = vpop.f32.mrb[0].mxu0
  %v2228 = vadd.f32 %v2115, %v2227
  %v2229 = vpop.f32.mrb[0].mxu0
  %v2230 = vadd.f32 %v2117, %v2229
  %v2231 = vpop.f32.mrb[0].mxu0
  %v2232 = vadd.f32 %v2119, %v2231
  %v2233 = vpop.f32.mrb[0].mxu0
  %v2234 = vadd.f32 %v2121, %v2233
  %2235 = vdwg.mxu0
  %vm2236 = vcmp.ge.f32.partialorder %v2158, 0.0
  %vm2237 = vcmp.ge.f32.partialorder %v2160, 0.0
  %vm2238 = vcmp.ge.f32.partialorder %v2162, 0.0
  %vm2239 = vcmp.ge.f32.partialorder %v2164, 0.0
  %vm2240 = vcmp.ge.f32.partialorder %v2168, 0.0
  %vm2241 = vcmp.ge.f32.partialorder %v2170, 0.0
  %vm2242 = vcmp.ge.f32.partialorder %v2172, 0.0
  %vm2243 = vcmp.ge.f32.partialorder %v2174, 0.0
  %vm2244 = vcmp.ge.f32.partialorder %v2178, 0.0
  %vm2245 = vcmp.ge.f32.partialorder %v2180, 0.0
  %vm2246 = vcmp.ge.f32.partialorder %v2182, 0.0
  %vm2247 = vcmp.ge.f32.partialorder %v2184, 0.0
  %vm2248 = vcmp.ge.f32.partialorder %v2188, 0.0
  %vm2249 = vcmp.ge.f32.partialorder %v2190, 0.0
  %vm2250 = vcmp.ge.f32.partialorder %v2192, 0.0
  %vm2251 = vcmp.ge.f32.partialorder %v2194, 0.0
  %vm2252 = vcmp.ge.f32.partialorder %v2198, 0.0
  %vm2253 = vcmp.ge.f32.partialorder %v2200, 0.0
  %vm2254 = vcmp.ge.f32.partialorder %v2202, 0.0
  %vm2255 = vcmp.ge.f32.partialorder %v2204, 0.0
  %vm2256 = vcmp.ge.f32.partialorder %v2208, 0.0
  %vm2257 = vcmp.ge.f32.partialorder %v2210, 0.0
  %vm2258 = vcmp.ge.f32.partialorder %v2212, 0.0
  %vm2259 = vcmp.ge.f32.partialorder %v2214, 0.0
  %vm2260 = vcmp.ge.f32.partialorder %v2218, 0.0
  %vm2261 = vcmp.ge.f32.partialorder %v2220, 0.0
  %vm2262 = vcmp.ge.f32.partialorder %v2222, 0.0
  %vm2263 = vcmp.ge.f32.partialorder %v2224, 0.0
  %vm2264 = vcmp.ge.f32.partialorder %v2228, 0.0
  %vm2265 = vcmp.ge.f32.partialorder %v2230, 0.0
  %vm2266 = vcmp.ge.f32.partialorder %v2232, 0.0
  %vm2267 = vcmp.ge.f32.partialorder %v2234, 0.0
  %v2268 = vmul.f32 %v2158, 0.1
  %v2269 = vmul.f32 %v2160, 0.1
  %v2270 = vmul.f32 %v2162, 0.1
  %v2271 = vmul.f32 %v2164, 0.1
  %v2272 = vmul.f32 %v2168, 0.1
  %v2273 = vmul.f32 %v2170, 0.1
  %v2274 = vmul.f32 %v2172, 0.1
  %v2275 = vmul.f32 %v2174, 0.1
  %v2276 = vmul.f32 %v2178, 0.1
  %v2277 = vmul.f32 %v2180, 0.1
  %v2278 = vmul.f32 %v2182, 0.1
  %v2279 = vmul.f32 %v2184, 0.1
  %v2280 = vmul.f32 %v2188, 0.1
  %v2281 = vmul.f32 %v2190, 0.1
  %v2282 = vmul.f32 %v2192, 0.1
  %v2283 = vmul.f32 %v2194, 0.1
  %v2284 = vmul.f32 %v2198, 0.1
  %v2285 = vmul.f32 %v2200, 0.1
  %v2286 = vmul.f32 %v2202, 0.1
  %v2287 = vmul.f32 %v2204, 0.1
  %v2288 = vmul.f32 %v2208, 0.1
  %v2289 = vmul.f32 %v2210, 0.1
  %v2290 = vmul.f32 %v2212, 0.1
  %v2291 = vmul.f32 %v2214, 0.1
  %v2292 = vmul.f32 %v2218, 0.1
  %v2293 = vmul.f32 %v2220, 0.1
  %v2294 = vmul.f32 %v2222, 0.1
  %v2295 = vmul.f32 %v2224, 0.1
  %v2296 = vmul.f32 %v2228, 0.1
  %v2297 = vmul.f32 %v2230, 0.1
  %v2298 = vmul.f32 %v2232, 0.1
  %v2299 = vmul.f32 %v2234, 0.1
  %v2300 = vsel %vm2236, %v2158, %v2268
  %v2301 = vsel %vm2237, %v2160, %v2269
  %v2302 = vsel %vm2238, %v2162, %v2270
  %v2303 = vsel %vm2239, %v2164, %v2271
  %v2304 = vsel %vm2240, %v2168, %v2272
  %v2305 = vsel %vm2241, %v2170, %v2273
  %v2306 = vsel %vm2242, %v2172, %v2274
  %v2307 = vsel %vm2243, %v2174, %v2275
  %v2308 = vsel %vm2244, %v2178, %v2276
  %v2309 = vsel %vm2245, %v2180, %v2277
  %v2310 = vsel %vm2246, %v2182, %v2278
  %v2311 = vsel %vm2247, %v2184, %v2279
  %v2312 = vsel %vm2248, %v2188, %v2280
  %v2313 = vsel %vm2249, %v2190, %v2281
  %v2314 = vsel %vm2250, %v2192, %v2282
  %v2315 = vsel %vm2251, %v2194, %v2283
  %v2316 = vsel %vm2252, %v2198, %v2284
  %v2317 = vsel %vm2253, %v2200, %v2285
  %v2318 = vsel %vm2254, %v2202, %v2286
  %v2319 = vsel %vm2255, %v2204, %v2287
  %v2320 = vsel %vm2256, %v2208, %v2288
  %v2321 = vsel %vm2257, %v2210, %v2289
  %v2322 = vsel %vm2258, %v2212, %v2290
  %v2323 = vsel %vm2259, %v2214, %v2291
  %v2324 = vsel %vm2260, %v2218, %v2292
  %v2325 = vsel %vm2261, %v2220, %v2293
  %v2326 = vsel %vm2262, %v2222, %v2294
  %v2327 = vsel %vm2263, %v2224, %v2295
  %v2328 = vsel %vm2264, %v2228, %v2296
  %v2329 = vsel %vm2265, %v2230, %v2297
  %v2330 = vsel %vm2266, %v2232, %v2298
  %v2331 = vsel %vm2267, %v2234, %v2299
  %v2332 = vunpack.c.l.bf16 %v21
  %v2333 = vunpack.c.h.bf16 %v21
  %v2334 = vunpack.c.l.bf16 %v22
  %v2335 = vunpack.c.h.bf16 %v22
  %v2336 = vunpack.c.l.bf16 %v23
  %v2337 = vunpack.c.h.bf16 %v23
  %v2338 = vunpack.c.l.bf16 %v24
  %v2339 = vunpack.c.h.bf16 %v24
  %v2340 = vunpack.c.l.bf16 %v25
  %v2341 = vunpack.c.h.bf16 %v25
  %v2342 = vunpack.c.l.bf16 %v26
  %v2343 = vunpack.c.h.bf16 %v26
  %v2344 = vunpack.c.l.bf16 %v27
  %v2345 = vunpack.c.h.bf16 %v27
  %v2346 = vunpack.c.l.bf16 %v28
  %v2347 = vunpack.c.h.bf16 %v28
  %v2348 = vunpack.c.l.bf16 %v29
  %v2349 = vunpack.c.h.bf16 %v29
  %v2350 = vunpack.c.l.bf16 %v30
  %v2351 = vunpack.c.h.bf16 %v30
  %v2352 = vunpack.c.l.bf16 %v31
  %v2353 = vunpack.c.h.bf16 %v31
  %v2354 = vunpack.c.l.bf16 %v32
  %v2355 = vunpack.c.h.bf16 %v32
  %v2356 = vunpack.c.l.bf16 %v33
  %v2357 = vunpack.c.h.bf16 %v33
  %v2358 = vunpack.c.l.bf16 %v34
  %v2359 = vunpack.c.h.bf16 %v34
  %v2360 = vunpack.c.l.bf16 %v35
  %v2361 = vunpack.c.h.bf16 %v35
  %v2362 = vunpack.c.l.bf16 %v36
  %v2363 = vunpack.c.h.bf16 %v36
  %v2364 = vadd.f32 %v2300, %v2332
  %v2365 = vadd.f32 %v2301, %v2333
  %v2366 = vadd.f32 %v2302, %v2334
  %v2367 = vadd.f32 %v2303, %v2335
  %v2368 = vadd.f32 %v2304, %v2336
  %v2369 = vadd.f32 %v2305, %v2337
  %v2370 = vadd.f32 %v2306, %v2338
  %v2371 = vadd.f32 %v2307, %v2339
  %v2372 = vadd.f32 %v2308, %v2340
  %v2373 = vadd.f32 %v2309, %v2341
  %v2374 = vadd.f32 %v2310, %v2342
  %v2375 = vadd.f32 %v2311, %v2343
  %v2376 = vadd.f32 %v2312, %v2344
  %v2377 = vadd.f32 %v2313, %v2345
  %v2378 = vadd.f32 %v2314, %v2346
  %v2379 = vadd.f32 %v2315, %v2347
  %v2380 = vadd.f32 %v2316, %v2348
  %v2381 = vadd.f32 %v2317, %v2349
  %v2382 = vadd.f32 %v2318, %v2350
  %v2383 = vadd.f32 %v2319, %v2351
  %v2384 = vadd.f32 %v2320, %v2352
  %v2385 = vadd.f32 %v2321, %v2353
  %v2386 = vadd.f32 %v2322, %v2354
  %v2387 = vadd.f32 %v2323, %v2355
  %v2388 = vadd.f32 %v2324, %v2356
  %v2389 = vadd.f32 %v2325, %v2357
  %v2390 = vadd.f32 %v2326, %v2358
  %v2391 = vadd.f32 %v2327, %v2359
  %v2392 = vadd.f32 %v2328, %v2360
  %v2393 = vadd.f32 %v2329, %v2361
  %v2394 = vadd.f32 %v2330, %v2362
  %v2395 = vadd.f32 %v2331, %v2363
  %v2396 = vpack.c.bf16 %v2366, %v2364
  %v2397 = vpack.c.bf16 %v2367, %v2365
  %v2398 = vpack.c.bf16 %v2370, %v2368
  %v2399 = vpack.c.bf16 %v2371, %v2369
  %v2400 = vpack.c.bf16 %v2374, %v2372
  %v2401 = vpack.c.bf16 %v2375, %v2373
  %v2402 = vpack.c.bf16 %v2378, %v2376
  %v2403 = vpack.c.bf16 %v2379, %v2377
  %v2404 = vpack.c.bf16 %v2382, %v2380
  %v2405 = vpack.c.bf16 %v2383, %v2381
  %v2406 = vpack.c.bf16 %v2386, %v2384
  %v2407 = vpack.c.bf16 %v2387, %v2385
  %v2408 = vpack.c.bf16 %v2390, %v2388
  %v2409 = vpack.c.bf16 %v2391, %v2389
  %v2410 = vpack.c.bf16 %v2394, %v2392
  %v2411 = vpack.c.bf16 %v2395, %v2393
  %v2428 = vunpack.c.l.b16 %v2396
  %v2429 = vunpack.c.l.b16 %v2397
  %v2430 = vunpack.c.h.b16 %v2396
  %v2431 = vunpack.c.h.b16 %v2397
  %v2432 = vunpack.c.l.b16 %v2398
  %v2433 = vunpack.c.l.b16 %v2399
  %v2434 = vunpack.c.h.b16 %v2398
  %v2435 = vunpack.c.h.b16 %v2399
  %v2436 = vunpack.c.l.b16 %v2400
  %v2437 = vunpack.c.l.b16 %v2401
  %v2438 = vunpack.c.h.b16 %v2400
  %v2439 = vunpack.c.h.b16 %v2401
  %v2440 = vunpack.c.l.b16 %v2402
  %v2441 = vunpack.c.l.b16 %v2403
  %v2442 = vunpack.c.h.b16 %v2402
  %v2443 = vunpack.c.h.b16 %v2403
  %v2444 = vunpack.c.l.b16 %v2404
  %v2445 = vunpack.c.l.b16 %v2405
  %v2446 = vunpack.c.h.b16 %v2404
  %v2447 = vunpack.c.h.b16 %v2405
  %v2448 = vunpack.c.l.b16 %v2406
  %v2449 = vunpack.c.l.b16 %v2407
  %v2450 = vunpack.c.h.b16 %v2406
  %v2451 = vunpack.c.h.b16 %v2407
  %v2452 = vunpack.c.l.b16 %v2408
  %v2453 = vunpack.c.l.b16 %v2409
  %v2454 = vunpack.c.h.b16 %v2408
  %v2455 = vunpack.c.h.b16 %v2409
  %v2456 = vunpack.c.l.b16 %v2410
  %v2457 = vunpack.c.l.b16 %v2411
  %v2458 = vunpack.c.h.b16 %v2410
  %v2459 = vunpack.c.h.b16 %v2411
  %v2460 = vpack.c.b16 %v2429, %v2428
  %v2461 = vpack.c.b16 %v2431, %v2430
  %v2462 = vpack.c.b16 %v2433, %v2432
  %v2463 = vpack.c.b16 %v2435, %v2434
  %v2464 = vpack.c.b16 %v2437, %v2436
  %v2465 = vpack.c.b16 %v2439, %v2438
  %v2466 = vpack.c.b16 %v2441, %v2440
  %v2467 = vpack.c.b16 %v2443, %v2442
  %v2468 = vpack.c.b16 %v2445, %v2444
  %v2469 = vpack.c.b16 %v2447, %v2446
  %v2470 = vpack.c.b16 %v2449, %v2448
  %v2471 = vpack.c.b16 %v2451, %v2450
  %v2472 = vpack.c.b16 %v2453, %v2452
  %v2473 = vpack.c.b16 %v2455, %v2454
  %v2474 = vpack.c.b16 %v2457, %v2456
  %v2475 = vpack.c.b16 %v2459, %v2458
  %vm2492 = vcmask 1043456
  %vm2493 = vcmask 523268
  %vm2494 = vmor %vm2493, %vm2492
  %2495 = vst.msk [vmem:[%s5] sm:$0xff] %vm2494, %v2460
  %2496 = vst.msk [vmem:[%s5 + $0x8] sm:$0xff] %vm2494, %v2461
  %2497 = vst.msk [vmem:[%s5 + $0x10] sm:$0xff] %vm2494, %v2462
  %2498 = vst.msk [vmem:[%s5 + $0x18] sm:$0xff] %vm2494, %v2463
  %2499 = vst.msk [vmem:[%s5 + $0x20] sm:$0xff] %vm2494, %v2464
  %2500 = vst.msk [vmem:[%s5 + $0x28] sm:$0xff] %vm2494, %v2465
  %2501 = vst.msk [vmem:[%s5 + $0x30] sm:$0xff] %vm2494, %v2466
  %2502 = vst.msk [vmem:[%s5 + $0x38] sm:$0xff] %vm2494, %v2467
  %2503 = vst.msk [vmem:[%s5 + $0x40] sm:$0xff] %vm2494, %v2468
  %2504 = vst.msk [vmem:[%s5 + $0x48] sm:$0xff] %vm2494, %v2469
  %2505 = vst.msk [vmem:[%s5 + $0x50] sm:$0xff] %vm2494, %v2470
  %2506 = vst.msk [vmem:[%s5 + $0x58] sm:$0xff] %vm2494, %v2471
  %2507 = vst.msk [vmem:[%s5 + $0x60] sm:$0xff] %vm2494, %v2472
  %2508 = vst.msk [vmem:[%s5 + $0x68] sm:$0xff] %vm2494, %v2473
  %2509 = vst.msk [vmem:[%s5 + $0x70] sm:$0xff] %vm2494, %v2474
  %2510 = vst.msk [vmem:[%s5 + $0x78] sm:$0xff] %vm2494, %v2475
  // Predicated region
  $region22: #{spatial_prior.5} parent=0 // pred_check
    _
  $region23: #{spatial_prior.5} parent=0 // pred_check_branch
    %2512 = sbr.rel (0) target = $region25
  $region24: #{spatial_prior.5} parent=0 // pred_region
    _
  $region25: #{spatial_prior.5} parent=0 // pred_fallthru
    _
  // Predicated region
  $region26: #{spatial_prior.5} parent=0 // pred_check
    _
  $region27: #{spatial_prior.5} parent=0 // pred_check_branch
    %2514 = sbr.rel (0) target = $region29
  $region28: #{spatial_prior.5} parent=0 // pred_region
    _
  $region29: #{spatial_prior.5} parent=0 // pred_fallthru
    _

// kernel: spatial_prior.6
$region0: #{spatial_prior.6}
  #allocation0 [shape = 'u32[]', space=smem, size = 0x4, offset = 0x4, fixed_abs, tag = 'smem constant byte address 0x4 - core index']
  #allocation1 [shape = 'u32[144,128]{1,0:T(1,128)}', space=vmem, size = 0x12000, scoped, tag = 'internal scratch']
  %s0 = inlined_call_operand.vmem [shape: bf16[128,192], index: 0, kind: input, shape index: {}, may-alias: {0,1,2}]
  %s1 = inlined_call_operand.vmem [shape: bf16[128,192], index: 1, kind: input, shape index: {}, may-alias: {0,1,2}]
  %s2 = inlined_call_operand.vmem [shape: bf16[128,192], index: 2, kind: input, shape index: {}, may-alias: {0,1,2}]
  %s3 = inlined_call_operand.vmem [shape: bf16[192,192], index: 3, kind: input, shape index: {}]
  %s4 = inlined_call_operand.vmem [shape: bf16[1,192], index: 4, kind: input, shape index: {}]
  %s5 = inlined_call_operand.vmem [shape: bf16[3,3,192], index: 5, kind: input, shape index: {}]
  %s6 = inlined_call_operand.vmem [shape: bf16[1,192], index: 6, kind: input, shape index: {}]
  %s7 = inlined_call_operand.vmem [shape: bf16[192,192], index: 7, kind: input, shape index: {}]
  %s8 = inlined_call_operand.vmem [shape: bf16[1,192], index: 8, kind: input, shape index: {}]
  %s9 = inlined_call_operand.vmem [shape: bf16[128,192], index: 9, kind: output, shape index: {}]
  %s10 = sld [smem:[#allocation0]]
  $region69: #{spatial_prior.6} parent=0
    _
  %s12 = ssub.s32 1, %s10
  %s13 = scalar_select 0, %s12, %s10
  loop: start=0, step=1, limit=4
  $region2: #{spatial_prior.6} parent=0 // loop_pre_header
    _
  $region3: #{spatial_prior.6} parent=0 // loop_header
    %s15 = sphi 0, %s19
    %p16 = scmp.ge.s32.totalorder %s15, 4
    %s22 = sphi 0, %s34
    %s23 = sphi 0, %s30
    %s24 = sphi 0, %s22
    %s25 = sphi 0, %s23
    %s26 = sphi 0, %s24
    %s27 = sphi 0, %s25
    %s39 = sphi 0, %s41
    %s42 = sphi 0, %s39
    %s43 = sphi 0, %s42
    %s59 = sphi 0, %s43
    %s77 = sphi 0, %s79
    %s80 = sphi 0, %s77
    %s81 = sphi 0, %s80
    %s97 = sphi 0, %s81
    %s115 = sphi 0, %s117
    %s118 = sphi 0, %s115
    %s119 = sphi 0, %s118
    %s135 = sphi 0, %s119
    %s139 = sphi 0, %s139
    %s141 = sphi 0, %s139
    %s142 = sphi 0, %s141
    %s156 = sphi 0, %s142
    %s160 = sphi 0, %s160
    %s162 = sphi 0, %s160
    %s163 = sphi 0, %s162
    %s177 = sphi 0, %s163
    %s181 = sphi 0, %s181
    %s183 = sphi 0, %s181
    %s184 = sphi 0, %s183
    %s198 = sphi 0, %s184
    %s202 = sphi 0, %s202
    %s204 = sphi 0, %s202
    %s205 = sphi 0, %s204
    %s219 = sphi 0, %s205
    %s223 = sphi 0, %s223
    %s225 = sphi 0, %s223
    %s226 = sphi 0, %s225
    %s240 = sphi 0, %s226
    %s244 = sphi 0, %s244
    %s246 = sphi 0, %s244
    %s247 = sphi 0, %s246
    %s261 = sphi 0, %s247
    %s269 = sphi 0, %s271
    %s272 = sphi 0, %s269
    %s273 = sphi 0, %s272
    %s289 = sphi 0, %s273
  $region4: #{spatial_prior.6} parent=0 // loop_header_branch
    %18 = sbr.rel (%p16) target = $region8
  $region5: #{spatial_prior.6} parent=0 // loop_body
    %s20 = ssub.s32 %s15, 1
    %s21 = ssub.s32 %s15, 2
    %s28 = sadd.s32 1, %s23
    %p29 = scmp.ge.s32.totalorder %s28, 1
    %s30 = scalar_select %p29, 0, %s28
    %s31 = sadd.s32 1, %s22
    %s32 = scalar_select %p29, %s31, %s22
    %p33 = scmp.ge.s32.totalorder %s32, 2
    %s34 = scalar_select %p33, 0, %s32
    %s35 = sadd.s32 %s22, %s23
    %s36 = sadd.s32 %s34, %s30
    %s37 = ssub.s32 %s35, %s36
    %p38 = scmp.eq.s32.totalorder %s37, 0
    %s40 = sadd.s32 %s39, 1
    %s41 = scalar_select %p38, %s39, %s40
    %p44 = pneg %p38
    %p45 = scmp.eq.s32.totalorder %s15, 1
    %p46 = por %p44, %p45
    %p47 = scmp.ne.s32.totalorder %s39, %s42
    %p48 = scmp.eq.s32.totalorder %s15, 0
    %p49 = por %p47, %p48
    %p50 = scmp.ne.s32.totalorder %s39, %s42
    %p51 = scmp.eq.s32.totalorder %s20, 1
    %p52 = por %p50, %p51
    %p53 = scmp.ne.s32.totalorder %s42, %s43
    %p54 = scmp.eq.s32.totalorder %s20, 0
    %p55 = por %p53, %p54
    %p56 = scmp.ne.s32.totalorder %s42, %s43
    %p57 = scmp.eq.s32.totalorder %s21, 1
    %p58 = por %p56, %p57
    %p60 = scmp.ne.s32.totalorder %s43, %s59
    %p61 = scmp.eq.s32.totalorder %s21, 0
    %p62 = por %p60, %p61
    %s63 = smul.u32 %s22, 8
    %s64 = smul.u32 %s23, 8
    %s65 = ssub.s32 %s64, 1
    %p66 = scmp.gt.s32.totalorder %s65, 0
    %s67 = scalar_select %p66, %s65, 0
    %s68 = sadd.s32 %s63, %s67
    %s69 = smul.u32 %s34, 8
    %s70 = smul.u32 %s30, 8
    %s71 = ssub.s32 %s70, 1
    %p72 = scmp.gt.s32.totalorder %s71, 0
    %s73 = scalar_select %p72, %s71, 0
    %s74 = sadd.s32 %s69, %s73
    %s75 = ssub.s32 %s68, %s74
    %p76 = scmp.eq.s32.totalorder %s75, 0
    %s78 = sadd.s32 %s77, 1
    %s79 = scalar_select %p76, %s77, %s78
    %p82 = pneg %p76
    %p83 = scmp.eq.s32.totalorder %s15, 1
    %p84 = por %p82, %p83
    %p85 = scmp.ne.s32.totalorder %s77, %s80
    %p86 = scmp.eq.s32.totalorder %s15, 0
    %p87 = por %p85, %p86
    %p88 = scmp.ne.s32.totalorder %s77, %s80
    %p89 = scmp.eq.s32.totalorder %s20, 1
    %p90 = por %p88, %p89
    %p91 = scmp.ne.s32.totalorder %s80, %s81
    %p92 = scmp.eq.s32.totalorder %s20, 0
    %p93 = por %p91, %p92
    %p94 = scmp.ne.s32.totalorder %s80, %s81
    %p95 = scmp.eq.s32.totalorder %s21, 1
    %p96 = por %p94, %p95
    %p98 = scmp.ne.s32.totalorder %s81, %s97
    %p99 = scmp.eq.s32.totalorder %s21, 0
    %p100 = por %p98, %p99
    %s101 = smul.u32 %s22, 8
    %s102 = sadd.s32 %s23, 1
    %s103 = smul.u32 %s102, 8
    %p104 = scmp.lt.s32.totalorder %s103, 7
    %s105 = scalar_select %p104, %s103, 7
    %s106 = sadd.s32 %s101, %s105
    %s107 = smul.u32 %s34, 8
    %s108 = sadd.s32 %s30, 1
    %s109 = smul.u32 %s108, 8
    %p110 = scmp.lt.s32.totalorder %s109, 7
    %s111 = scalar_select %p110, %s109, 7
    %s112 = sadd.s32 %s107, %s111
    %s113 = ssub.s32 %s106, %s112
    %p114 = scmp.eq.s32.totalorder %s113, 0
    %s116 = sadd.s32 %s115, 1
    %s117 = scalar_select %p114, %s115, %s116
    %p120 = pneg %p114
    %p121 = scmp.eq.s32.totalorder %s15, 1
    %p122 = por %p120, %p121
    %p123 = scmp.ne.s32.totalorder %s115, %s118
    %p124 = scmp.eq.s32.totalorder %s15, 0
    %p125 = por %p123, %p124
    %p126 = scmp.ne.s32.totalorder %s115, %s118
    %p127 = scmp.eq.s32.totalorder %s20, 1
    %p128 = por %p126, %p127
    %p129 = scmp.ne.s32.totalorder %s118, %s119
    %p130 = scmp.eq.s32.totalorder %s20, 0
    %p131 = por %p129, %p130
    %p132 = scmp.ne.s32.totalorder %s118, %s119
    %p133 = scmp.eq.s32.totalorder %s21, 1
    %p134 = por %p132, %p133
    %p136 = scmp.ne.s32.totalorder %s119, %s135
    %p137 = scmp.eq.s32.totalorder %s21, 0
    %p138 = por %p136, %p137
    %s140 = sadd.s32 %s139, 1
    %p143 = scmp.eq.s32.totalorder %s15, 1
    %p144 = scmp.ne.s32.totalorder %s139, %s141
    %p145 = scmp.eq.s32.totalorder %s15, 0
    %p146 = por %p144, %p145
    %p147 = scmp.ne.s32.totalorder %s139, %s141
    %p148 = scmp.eq.s32.totalorder %s20, 1
    %p149 = por %p147, %p148
    %p150 = scmp.ne.s32.totalorder %s141, %s142
    %p151 = scmp.eq.s32.totalorder %s20, 0
    %p152 = por %p150, %p151
    %p153 = scmp.ne.s32.totalorder %s141, %s142
    %p154 = scmp.eq.s32.totalorder %s21, 1
    %p155 = por %p153, %p154
    %p157 = scmp.ne.s32.totalorder %s142, %s156
    %p158 = scmp.eq.s32.totalorder %s21, 0
    %p159 = por %p157, %p158
    %s161 = sadd.s32 %s160, 1
    %p164 = scmp.eq.s32.totalorder %s15, 1
    %p165 = scmp.ne.s32.totalorder %s160, %s162
    %p166 = scmp.eq.s32.totalorder %s15, 0
    %p167 = por %p165, %p166
    %p168 = scmp.ne.s32.totalorder %s160, %s162
    %p169 = scmp.eq.s32.totalorder %s20, 1
    %p170 = por %p168, %p169
    %p171 = scmp.ne.s32.totalorder %s162, %s163
    %p172 = scmp.eq.s32.totalorder %s20, 0
    %p173 = por %p171, %p172
    %p174 = scmp.ne.s32.totalorder %s162, %s163
    %p175 = scmp.eq.s32.totalorder %s21, 1
    %p176 = por %p174, %p175
    %p178 = scmp.ne.s32.totalorder %s163, %s177
    %p179 = scmp.eq.s32.totalorder %s21, 0
    %p180 = por %p178, %p179
    %s182 = sadd.s32 %s181, 1
    %p185 = scmp.eq.s32.totalorder %s15, 1
    %p186 = scmp.ne.s32.totalorder %s181, %s183
    %p187 = scmp.eq.s32.totalorder %s15, 0
    %p188 = por %p186, %p187
    %p189 = scmp.ne.s32.totalorder %s181, %s183
    %p190 = scmp.eq.s32.totalorder %s20, 1
    %p191 = por %p189, %p190
    %p192 = scmp.ne.s32.totalorder %s183, %s184
    %p193 = scmp.eq.s32.totalorder %s20, 0
    %p194 = por %p192, %p193
    %p195 = scmp.ne.s32.totalorder %s183, %s184
    %p196 = scmp.eq.s32.totalorder %s21, 1
    %p197 = por %p195, %p196
    %p199 = scmp.ne.s32.totalorder %s184, %s198
    %p200 = scmp.eq.s32.totalorder %s21, 0
    %p201 = por %p199, %p200
    %s203 = sadd.s32 %s202, 1
    %p206 = scmp.eq.s32.totalorder %s15, 1
    %p207 = scmp.ne.s32.totalorder %s202, %s204
    %p208 = scmp.eq.s32.totalorder %s15, 0
    %p209 = por %p207, %p208
    %p210 = scmp.ne.s32.totalorder %s202, %s204
    %p211 = scmp.eq.s32.totalorder %s20, 1
    %p212 = por %p210, %p211
    %p213 = scmp.ne.s32.totalorder %s204, %s205
    %p214 = scmp.eq.s32.totalorder %s20, 0
    %p215 = por %p213, %p214
    %p216 = scmp.ne.s32.totalorder %s204, %s205
    %p217 = scmp.eq.s32.totalorder %s21, 1
    %p218 = por %p216, %p217
    %p220 = scmp.ne.s32.totalorder %s205, %s219
    %p221 = scmp.eq.s32.totalorder %s21, 0
    %p222 = por %p220, %p221
    %s224 = sadd.s32 %s223, 1
    %p227 = scmp.eq.s32.totalorder %s15, 1
    %p228 = scmp.ne.s32.totalorder %s223, %s225
    %p229 = scmp.eq.s32.totalorder %s15, 0
    %p230 = por %p228, %p229
    %p231 = scmp.ne.s32.totalorder %s223, %s225
    %p232 = scmp.eq.s32.totalorder %s20, 1
    %p233 = por %p231, %p232
    %p234 = scmp.ne.s32.totalorder %s225, %s226
    %p235 = scmp.eq.s32.totalorder %s20, 0
    %p236 = por %p234, %p235
    %p237 = scmp.ne.s32.totalorder %s225, %s226
    %p238 = scmp.eq.s32.totalorder %s21, 1
    %p239 = por %p237, %p238
    %p241 = scmp.ne.s32.totalorder %s226, %s240
    %p242 = scmp.eq.s32.totalorder %s21, 0
    %p243 = por %p241, %p242
    %s245 = sadd.s32 %s244, 1
    %p248 = scmp.eq.s32.totalorder %s15, 1
    %p249 = scmp.ne.s32.totalorder %s244, %s246
    %p250 = scmp.eq.s32.totalorder %s15, 0
    %p251 = por %p249, %p250
    %p252 = scmp.ne.s32.totalorder %s244, %s246
    %p253 = scmp.eq.s32.totalorder %s20, 1
    %p254 = por %p252, %p253
    %p255 = scmp.ne.s32.totalorder %s246, %s247
    %p256 = scmp.eq.s32.totalorder %s20, 0
    %p257 = por %p255, %p256
    %p258 = scmp.ne.s32.totalorder %s246, %s247
    %p259 = scmp.eq.s32.totalorder %s21, 1
    %p260 = por %p258, %p259
    %p262 = scmp.ne.s32.totalorder %s247, %s261
    %p263 = scmp.eq.s32.totalorder %s21, 0
    %p264 = por %p262, %p263
    %s265 = sadd.s32 %s22, %s23
    %s266 = sadd.s32 %s34, %s30
    %s267 = ssub.s32 %s265, %s266
    %p268 = scmp.eq.s32.totalorder %s267, 0
    %s270 = sadd.s32 %s269, 1
    %s271 = scalar_select %p268, %s269, %s270
    %p274 = pneg %p268
    %p275 = scmp.eq.s32.totalorder %s15, 1
    %p276 = por %p274, %p275
    %p277 = scmp.ne.s32.totalorder %s269, %s272
    %p278 = scmp.eq.s32.totalorder %s15, 0
    %p279 = por %p277, %p278
    %p280 = scmp.ne.s32.totalorder %s269, %s272
    %p281 = scmp.eq.s32.totalorder %s20, 1
    %p282 = por %p280, %p281
    %p283 = scmp.ne.s32.totalorder %s272, %s273
    %p284 = scmp.eq.s32.totalorder %s20, 0
    %p285 = por %p283, %p284
    %p286 = scmp.ne.s32.totalorder %s272, %s273
    %p287 = scmp.eq.s32.totalorder %s21, 1
    %p288 = por %p286, %p287
    %p290 = scmp.ne.s32.totalorder %s273, %s289
    %p291 = scmp.eq.s32.totalorder %s21, 0
    %p292 = por %p290, %p291
    %p293 = scmp.le.s32.totalorder 1, %s15
    %p294 = scmp.lt.s32.totalorder %s15, 3
    %p295 = pnand %p293, %p294
    %p296 = pneg %p295
    // Predicated region
    $region9: #{spatial_prior.6} parent=5 // pred_check
      _
    $region10: #{spatial_prior.6} parent=5 // pred_check_branch
      %298 = sbr.rel (%p295) target = $region12
    $region11: #{spatial_prior.6} parent=5 // pred_region
      %s299 = ssub.s32 %s15, 1
      // Predicated region
      $region13: #{spatial_prior.6} parent=11 // pred_check
        %p300 = pneg %p152
      $region14: #{spatial_prior.6} parent=11 // pred_check_branch
        %302 = sbr.rel (%p300) target = $region16
      $region15: #{spatial_prior.6} parent=11 // pred_region
        _
      $region16: #{spatial_prior.6} parent=11 // pred_fallthru
        _
      // Predicated region
      $region17: #{spatial_prior.6} parent=11 // pred_check
        %p303 = pneg %p173
      $region18: #{spatial_prior.6} parent=11 // pred_check_branch
        %305 = sbr.rel (%p303) target = $region20
      $region19: #{spatial_prior.6} parent=11 // pred_region
        _
      $region20: #{spatial_prior.6} parent=11 // pred_fallthru
        _
      // Predicated region
      $region21: #{spatial_prior.6} parent=11 // pred_check
        %p306 = pneg %p194
      $region22: #{spatial_prior.6} parent=11 // pred_check_branch
        %308 = sbr.rel (%p306) target = $region24
      $region23: #{spatial_prior.6} parent=11 // pred_region
        _
      $region24: #{spatial_prior.6} parent=11 // pred_fallthru
        _
      // Predicated region
      $region25: #{spatial_prior.6} parent=11 // pred_check
        %p309 = pneg %p215
      $region26: #{spatial_prior.6} parent=11 // pred_check_branch
        %311 = sbr.rel (%p309) target = $region28
      $region27: #{spatial_prior.6} parent=11 // pred_region
        _
      $region28: #{spatial_prior.6} parent=11 // pred_fallthru
        _
      // Predicated region
      $region29: #{spatial_prior.6} parent=11 // pred_check
        %p312 = pneg %p236
      $region30: #{spatial_prior.6} parent=11 // pred_check_branch
        %314 = sbr.rel (%p312) target = $region32
      $region31: #{spatial_prior.6} parent=11 // pred_region
        _
      $region32: #{spatial_prior.6} parent=11 // pred_fallthru
        _
      // Predicated region
      $region33: #{spatial_prior.6} parent=11 // pred_check
        %p315 = pneg %p257
      $region34: #{spatial_prior.6} parent=11 // pred_check_branch
        %317 = sbr.rel (%p315) target = $region36
      $region35: #{spatial_prior.6} parent=11 // pred_region
        _
      $region36: #{spatial_prior.6} parent=11 // pred_fallthru
        _
    $region12: #{spatial_prior.6} parent=5 // pred_fallthru
      _
    %p318 = scmp.lt.s32.totalorder %s15, 2
    // Predicated region
    $region37: #{spatial_prior.6} parent=5 // pred_check
      %p319 = pneg %p318
    $region38: #{spatial_prior.6} parent=5 // pred_check_branch
      %321 = sbr.rel (%p319) target = $region40
    $region39: #{spatial_prior.6} parent=5 // pred_region
      // Predicated region
      $region41: #{spatial_prior.6} parent=39 // pred_check
        %p322 = pneg %p49
      $region42: #{spatial_prior.6} parent=39 // pred_check_branch
        %324 = sbr.rel (%p322) target = $region44
      $region43: #{spatial_prior.6} parent=39 // pred_region
        %s325 = sadd.s32 %s22, %s23
        %s326 = smul.u32 8, %s325
        %p327 = scmp.lt.s32.totalorder %s326, 15
        %s328 = scalar_select %p327, %s326, 15
        %s329 = smul.addr %s328, 2
        %s330 = smul.addr %s329, 4
        %s331 = scalar_lea.vmem %s0, %s330
        %s332 = sadd.s32 %s22, %s23
        %s333 = smul.u32 8, %s332
      $region44: #{spatial_prior.6} parent=39 // pred_fallthru
        _
      // Predicated region
      $region45: #{spatial_prior.6} parent=39 // pred_check
        %p334 = pneg %p87
      $region46: #{spatial_prior.6} parent=39 // pred_check_branch
        %336 = sbr.rel (%p334) target = $region48
      $region47: #{spatial_prior.6} parent=39 // pred_region
        %s337 = smul.u32 %s22, 8
        %s338 = smul.u32 %s23, 8
        %s339 = ssub.s32 %s338, 1
        %p340 = scmp.gt.s32.totalorder %s339, 0
        %s341 = scalar_select %p340, %s339, 0
        %s342 = sadd.s32 %s337, %s341
        %p343 = scmp.lt.s32.totalorder %s342, 15
        %s344 = scalar_select %p343, %s342, 15
        %s345 = smul.addr %s344, 2
        %s346 = smul.addr %s345, 4
        %s347 = scalar_lea.vmem %s1, %s346
        %s348 = smul.u32 %s22, 8
        %s349 = smul.u32 %s23, 8
        %s350 = ssub.s32 %s349, 1
        %p351 = scmp.gt.s32.totalorder %s350, 0
        %s352 = scalar_select %p351, %s350, 0
        %s353 = sadd.s32 %s348, %s352
      $region48: #{spatial_prior.6} parent=39 // pred_fallthru
        _
      // Predicated region
      $region49: #{spatial_prior.6} parent=39 // pred_check
        %p354 = pneg %p125
      $region50: #{spatial_prior.6} parent=39 // pred_check_branch
        %356 = sbr.rel (%p354) target = $region52
      $region51: #{spatial_prior.6} parent=39 // pred_region
        %s357 = smul.u32 %s22, 8
        %s358 = sadd.s32 %s23, 1
        %s359 = smul.u32 %s358, 8
        %p360 = scmp.lt.s32.totalorder %s359, 7
        %s361 = scalar_select %p360, %s359, 7
        %s362 = sadd.s32 %s357, %s361
        %p363 = scmp.lt.s32.totalorder %s362, 15
        %s364 = scalar_select %p363, %s362, 15
        %s365 = smul.addr %s364, 2
        %s366 = smul.addr %s365, 4
        %s367 = scalar_lea.vmem %s2, %s366
        %s368 = smul.u32 %s22, 8
        %s369 = sadd.s32 %s23, 1
        %s370 = smul.u32 %s369, 8
        %p371 = scmp.lt.s32.totalorder %s370, 7
        %s372 = scalar_select %p371, %s370, 7
        %s373 = sadd.s32 %s368, %s372
      $region52: #{spatial_prior.6} parent=39 // pred_fallthru
        _
    $region40: #{spatial_prior.6} parent=5 // pred_fallthru
      _
    %p374 = scmp.le.s32.totalorder 1, %s15
    %p375 = scmp.lt.s32.totalorder %s15, 3
    %p376 = pnand %p374, %p375
    %p377 = pneg %p376
    // Predicated region
    $region53: #{spatial_prior.6} parent=5 // pred_check
      _
    $region54: #{spatial_prior.6} parent=5 // pred_check_branch
      %379 = sbr.rel (%p376) target = $region56
    $region55: #{spatial_prior.6} parent=5 // pred_region
      %s380 = ssub.s32 %s15, 1
      %s381 = sadd.s32 %s24, %s25
      %s382 = smul.u32 8, %s381
      %p383 = scmp.lt.s32.totalorder %s382, 15
      %s384 = scalar_select %p383, %s382, 15
      %s385 = smul.addr %s384, 2
      %s386 = smul.addr %s385, 4
      %s387 = scalar_lea.vmem %s0, %s386
      %p388 = pneg %p55
      %p389 = pneg %p52
      %s390 = smul.u32 %s24, 8
      %s391 = smul.u32 %s25, 8
      %s392 = ssub.s32 %s391, 1
      %p393 = scmp.gt.s32.totalorder %s392, 0
      %s394 = scalar_select %p393, %s392, 0
      %s395 = sadd.s32 %s390, %s394
      %p396 = scmp.lt.s32.totalorder %s395, 15
      %s397 = scalar_select %p396, %s395, 15
      %s398 = smul.addr %s397, 2
      %s399 = smul.addr %s398, 4
      %s400 = scalar_lea.vmem %s1, %s399
      %p401 = pneg %p93
      %p402 = pneg %p90
      %s403 = smul.u32 %s24, 8
      %s404 = sadd.s32 %s25, 1
      %s405 = smul.u32 %s404, 8
      %p406 = scmp.lt.s32.totalorder %s405, 7
      %s407 = scalar_select %p406, %s405, 7
      %s408 = sadd.s32 %s403, %s407
      %p409 = scmp.lt.s32.totalorder %s408, 15
      %s410 = scalar_select %p409, %s408, 15
      %s411 = smul.addr %s410, 2
      %s412 = smul.addr %s411, 4
      %s413 = scalar_lea.vmem %s2, %s412
      %p414 = pneg %p131
      %p415 = pneg %p128
      %p416 = pneg %p152
      %p417 = pneg %p149
      %p418 = pneg %p173
      %p419 = pneg %p170
      %p420 = pneg %p194
      %p421 = pneg %p191
      %p422 = pneg %p215
      %p423 = pneg %p212
      %p424 = pneg %p236
      %p425 = pneg %p233
      %p426 = pneg %p257
      %p427 = pneg %p254
      %p428 = pneg %p285
      %p429 = pneg %p282
      %s430 = sadd.s32 %s24, %s25
      %s431 = smul.u32 8, %s430
      %p432 = scmp.lt.s32.totalorder %s431, 15
      %s433 = scalar_select %p432, %s431, 15
      %s434 = smul.addr %s433, 2
      %s435 = smul.addr %s434, 4
      %s436 = scalar_lea.vmem %s9, %s435
      %s437 = sadd.s32 %s24, %s25
      %s438 = smul.u32 8, %s437
      %p439 = scmp.lt.s32.totalorder %s438, 15
      %s440 = scalar_select %p439, %s438, 15
      %s441 = smul.addr %s440, 2
      %s442 = smul.addr %s441, 4
      %s443 = scalar_lea.vmem %s0, %s442
      %s444 = sadd.s32 %s24, %s25
      %s445 = smul.u32 8, %s444
      %s446 = smul.u32 %s24, 8
      %s447 = smul.u32 %s25, 8
      %s448 = ssub.s32 %s447, 1
      %p449 = scmp.gt.s32.totalorder %s448, 0
      %s450 = scalar_select %p449, %s448, 0
      %s451 = sadd.s32 %s446, %s450
      %p452 = scmp.lt.s32.totalorder %s451, 15
      %s453 = scalar_select %p452, %s451, 15
      %s454 = smul.addr %s453, 2
      %s455 = smul.addr %s454, 4
      %s456 = scalar_lea.vmem %s1, %s455
      %s457 = smul.u32 %s24, 8
      %s458 = smul.u32 %s25, 8
      %s459 = ssub.s32 %s458, 1
      %p460 = scmp.gt.s32.totalorder %s459, 0
      %s461 = scalar_select %p460, %s459, 0
      %s462 = sadd.s32 %s457, %s461
      %s463 = smul.u32 %s24, 8
      %s464 = sadd.s32 %s25, 1
      %s465 = smul.u32 %s464, 8
      %p466 = scmp.lt.s32.totalorder %s465, 7
      %s467 = scalar_select %p466, %s465, 7
      %s468 = sadd.s32 %s463, %s467
      %p469 = scmp.lt.s32.totalorder %s468, 15
      %s470 = scalar_select %p469, %s468, 15
      %s471 = smul.addr %s470, 2
      %s472 = smul.addr %s471, 4
      %s473 = scalar_lea.vmem %s2, %s472
      %s474 = smul.u32 %s24, 8
      %s475 = sadd.s32 %s25, 1
      %s476 = smul.u32 %s475, 8
      %p477 = scmp.lt.s32.totalorder %s476, 7
      %s478 = scalar_select %p477, %s476, 7
      %s479 = sadd.s32 %s474, %s478
      %s480 = sadd.s32 %s24, %s25
      %s481 = smul.u32 8, %s480
      %p482 = scmp.lt.s32.totalorder %s481, 15
      %s483 = scalar_select %p482, %s481, 15
      %s484 = smul.addr %s483, 2
      %s485 = smul.addr %s484, 4
      %s486 = scalar_lea.vmem %s9, %s485
      %s487 = sadd.s32 %s24, %s25
      %s488 = smul.u32 8, %s487
      %s490 = smul.u32 %s25, 8
      %v491 = vld [vmem:[%s443] sm:$0xff]
      %v492 = vld [vmem:[%s443 + $0x8] sm:$0xff]
      %v493 = vld [vmem:[%s443 + $0x10] sm:$0xff]
      %v494 = vld [vmem:[%s443 + $0x18] sm:$0xff]
      %v495 = vld [vmem:[%s443 + $0x20] sm:$0xff]
      %v496 = vld [vmem:[%s443 + $0x28] sm:$0xff]
      %v497 = vld [vmem:[%s443 + $0x30] sm:$0xff]
      %v498 = vld [vmem:[%s443 + $0x38] sm:$0xff]
      %v499 = vld [vmem:[%s3] sm:$0xff]
      %v500 = vld [vmem:[%s3 + $0x8] sm:$0xff]
      %v501 = vld [vmem:[%s3 + $0x10] sm:$0xff]
      %v502 = vld [vmem:[%s3 + $0x18] sm:$0xff]
      %v503 = vld [vmem:[%s3 + $0x20] sm:$0xff]
      %v504 = vld [vmem:[%s3 + $0x28] sm:$0xff]
      %v505 = vld [vmem:[%s3 + $0x30] sm:$0xff]
      %v506 = vld [vmem:[%s3 + $0x38] sm:$0xff]
      %v507 = vld [vmem:[%s3 + $0x40] sm:$0xff]
      %v508 = vld [vmem:[%s3 + $0x48] sm:$0xff]
      %v509 = vld [vmem:[%s3 + $0x50] sm:$0xff]
      %v510 = vld [vmem:[%s3 + $0x58] sm:$0xff]
      %v511 = vld [vmem:[%s3 + $0x60] sm:$0xff]
      %v512 = vld [vmem:[%s3 + $0x68] sm:$0xff]
      %v513 = vld [vmem:[%s3 + $0x70] sm:$0xff]
      %v514 = vld [vmem:[%s3 + $0x78] sm:$0xff]
      %v515 = vld [vmem:[%s3 + $0x80] sm:$0xff]
      %v516 = vld [vmem:[%s3 + $0x88] sm:$0xff]
      %v517 = vld [vmem:[%s3 + $0x90] sm:$0xff]
      %v518 = vld [vmem:[%s3 + $0x98] sm:$0xff]
      %v519 = vld [vmem:[%s3 + $0xa0] sm:$0xff]
      %v520 = vld [vmem:[%s3 + $0xa8] sm:$0xff]
      %v521 = vld [vmem:[%s3 + $0xb0] sm:$0xff]
      %v522 = vld [vmem:[%s3 + $0xb8] sm:$0xff]
      %v523 = vld [vmem:[%s4] sm:$0x3]
      %v524 = vunpack.c.l.bf16 %v523
      %v526 = vlaneseq
      %v527 = vshrl.u32 %v526, 7
      %v528 = vsub.s32 0, %v527
      %v529 = vrot.slane %v524, %v528
      %v530 = vlaneseq
      %v531 = vshrl.u32 %v530, 7
      %v532 = vsub.s32 2, %v531
      %v533 = vrot.slane %v524, %v532
      %v536 = vlaneseq
      %v537 = vshrl.u32 %v536, 7
      %v538 = vsub.s32 0, %v537
      %v539 = vrot.slane %v529, %v538
      %v540 = vlaneseq
      %v541 = vshrl.u32 %v540, 7
      %v542 = vsub.s32 0, %v541
      %v543 = vrot.slane %v533, %v542
      %v552 = vunpack.c.l.b16 %v491
      %v553 = vunpack.c.h.b16 %v491
      %v554 = vunpack.c.l.b16 %v492
      %v555 = vunpack.c.h.b16 %v492
      %v556 = vunpack.c.l.b16 %v493
      %v557 = vunpack.c.h.b16 %v493
      %v558 = vunpack.c.l.b16 %v494
      %v559 = vunpack.c.h.b16 %v494
      %v560 = vunpack.c.l.b16 %v495
      %v561 = vunpack.c.h.b16 %v495
      %v562 = vunpack.c.l.b16 %v496
      %v563 = vunpack.c.h.b16 %v496
      %v564 = vunpack.c.l.b16 %v497
      %v565 = vunpack.c.h.b16 %v497
      %v566 = vunpack.c.l.b16 %v498
      %v567 = vunpack.c.h.b16 %v498
      %v568 = vpack.c.b16 %v554, %v552
      %v569 = vpack.c.b16 %v555, %v553
      %v570 = vpack.c.b16 %v558, %v556
      %v571 = vpack.c.b16 %v559, %v557
      %v572 = vpack.c.b16 %v562, %v560
      %v573 = vpack.c.b16 %v563, %v561
      %v574 = vpack.c.b16 %v566, %v564
      %v575 = vpack.c.b16 %v567, %v565
      %v604 = vunpack.c.l.b16 %v499
      %v605 = vunpack.c.h.b16 %v499
      %v606 = vunpack.c.l.b16 %v500
      %v607 = vunpack.c.h.b16 %v500
      %v608 = vunpack.c.l.b16 %v501
      %v609 = vunpack.c.h.b16 %v501
      %v610 = vunpack.c.l.b16 %v502
      %v611 = vunpack.c.h.b16 %v502
      %v612 = vunpack.c.l.b16 %v503
      %v613 = vunpack.c.h.b16 %v503
      %v614 = vunpack.c.l.b16 %v504
      %v615 = vunpack.c.h.b16 %v504
      %v616 = vunpack.c.l.b16 %v505
      %v617 = vunpack.c.h.b16 %v505
      %v618 = vunpack.c.l.b16 %v506
      %v619 = vunpack.c.h.b16 %v506
      %v620 = vunpack.c.l.b16 %v507
      %v621 = vunpack.c.h.b16 %v507
      %v622 = vunpack.c.l.b16 %v508
      %v623 = vunpack.c.h.b16 %v508
      %v624 = vunpack.c.l.b16 %v509
      %v625 = vunpack.c.h.b16 %v509
      %v626 = vunpack.c.l.b16 %v510
      %v627 = vunpack.c.h.b16 %v510
      %v628 = vunpack.c.l.b16 %v511
      %v629 = vunpack.c.h.b16 %v511
      %v630 = vunpack.c.l.b16 %v512
      %v631 = vunpack.c.h.b16 %v512
      %v632 = vunpack.c.l.b16 %v513
      %v633 = vunpack.c.h.b16 %v513
      %v634 = vunpack.c.l.b16 %v514
      %v635 = vunpack.c.h.b16 %v514
      %v636 = vunpack.c.l.b16 %v515
      %v637 = vunpack.c.h.b16 %v515
      %v638 = vunpack.c.l.b16 %v516
      %v639 = vunpack.c.h.b16 %v516
      %v640 = vunpack.c.l.b16 %v517
      %v641 = vunpack.c.h.b16 %v517
      %v642 = vunpack.c.l.b16 %v518
      %v643 = vunpack.c.h.b16 %v518
      %v644 = vunpack.c.l.b16 %v519
      %v645 = vunpack.c.h.b16 %v519
      %v646 = vunpack.c.l.b16 %v520
      %v647 = vunpack.c.h.b16 %v520
      %v648 = vunpack.c.l.b16 %v521
      %v649 = vunpack.c.h.b16 %v521
      %v650 = vunpack.c.l.b16 %v522
      %v651 = vunpack.c.h.b16 %v522
      %v652 = vpack.c.b16 %v606, %v604
      %v653 = vpack.c.b16 %v607, %v605
      %v654 = vpack.c.b16 %v610, %v608
      %v655 = vpack.c.b16 %v611, %v609
      %v656 = vpack.c.b16 %v614, %v612
      %v657 = vpack.c.b16 %v615, %v613
      %v658 = vpack.c.b16 %v618, %v616
      %v659 = vpack.c.b16 %v619, %v617
      %v660 = vpack.c.b16 %v622, %v620
      %v661 = vpack.c.b16 %v623, %v621
      %v662 = vpack.c.b16 %v626, %v624
      %v663 = vpack.c.b16 %v627, %v625
      %v664 = vpack.c.b16 %v630, %v628
      %v665 = vpack.c.b16 %v631, %v629
      %v666 = vpack.c.b16 %v634, %v632
      %v667 = vpack.c.b16 %v635, %v633
      %v668 = vpack.c.b16 %v638, %v636
      %v669 = vpack.c.b16 %v639, %v637
      %v670 = vpack.c.b16 %v642, %v640
      %v671 = vpack.c.b16 %v643, %v641
      %v672 = vpack.c.b16 %v646, %v644
      %v673 = vpack.c.b16 %v647, %v645
      %v674 = vpack.c.b16 %v650, %v648
      %v675 = vpack.c.b16 %v651, %v649
      %vm700 = vcmask 523264
      %v702 = vsel %vm700, %v569, 0
      %v705 = vsel %vm700, %v571, 0
      %v708 = vsel %vm700, %v573, 0
      %v711 = vsel %vm700, %v575, 0
      %713 = vmatprep.subr.bf16.mxu0 %v653
      %714 = vmatpush1.bf16.msra.mxu0 %v652
      %715 = vmatprep.subr.bf16.mxu0 %v655
      %716 = vmatpush1.bf16.msra.mxu0 %v654
      %717 = vmatprep.subr.bf16.mxu0 %v657
      %718 = vmatpush1.bf16.msra.mxu0 %v656
      %719 = vmatprep.subr.bf16.mxu0 %v659
      %720 = vmatpush1.bf16.msra.mxu0 %v658
      %721 = vmatprep.subr.bf16.mxu0 %v661
      %722 = vmatpush1.bf16.msra.mxu0 %v660
      %723 = vmatprep.subr.bf16.mxu0 %v663
      %724 = vmatpush1.bf16.msra.mxu0 %v662
      %725 = vmatprep.subr.bf16.mxu0 %v665
      %726 = vmatpush1.bf16.msra.mxu0 %v664
      %727 = vmatprep.subr.bf16.mxu0 %v667
      %728 = vmatpush1.bf16.msra.mxu0 %v666
      %729 = vmatprep.subr.bf16.mxu0 %v669
      %730 = vmatpush1.bf16.msra.mxu0 %v668
      %731 = vmatprep.subr.bf16.mxu0 %v671
      %732 = vmatpush1.bf16.msra.mxu0 %v670
      %733 = vmatprep.subr.bf16.mxu0 %v673
      %734 = vmatpush1.bf16.msra.mxu0 %v672
      %735 = vmatprep.subr.bf16.mxu0 %v675
      %736 = vmatpush1.bf16.msra.mxu0 %v674
      %737 = vmatprep.subr.bf16.mxu0 0
      %738 = vmatpush1.bf16.msra.mxu0 0
      %739 = vmatprep.subr.bf16.mxu0 0
      %740 = vmatpush1.bf16.msra.mxu0 0
      %741 = vmatprep.subr.bf16.mxu0 0
      %742 = vmatpush1.bf16.msra.mxu0 0
      %743 = vmatprep.subr.bf16.mxu0 0
      %744 = vmatpush1.bf16.msra.mxu0 0
      %745 = vmatprep.mubr.bf16.mxu0 %v702
      %746 = vmatmul.mubr.bf16.gmra.mrb[0].mxu0 %v568
      %v747 = vpop.f32.mrb[0].mxu0
      %v748 = vadd.f32 %v539, %v747
      %v749 = vpop.f32.mrb[0].mxu0
      %v750 = vadd.f32 %v543, %v749
      %v751 = vpop.f32.mrb[0].mxu0
      %v752 = vadd.f32 %v539, %v751
      %v753 = vpop.f32.mrb[0].mxu0
      %v754 = vadd.f32 %v543, %v753
      %755 = vmatprep.mubr.bf16.mxu0 %v705
      %756 = vmatmul.mubr.bf16.gmra.mrb[0].mxu0 %v570
      %v757 = vpop.f32.mrb[0].mxu0
      %v758 = vadd.f32 %v539, %v757
      %v759 = vpop.f32.mrb[0].mxu0
      %v760 = vadd.f32 %v543, %v759
      %v761 = vpop.f32.mrb[0].mxu0
      %v762 = vadd.f32 %v539, %v761
      %v763 = vpop.f32.mrb[0].mxu0
      %v764 = vadd.f32 %v543, %v763
      %765 = vmatprep.mubr.bf16.mxu0 %v708
      %766 = vmatmul.mubr.bf16.gmra.mrb[0].mxu0 %v572
      %v767 = vpop.f32.mrb[0].mxu0
      %v768 = vadd.f32 %v539, %v767
      %v769 = vpop.f32.mrb[0].mxu0
      %v770 = vadd.f32 %v543, %v769
      %v771 = vpop.f32.mrb[0].mxu0
      %v772 = vadd.f32 %v539, %v771
      %v773 = vpop.f32.mrb[0].mxu0
      %v774 = vadd.f32 %v543, %v773
      %775 = vmatprep.mubr.bf16.mxu0 %v711
      %776 = vmatmul.mubr.bf16.gmra.mrb[0].mxu0 %v574
      %v777 = vpop.f32.mrb[0].mxu0
      %v778 = vadd.f32 %v539, %v777
      %v779 = vpop.f32.mrb[0].mxu0
      %v780 = vadd.f32 %v543, %v779
      %v781 = vpop.f32.mrb[0].mxu0
      %v782 = vadd.f32 %v539, %v781
      %v783 = vpop.f32.mrb[0].mxu0
      %v784 = vadd.f32 %v543, %v783
      %785 = vdwg.mxu0
      %vm786 = vcmp.ge.f32.partialorder %v748, 0.0
      %vm787 = vcmp.ge.f32.partialorder %v750, 0.0
      %vm788 = vcmp.ge.f32.partialorder %v752, 0.0
      %vm789 = vcmp.ge.f32.partialorder %v754, 0.0
      %vm790 = vcmp.ge.f32.partialorder %v758, 0.0
      %vm791 = vcmp.ge.f32.partialorder %v760, 0.0
      %vm792 = vcmp.ge.f32.partialorder %v762, 0.0
      %vm793 = vcmp.ge.f32.partialorder %v764, 0.0
      %vm794 = vcmp.ge.f32.partialorder %v768, 0.0
      %vm795 = vcmp.ge.f32.partialorder %v770, 0.0
      %vm796 = vcmp.ge.f32.partialorder %v772, 0.0
      %vm797 = vcmp.ge.f32.partialorder %v774, 0.0
      %vm798 = vcmp.ge.f32.partialorder %v778, 0.0
      %vm799 = vcmp.ge.f32.partialorder %v780, 0.0
      %vm800 = vcmp.ge.f32.partialorder %v782, 0.0
      %vm801 = vcmp.ge.f32.partialorder %v784, 0.0
      %v802 = vmul.f32 %v748, 0.01
      %v803 = vmul.f32 %v750, 0.01
      %v804 = vmul.f32 %v752, 0.01
      %v805 = vmul.f32 %v754, 0.01
      %v806 = vmul.f32 %v758, 0.01
      %v807 = vmul.f32 %v760, 0.01
      %v808 = vmul.f32 %v762, 0.01
      %v809 = vmul.f32 %v764, 0.01
      %v810 = vmul.f32 %v768, 0.01
      %v811 = vmul.f32 %v770, 0.01
      %v812 = vmul.f32 %v772, 0.01
      %v813 = vmul.f32 %v774, 0.01
      %v814 = vmul.f32 %v778, 0.01
      %v815 = vmul.f32 %v780, 0.01
      %v816 = vmul.f32 %v782, 0.01
      %v817 = vmul.f32 %v784, 0.01
      %v818 = vsel %vm786, %v748, %v802
      %v819 = vsel %vm787, %v750, %v803
      %v820 = vsel %vm788, %v752, %v804
      %v821 = vsel %vm789, %v754, %v805
      %v822 = vsel %vm790, %v758, %v806
      %v823 = vsel %vm791, %v760, %v807
      %v824 = vsel %vm792, %v762, %v808
      %v825 = vsel %vm793, %v764, %v809
      %v826 = vsel %vm794, %v768, %v810
      %v827 = vsel %vm795, %v770, %v811
      %v828 = vsel %vm796, %v772, %v812
      %v829 = vsel %vm797, %v774, %v813
      %v830 = vsel %vm798, %v778, %v814
      %v831 = vsel %vm799, %v780, %v815
      %v832 = vsel %vm800, %v782, %v816
      %v833 = vsel %vm801, %v784, %v817
      %p834 = scmp.gt.s32.totalorder %s490, 0
      %v835 = vld [vmem:[%s456] sm:$0xff]
      %v837 = vunpack.c.l.b16 %v835
      %v838 = vunpack.c.h.b16 %v835
      %v839 = vpack.c.b16 %v837, %v837
      %v840 = vpack.c.b16 %v838, %v838
      %v843 = vsel %vm700, %v840, 0
      %845 = vmatprep.subr.bf16.mxu0 %v653
      %846 = vmatpush1.bf16.msra.mxu0 %v652
      %847 = vmatprep.subr.bf16.mxu0 %v655
      %848 = vmatpush1.bf16.msra.mxu0 %v654
      %849 = vmatprep.subr.bf16.mxu0 %v657
      %850 = vmatpush1.bf16.msra.mxu0 %v656
      %851 = vmatprep.subr.bf16.mxu0 %v659
      %852 = vmatpush1.bf16.msra.mxu0 %v658
      %853 = vmatprep.subr.bf16.mxu0 %v661
      %854 = vmatpush1.bf16.msra.mxu0 %v660
      %855 = vmatprep.subr.bf16.mxu0 %v663
      %856 = vmatpush1.bf16.msra.mxu0 %v662
      %857 = vmatprep.subr.bf16.mxu0 %v665
      %858 = vmatpush1.bf16.msra.mxu0 %v664
      %859 = vmatprep.subr.bf16.mxu0 %v667
      %860 = vmatpush1.bf16.msra.mxu0 %v666
      %861 = vmatprep.subr.bf16.mxu0 %v669
      %862 = vmatpush1.bf16.msra.mxu0 %v668
      %863 = vmatprep.subr.bf16.mxu0 %v671
      %864 = vmatpush1.bf16.msra.mxu0 %v670
      %865 = vmatprep.subr.bf16.mxu0 %v673
      %866 = vmatpush1.bf16.msra.mxu0 %v672
      %867 = vmatprep.subr.bf16.mxu0 %v675
      %868 = vmatpush1.bf16.msra.mxu0 %v674
      %869 = vmatprep.subr.bf16.mxu0 0
      %870 = vmatpush1.bf16.msra.mxu0 0
      %871 = vmatprep.subr.bf16.mxu0 0
      %872 = vmatpush1.bf16.msra.mxu0 0
      %873 = vmatprep.subr.bf16.mxu0 0
      %874 = vmatpush1.bf16.msra.mxu0 0
      %875 = vmatprep.subr.bf16.mxu0 0
      %876 = vmatpush1.bf16.msra.mxu0 0
      %877 = vmatprep.mubr.bf16.mxu0 %v843
      %878 = vmatmul.mubr.bf16.gmra.mrb[0].mxu0 %v839
      %v879 = vpop.f32.mrb[0].mxu0
      %v880 = vadd.f32 %v539, %v879
      %v881 = vpop.f32.mrb[0].mxu0
      %v882 = vadd.f32 %v543, %v881
      %v883 = vpop.f32.mrb[0].mxu0
      %v884 = vpop.f32.mrb[0].mxu0
      %885 = vdwg.mxu0
      %vm886 = vcmp.ge.f32.partialorder %v880, 0.0
      %vm887 = vcmp.ge.f32.partialorder %v882, 0.0
      %v888 = vmul.f32 %v880, 0.01
      %v889 = vmul.f32 %v882, 0.01
      %v890 = vsel %vm886, %v880, %v888
      %v891 = vsel %vm887, %v882, %v889
      %s892 = scalar_select %p834, 1, 0
      %v893 = vstv %s892
      %vm894 = vcmp.eq.s32.totalorder %v893, 1
      %v895 = vsel %vm894, %v890, 0.0
      %v896 = vsel %vm894, %v891, 0.0
      %s897 = sadd.s32 %s490, 8
      %p898 = scmp.lt.s32.totalorder %s897, 8
      %v899 = vld [vmem:[%s473] sm:$0xff]
      %v901 = vunpack.c.l.b16 %v899
      %v902 = vunpack.c.h.b16 %v899
      %v903 = vpack.c.b16 %v901, %v901
      %v904 = vpack.c.b16 %v902, %v902
      %v907 = vsel %vm700, %v904, 0
      %909 = vmatprep.subr.bf16.mxu0 %v653
      %910 = vmatpush1.bf16.msra.mxu0 %v652
      %911 = vmatprep.subr.bf16.mxu0 %v655
      %912 = vmatpush1.bf16.msra.mxu0 %v654
      %913 = vmatprep.subr.bf16.mxu0 %v657
      %914 = vmatpush1.bf16.msra.mxu0 %v656
      %915 = vmatprep.subr.bf16.mxu0 %v659
      %916 = vmatpush1.bf16.msra.mxu0 %v658
      %917 = vmatprep.subr.bf16.mxu0 %v661
      %918 = vmatpush1.bf16.msra.mxu0 %v660
      %919 = vmatprep.subr.bf16.mxu0 %v663
      %920 = vmatpush1.bf16.msra.mxu0 %v662
      %921 = vmatprep.subr.bf16.mxu0 %v665
      %922 = vmatpush1.bf16.msra.mxu0 %v664
      %923 = vmatprep.subr.bf16.mxu0 %v667
      %924 = vmatpush1.bf16.msra.mxu0 %v666
      %925 = vmatprep.subr.bf16.mxu0 %v669
      %926 = vmatpush1.bf16.msra.mxu0 %v668
      %927 = vmatprep.subr.bf16.mxu0 %v671
      %928 = vmatpush1.bf16.msra.mxu0 %v670
      %929 = vmatprep.subr.bf16.mxu0 %v673
      %930 = vmatpush1.bf16.msra.mxu0 %v672
      %931 = vmatprep.subr.bf16.mxu0 %v675
      %932 = vmatpush1.bf16.msra.mxu0 %v674
      %933 = vmatprep.subr.bf16.mxu0 0
      %934 = vmatpush1.bf16.msra.mxu0 0
      %935 = vmatprep.subr.bf16.mxu0 0
      %936 = vmatpush1.bf16.msra.mxu0 0
      %937 = vmatprep.subr.bf16.mxu0 0
      %938 = vmatpush1.bf16.msra.mxu0 0
      %939 = vmatprep.subr.bf16.mxu0 0
      %940 = vmatpush1.bf16.msra.mxu0 0
      %941 = vmatprep.mubr.bf16.mxu0 %v907
      %942 = vmatmul.mubr.bf16.gmra.mrb[0].mxu0 %v903
      %v943 = vpop.f32.mrb[0].mxu0
      %v944 = vadd.f32 %v539, %v943
      %v945 = vpop.f32.mrb[0].mxu0
      %v946 = vadd.f32 %v543, %v945
      %v947 = vpop.f32.mrb[0].mxu0
      %v948 = vpop.f32.mrb[0].mxu0
      %949 = vdwg.mxu0
      %vm950 = vcmp.ge.f32.partialorder %v944, 0.0
      %vm951 = vcmp.ge.f32.partialorder %v946, 0.0
      %v952 = vmul.f32 %v944, 0.01
      %v953 = vmul.f32 %v946, 0.01
      %v954 = vsel %vm950, %v944, %v952
      %v955 = vsel %vm951, %v946, %v953
      %s956 = scalar_select %p898, 1, 0
      %v957 = vstv %s956
      %vm958 = vcmp.eq.s32.totalorder %v957, 1
      %v959 = vsel %vm958, %v954, 0.0
      %v960 = vsel %vm958, %v955, 0.0
      %v961 = vlaneseq
      %v962 = vshrl.u32 %v961, 7
      %v963 = vadd.s32 %v962, 8
      %v964 = vadd.s32 %v962, 16
      %v965 = vadd.s32 %v962, 24
      %v966 = vadd.s32 %v962, 32
      %v967 = vadd.s32 %v962, 40
      %v968 = vadd.s32 %v962, 48
      %v969 = vadd.s32 %v962, 56
      %v970 = vadd.s32 %v962, 64
      %v971 = vadd.s32 %v962, 72
      %vm972 = vcmp.lt.s32.totalorder %v962, 0
      %v973 = vsub.s32 0, %v962
      %v974 = vsel %vm972, %v973, %v962
      %v975 = vshrl.u32 %v974, 3
      %v976 = vand.u32 %v974, 7
      %v977 = vsub.s32 0, %v976
      %v978 = vsel %vm972, %v977, %v976
      %vm979 = vcmp.lt.s32.totalorder %v963, 0
      %v980 = vsub.s32 0, %v963
      %v981 = vsel %vm979, %v980, %v963
      %v982 = vshrl.u32 %v981, 3
      %v983 = vand.u32 %v981, 7
      %v984 = vsub.s32 0, %v983
      %v985 = vsel %vm979, %v984, %v983
      %vm986 = vcmp.lt.s32.totalorder %v964, 0
      %v987 = vsub.s32 0, %v964
      %v988 = vsel %vm986, %v987, %v964
      %v989 = vshrl.u32 %v988, 3
      %v990 = vand.u32 %v988, 7
      %v991 = vsub.s32 0, %v990
      %v992 = vsel %vm986, %v991, %v990
      %vm993 = vcmp.lt.s32.totalorder %v965, 0
      %v994 = vsub.s32 0, %v965
      %v995 = vsel %vm993, %v994, %v965
      %v996 = vshrl.u32 %v995, 3
      %v997 = vand.u32 %v995, 7
      %v998 = vsub.s32 0, %v997
      %v999 = vsel %vm993, %v998, %v997
      %vm1000 = vcmp.lt.s32.totalorder %v966, 0
      %v1001 = vsub.s32 0, %v966
      %v1002 = vsel %vm1000, %v1001, %v966
      %v1003 = vshrl.u32 %v1002, 3
      %v1004 = vand.u32 %v1002, 7
      %v1005 = vsub.s32 0, %v1004
      %v1006 = vsel %vm1000, %v1005, %v1004
      %vm1007 = vcmp.lt.s32.totalorder %v967, 0
      %v1008 = vsub.s32 0, %v967
      %v1009 = vsel %vm1007, %v1008, %v967
      %v1010 = vshrl.u32 %v1009, 3
      %v1011 = vand.u32 %v1009, 7
      %v1012 = vsub.s32 0, %v1011
      %v1013 = vsel %vm1007, %v1012, %v1011
      %vm1014 = vcmp.lt.s32.totalorder %v968, 0
      %v1015 = vsub.s32 0, %v968
      %v1016 = vsel %vm1014, %v1015, %v968
      %v1017 = vshrl.u32 %v1016, 3
      %v1018 = vand.u32 %v1016, 7
      %v1019 = vsub.s32 0, %v1018
      %v1020 = vsel %vm1014, %v1019, %v1018
      %vm1021 = vcmp.lt.s32.totalorder %v969, 0
      %v1022 = vsub.s32 0, %v969
      %v1023 = vsel %vm1021, %v1022, %v969
      %v1024 = vshrl.u32 %v1023, 3
      %v1025 = vand.u32 %v1023, 7
      %v1026 = vsub.s32 0, %v1025
      %v1027 = vsel %vm1021, %v1026, %v1025
      %vm1028 = vcmp.lt.s32.totalorder %v970, 0
      %v1029 = vsub.s32 0, %v970
      %v1030 = vsel %vm1028, %v1029, %v970
      %v1031 = vshrl.u32 %v1030, 3
      %v1032 = vand.u32 %v1030, 7
      %v1033 = vsub.s32 0, %v1032
      %v1034 = vsel %vm1028, %v1033, %v1032
      %vm1035 = vcmp.lt.s32.totalorder %v971, 0
      %v1036 = vsub.s32 0, %v971
      %v1037 = vsel %vm1035, %v1036, %v971
      %v1038 = vshrl.u32 %v1037, 3
      %v1039 = vand.u32 %v1037, 7
      %v1040 = vsub.s32 0, %v1039
      %v1041 = vsel %vm1035, %v1040, %v1039
      %vm1042 = vcmp.ne.s32.totalorder %v978, 0
      %vm1043 = vcmp.ne.s32.totalorder %v985, 0
      %vm1044 = vcmp.ne.s32.totalorder %v992, 0
      %vm1045 = vcmp.ne.s32.totalorder %v999, 0
      %vm1046 = vcmp.ne.s32.totalorder %v1006, 0
      %vm1047 = vcmp.ne.s32.totalorder %v1013, 0
      %vm1048 = vcmp.ne.s32.totalorder %v1020, 0
      %vm1049 = vcmp.ne.s32.totalorder %v1027, 0
      %vm1050 = vcmp.ne.s32.totalorder %v1034, 0
      %vm1051 = vcmp.ne.s32.totalorder %v1041, 0
      %vm1052 = vcmp.lt.s32.totalorder %v978, 0
      %vm1053 = vcmp.lt.s32.totalorder %v985, 0
      %vm1054 = vcmp.lt.s32.totalorder %v992, 0
      %vm1055 = vcmp.lt.s32.totalorder %v999, 0
      %vm1056 = vcmp.lt.s32.totalorder %v1006, 0
      %vm1057 = vcmp.lt.s32.totalorder %v1013, 0
      %vm1058 = vcmp.lt.s32.totalorder %v1020, 0
      %vm1059 = vcmp.lt.s32.totalorder %v1027, 0
      %vm1060 = vcmp.lt.s32.totalorder %v1034, 0
      %vm1061 = vcmp.lt.s32.totalorder %v1041, 0
      %vm1062 = vmand %vm1052, %vm1042
      %vm1063 = vmand %vm1053, %vm1043
      %vm1064 = vmand %vm1054, %vm1044
      %vm1065 = vmand %vm1055, %vm1045
      %vm1066 = vmand %vm1056, %vm1046
      %vm1067 = vmand %vm1057, %vm1047
      %vm1068 = vmand %vm1058, %vm1048
      %vm1069 = vmand %vm1059, %vm1049
      %vm1070 = vmand %vm1060, %vm1050
      %vm1071 = vmand %vm1061, %vm1051
      %v1072 = vadd.s32 %v978, 8
      %v1073 = vadd.s32 %v985, 8
      %v1074 = vadd.s32 %v992, 8
      %v1075 = vadd.s32 %v999, 8
      %v1076 = vadd.s32 %v1006, 8
      %v1077 = vadd.s32 %v1013, 8
      %v1078 = vadd.s32 %v1020, 8
      %v1079 = vadd.s32 %v1027, 8
      %v1080 = vadd.s32 %v1034, 8
      %v1081 = vadd.s32 %v1041, 8
      %v1082 = vsel %vm1062, %v1072, %v978
      %v1083 = vsel %vm1063, %v1073, %v985
      %v1084 = vsel %vm1064, %v1074, %v992
      %v1085 = vsel %vm1065, %v1075, %v999
      %v1086 = vsel %vm1066, %v1076, %v1006
      %v1087 = vsel %vm1067, %v1077, %v1013
      %v1088 = vsel %vm1068, %v1078, %v1020
      %v1089 = vsel %vm1069, %v1079, %v1027
      %v1090 = vsel %vm1070, %v1080, %v1034
      %v1091 = vsel %vm1071, %v1081, %v1041
      %vm1092 = vcmp.gt.s32.totalorder %v1082, 0
      %vm1093 = vcmp.gt.s32.totalorder %v1083, 0
      %vm1094 = vcmp.gt.s32.totalorder %v1084, 0
      %vm1095 = vcmp.gt.s32.totalorder %v1085, 0
      %vm1096 = vcmp.gt.s32.totalorder %v1086, 0
      %vm1097 = vcmp.gt.s32.totalorder %v1087, 0
      %vm1098 = vcmp.gt.s32.totalorder %v1088, 0
      %vm1099 = vcmp.gt.s32.totalorder %v1089, 0
      %vm1100 = vcmp.gt.s32.totalorder %v1090, 0
      %vm1101 = vcmp.gt.s32.totalorder %v1091, 0
      %v1102 = vrot.slane %v895, 7
      %v1103 = vrot.slane %v896, 7
      %v1104 = vrot.slane %v818, 7
      %v1105 = vrot.slane %v819, 7
      %v1106 = vrot.slane %v820, 7
      %v1107 = vrot.slane %v821, 7
      %v1108 = vrot.slane %v822, 7
      %v1109 = vrot.slane %v823, 7
      %v1110 = vrot.slane %v824, 7
      %v1111 = vrot.slane %v825, 7
      %v1112 = vrot.slane %v826, 7
      %v1113 = vrot.slane %v827, 7
      %v1114 = vrot.slane %v828, 7
      %v1115 = vrot.slane %v829, 7
      %v1116 = vrot.slane %v830, 7
      %v1117 = vrot.slane %v831, 7
      %v1118 = vrot.slane %v832, 7
      %v1119 = vrot.slane %v833, 7
      %v1120 = vrot.slane %v959, 7
      %v1121 = vrot.slane %v960, 7
      %vm1122 = vcmp.lt.s32.totalorder %v962, 1
      %v1123 = vsel %vm1122, %v1118, %v1120
      %v1124 = vsel %vm1122, %v1119, %v1121
      %v1125 = vsel %vm1122, %v1116, %v1118
      %v1126 = vsel %vm1122, %v1117, %v1119
      %v1127 = vsel %vm1122, %v1114, %v1116
      %v1128 = vsel %vm1122, %v1115, %v1117
      %v1129 = vsel %vm1122, %v1112, %v1114
      %v1130 = vsel %vm1122, %v1113, %v1115
      %v1131 = vsel %vm1122, %v1110, %v1112
      %v1132 = vsel %vm1122, %v1111, %v1113
      %v1133 = vsel %vm1122, %v1108, %v1110
      %v1134 = vsel %vm1122, %v1109, %v1111
      %v1135 = vsel %vm1122, %v1106, %v1108
      %v1136 = vsel %vm1122, %v1107, %v1109
      %v1137 = vsel %vm1122, %v1104, %v1106
      %v1138 = vsel %vm1122, %v1105, %v1107
      %v1139 = vsel %vm1122, %v1102, %v1104
      %v1140 = vsel %vm1122, %v1103, %v1105
      %v1141 = vsel %vm1122, %v1120, %v1102
      %v1142 = vsel %vm1122, %v1121, %v1103
      %v1143 = vsel %vm1092, %v1141, 0.0
      %v1144 = vsel %vm1092, %v1142, 0.0
      %v1145 = vsel %vm1093, %v1139, 0.0
      %v1146 = vsel %vm1093, %v1140, 0.0
      %v1147 = vsel %vm1094, %v1137, 0.0
      %v1148 = vsel %vm1094, %v1138, 0.0
      %v1149 = vsel %vm1095, %v1135, 0.0
      %v1150 = vsel %vm1095, %v1136, 0.0
      %v1151 = vsel %vm1096, %v1133, 0.0
      %v1152 = vsel %vm1096, %v1134, 0.0
      %v1153 = vsel %vm1097, %v1131, 0.0
      %v1154 = vsel %vm1097, %v1132, 0.0
      %v1155 = vsel %vm1098, %v1129, 0.0
      %v1156 = vsel %vm1098, %v1130, 0.0
      %v1157 = vsel %vm1099, %v1127, 0.0
      %v1158 = vsel %vm1099, %v1128, 0.0
      %v1159 = vsel %vm1100, %v1125, 0.0
      %v1160 = vsel %vm1100, %v1126, 0.0
      %v1161 = vsel %vm1101, %v1123, 0.0
      %v1162 = vsel %vm1101, %v1124, 0.0
      %vm1163 = vcmp.lt.s32.totalorder %v1082, 7
      %vm1164 = vcmp.lt.s32.totalorder %v1083, 7
      %vm1165 = vcmp.lt.s32.totalorder %v1084, 7
      %vm1166 = vcmp.lt.s32.totalorder %v1085, 7
      %vm1167 = vcmp.lt.s32.totalorder %v1086, 7
      %vm1168 = vcmp.lt.s32.totalorder %v1087, 7
      %vm1169 = vcmp.lt.s32.totalorder %v1088, 7
      %vm1170 = vcmp.lt.s32.totalorder %v1089, 7
      %vm1171 = vcmp.lt.s32.totalorder %v1090, 7
      %vm1172 = vcmp.lt.s32.totalorder %v1091, 7
      %v1173 = vrot.slane %v895, 1
      %v1174 = vrot.slane %v896, 1
      %v1175 = vrot.slane %v818, 1
      %v1176 = vrot.slane %v819, 1
      %v1177 = vrot.slane %v820, 1
      %v1178 = vrot.slane %v821, 1
      %v1179 = vrot.slane %v822, 1
      %v1180 = vrot.slane %v823, 1
      %v1181 = vrot.slane %v824, 1
      %v1182 = vrot.slane %v825, 1
      %v1183 = vrot.slane %v826, 1
      %v1184 = vrot.slane %v827, 1
      %v1185 = vrot.slane %v828, 1
      %v1186 = vrot.slane %v829, 1
      %v1187 = vrot.slane %v830, 1
      %v1188 = vrot.slane %v831, 1
      %v1189 = vrot.slane %v832, 1
      %v1190 = vrot.slane %v833, 1
      %v1191 = vrot.slane %v959, 1
      %v1192 = vrot.slane %v960, 1
      %vm1193 = vcmp.lt.s32.totalorder %v962, 7
      %v1194 = vsel %vm1193, %v1189, %v1191
      %v1195 = vsel %vm1193, %v1190, %v1192
      %v1196 = vsel %vm1193, %v1187, %v1189
      %v1197 = vsel %vm1193, %v1188, %v1190
      %v1198 = vsel %vm1193, %v1185, %v1187
      %v1199 = vsel %vm1193, %v1186, %v1188
      %v1200 = vsel %vm1193, %v1183, %v1185
      %v1201 = vsel %vm1193, %v1184, %v1186
      %v1202 = vsel %vm1193, %v1181, %v1183
      %v1203 = vsel %vm1193, %v1182, %v1184
      %v1204 = vsel %vm1193, %v1179, %v1181
      %v1205 = vsel %vm1193, %v1180, %v1182
      %v1206 = vsel %vm1193, %v1177, %v1179
      %v1207 = vsel %vm1193, %v1178, %v1180
      %v1208 = vsel %vm1193, %v1175, %v1177
      %v1209 = vsel %vm1193, %v1176, %v1178
      %v1210 = vsel %vm1193, %v1173, %v1175
      %v1211 = vsel %vm1193, %v1174, %v1176
      %v1212 = vsel %vm1193, %v1191, %v1173
      %v1213 = vsel %vm1193, %v1192, %v1174
      %v1214 = vsel %vm1163, %v1210, 0.0
      %v1215 = vsel %vm1163, %v1211, 0.0
      %v1216 = vsel %vm1164, %v1208, 0.0
      %v1217 = vsel %vm1164, %v1209, 0.0
      %v1218 = vsel %vm1165, %v1206, 0.0
      %v1219 = vsel %vm1165, %v1207, 0.0
      %v1220 = vsel %vm1166, %v1204, 0.0
      %v1221 = vsel %vm1166, %v1205, 0.0
      %v1222 = vsel %vm1167, %v1202, 0.0
      %v1223 = vsel %vm1167, %v1203, 0.0
      %v1224 = vsel %vm1168, %v1200, 0.0
      %v1225 = vsel %vm1168, %v1201, 0.0
      %v1226 = vsel %vm1169, %v1198, 0.0
      %v1227 = vsel %vm1169, %v1199, 0.0
      %v1228 = vsel %vm1170, %v1196, 0.0
      %v1229 = vsel %vm1170, %v1197, 0.0
      %v1230 = vsel %vm1171, %v1194, 0.0
      %v1231 = vsel %vm1171, %v1195, 0.0
      %v1232 = vsel %vm1172, %v1212, 0.0
      %v1233 = vsel %vm1172, %v1213, 0.0
      %v1234 = vld [vmem:[%s5] sm:$0xf]
      %v1235 = vld [vmem:[%s5 + $0x4] sm:$0xf]
      %v1236 = vld [vmem:[%s5 + $0x8] sm:$0xf]
      %v1237 = vunpack.c.l.bf16 %v1234
      %v1238 = vunpack.c.l.bf16 %v1235
      %v1239 = vunpack.c.l.bf16 %v1236
      %v1241 = vlaneseq
      %v1242 = vshrl.u32 %v1241, 7
      %v1243 = vsub.s32 0, %v1242
      %v1244 = vrot.slane %v1237, %v1243
      %v1245 = vlaneseq
      %v1246 = vshrl.u32 %v1245, 7
      %v1247 = vsub.s32 4, %v1246
      %v1248 = vrot.slane %v1237, %v1247
      %v1251 = vlaneseq
      %v1252 = vshrl.u32 %v1251, 7
      %v1253 = vsub.s32 0, %v1252
      %v1254 = vrot.slane %v1244, %v1253
      %v1255 = vlaneseq
      %v1256 = vshrl.u32 %v1255, 7
      %v1257 = vsub.s32 0, %v1256
      %v1258 = vrot.slane %v1248, %v1257
      %v1259 = vmul.f32 %v1143, %v1254
      %v1260 = vmul.f32 %v1144, %v1258
      %v1261 = vmul.f32 %v1145, %v1254
      %v1262 = vmul.f32 %v1146, %v1258
      %v1263 = vmul.f32 %v1147, %v1254
      %v1264 = vmul.f32 %v1148, %v1258
      %v1265 = vmul.f32 %v1149, %v1254
      %v1266 = vmul.f32 %v1150, %v1258
      %v1267 = vmul.f32 %v1151, %v1254
      %v1268 = vmul.f32 %v1152, %v1258
      %v1269 = vmul.f32 %v1153, %v1254
      %v1270 = vmul.f32 %v1154, %v1258
      %v1271 = vmul.f32 %v1155, %v1254
      %v1272 = vmul.f32 %v1156, %v1258
      %v1273 = vmul.f32 %v1157, %v1254
      %v1274 = vmul.f32 %v1158, %v1258
      %v1275 = vadd.f32 %v1259, 0.0
      %v1276 = vadd.f32 %v1260, 0.0
      %v1277 = vadd.f32 %v1261, 0.0
      %v1278 = vadd.f32 %v1262, 0.0
      %v1279 = vadd.f32 %v1263, 0.0
      %v1280 = vadd.f32 %v1264, 0.0
      %v1281 = vadd.f32 %v1265, 0.0
      %v1282 = vadd.f32 %v1266, 0.0
      %v1283 = vadd.f32 %v1267, 0.0
      %v1284 = vadd.f32 %v1268, 0.0
      %v1285 = vadd.f32 %v1269, 0.0
      %v1286 = vadd.f32 %v1270, 0.0
      %v1287 = vadd.f32 %v1271, 0.0
      %v1288 = vadd.f32 %v1272, 0.0
      %v1289 = vadd.f32 %v1273, 0.0
      %v1290 = vadd.f32 %v1274, 0.0
      %v1292 = vlaneseq
      %v1293 = vshrl.u32 %v1292, 7
      %v1294 = vsub.s32 0, %v1293
      %v1295 = vrot.slane %v1238, %v1294
      %v1296 = vlaneseq
      %v1297 = vshrl.u32 %v1296, 7
      %v1298 = vsub.s32 4, %v1297
      %v1299 = vrot.slane %v1238, %v1298
      %v1302 = vlaneseq
      %v1303 = vshrl.u32 %v1302, 7
      %v1304 = vsub.s32 0, %v1303
      %v1305 = vrot.slane %v1295, %v1304
      %v1306 = vlaneseq
      %v1307 = vshrl.u32 %v1306, 7
      %v1308 = vsub.s32 0, %v1307
      %v1309 = vrot.slane %v1299, %v1308
      %v1310 = vmul.f32 %v1145, %v1305
      %v1311 = vmul.f32 %v1146, %v1309
      %v1312 = vmul.f32 %v1147, %v1305
      %v1313 = vmul.f32 %v1148, %v1309
      %v1314 = vmul.f32 %v1149, %v1305
      %v1315 = vmul.f32 %v1150, %v1309
      %v1316 = vmul.f32 %v1151, %v1305
      %v1317 = vmul.f32 %v1152, %v1309
      %v1318 = vmul.f32 %v1153, %v1305
      %v1319 = vmul.f32 %v1154, %v1309
      %v1320 = vmul.f32 %v1155, %v1305
      %v1321 = vmul.f32 %v1156, %v1309
      %v1322 = vmul.f32 %v1157, %v1305
      %v1323 = vmul.f32 %v1158, %v1309
      %v1324 = vmul.f32 %v1159, %v1305
      %v1325 = vmul.f32 %v1160, %v1309
      %v1326 = vadd.f32 %v1275, %v1310
      %v1327 = vadd.f32 %v1276, %v1311
      %v1328 = vadd.f32 %v1277, %v1312
      %v1329 = vadd.f32 %v1278, %v1313
      %v1330 = vadd.f32 %v1279, %v1314
      %v1331 = vadd.f32 %v1280, %v1315
      %v1332 = vadd.f32 %v1281, %v1316
      %v1333 = vadd.f32 %v1282, %v1317
      %v1334 = vadd.f32 %v1283, %v1318
      %v1335 = vadd.f32 %v1284, %v1319
      %v1336 = vadd.f32 %v1285, %v1320
      %v1337 = vadd.f32 %v1286, %v1321
      %v1338 = vadd.f32 %v1287, %v1322
      %v1339 = vadd.f32 %v1288, %v1323
      %v1340 = vadd.f32 %v1289, %v1324
      %v1341 = vadd.f32 %v1290, %v1325
      %v1343 = vlaneseq
      %v1344 = vshrl.u32 %v1343, 7
      %v1345 = vsub.s32 0, %v1344
      %v1346 = vrot.slane %v1239, %v1345
      %v1347 = vlaneseq
      %v1348 = vshrl.u32 %v1347, 7
      %v1349 = vsub.s32 4, %v1348
      %v1350 = vrot.slane %v1239, %v1349
      %v1353 = vlaneseq
      %v1354 = vshrl.u32 %v1353, 7
      %v1355 = vsub.s32 0, %v1354
      %v1356 = vrot.slane %v1346, %v1355
      %v1357 = vlaneseq
      %v1358 = vshrl.u32 %v1357, 7
      %v1359 = vsub.s32 0, %v1358
      %v1360 = vrot.slane %v1350, %v1359
      %v1361 = vmul.f32 %v1147, %v1356
      %v1362 = vmul.f32 %v1148, %v1360
      %v1363 = vmul.f32 %v1149, %v1356
      %v1364 = vmul.f32 %v1150, %v1360
      %v1365 = vmul.f32 %v1151, %v1356
      %v1366 = vmul.f32 %v1152, %v1360
      %v1367 = vmul.f32 %v1153, %v1356
      %v1368 = vmul.f32 %v1154, %v1360
      %v1369 = vmul.f32 %v1155, %v1356
      %v1370 = vmul.f32 %v1156, %v1360
      %v1371 = vmul.f32 %v1157, %v1356
      %v1372 = vmul.f32 %v1158, %v1360
      %v1373 = vmul.f32 %v1159, %v1356
      %v1374 = vmul.f32 %v1160, %v1360
      %v1375 = vmul.f32 %v1161, %v1356
      %v1376 = vmul.f32 %v1162, %v1360
      %v1377 = vadd.f32 %v1326, %v1361
      %v1378 = vadd.f32 %v1327, %v1362
      %v1379 = vadd.f32 %v1328, %v1363
      %v1380 = vadd.f32 %v1329, %v1364
      %v1381 = vadd.f32 %v1330, %v1365
      %v1382 = vadd.f32 %v1331, %v1366
      %v1383 = vadd.f32 %v1332, %v1367
      %v1384 = vadd.f32 %v1333, %v1368
      %v1385 = vadd.f32 %v1334, %v1369
      %v1386 = vadd.f32 %v1335, %v1370
      %v1387 = vadd.f32 %v1336, %v1371
      %v1388 = vadd.f32 %v1337, %v1372
      %v1389 = vadd.f32 %v1338, %v1373
      %v1390 = vadd.f32 %v1339, %v1374
      %v1391 = vadd.f32 %v1340, %v1375
      %v1392 = vadd.f32 %v1341, %v1376
      %v1393 = vlaneseq
      %v1394 = vshrl.u32 %v1393, 7
      %v1395 = vsub.s32 1, %v1394
      %v1396 = vrot.slane %v1237, %v1395
      %v1397 = vlaneseq
      %v1398 = vshrl.u32 %v1397, 7
      %v1399 = vsub.s32 5, %v1398
      %v1400 = vrot.slane %v1237, %v1399
      %v1403 = vlaneseq
      %v1404 = vshrl.u32 %v1403, 7
      %v1405 = vsub.s32 1, %v1404
      %v1406 = vrot.slane %v1396, %v1405
      %v1407 = vlaneseq
      %v1408 = vshrl.u32 %v1407, 7
      %v1409 = vsub.s32 1, %v1408
      %v1410 = vrot.slane %v1400, %v1409
      %v1411 = vmul.f32 %v895, %v1406
      %v1412 = vmul.f32 %v896, %v1410
      %v1413 = vmul.f32 %v818, %v1406
      %v1414 = vmul.f32 %v819, %v1410
      %v1415 = vmul.f32 %v820, %v1406
      %v1416 = vmul.f32 %v821, %v1410
      %v1417 = vmul.f32 %v822, %v1406
      %v1418 = vmul.f32 %v823, %v1410
      %v1419 = vmul.f32 %v824, %v1406
      %v1420 = vmul.f32 %v825, %v1410
      %v1421 = vmul.f32 %v826, %v1406
      %v1422 = vmul.f32 %v827, %v1410
      %v1423 = vmul.f32 %v828, %v1406
      %v1424 = vmul.f32 %v829, %v1410
      %v1425 = vmul.f32 %v830, %v1406
      %v1426 = vmul.f32 %v831, %v1410
      %v1427 = vadd.f32 %v1377, %v1411
      %v1428 = vadd.f32 %v1378, %v1412
      %v1429 = vadd.f32 %v1379, %v1413
      %v1430 = vadd.f32 %v1380, %v1414
      %v1431 = vadd.f32 %v1381, %v1415
      %v1432 = vadd.f32 %v1382, %v1416
      %v1433 = vadd.f32 %v1383, %v1417
      %v1434 = vadd.f32 %v1384, %v1418
      %v1435 = vadd.f32 %v1385, %v1419
      %v1436 = vadd.f32 %v1386, %v1420
      %v1437 = vadd.f32 %v1387, %v1421
      %v1438 = vadd.f32 %v1388, %v1422
      %v1439 = vadd.f32 %v1389, %v1423
      %v1440 = vadd.f32 %v1390, %v1424
      %v1441 = vadd.f32 %v1391, %v1425
      %v1442 = vadd.f32 %v1392, %v1426
      %v1443 = vlaneseq
      %v1444 = vshrl.u32 %v1443, 7
      %v1445 = vsub.s32 1, %v1444
      %v1446 = vrot.slane %v1238, %v1445
      %v1447 = vlaneseq
      %v1448 = vshrl.u32 %v1447, 7
      %v1449 = vsub.s32 5, %v1448
      %v1450 = vrot.slane %v1238, %v1449
      %v1453 = vlaneseq
      %v1454 = vshrl.u32 %v1453, 7
      %v1455 = vsub.s32 1, %v1454
      %v1456 = vrot.slane %v1446, %v1455
      %v1457 = vlaneseq
      %v1458 = vshrl.u32 %v1457, 7
      %v1459 = vsub.s32 1, %v1458
      %v1460 = vrot.slane %v1450, %v1459
      %v1461 = vmul.f32 %v818, %v1456
      %v1462 = vmul.f32 %v819, %v1460
      %v1463 = vmul.f32 %v820, %v1456
      %v1464 = vmul.f32 %v821, %v1460
      %v1465 = vmul.f32 %v822, %v1456
      %v1466 = vmul.f32 %v823, %v1460
      %v1467 = vmul.f32 %v824, %v1456
      %v1468 = vmul.f32 %v825, %v1460
      %v1469 = vmul.f32 %v826, %v1456
      %v1470 = vmul.f32 %v827, %v1460
      %v1471 = vmul.f32 %v828, %v1456
      %v1472 = vmul.f32 %v829, %v1460
      %v1473 = vmul.f32 %v830, %v1456
      %v1474 = vmul.f32 %v831, %v1460
      %v1475 = vmul.f32 %v832, %v1456
      %v1476 = vmul.f32 %v833, %v1460
      %v1477 = vadd.f32 %v1427, %v1461
      %v1478 = vadd.f32 %v1428, %v1462
      %v1479 = vadd.f32 %v1429, %v1463
      %v1480 = vadd.f32 %v1430, %v1464
      %v1481 = vadd.f32 %v1431, %v1465
      %v1482 = vadd.f32 %v1432, %v1466
      %v1483 = vadd.f32 %v1433, %v1467
      %v1484 = vadd.f32 %v1434, %v1468
      %v1485 = vadd.f32 %v1435, %v1469
      %v1486 = vadd.f32 %v1436, %v1470
      %v1487 = vadd.f32 %v1437, %v1471
      %v1488 = vadd.f32 %v1438, %v1472
      %v1489 = vadd.f32 %v1439, %v1473
      %v1490 = vadd.f32 %v1440, %v1474
      %v1491 = vadd.f32 %v1441, %v1475
      %v1492 = vadd.f32 %v1442, %v1476
      %v1493 = vlaneseq
      %v1494 = vshrl.u32 %v1493, 7
      %v1495 = vsub.s32 1, %v1494
      %v1496 = vrot.slane %v1239, %v1495
      %v1497 = vlaneseq
      %v1498 = vshrl.u32 %v1497, 7
      %v1499 = vsub.s32 5, %v1498
      %v1500 = vrot.slane %v1239, %v1499
      %v1503 = vlaneseq
      %v1504 = vshrl.u32 %v1503, 7
      %v1505 = vsub.s32 1, %v1504
      %v1506 = vrot.slane %v1496, %v1505
      %v1507 = vlaneseq
      %v1508 = vshrl.u32 %v1507, 7
      %v1509 = vsub.s32 1, %v1508
      %v1510 = vrot.slane %v1500, %v1509
      %v1511 = vmul.f32 %v820, %v1506
      %v1512 = vmul.f32 %v821, %v1510
      %v1513 = vmul.f32 %v822, %v1506
      %v1514 = vmul.f32 %v823, %v1510
      %v1515 = vmul.f32 %v824, %v1506
      %v1516 = vmul.f32 %v825, %v1510
      %v1517 = vmul.f32 %v826, %v1506
      %v1518 = vmul.f32 %v827, %v1510
      %v1519 = vmul.f32 %v828, %v1506
      %v1520 = vmul.f32 %v829, %v1510
      %v1521 = vmul.f32 %v830, %v1506
      %v1522 = vmul.f32 %v831, %v1510
      %v1523 = vmul.f32 %v832, %v1506
      %v1524 = vmul.f32 %v833, %v1510
      %v1525 = vmul.f32 %v959, %v1506
      %v1526 = vmul.f32 %v960, %v1510
      %v1527 = vadd.f32 %v1477, %v1511
      %v1528 = vadd.f32 %v1478, %v1512
      %v1529 = vadd.f32 %v1479, %v1513
      %v1530 = vadd.f32 %v1480, %v1514
      %v1531 = vadd.f32 %v1481, %v1515
      %v1532 = vadd.f32 %v1482, %v1516
      %v1533 = vadd.f32 %v1483, %v1517
      %v1534 = vadd.f32 %v1484, %v1518
      %v1535 = vadd.f32 %v1485, %v1519
      %v1536 = vadd.f32 %v1486, %v1520
      %v1537 = vadd.f32 %v1487, %v1521
      %v1538 = vadd.f32 %v1488, %v1522
      %v1539 = vadd.f32 %v1489, %v1523
      %v1540 = vadd.f32 %v1490, %v1524
      %v1541 = vadd.f32 %v1491, %v1525
      %v1542 = vadd.f32 %v1492, %v1526
      %v1543 = vlaneseq
      %v1544 = vshrl.u32 %v1543, 7
      %v1545 = vsub.s32 2, %v1544
      %v1546 = vrot.slane %v1237, %v1545
      %v1547 = vlaneseq
      %v1548 = vshrl.u32 %v1547, 7
      %v1549 = vsub.s32 6, %v1548
      %v1550 = vrot.slane %v1237, %v1549
      %v1553 = vlaneseq
      %v1554 = vshrl.u32 %v1553, 7
      %v1555 = vsub.s32 2, %v1554
      %v1556 = vrot.slane %v1546, %v1555
      %v1557 = vlaneseq
      %v1558 = vshrl.u32 %v1557, 7
      %v1559 = vsub.s32 2, %v1558
      %v1560 = vrot.slane %v1550, %v1559
      %v1561 = vmul.f32 %v1214, %v1556
      %v1562 = vmul.f32 %v1215, %v1560
      %v1563 = vmul.f32 %v1216, %v1556
      %v1564 = vmul.f32 %v1217, %v1560
      %v1565 = vmul.f32 %v1218, %v1556
      %v1566 = vmul.f32 %v1219, %v1560
      %v1567 = vmul.f32 %v1220, %v1556
      %v1568 = vmul.f32 %v1221, %v1560
      %v1569 = vmul.f32 %v1222, %v1556
      %v1570 = vmul.f32 %v1223, %v1560
      %v1571 = vmul.f32 %v1224, %v1556
      %v1572 = vmul.f32 %v1225, %v1560
      %v1573 = vmul.f32 %v1226, %v1556
      %v1574 = vmul.f32 %v1227, %v1560
      %v1575 = vmul.f32 %v1228, %v1556
      %v1576 = vmul.f32 %v1229, %v1560
      %v1577 = vadd.f32 %v1527, %v1561
      %v1578 = vadd.f32 %v1528, %v1562
      %v1579 = vadd.f32 %v1529, %v1563
      %v1580 = vadd.f32 %v1530, %v1564
      %v1581 = vadd.f32 %v1531, %v1565
      %v1582 = vadd.f32 %v1532, %v1566
      %v1583 = vadd.f32 %v1533, %v1567
      %v1584 = vadd.f32 %v1534, %v1568
      %v1585 = vadd.f32 %v1535, %v1569
      %v1586 = vadd.f32 %v1536, %v1570
      %v1587 = vadd.f32 %v1537, %v1571
      %v1588 = vadd.f32 %v1538, %v1572
      %v1589 = vadd.f32 %v1539, %v1573
      %v1590 = vadd.f32 %v1540, %v1574
      %v1591 = vadd.f32 %v1541, %v1575
      %v1592 = vadd.f32 %v1542, %v1576
      %v1593 = vlaneseq
      %v1594 = vshrl.u32 %v1593, 7
      %v1595 = vsub.s32 2, %v1594
      %v1596 = vrot.slane %v1238, %v1595
      %v1597 = vlaneseq
      %v1598 = vshrl.u32 %v1597, 7
      %v1599 = vsub.s32 6, %v1598
      %v1600 = vrot.slane %v1238, %v1599
      %v1603 = vlaneseq
      %v1604 = vshrl.u32 %v1603, 7
      %v1605 = vsub.s32 2, %v1604
      %v1606 = vrot.slane %v1596, %v1605
      %v1607 = vlaneseq
      %v1608 = vshrl.u32 %v1607, 7
      %v1609 = vsub.s32 2, %v1608
      %v1610 = vrot.slane %v1600, %v1609
      %v1611 = vmul.f32 %v1216, %v1606
      %v1612 = vmul.f32 %v1217, %v1610
      %v1613 = vmul.f32 %v1218, %v1606
      %v1614 = vmul.f32 %v1219, %v1610
      %v1615 = vmul.f32 %v1220, %v1606
      %v1616 = vmul.f32 %v1221, %v1610
      %v1617 = vmul.f32 %v1222, %v1606
      %v1618 = vmul.f32 %v1223, %v1610
      %v1619 = vmul.f32 %v1224, %v1606
      %v1620 = vmul.f32 %v1225, %v1610
      %v1621 = vmul.f32 %v1226, %v1606
      %v1622 = vmul.f32 %v1227, %v1610
      %v1623 = vmul.f32 %v1228, %v1606
      %v1624 = vmul.f32 %v1229, %v1610
      %v1625 = vmul.f32 %v1230, %v1606
      %v1626 = vmul.f32 %v1231, %v1610
      %v1627 = vadd.f32 %v1577, %v1611
      %v1628 = vadd.f32 %v1578, %v1612
      %v1629 = vadd.f32 %v1579, %v1613
      %v1630 = vadd.f32 %v1580, %v1614
      %v1631 = vadd.f32 %v1581, %v1615
      %v1632 = vadd.f32 %v1582, %v1616
      %v1633 = vadd.f32 %v1583, %v1617
      %v1634 = vadd.f32 %v1584, %v1618
      %v1635 = vadd.f32 %v1585, %v1619
      %v1636 = vadd.f32 %v1586, %v1620
      %v1637 = vadd.f32 %v1587, %v1621
      %v1638 = vadd.f32 %v1588, %v1622
      %v1639 = vadd.f32 %v1589, %v1623
      %v1640 = vadd.f32 %v1590, %v1624
      %v1641 = vadd.f32 %v1591, %v1625
      %v1642 = vadd.f32 %v1592, %v1626
      %v1643 = vlaneseq
      %v1644 = vshrl.u32 %v1643, 7
      %v1645 = vsub.s32 2, %v1644
      %v1646 = vrot.slane %v1239, %v1645
      %v1647 = vlaneseq
      %v1648 = vshrl.u32 %v1647, 7
      %v1649 = vsub.s32 6, %v1648
      %v1650 = vrot.slane %v1239, %v1649
      %v1653 = vlaneseq
      %v1654 = vshrl.u32 %v1653, 7
      %v1655 = vsub.s32 2, %v1654
      %v1656 = vrot.slane %v1646, %v1655
      %v1657 = vlaneseq
      %v1658 = vshrl.u32 %v1657, 7
      %v1659 = vsub.s32 2, %v1658
      %v1660 = vrot.slane %v1650, %v1659
      %v1661 = vmul.f32 %v1218, %v1656
      %v1662 = vmul.f32 %v1219, %v1660
      %v1663 = vmul.f32 %v1220, %v1656
      %v1664 = vmul.f32 %v1221, %v1660
      %v1665 = vmul.f32 %v1222, %v1656
      %v1666 = vmul.f32 %v1223, %v1660
      %v1667 = vmul.f32 %v1224, %v1656
      %v1668 = vmul.f32 %v1225, %v1660
      %v1669 = vmul.f32 %v1226, %v1656
      %v1670 = vmul.f32 %v1227, %v1660
      %v1671 = vmul.f32 %v1228, %v1656
      %v1672 = vmul.f32 %v1229, %v1660
      %v1673 = vmul.f32 %v1230, %v1656
      %v1674 = vmul.f32 %v1231, %v1660
      %v1675 = vmul.f32 %v1232, %v1656
      %v1676 = vmul.f32 %v1233, %v1660
      %v1677 = vadd.f32 %v1627, %v1661
      %v1678 = vadd.f32 %v1628, %v1662
      %v1679 = vadd.f32 %v1629, %v1663
      %v1680 = vadd.f32 %v1630, %v1664
      %v1681 = vadd.f32 %v1631, %v1665
      %v1682 = vadd.f32 %v1632, %v1666
      %v1683 = vadd.f32 %v1633, %v1667
      %v1684 = vadd.f32 %v1634, %v1668
      %v1685 = vadd.f32 %v1635, %v1669
      %v1686 = vadd.f32 %v1636, %v1670
      %v1687 = vadd.f32 %v1637, %v1671
      %v1688 = vadd.f32 %v1638, %v1672
      %v1689 = vadd.f32 %v1639, %v1673
      %v1690 = vadd.f32 %v1640, %v1674
      %v1691 = vadd.f32 %v1641, %v1675
      %v1692 = vadd.f32 %v1642, %v1676
      %v1693 = vld [vmem:[%s6] sm:$0x3]
      %v1694 = vunpack.c.l.bf16 %v1693
      %v1696 = vlaneseq
      %v1697 = vshrl.u32 %v1696, 7
      %v1698 = vsub.s32 0, %v1697
      %v1699 = vrot.slane %v1694, %v1698
      %v1700 = vlaneseq
      %v1701 = vshrl.u32 %v1700, 7
      %v1702 = vsub.s32 2, %v1701
      %v1703 = vrot.slane %v1694, %v1702
      %v1706 = vlaneseq
      %v1707 = vshrl.u32 %v1706, 7
      %v1708 = vsub.s32 0, %v1707
      %v1709 = vrot.slane %v1699, %v1708
      %v1710 = vlaneseq
      %v1711 = vshrl.u32 %v1710, 7
      %v1712 = vsub.s32 0, %v1711
      %v1713 = vrot.slane %v1703, %v1712
      %v1714 = vadd.f32 %v1677, %v1709
      %v1715 = vadd.f32 %v1678, %v1713
      %v1716 = vadd.f32 %v1679, %v1709
      %v1717 = vadd.f32 %v1680, %v1713
      %v1718 = vadd.f32 %v1681, %v1709
      %v1719 = vadd.f32 %v1682, %v1713
      %v1720 = vadd.f32 %v1683, %v1709
      %v1721 = vadd.f32 %v1684, %v1713
      %v1722 = vadd.f32 %v1685, %v1709
      %v1723 = vadd.f32 %v1686, %v1713
      %v1724 = vadd.f32 %v1687, %v1709
      %v1725 = vadd.f32 %v1688, %v1713
      %v1726 = vadd.f32 %v1689, %v1709
      %v1727 = vadd.f32 %v1690, %v1713
      %v1728 = vadd.f32 %v1691, %v1709
      %v1729 = vadd.f32 %v1692, %v1713
      %vm1730 = vcmp.ge.f32.partialorder %v1714, 0.0
      %vm1731 = vcmp.ge.f32.partialorder %v1715, 0.0
      %vm1732 = vcmp.ge.f32.partialorder %v1716, 0.0
      %vm1733 = vcmp.ge.f32.partialorder %v1717, 0.0
      %vm1734 = vcmp.ge.f32.partialorder %v1718, 0.0
      %vm1735 = vcmp.ge.f32.partialorder %v1719, 0.0
      %vm1736 = vcmp.ge.f32.partialorder %v1720, 0.0
      %vm1737 = vcmp.ge.f32.partialorder %v1721, 0.0
      %vm1738 = vcmp.ge.f32.partialorder %v1722, 0.0
      %vm1739 = vcmp.ge.f32.partialorder %v1723, 0.0
      %vm1740 = vcmp.ge.f32.partialorder %v1724, 0.0
      %vm1741 = vcmp.ge.f32.partialorder %v1725, 0.0
      %vm1742 = vcmp.ge.f32.partialorder %v1726, 0.0
      %vm1743 = vcmp.ge.f32.partialorder %v1727, 0.0
      %vm1744 = vcmp.ge.f32.partialorder %v1728, 0.0
      %vm1745 = vcmp.ge.f32.partialorder %v1729, 0.0
      %v1746 = vmul.f32 %v1714, 0.01
      %v1747 = vmul.f32 %v1715, 0.01
      %v1748 = vmul.f32 %v1716, 0.01
      %v1749 = vmul.f32 %v1717, 0.01
      %v1750 = vmul.f32 %v1718, 0.01
      %v1751 = vmul.f32 %v1719, 0.01
      %v1752 = vmul.f32 %v1720, 0.01
      %v1753 = vmul.f32 %v1721, 0.01
      %v1754 = vmul.f32 %v1722, 0.01
      %v1755 = vmul.f32 %v1723, 0.01
      %v1756 = vmul.f32 %v1724, 0.01
      %v1757 = vmul.f32 %v1725, 0.01
      %v1758 = vmul.f32 %v1726, 0.01
      %v1759 = vmul.f32 %v1727, 0.01
      %v1760 = vmul.f32 %v1728, 0.01
      %v1761 = vmul.f32 %v1729, 0.01
      %v1762 = vsel %vm1730, %v1714, %v1746
      %v1763 = vsel %vm1731, %v1715, %v1747
      %v1764 = vsel %vm1732, %v1716, %v1748
      %v1765 = vsel %vm1733, %v1717, %v1749
      %v1766 = vsel %vm1734, %v1718, %v1750
      %v1767 = vsel %vm1735, %v1719, %v1751
      %v1768 = vsel %vm1736, %v1720, %v1752
      %v1769 = vsel %vm1737, %v1721, %v1753
      %v1770 = vsel %vm1738, %v1722, %v1754
      %v1771 = vsel %vm1739, %v1723, %v1755
      %v1772 = vsel %vm1740, %v1724, %v1756
      %v1773 = vsel %vm1741, %v1725, %v1757
      %v1774 = vsel %vm1742, %v1726, %v1758
      %v1775 = vsel %vm1743, %v1727, %v1759
      %v1776 = vsel %vm1744, %v1728, %v1760
      %v1777 = vsel %vm1745, %v1729, %v1761
      %v1778 = vpack.c.bf16 %v1764, %v1762
      %v1779 = vpack.c.bf16 %v1765, %v1763
      %v1780 = vpack.c.bf16 %v1768, %v1766
      %v1781 = vpack.c.bf16 %v1769, %v1767
      %v1782 = vpack.c.bf16 %v1772, %v1770
      %v1783 = vpack.c.bf16 %v1773, %v1771
      %v1784 = vpack.c.bf16 %v1776, %v1774
      %v1785 = vpack.c.bf16 %v1777, %v1775
      %v1786 = vld [vmem:[%s7] sm:$0xff]
      %v1787 = vld [vmem:[%s7 + $0x8] sm:$0xff]
      %v1788 = vld [vmem:[%s7 + $0x10] sm:$0xff]
      %v1789 = vld [vmem:[%s7 + $0x18] sm:$0xff]
      %v1790 = vld [vmem:[%s7 + $0x20] sm:$0xff]
      %v1791 = vld [vmem:[%s7 + $0x28] sm:$0xff]
      %v1792 = vld [vmem:[%s7 + $0x30] sm:$0xff]
      %v1793 = vld [vmem:[%s7 + $0x38] sm:$0xff]
      %v1794 = vld [vmem:[%s7 + $0x40] sm:$0xff]
      %v1795 = vld [vmem:[%s7 + $0x48] sm:$0xff]
      %v1796 = vld [vmem:[%s7 + $0x50] sm:$0xff]
      %v1797 = vld [vmem:[%s7 + $0x58] sm:$0xff]
      %v1798 = vld [vmem:[%s7 + $0x60] sm:$0xff]
      %v1799 = vld [vmem:[%s7 + $0x68] sm:$0xff]
      %v1800 = vld [vmem:[%s7 + $0x70] sm:$0xff]
      %v1801 = vld [vmem:[%s7 + $0x78] sm:$0xff]
      %v1802 = vld [vmem:[%s7 + $0x80] sm:$0xff]
      %v1803 = vld [vmem:[%s7 + $0x88] sm:$0xff]
      %v1804 = vld [vmem:[%s7 + $0x90] sm:$0xff]
      %v1805 = vld [vmem:[%s7 + $0x98] sm:$0xff]
      %v1806 = vld [vmem:[%s7 + $0xa0] sm:$0xff]
      %v1807 = vld [vmem:[%s7 + $0xa8] sm:$0xff]
      %v1808 = vld [vmem:[%s7 + $0xb0] sm:$0xff]
      %v1809 = vld [vmem:[%s7 + $0xb8] sm:$0xff]
      %v1810 = vld [vmem:[%s8] sm:$0x3]
      %v1811 = vunpack.c.l.bf16 %v1810
      %v1813 = vlaneseq
      %v1814 = vshrl.u32 %v1813, 7
      %v1815 = vsub.s32 0, %v1814
      %v1816 = vrot.slane %v1811, %v1815
      %v1817 = vlaneseq
      %v1818 = vshrl.u32 %v1817, 7
      %v1819 = vsub.s32 2, %v1818
      %v1820 = vrot.slane %v1811, %v1819
      %v1823 = vlaneseq
      %v1824 = vshrl.u32 %v1823, 7
      %v1825 = vsub.s32 0, %v1824
      %v1826 = vrot.slane %v1816, %v1825
      %v1827 = vlaneseq
      %v1828 = vshrl.u32 %v1827, 7
      %v1829 = vsub.s32 0, %v1828
      %v1830 = vrot.slane %v1820, %v1829
      %v1855 = vunpack.c.l.b16 %v1786
      %v1856 = vunpack.c.h.b16 %v1786
      %v1857 = vunpack.c.l.b16 %v1787
      %v1858 = vunpack.c.h.b16 %v1787
      %v1859 = vunpack.c.l.b16 %v1788
      %v1860 = vunpack.c.h.b16 %v1788
      %v1861 = vunpack.c.l.b16 %v1789
      %v1862 = vunpack.c.h.b16 %v1789
      %v1863 = vunpack.c.l.b16 %v1790
      %v1864 = vunpack.c.h.b16 %v1790
      %v1865 = vunpack.c.l.b16 %v1791
      %v1866 = vunpack.c.h.b16 %v1791
      %v1867 = vunpack.c.l.b16 %v1792
      %v1868 = vunpack.c.h.b16 %v1792
      %v1869 = vunpack.c.l.b16 %v1793
      %v1870 = vunpack.c.h.b16 %v1793
      %v1871 = vunpack.c.l.b16 %v1794
      %v1872 = vunpack.c.h.b16 %v1794
      %v1873 = vunpack.c.l.b16 %v1795
      %v1874 = vunpack.c.h.b16 %v1795
      %v1875 = vunpack.c.l.b16 %v1796
      %v1876 = vunpack.c.h.b16 %v1796
      %v1877 = vunpack.c.l.b16 %v1797
      %v1878 = vunpack.c.h.b16 %v1797
      %v1879 = vunpack.c.l.b16 %v1798
      %v1880 = vunpack.c.h.b16 %v1798
      %v1881 = vunpack.c.l.b16 %v1799
      %v1882 = vunpack.c.h.b16 %v1799
      %v1883 = vunpack.c.l.b16 %v1800
      %v1884 = vunpack.c.h.b16 %v1800
      %v1885 = vunpack.c.l.b16 %v1801
      %v1886 = vunpack.c.h.b16 %v1801
      %v1887 = vunpack.c.l.b16 %v1802
      %v1888 = vunpack.c.h.b16 %v1802
      %v1889 = vunpack.c.l.b16 %v1803
      %v1890 = vunpack.c.h.b16 %v1803
      %v1891 = vunpack.c.l.b16 %v1804
      %v1892 = vunpack.c.h.b16 %v1804
      %v1893 = vunpack.c.l.b16 %v1805
      %v1894 = vunpack.c.h.b16 %v1805
      %v1895 = vunpack.c.l.b16 %v1806
      %v1896 = vunpack.c.h.b16 %v1806
      %v1897 = vunpack.c.l.b16 %v1807
      %v1898 = vunpack.c.h.b16 %v1807
      %v1899 = vunpack.c.l.b16 %v1808
      %v1900 = vunpack.c.h.b16 %v1808
      %v1901 = vunpack.c.l.b16 %v1809
      %v1902 = vunpack.c.h.b16 %v1809
      %v1903 = vpack.c.b16 %v1857, %v1855
      %v1904 = vpack.c.b16 %v1858, %v1856
      %v1905 = vpack.c.b16 %v1861, %v1859
      %v1906 = vpack.c.b16 %v1862, %v1860
      %v1907 = vpack.c.b16 %v1865, %v1863
      %v1908 = vpack.c.b16 %v1866, %v1864
      %v1909 = vpack.c.b16 %v1869, %v1867
      %v1910 = vpack.c.b16 %v1870, %v1868
      %v1911 = vpack.c.b16 %v1873, %v1871
      %v1912 = vpack.c.b16 %v1874, %v1872
      %v1913 = vpack.c.b16 %v1877, %v1875
      %v1914 = vpack.c.b16 %v1878, %v1876
      %v1915 = vpack.c.b16 %v1881, %v1879
      %v1916 = vpack.c.b16 %v1882, %v1880
      %v1917 = vpack.c.b16 %v1885, %v1883
      %v1918 = vpack.c.b16 %v1886, %v1884
      %v1919 = vpack.c.b16 %v1889, %v1887
      %v1920 = vpack.c.b16 %v1890, %v1888
      %v1921 = vpack.c.b16 %v1893, %v1891
      %v1922 = vpack.c.b16 %v1894, %v1892
      %v1923 = vpack.c.b16 %v1897, %v1895
      %v1924 = vpack.c.b16 %v1898, %v1896
      %v1925 = vpack.c.b16 %v1901, %v1899
      %v1926 = vpack.c.b16 %v1902, %v1900
      %v1952 = vsel %vm700, %v1779, 0
      %v1955 = vsel %vm700, %v1781, 0
      %v1958 = vsel %vm700, %v1783, 0
      %v1961 = vsel %vm700, %v1785, 0
      %1963 = vmatprep.subr.bf16.mxu0 %v1904
      %1964 = vmatpush1.bf16.msra.mxu0 %v1903
      %1965 = vmatprep.subr.bf16.mxu0 %v1906
      %1966 = vmatpush1.bf16.msra.mxu0 %v1905
      %1967 = vmatprep.subr.bf16.mxu0 %v1908
      %1968 = vmatpush1.bf16.msra.mxu0 %v1907
      %1969 = vmatprep.subr.bf16.mxu0 %v1910
      %1970 = vmatpush1.bf16.msra.mxu0 %v1909
      %1971 = vmatprep.subr.bf16.mxu0 %v1912
      %1972 = vmatpush1.bf16.msra.mxu0 %v1911
      %1973 = vmatprep.subr.bf16.mxu0 %v1914
      %1974 = vmatpush1.bf16.msra.mxu0 %v1913
      %1975 = vmatprep.subr.bf16.mxu0 %v1916
      %1976 = vmatpush1.bf16.msra.mxu0 %v1915
      %1977 = vmatprep.subr.bf16.mxu0 %v1918
      %1978 = vmatpush1.bf16.msra.mxu0 %v1917
      %1979 = vmatprep.subr.bf16.mxu0 %v1920
      %1980 = vmatpush1.bf16.msra.mxu0 %v1919
      %1981 = vmatprep.subr.bf16.mxu0 %v1922
      %1982 = vmatpush1.bf16.msra.mxu0 %v1921
      %1983 = vmatprep.subr.bf16.mxu0 %v1924
      %1984 = vmatpush1.bf16.msra.mxu0 %v1923
      %1985 = vmatprep.subr.bf16.mxu0 %v1926
      %1986 = vmatpush1.bf16.msra.mxu0 %v1925
      %1987 = vmatprep.subr.bf16.mxu0 0
      %1988 = vmatpush1.bf16.msra.mxu0 0
      %1989 = vmatprep.subr.bf16.mxu0 0
      %1990 = vmatpush1.bf16.msra.mxu0 0
      %1991 = vmatprep.subr.bf16.mxu0 0
      %1992 = vmatpush1.bf16.msra.mxu0 0
      %1993 = vmatprep.subr.bf16.mxu0 0
      %1994 = vmatpush1.bf16.msra.mxu0 0
      %1995 = vmatprep.mubr.bf16.mxu0 %v1952
      %1996 = vmatmul.mubr.bf16.gmra.mrb[0].mxu0 %v1778
      %v1997 = vpop.f32.mrb[0].mxu0
      %v1998 = vadd.f32 %v1826, %v1997
      %v1999 = vpop.f32.mrb[0].mxu0
      %v2000 = vadd.f32 %v1830, %v1999
      %v2001 = vpop.f32.mrb[0].mxu0
      %v2002 = vadd.f32 %v1826, %v2001
      %v2003 = vpop.f32.mrb[0].mxu0
      %v2004 = vadd.f32 %v1830, %v2003
      %2005 = vmatprep.mubr.bf16.mxu0 %v1955
      %2006 = vmatmul.mubr.bf16.gmra.mrb[0].mxu0 %v1780
      %v2007 = vpop.f32.mrb[0].mxu0
      %v2008 = vadd.f32 %v1826, %v2007
      %v2009 = vpop.f32.mrb[0].mxu0
      %v2010 = vadd.f32 %v1830, %v2009
      %v2011 = vpop.f32.mrb[0].mxu0
      %v2012 = vadd.f32 %v1826, %v2011
      %v2013 = vpop.f32.mrb[0].mxu0
      %v2014 = vadd.f32 %v1830, %v2013
      %2015 = vmatprep.mubr.bf16.mxu0 %v1958
      %2016 = vmatmul.mubr.bf16.gmra.mrb[0].mxu0 %v1782
      %v2017 = vpop.f32.mrb[0].mxu0
      %v2018 = vadd.f32 %v1826, %v2017
      %v2019 = vpop.f32.mrb[0].mxu0
      %v2020 = vadd.f32 %v1830, %v2019
      %v2021 = vpop.f32.mrb[0].mxu0
      %v2022 = vadd.f32 %v1826, %v2021
      %v2023 = vpop.f32.mrb[0].mxu0
      %v2024 = vadd.f32 %v1830, %v2023
      %2025 = vmatprep.mubr.bf16.mxu0 %v1961
      %2026 = vmatmul.mubr.bf16.gmra.mrb[0].mxu0 %v1784
      %v2027 = vpop.f32.mrb[0].mxu0
      %v2028 = vadd.f32 %v1826, %v2027
      %v2029 = vpop.f32.mrb[0].mxu0
      %v2030 = vadd.f32 %v1830, %v2029
      %v2031 = vpop.f32.mrb[0].mxu0
      %v2032 = vadd.f32 %v1826, %v2031
      %v2033 = vpop.f32.mrb[0].mxu0
      %v2034 = vadd.f32 %v1830, %v2033
      %2035 = vdwg.mxu0
      %v2036 = vunpack.c.l.bf16 %v491
      %v2037 = vunpack.c.h.bf16 %v491
      %v2038 = vunpack.c.l.bf16 %v492
      %v2039 = vunpack.c.h.bf16 %v492
      %v2040 = vunpack.c.l.bf16 %v493
      %v2041 = vunpack.c.h.bf16 %v493
      %v2042 = vunpack.c.l.bf16 %v494
      %v2043 = vunpack.c.h.bf16 %v494
      %v2044 = vunpack.c.l.bf16 %v495
      %v2045 = vunpack.c.h.bf16 %v495
      %v2046 = vunpack.c.l.bf16 %v496
      %v2047 = vunpack.c.h.bf16 %v496
      %v2048 = vunpack.c.l.bf16 %v497
      %v2049 = vunpack.c.h.bf16 %v497
      %v2050 = vunpack.c.l.bf16 %v498
      %v2051 = vunpack.c.h.bf16 %v498
      %v2052 = vadd.f32 %v1998, %v2036
      %v2053 = vadd.f32 %v2000, %v2037
      %v2054 = vadd.f32 %v2002, %v2038
      %v2055 = vadd.f32 %v2004, %v2039
      %v2056 = vadd.f32 %v2008, %v2040
      %v2057 = vadd.f32 %v2010, %v2041
      %v2058 = vadd.f32 %v2012, %v2042
      %v2059 = vadd.f32 %v2014, %v2043
      %v2060 = vadd.f32 %v2018, %v2044
      %v2061 = vadd.f32 %v2020, %v2045
      %v2062 = vadd.f32 %v2022, %v2046
      %v2063 = vadd.f32 %v2024, %v2047
      %v2064 = vadd.f32 %v2028, %v2048
      %v2065 = vadd.f32 %v2030, %v2049
      %v2066 = vadd.f32 %v2032, %v2050
      %v2067 = vadd.f32 %v2034, %v2051
      %v2068 = vpack.c.bf16 %v2054, %v2052
      %v2069 = vpack.c.bf16 %v2055, %v2053
      %v2070 = vpack.c.bf16 %v2058, %v2056
      %v2071 = vpack.c.bf16 %v2059, %v2057
      %v2072 = vpack.c.bf16 %v2062, %v2060
      %v2073 = vpack.c.bf16 %v2063, %v2061
      %v2074 = vpack.c.bf16 %v2066, %v2064
      %v2075 = vpack.c.bf16 %v2067, %v2065
      %v2084 = vunpack.c.l.b16 %v2068
      %v2085 = vunpack.c.l.b16 %v2069
      %v2086 = vunpack.c.h.b16 %v2068
      %v2087 = vunpack.c.h.b16 %v2069
      %v2088 = vunpack.c.l.b16 %v2070
      %v2089 = vunpack.c.l.b16 %v2071
      %v2090 = vunpack.c.h.b16 %v2070
      %v2091 = vunpack.c.h.b16 %v2071
      %v2092 = vunpack.c.l.b16 %v2072
      %v2093 = vunpack.c.l.b16 %v2073
      %v2094 = vunpack.c.h.b16 %v2072
      %v2095 = vunpack.c.h.b16 %v2073
      %v2096 = vunpack.c.l.b16 %v2074
      %v2097 = vunpack.c.l.b16 %v2075
      %v2098 = vunpack.c.h.b16 %v2074
      %v2099 = vunpack.c.h.b16 %v2075
      %v2100 = vpack.c.b16 %v2085, %v2084
      %v2101 = vpack.c.b16 %v2087, %v2086
      %v2102 = vpack.c.b16 %v2089, %v2088
      %v2103 = vpack.c.b16 %v2091, %v2090
      %v2104 = vpack.c.b16 %v2093, %v2092
      %v2105 = vpack.c.b16 %v2095, %v2094
      %v2106 = vpack.c.b16 %v2097, %v2096
      %v2107 = vpack.c.b16 %v2099, %v2098
      %vm2116 = vcmask 1043456
      %vm2117 = vcmask 523268
      %vm2118 = vmor %vm2117, %vm2116
      %2119 = vst.msk [vmem:[%s486] sm:$0xff] %vm2118, %v2100
      %2120 = vst.msk [vmem:[%s486 + $0x8] sm:$0xff] %vm2118, %v2101
      %2121 = vst.msk [vmem:[%s486 + $0x10] sm:$0xff] %vm2118, %v2102
      %2122 = vst.msk [vmem:[%s486 + $0x18] sm:$0xff] %vm2118, %v2103
      %2123 = vst.msk [vmem:[%s486 + $0x20] sm:$0xff] %vm2118, %v2104
      %2124 = vst.msk [vmem:[%s486 + $0x28] sm:$0xff] %vm2118, %v2105
      %2125 = vst.msk [vmem:[%s486 + $0x30] sm:$0xff] %vm2118, %v2106
      %2126 = vst.msk [vmem:[%s486 + $0x38] sm:$0xff] %vm2118, %v2107
      %s2127 = sadd.s32 %s24, %s25
      %s2128 = smul.u32 8, %s2127
      %p2129 = scmp.lt.s32.totalorder %s2128, 15
      %s2130 = scalar_select %p2129, %s2128, 15
      %s2131 = smul.addr %s2130, 2
      %s2132 = smul.addr %s2131, 4
      %s2133 = scalar_lea.vmem %s9, %s2132
      // Predicated region
      $region57: #{spatial_prior.6} parent=55 // pred_check
        %p2134 = pneg %p282
      $region58: #{spatial_prior.6} parent=55 // pred_check_branch
        %2136 = sbr.rel (%p2134) target = $region60
      $region59: #{spatial_prior.6} parent=55 // pred_region
        %s2137 = sadd.s32 %s24, %s25
        %s2138 = smul.u32 8, %s2137
      $region60: #{spatial_prior.6} parent=55 // pred_fallthru
        _
    $region56: #{spatial_prior.6} parent=5 // pred_fallthru
      _
    %p2139 = scmp.le.s32.totalorder 2, %s15
    // Predicated region
    $region61: #{spatial_prior.6} parent=5 // pred_check
      %p2140 = pneg %p2139
    $region62: #{spatial_prior.6} parent=5 // pred_check_branch
      %2142 = sbr.rel (%p2140) target = $region64
    $region63: #{spatial_prior.6} parent=5 // pred_region
      %s2143 = ssub.s32 %s15, 2
      // Predicated region
      $region65: #{spatial_prior.6} parent=63 // pred_check
        %p2144 = pneg %p288
      $region66: #{spatial_prior.6} parent=63 // pred_check_branch
        %2146 = sbr.rel (%p2144) target = $region68
      $region67: #{spatial_prior.6} parent=63 // pred_region
        %s2147 = sadd.s32 %s26, %s27
        %s2148 = smul.u32 8, %s2147
        %p2149 = scmp.lt.s32.totalorder %s2148, 15
        %s2150 = scalar_select %p2149, %s2148, 15
        %s2151 = smul.addr %s2150, 2
        %s2152 = smul.addr %s2151, 4
        %s2153 = scalar_lea.vmem %s9, %s2152
      $region68: #{spatial_prior.6} parent=63 // pred_fallthru
        _
    $region64: #{spatial_prior.6} parent=5 // pred_fallthru
      _
  $region6: #{spatial_prior.6} parent=0 // loop_footer
    %s19 = sadd.s32 1, %s15
  $region7: #{spatial_prior.6} parent=0 // loop_footer_branch
    %14 = sbr.rel target = $region3
  $region8: #{spatial_prior.6} parent=0 // loop_exit
    _

// kernel: spatial_prior.7
$region0: #{spatial_prior.7}
  #allocation0 [shape = 'u32[]', space=smem, size = 0x4, offset = 0x4, fixed_abs, tag = 'smem constant byte address 0x4 - core index']
  #allocation1 [shape = 'u32[144,128]{1,0:T(1,128)}', space=vmem, size = 0x12000, scoped, tag = 'internal scratch']
  %s0 = inlined_call_operand.vmem [shape: bf16[128,192], index: 0, kind: input, shape index: {}]
  %s1 = inlined_call_operand.vmem [shape: bf16[192,768], index: 1, kind: input, shape index: {}]
  %s2 = inlined_call_operand.vmem [shape: bf16[1,768], index: 2, kind: input, shape index: {}]
  %s3 = inlined_call_operand.vmem [shape: bf16[768,192], index: 3, kind: input, shape index: {}]
  %s4 = inlined_call_operand.vmem [shape: bf16[1,192], index: 4, kind: input, shape index: {}]
  %s5 = inlined_call_operand.vmem [shape: bf16[192,128], index: 5, kind: input, shape index: {}]
  %s6 = inlined_call_operand.vmem [shape: bf16[1,128], index: 6, kind: input, shape index: {}]
  %s7 = inlined_call_operand.hbm [shape: f32[128,128], index: 7, kind: output, shape index: {}]
  %s8 = sld [smem:[#allocation0]]
  $region38: #{spatial_prior.7} parent=0
    _
  %s10 = ssub.s32 1, %s8
  %s11 = scalar_select 0, %s10, %s8
  $region1: #{spatial_prior.7} parent=0
    #allocation2 [shape = 'u8[65536]{0}', space=vmem, size = 0x10000, scoped, tag = 'output window, operand 0, single buffered']
    #allocation3 [shape = 's32[1]{0}', space=sflag, size = 0x4, scoped, tag = 'scoped memory for spatial_prior.7']
    %12 = vsyncpa [#allocation3], 0
    // Predicated region
    $region2: #{spatial_prior.7} parent=1 // pred_check
      _
    $region3: #{spatial_prior.7} parent=1 // pred_check_branch
      %14 = sbr.rel (0) target = $region5
    $region4: #{spatial_prior.7} parent=1 // pred_region
      _
    $region5: #{spatial_prior.7} parent=1 // pred_fallthru
      _
    // Predicated region
    $region6: #{spatial_prior.7} parent=1 // pred_check
      _
    $region7: #{spatial_prior.7} parent=1 // pred_check_branch
      %16 = sbr.rel (0) target = $region9
    $region8: #{spatial_prior.7} parent=1 // pred_region
      _
    $region9: #{spatial_prior.7} parent=1 // pred_fallthru
      _
    // Predicated region
    $region10: #{spatial_prior.7} parent=1 // pred_check
      _
    $region11: #{spatial_prior.7} parent=1 // pred_check_branch
      %18 = sbr.rel (0) target = $region13
    $region12: #{spatial_prior.7} parent=1 // pred_region
      _
    $region13: #{spatial_prior.7} parent=1 // pred_fallthru
      _
    // Predicated region
    $region14: #{spatial_prior.7} parent=1 // pred_check
      _
    $region15: #{spatial_prior.7} parent=1 // pred_check_branch
      %20 = sbr.rel (0) target = $region17
    $region16: #{spatial_prior.7} parent=1 // pred_region
      _
    $region17: #{spatial_prior.7} parent=1 // pred_fallthru
      _
    // Predicated region
    $region18: #{spatial_prior.7} parent=1 // pred_check
      _
    $region19: #{spatial_prior.7} parent=1 // pred_check_branch
      %22 = sbr.rel (0) target = $region21
    $region20: #{spatial_prior.7} parent=1 // pred_region
      _
    $region21: #{spatial_prior.7} parent=1 // pred_fallthru
      _
    // Predicated region
    $region22: #{spatial_prior.7} parent=1 // pred_check
      _
    $region23: #{spatial_prior.7} parent=1 // pred_check_branch
      %24 = sbr.rel (0) target = $region25
    $region24: #{spatial_prior.7} parent=1 // pred_region
      _
    $region25: #{spatial_prior.7} parent=1 // pred_fallthru
      _
    // Predicated region
    $region26: #{spatial_prior.7} parent=1 // pred_check
      _
    $region27: #{spatial_prior.7} parent=1 // pred_check_branch
      %26 = sbr.rel (0) target = $region29
    $region28: #{spatial_prior.7} parent=1 // pred_region
      _
    $region29: #{spatial_prior.7} parent=1 // pred_fallthru
      _
    %v28 = vld [vmem:[%s0] sm:$0xff]
    %v29 = vld [vmem:[%s0 + $0x8] sm:$0xff]
    %v30 = vld [vmem:[%s0 + $0x10] sm:$0xff]
    %v31 = vld [vmem:[%s0 + $0x18] sm:$0xff]
    %v32 = vld [vmem:[%s0 + $0x20] sm:$0xff]
    %v33 = vld [vmem:[%s0 + $0x28] sm:$0xff]
    %v34 = vld [vmem:[%s0 + $0x30] sm:$0xff]
    %v35 = vld [vmem:[%s0 + $0x38] sm:$0xff]
    %v36 = vld [vmem:[%s0 + $0x40] sm:$0xff]
    %v37 = vld [vmem:[%s0 + $0x48] sm:$0xff]
    %v38 = vld [vmem:[%s0 + $0x50] sm:$0xff]
    %v39 = vld [vmem:[%s0 + $0x58] sm:$0xff]
    %v40 = vld [vmem:[%s0 + $0x60] sm:$0xff]
    %v41 = vld [vmem:[%s0 + $0x68] sm:$0xff]
    %v42 = vld [vmem:[%s0 + $0x70] sm:$0xff]
    %v43 = vld [vmem:[%s0 + $0x78] sm:$0xff]
    %v44 = vld [vmem:[%s1] sm:$0xff]
    %v45 = vld [vmem:[%s1 + $0x8] sm:$0xff]
    %v46 = vld [vmem:[%s1 + $0x10] sm:$0xff]
    %v47 = vld [vmem:[%s1 + $0x18] sm:$0xff]
    %v48 = vld [vmem:[%s1 + $0x20] sm:$0xff]
    %v49 = vld [vmem:[%s1 + $0x28] sm:$0xff]
    %v50 = vld [vmem:[%s1 + $0x30] sm:$0xff]
    %v51 = vld [vmem:[%s1 + $0x38] sm:$0xff]
    %v52 = vld [vmem:[%s1 + $0x40] sm:$0xff]
    %v53 = vld [vmem:[%s1 + $0x48] sm:$0xff]
    %v54 = vld [vmem:[%s1 + $0x50] sm:$0xff]
    %v55 = vld [vmem:[%s1 + $0x58] sm:$0xff]
    %v56 = vld [vmem:[%s1 + $0x60] sm:$0xff]
    %v57 = vld [vmem:[%s1 + $0x68] sm:$0xff]
    %v58 = vld [vmem:[%s1 + $0x70] sm:$0xff]
    %v59 = vld [vmem:[%s1 + $0x78] sm:$0xff]
    %v60 = vld [vmem:[%s1 + $0x80] sm:$0xff]
    %v61 = vld [vmem:[%s1 + $0x88] sm:$0xff]
    %v62 = vld [vmem:[%s1 + $0x90] sm:$0xff]
    %v63 = vld [vmem:[%s1 + $0x98] sm:$0xff]
    %v64 = vld [vmem:[%s1 + $0xa0] sm:$0xff]
    %v65 = vld [vmem:[%s1 + $0xa8] sm:$0xff]
    %v66 = vld [vmem:[%s1 + $0xb0] sm:$0xff]
    %v67 = vld [vmem:[%s1 + $0xb8] sm:$0xff]
    %v68 = vld [vmem:[%s1 + $0xc0] sm:$0xff]
    %v69 = vld [vmem:[%s1 + $0xc8] sm:$0xff]
    %v70 = vld [vmem:[%s1 + $0xd0] sm:$0xff]
    %v71 = vld [vmem:[%s1 + $0xd8] sm:$0xff]
    %v72 = vld [vmem:[%s1 + $0xe0] sm:$0xff]
    %v73 = vld [vmem:[%s1 + $0xe8] sm:$0xff]
    %v74 = vld [vmem:[%s1 + $0xf0] sm:$0xff]
    %v75 = vld [vmem:[%s1 + $0xf8] sm:$0xff]
    %v76 = vld [vmem:[%s1 + $0x100] sm:$0xff]
    %v77 = vld [vmem:[%s1 + $0x108] sm:$0xff]
    %v78 = vld [vmem:[%s1 + $0x110] sm:$0xff]
    %v79 = vld [vmem:[%s1 + $0x118] sm:$0xff]
    %v80 = vld [vmem:[%s1 + $0x120] sm:$0xff]
    %v81 = vld [vmem:[%s1 + $0x128] sm:$0xff]
    %v82 = vld [vmem:[%s1 + $0x130] sm:$0xff]
    %v83 = vld [vmem:[%s1 + $0x138] sm:$0xff]
    %v84 = vld [vmem:[%s1 + $0x140] sm:$0xff]
    %v85 = vld [vmem:[%s1 + $0x148] sm:$0xff]
    %v86 = vld [vmem:[%s1 + $0x150] sm:$0xff]
    %v87 = vld [vmem:[%s1 + $0x158] sm:$0xff]
    %v88 = vld [vmem:[%s1 + $0x160] sm:$0xff]
    %v89 = vld [vmem:[%s1 + $0x168] sm:$0xff]
    %v90 = vld [vmem:[%s1 + $0x170] sm:$0xff]
    %v91 = vld [vmem:[%s1 + $0x178] sm:$0xff]
    %v92 = vld [vmem:[%s1 + $0x180] sm:$0xff]
    %v93 = vld [vmem:[%s1 + $0x188] sm:$0xff]
    %v94 = vld [vmem:[%s1 + $0x190] sm:$0xff]
    %v95 = vld [vmem:[%s1 + $0x198] sm:$0xff]
    %v96 = vld [vmem:[%s1 + $0x1a0] sm:$0xff]
    %v97 = vld [vmem:[%s1 + $0x1a8] sm:$0xff]
    %v98 = vld [vmem:[%s1 + $0x1b0] sm:$0xff]
    %v99 = vld [vmem:[%s1 + $0x1b8] sm:$0xff]
    %v100 = vld [vmem:[%s1 + $0x1c0] sm:$0xff]
    %v101 = vld [vmem:[%s1 + $0x1c8] sm:$0xff]
    %v102 = vld [vmem:[%s1 + $0x1d0] sm:$0xff]
    %v103 = vld [vmem:[%s1 + $0x1d8] sm:$0xff]
    %v104 = vld [vmem:[%s1 + $0x1e0] sm:$0xff]
    %v105 = vld [vmem:[%s1 + $0x1e8] sm:$0xff]
    %v106 = vld [vmem:[%s1 + $0x1f0] sm:$0xff]
    %v107 = vld [vmem:[%s1 + $0x1f8] sm:$0xff]
    %v108 = vld [vmem:[%s1 + $0x200] sm:$0xff]
    %v109 = vld [vmem:[%s1 + $0x208] sm:$0xff]
    %v110 = vld [vmem:[%s1 + $0x210] sm:$0xff]
    %v111 = vld [vmem:[%s1 + $0x218] sm:$0xff]
    %v112 = vld [vmem:[%s1 + $0x220] sm:$0xff]
    %v113 = vld [vmem:[%s1 + $0x228] sm:$0xff]
    %v114 = vld [vmem:[%s1 + $0x230] sm:$0xff]
    %v115 = vld [vmem:[%s1 + $0x238] sm:$0xff]
    %v116 = vld [vmem:[%s2] sm:$0x3f]
    %v117 = vunpack.c.l.bf16 %v116
    %v118 = vunpack.c.h.bf16 %v116
    %v121 = vlaneseq
    %v122 = vshrl.u32 %v121, 7
    %v123 = vsub.s32 0, %v122
    %v124 = vrot.slane %v117, %v123
    %v125 = vlaneseq
    %v126 = vshrl.u32 %v125, 7
    %v127 = vsub.s32 2, %v126
    %v128 = vrot.slane %v117, %v127
    %v129 = vlaneseq
    %v130 = vshrl.u32 %v129, 7
    %v131 = vsub.s32 4, %v130
    %v132 = vrot.slane %v117, %v131
    %v133 = vlaneseq
    %v134 = vshrl.u32 %v133, 7
    %v135 = vsub.s32 6, %v134
    %v136 = vrot.slane %v117, %v135
    %v137 = vlaneseq
    %v138 = vshrl.u32 %v137, 7
    %v139 = vsub.s32 0, %v138
    %v140 = vrot.slane %v118, %v139
    %v141 = vlaneseq
    %v142 = vshrl.u32 %v141, 7
    %v143 = vsub.s32 2, %v142
    %v144 = vrot.slane %v118, %v143
    %v151 = vlaneseq
    %v152 = vshrl.u32 %v151, 7
    %v153 = vsub.s32 0, %v152
    %v154 = vrot.slane %v124, %v153
    %v155 = vlaneseq
    %v156 = vshrl.u32 %v155, 7
    %v157 = vsub.s32 0, %v156
    %v158 = vrot.slane %v128, %v157
    %v159 = vlaneseq
    %v160 = vshrl.u32 %v159, 7
    %v161 = vsub.s32 0, %v160
    %v162 = vrot.slane %v132, %v161
    %v163 = vlaneseq
    %v164 = vshrl.u32 %v163, 7
    %v165 = vsub.s32 0, %v164
    %v166 = vrot.slane %v136, %v165
    %v167 = vlaneseq
    %v168 = vshrl.u32 %v167, 7
    %v169 = vsub.s32 0, %v168
    %v170 = vrot.slane %v140, %v169
    %v171 = vlaneseq
    %v172 = vshrl.u32 %v171, 7
    %v173 = vsub.s32 0, %v172
    %v174 = vrot.slane %v144, %v173
    %v191 = vunpack.c.l.b16 %v28
    %v192 = vunpack.c.h.b16 %v28
    %v193 = vunpack.c.l.b16 %v29
    %v194 = vunpack.c.h.b16 %v29
    %v195 = vunpack.c.l.b16 %v30
    %v196 = vunpack.c.h.b16 %v30
    %v197 = vunpack.c.l.b16 %v31
    %v198 = vunpack.c.h.b16 %v31
    %v199 = vunpack.c.l.b16 %v32
    %v200 = vunpack.c.h.b16 %v32
    %v201 = vunpack.c.l.b16 %v33
    %v202 = vunpack.c.h.b16 %v33
    %v203 = vunpack.c.l.b16 %v34
    %v204 = vunpack.c.h.b16 %v34
    %v205 = vunpack.c.l.b16 %v35
    %v206 = vunpack.c.h.b16 %v35
    %v207 = vunpack.c.l.b16 %v36
    %v208 = vunpack.c.h.b16 %v36
    %v209 = vunpack.c.l.b16 %v37
    %v210 = vunpack.c.h.b16 %v37
    %v211 = vunpack.c.l.b16 %v38
    %v212 = vunpack.c.h.b16 %v38
    %v213 = vunpack.c.l.b16 %v39
    %v214 = vunpack.c.h.b16 %v39
    %v215 = vunpack.c.l.b16 %v40
    %v216 = vunpack.c.h.b16 %v40
    %v217 = vunpack.c.l.b16 %v41
    %v218 = vunpack.c.h.b16 %v41
    %v219 = vunpack.c.l.b16 %v42
    %v220 = vunpack.c.h.b16 %v42
    %v221 = vunpack.c.l.b16 %v43
    %v222 = vunpack.c.h.b16 %v43
    %v223 = vpack.c.b16 %v193, %v191
    %v224 = vpack.c.b16 %v194, %v192
    %v225 = vpack.c.b16 %v197, %v195
    %v226 = vpack.c.b16 %v198, %v196
    %v227 = vpack.c.b16 %v201, %v199
    %v228 = vpack.c.b16 %v202, %v200
    %v229 = vpack.c.b16 %v205, %v203
    %v230 = vpack.c.b16 %v206, %v204
    %v231 = vpack.c.b16 %v209, %v207
    %v232 = vpack.c.b16 %v210, %v208
    %v233 = vpack.c.b16 %v213, %v211
    %v234 = vpack.c.b16 %v214, %v212
    %v235 = vpack.c.b16 %v217, %v215
    %v236 = vpack.c.b16 %v218, %v216
    %v237 = vpack.c.b16 %v221, %v219
    %v238 = vpack.c.b16 %v222, %v220
    %v319 = vunpack.c.l.b16 %v44
    %v320 = vunpack.c.h.b16 %v44
    %v321 = vunpack.c.l.b16 %v45
    %v322 = vunpack.c.h.b16 %v45
    %v323 = vunpack.c.l.b16 %v46
    %v324 = vunpack.c.h.b16 %v46
    %v325 = vunpack.c.l.b16 %v47
    %v326 = vunpack.c.h.b16 %v47
    %v327 = vunpack.c.l.b16 %v48
    %v328 = vunpack.c.h.b16 %v48
    %v329 = vunpack.c.l.b16 %v49
    %v330 = vunpack.c.h.b16 %v49
    %v331 = vunpack.c.l.b16 %v50
    %v332 = vunpack.c.h.b16 %v50
    %v333 = vunpack.c.l.b16 %v51
    %v334 = vunpack.c.h.b16 %v51
    %v335 = vunpack.c.l.b16 %v52
    %v336 = vunpack.c.h.b16 %v52
    %v337 = vunpack.c.l.b16 %v53
    %v338 = vunpack.c.h.b16 %v53
    %v339 = vunpack.c.l.b16 %v54
    %v340 = vunpack.c.h.b16 %v54
    %v341 = vunpack.c.l.b16 %v55
    %v342 = vunpack.c.h.b16 %v55
    %v343 = vunpack.c.l.b16 %v56
    %v344 = vunpack.c.h.b16 %v56
    %v345 = vunpack.c.l.b16 %v57
    %v346 = vunpack.c.h.b16 %v57
    %v347 = vunpack.c.l.b16 %v58
    %v348 = vunpack.c.h.b16 %v58
    %v349 = vunpack.c.l.b16 %v59
    %v350 = vunpack.c.h.b16 %v59
    %v351 = vunpack.c.l.b16 %v60
    %v352 = vunpack.c.h.b16 %v60
    %v353 = vunpack.c.l.b16 %v61
    %v354 = vunpack.c.h.b16 %v61
    %v355 = vunpack.c.l.b16 %v62
    %v356 = vunpack.c.h.b16 %v62
    %v357 = vunpack.c.l.b16 %v63
    %v358 = vunpack.c.h.b16 %v63
    %v359 = vunpack.c.l.b16 %v64
    %v360 = vunpack.c.h.b16 %v64
    %v361 = vunpack.c.l.b16 %v65
    %v362 = vunpack.c.h.b16 %v65
    %v363 = vunpack.c.l.b16 %v66
    %v364 = vunpack.c.h.b16 %v66
    %v365 = vunpack.c.l.b16 %v67
    %v366 = vunpack.c.h.b16 %v67
    %v367 = vunpack.c.l.b16 %v68
    %v368 = vunpack.c.h.b16 %v68
    %v369 = vunpack.c.l.b16 %v69
    %v370 = vunpack.c.h.b16 %v69
    %v371 = vunpack.c.l.b16 %v70
    %v372 = vunpack.c.h.b16 %v70
    %v373 = vunpack.c.l.b16 %v71
    %v374 = vunpack.c.h.b16 %v71
    %v375 = vunpack.c.l.b16 %v72
    %v376 = vunpack.c.h.b16 %v72
    %v377 = vunpack.c.l.b16 %v73
    %v378 = vunpack.c.h.b16 %v73
    %v379 = vunpack.c.l.b16 %v74
    %v380 = vunpack.c.h.b16 %v74
    %v381 = vunpack.c.l.b16 %v75
    %v382 = vunpack.c.h.b16 %v75
    %v383 = vunpack.c.l.b16 %v76
    %v384 = vunpack.c.h.b16 %v76
    %v385 = vunpack.c.l.b16 %v77
    %v386 = vunpack.c.h.b16 %v77
    %v387 = vunpack.c.l.b16 %v78
    %v388 = vunpack.c.h.b16 %v78
    %v389 = vunpack.c.l.b16 %v79
    %v390 = vunpack.c.h.b16 %v79
    %v391 = vunpack.c.l.b16 %v80
    %v392 = vunpack.c.h.b16 %v80
    %v393 = vunpack.c.l.b16 %v81
    %v394 = vunpack.c.h.b16 %v81
    %v395 = vunpack.c.l.b16 %v82
    %v396 = vunpack.c.h.b16 %v82
    %v397 = vunpack.c.l.b16 %v83
    %v398 = vunpack.c.h.b16 %v83
    %v399 = vunpack.c.l.b16 %v84
    %v400 = vunpack.c.h.b16 %v84
    %v401 = vunpack.c.l.b16 %v85
    %v402 = vunpack.c.h.b16 %v85
    %v403 = vunpack.c.l.b16 %v86
    %v404 = vunpack.c.h.b16 %v86
    %v405 = vunpack.c.l.b16 %v87
    %v406 = vunpack.c.h.b16 %v87
    %v407 = vunpack.c.l.b16 %v88
    %v408 = vunpack.c.h.b16 %v88
    %v409 = vunpack.c.l.b16 %v89
    %v410 = vunpack.c.h.b16 %v89
    %v411 = vunpack.c.l.b16 %v90
    %v412 = vunpack.c.h.b16 %v90
    %v413 = vunpack.c.l.b16 %v91
    %v414 = vunpack.c.h.b16 %v91
    %v415 = vunpack.c.l.b16 %v92
    %v416 = vunpack.c.h.b16 %v92
    %v417 = vunpack.c.l.b16 %v93
    %v418 = vunpack.c.h.b16 %v93
    %v419 = vunpack.c.l.b16 %v94
    %v420 = vunpack.c.h.b16 %v94
    %v421 = vunpack.c.l.b16 %v95
    %v422 = vunpack.c.h.b16 %v95
    %v423 = vunpack.c.l.b16 %v96
    %v424 = vunpack.c.h.b16 %v96
    %v425 = vunpack.c.l.b16 %v97
    %v426 = vunpack.c.h.b16 %v97
    %v427 = vunpack.c.l.b16 %v98
    %v428 = vunpack.c.h.b16 %v98
    %v429 = vunpack.c.l.b16 %v99
    %v430 = vunpack.c.h.b16 %v99
    %v431 = vunpack.c.l.b16 %v100
    %v432 = vunpack.c.h.b16 %v100
    %v433 = vunpack.c.l.b16 %v101
    %v434 = vunpack.c.h.b16 %v101
    %v435 = vunpack.c.l.b16 %v102
    %v436 = vunpack.c.h.b16 %v102
    %v437 = vunpack.c.l.b16 %v103
    %v438 = vunpack.c.h.b16 %v103
    %v439 = vunpack.c.l.b16 %v104
    %v440 = vunpack.c.h.b16 %v104
    %v441 = vunpack.c.l.b16 %v105
    %v442 = vunpack.c.h.b16 %v105
    %v443 = vunpack.c.l.b16 %v106
    %v444 = vunpack.c.h.b16 %v106
    %v445 = vunpack.c.l.b16 %v107
    %v446 = vunpack.c.h.b16 %v107
    %v447 = vunpack.c.l.b16 %v108
    %v448 = vunpack.c.h.b16 %v108
    %v449 = vunpack.c.l.b16 %v109
    %v450 = vunpack.c.h.b16 %v109
    %v451 = vunpack.c.l.b16 %v110
    %v452 = vunpack.c.h.b16 %v110
    %v453 = vunpack.c.l.b16 %v111
    %v454 = vunpack.c.h.b16 %v111
    %v455 = vunpack.c.l.b16 %v112
    %v456 = vunpack.c.h.b16 %v112
    %v457 = vunpack.c.l.b16 %v113
    %v458 = vunpack.c.h.b16 %v113
    %v459 = vunpack.c.l.b16 %v114
    %v460 = vunpack.c.h.b16 %v114
    %v461 = vunpack.c.l.b16 %v115
    %v462 = vunpack.c.h.b16 %v115
    %v463 = vpack.c.b16 %v325, %v319
    %v464 = vpack.c.b16 %v326, %v320
    %v465 = vpack.c.b16 %v327, %v321
    %v466 = vpack.c.b16 %v328, %v322
    %v467 = vpack.c.b16 %v329, %v323
    %v468 = vpack.c.b16 %v330, %v324
    %v469 = vpack.c.b16 %v337, %v331
    %v470 = vpack.c.b16 %v338, %v332
    %v471 = vpack.c.b16 %v339, %v333
    %v472 = vpack.c.b16 %v340, %v334
    %v473 = vpack.c.b16 %v341, %v335
    %v474 = vpack.c.b16 %v342, %v336
    %v475 = vpack.c.b16 %v349, %v343
    %v476 = vpack.c.b16 %v350, %v344
    %v477 = vpack.c.b16 %v351, %v345
    %v478 = vpack.c.b16 %v352, %v346
    %v479 = vpack.c.b16 %v353, %v347
    %v480 = vpack.c.b16 %v354, %v348
    %v481 = vpack.c.b16 %v361, %v355
    %v482 = vpack.c.b16 %v362, %v356
    %v483 = vpack.c.b16 %v363, %v357
    %v484 = vpack.c.b16 %v364, %v358
    %v485 = vpack.c.b16 %v365, %v359
    %v486 = vpack.c.b16 %v366, %v360
    %v487 = vpack.c.b16 %v373, %v367
    %v488 = vpack.c.b16 %v374, %v368
    %v489 = vpack.c.b16 %v375, %v369
    %v490 = vpack.c.b16 %v376, %v370
    %v491 = vpack.c.b16 %v377, %v371
    %v492 = vpack.c.b16 %v378, %v372
    %v493 = vpack.c.b16 %v385, %v379
    %v494 = vpack.c.b16 %v386, %v380
    %v495 = vpack.c.b16 %v387, %v381
    %v496 = vpack.c.b16 %v388, %v382
    %v497 = vpack.c.b16 %v389, %v383
    %v498 = vpack.c.b16 %v390, %v384
    %v499 = vpack.c.b16 %v397, %v391
    %v500 = vpack.c.b16 %v398, %v392
    %v501 = vpack.c.b16 %v399, %v393
    %v502 = vpack.c.b16 %v400, %v394
    %v503 = vpack.c.b16 %v401, %v395
    %v504 = vpack.c.b16 %v402, %v396
    %v505 = vpack.c.b16 %v409, %v403
    %v506 = vpack.c.b16 %v410, %v404
    %v507 = vpack.c.b16 %v411, %v405
    %v508 = vpack.c.b16 %v412, %v406
    %v509 = vpack.c.b16 %v413, %v407
    %v510 = vpack.c.b16 %v414, %v408
    %v511 = vpack.c.b16 %v421, %v415
    %v512 = vpack.c.b16 %v422, %v416
    %v513 = vpack.c.b16 %v423, %v417
    %v514 = vpack.c.b16 %v424, %v418
    %v515 = vpack.c.b16 %v425, %v419
    %v516 = vpack.c.b16 %v426, %v420
    %v517 = vpack.c.b16 %v433, %v427
    %v518 = vpack.c.b16 %v434, %v428
    %v519 = vpack.c.b16 %v435, %v429
    %v520 = vpack.c.b16 %v436, %v430
    %v521 = vpack.c.b16 %v437, %v431
    %v522 = vpack.c.b16 %v438, %v432
    %v523 = vpack.c.b16 %v445, %v439
    %v524 = vpack.c.b16 %v446, %v440
    %v525 = vpack.c.b16 %v447, %v441
    %v526 = vpack.c.b16 %v448, %v442
    %v527 = vpack.c.b16 %v449, %v443
    %v528 = vpack.c.b16 %v450, %v444
    %v529 = vpack.c.b16 %v457, %v451
    %v530 = vpack.c.b16 %v458, %v452
    %v531 = vpack.c.b16 %v459, %v453
    %v532 = vpack.c.b16 %v460, %v454
    %v533 = vpack.c.b16 %v461, %v455
    %v534 = vpack.c.b16 %v462, %v456
    %vm607 = vcmask 523264
    %v609 = vsel %vm607, %v224, 0
    %v612 = vsel %vm607, %v226, 0
    %v615 = vsel %vm607, %v228, 0
    %v618 = vsel %vm607, %v230, 0
    %v621 = vsel %vm607, %v232, 0
    %v624 = vsel %vm607, %v234, 0
    %v627 = vsel %vm607, %v236, 0
    %v630 = vsel %vm607, %v238, 0
    %632 = vmatprep.subr.bf16.mxu0 %v464
    %633 = vmatpush1.bf16.msra.mxu0 %v463
    %634 = vmatprep.subr.bf16.mxu0 %v470
    %635 = vmatpush1.bf16.msra.mxu0 %v469
    %636 = vmatprep.subr.bf16.mxu0 %v476
    %637 = vmatpush1.bf16.msra.mxu0 %v475
    %638 = vmatprep.subr.bf16.mxu0 %v482
    %639 = vmatpush1.bf16.msra.mxu0 %v481
    %640 = vmatprep.subr.bf16.mxu0 %v488
    %641 = vmatpush1.bf16.msra.mxu0 %v487
    %642 = vmatprep.subr.bf16.mxu0 %v494
    %643 = vmatpush1.bf16.msra.mxu0 %v493
    %644 = vmatprep.subr.bf16.mxu0 %v500
    %645 = vmatpush1.bf16.msra.mxu0 %v499
    %646 = vmatprep.subr.bf16.mxu0 %v506
    %647 = vmatpush1.bf16.msra.mxu0 %v505
    %648 = vmatprep.subr.bf16.mxu0 %v512
    %649 = vmatpush1.bf16.msra.mxu0 %v511
    %650 = vmatprep.subr.bf16.mxu0 %v518
    %651 = vmatpush1.bf16.msra.mxu0 %v517
    %652 = vmatprep.subr.bf16.mxu0 %v524
    %653 = vmatpush1.bf16.msra.mxu0 %v523
    %654 = vmatprep.subr.bf16.mxu0 %v530
    %655 = vmatpush1.bf16.msra.mxu0 %v529
    %656 = vmatprep.subr.bf16.mxu0 0
    %657 = vmatpush1.bf16.msra.mxu0 0
    %658 = vmatprep.subr.bf16.mxu0 0
    %659 = vmatpush1.bf16.msra.mxu0 0
    %660 = vmatprep.subr.bf16.mxu0 0
    %661 = vmatpush1.bf16.msra.mxu0 0
    %662 = vmatprep.subr.bf16.mxu0 0
    %663 = vmatpush1.bf16.msra.mxu0 0
    %664 = vmatprep.mubr.bf16.mxu0 %v609
    %665 = vmatmul.mubr.bf16.gmra.mrb[0].mxu0 %v223
    %v666 = vpop.f32.mrb[0].mxu0
    %v667 = vadd.f32 %v154, %v666
    %v668 = vpop.f32.mrb[0].mxu0
    %v669 = vadd.f32 %v158, %v668
    %v670 = vpop.f32.mrb[0].mxu0
    %v671 = vadd.f32 %v154, %v670
    %v672 = vpop.f32.mrb[0].mxu0
    %v673 = vadd.f32 %v158, %v672
    %674 = vmatprep.mubr.bf16.mxu0 %v612
    %675 = vmatmul.mubr.bf16.gmra.mrb[0].mxu0 %v225
    %v676 = vpop.f32.mrb[0].mxu0
    %v677 = vadd.f32 %v154, %v676
    %v678 = vpop.f32.mrb[0].mxu0
    %v679 = vadd.f32 %v158, %v678
    %v680 = vpop.f32.mrb[0].mxu0
    %v681 = vadd.f32 %v154, %v680
    %v682 = vpop.f32.mrb[0].mxu0
    %v683 = vadd.f32 %v158, %v682
    %684 = vmatprep.mubr.bf16.mxu0 %v615
    %685 = vmatmul.mubr.bf16.gmra.mrb[0].mxu0 %v227
    %v686 = vpop.f32.mrb[0].mxu0
    %v687 = vadd.f32 %v154, %v686
    %v688 = vpop.f32.mrb[0].mxu0
    %v689 = vadd.f32 %v158, %v688
    %v690 = vpop.f32.mrb[0].mxu0
    %v691 = vadd.f32 %v154, %v690
    %v692 = vpop.f32.mrb[0].mxu0
    %v693 = vadd.f32 %v158, %v692
    %694 = vmatprep.mubr.bf16.mxu0 %v618
    %695 = vmatmul.mubr.bf16.gmra.mrb[0].mxu0 %v229
    %v696 = vpop.f32.mrb[0].mxu0
    %v697 = vadd.f32 %v154, %v696
    %v698 = vpop.f32.mrb[0].mxu0
    %v699 = vadd.f32 %v158, %v698
    %v700 = vpop.f32.mrb[0].mxu0
    %v701 = vadd.f32 %v154, %v700
    %v702 = vpop.f32.mrb[0].mxu0
    %v703 = vadd.f32 %v158, %v702
    %704 = vmatprep.mubr.bf16.mxu0 %v621
    %705 = vmatmul.mubr.bf16.gmra.mrb[0].mxu0 %v231
    %v706 = vpop.f32.mrb[0].mxu0
    %v707 = vadd.f32 %v154, %v706
    %v708 = vpop.f32.mrb[0].mxu0
    %v709 = vadd.f32 %v158, %v708
    %v710 = vpop.f32.mrb[0].mxu0
    %v711 = vadd.f32 %v154, %v710
    %v712 = vpop.f32.mrb[0].mxu0
    %v713 = vadd.f32 %v158, %v712
    %714 = vmatprep.mubr.bf16.mxu0 %v624
    %715 = vmatmul.mubr.bf16.gmra.mrb[0].mxu0 %v233
    %v716 = vpop.f32.mrb[0].mxu0
    %v717 = vadd.f32 %v154, %v716
    %v718 = vpop.f32.mrb[0].mxu0
    %v719 = vadd.f32 %v158, %v718
    %v720 = vpop.f32.mrb[0].mxu0
    %v721 = vadd.f32 %v154, %v720
    %v722 = vpop.f32.mrb[0].mxu0
    %v723 = vadd.f32 %v158, %v722
    %724 = vmatprep.mubr.bf16.mxu0 %v627
    %725 = vmatmul.mubr.bf16.gmra.mrb[0].mxu0 %v235
    %v726 = vpop.f32.mrb[0].mxu0
    %v727 = vadd.f32 %v154, %v726
    %v728 = vpop.f32.mrb[0].mxu0
    %v729 = vadd.f32 %v158, %v728
    %v730 = vpop.f32.mrb[0].mxu0
    %v731 = vadd.f32 %v154, %v730
    %v732 = vpop.f32.mrb[0].mxu0
    %v733 = vadd.f32 %v158, %v732
    %734 = vmatprep.mubr.bf16.mxu0 %v630
    %735 = vmatmul.mubr.bf16.gmra.mrb[0].mxu0 %v237
    %v736 = vpop.f32.mrb[0].mxu0
    %v737 = vadd.f32 %v154, %v736
    %v738 = vpop.f32.mrb[0].mxu0
    %v739 = vadd.f32 %v158, %v738
    %v740 = vpop.f32.mrb[0].mxu0
    %v741 = vadd.f32 %v154, %v740
    %v742 = vpop.f32.mrb[0].mxu0
    %v743 = vadd.f32 %v158, %v742
    %744 = vdwg.mxu0
    %745 = vmatprep.subr.bf16.mxu0 %v466
    %746 = vmatpush1.bf16.msra.mxu0 %v465
    %747 = vmatprep.subr.bf16.mxu0 %v472
    %748 = vmatpush1.bf16.msra.mxu0 %v471
    %749 = vmatprep.subr.bf16.mxu0 %v478
    %750 = vmatpush1.bf16.msra.mxu0 %v477
    %751 = vmatprep.subr.bf16.mxu0 %v484
    %752 = vmatpush1.bf16.msra.mxu0 %v483
    %753 = vmatprep.subr.bf16.mxu0 %v490
    %754 = vmatpush1.bf16.msra.mxu0 %v489
    %755 = vmatprep.subr.bf16.mxu0 %v496
    %756 = vmatpush1.bf16.msra.mxu0 %v495
    %757 = vmatprep.subr.bf16.mxu0 %v502
    %758 = vmatpush1.bf16.msra.mxu0 %v501
    %759 = vmatprep.subr.bf16.mxu0 %v508
    %760 = vmatpush1.bf16.msra.mxu0 %v507
    %761 = vmatprep.subr.bf16.mxu0 %v514
    %762 = vmatpush1.bf16.msra.mxu0 %v513
    %763 = vmatprep.subr.bf16.mxu0 %v520
    %764 = vmatpush1.bf16.msra.mxu0 %v519
    %765 = vmatprep.subr.bf16.mxu0 %v526
    %766 = vmatpush1.bf16.msra.mxu0 %v525
    %767 = vmatprep.subr.bf16.mxu0 %v532
    %768 = vmatpush1.bf16.msra.mxu0 %v531
    %769 = vmatprep.subr.bf16.mxu0 0
    %770 = vmatpush1.bf16.msra.mxu0 0
    %771 = vmatprep.subr.bf16.mxu0 0
    %772 = vmatpush1.bf16.msra.mxu0 0
    %773 = vmatprep.subr.bf16.mxu0 0
    %774 = vmatpush1.bf16.msra.mxu0 0
    %775 = vmatprep.subr.bf16.mxu0 0
    %776 = vmatpush1.bf16.msra.mxu0 0
    %777 = vmatprep.mubr.bf16.mxu0 %v609
    %778 = vmatmul.mubr.bf16.gmra.mrb[0].mxu0 %v223
    %v779 = vpop.f32.mrb[0].mxu0
    %v780 = vadd.f32 %v162, %v779
    %v781 = vpop.f32.mrb[0].mxu0
    %v782 = vadd.f32 %v166, %v781
    %v783 = vpop.f32.mrb[0].mxu0
    %v784 = vadd.f32 %v162, %v783
    %v785 = vpop.f32.mrb[0].mxu0
    %v786 = vadd.f32 %v166, %v785
    %787 = vmatprep.mubr.bf16.mxu0 %v612
    %788 = vmatmul.mubr.bf16.gmra.mrb[0].mxu0 %v225
    %v789 = vpop.f32.mrb[0].mxu0
    %v790 = vadd.f32 %v162, %v789
    %v791 = vpop.f32.mrb[0].mxu0
    %v792 = vadd.f32 %v166, %v791
    %v793 = vpop.f32.mrb[0].mxu0
    %v794 = vadd.f32 %v162, %v793
    %v795 = vpop.f32.mrb[0].mxu0
    %v796 = vadd.f32 %v166, %v795
    %797 = vmatprep.mubr.bf16.mxu0 %v615
    %798 = vmatmul.mubr.bf16.gmra.mrb[0].mxu0 %v227
    %v799 = vpop.f32.mrb[0].mxu0
    %v800 = vadd.f32 %v162, %v799
    %v801 = vpop.f32.mrb[0].mxu0
    %v802 = vadd.f32 %v166, %v801
    %v803 = vpop.f32.mrb[0].mxu0
    %v804 = vadd.f32 %v162, %v803
    %v805 = vpop.f32.mrb[0].mxu0
    %v806 = vadd.f32 %v166, %v805
    %807 = vmatprep.mubr.bf16.mxu0 %v618
    %808 = vmatmul.mubr.bf16.gmra.mrb[0].mxu0 %v229
    %v809 = vpop.f32.mrb[0].mxu0
    %v810 = vadd.f32 %v162, %v809
    %v811 = vpop.f32.mrb[0].mxu0
    %v812 = vadd.f32 %v166, %v811
    %v813 = vpop.f32.mrb[0].mxu0
    %v814 = vadd.f32 %v162, %v813
    %v815 = vpop.f32.mrb[0].mxu0
    %v816 = vadd.f32 %v166, %v815
    %817 = vmatprep.mubr.bf16.mxu0 %v621
    %818 = vmatmul.mubr.bf16.gmra.mrb[0].mxu0 %v231
    %v819 = vpop.f32.mrb[0].mxu0
    %v820 = vadd.f32 %v162, %v819
    %v821 = vpop.f32.mrb[0].mxu0
    %v822 = vadd.f32 %v166, %v821
    %v823 = vpop.f32.mrb[0].mxu0
    %v824 = vadd.f32 %v162, %v823
    %v825 = vpop.f32.mrb[0].mxu0
    %v826 = vadd.f32 %v166, %v825
    %827 = vmatprep.mubr.bf16.mxu0 %v624
    %828 = vmatmul.mubr.bf16.gmra.mrb[0].mxu0 %v233
    %v829 = vpop.f32.mrb[0].mxu0
    %v830 = vadd.f32 %v162, %v829
    %v831 = vpop.f32.mrb[0].mxu0
    %v832 = vadd.f32 %v166, %v831
    %v833 = vpop.f32.mrb[0].mxu0
    %v834 = vadd.f32 %v162, %v833
    %v835 = vpop.f32.mrb[0].mxu0
    %v836 = vadd.f32 %v166, %v835
    %837 = vmatprep.mubr.bf16.mxu0 %v627
    %838 = vmatmul.mubr.bf16.gmra.mrb[0].mxu0 %v235
    %v839 = vpop.f32.mrb[0].mxu0
    %v840 = vadd.f32 %v162, %v839
    %v841 = vpop.f32.mrb[0].mxu0
    %v842 = vadd.f32 %v166, %v841
    %v843 = vpop.f32.mrb[0].mxu0
    %v844 = vadd.f32 %v162, %v843
    %v845 = vpop.f32.mrb[0].mxu0
    %v846 = vadd.f32 %v166, %v845
    %847 = vmatprep.mubr.bf16.mxu0 %v630
    %848 = vmatmul.mubr.bf16.gmra.mrb[0].mxu0 %v237
    %v849 = vpop.f32.mrb[0].mxu0
    %v850 = vadd.f32 %v162, %v849
    %v851 = vpop.f32.mrb[0].mxu0
    %v852 = vadd.f32 %v166, %v851
    %v853 = vpop.f32.mrb[0].mxu0
    %v854 = vadd.f32 %v162, %v853
    %v855 = vpop.f32.mrb[0].mxu0
    %v856 = vadd.f32 %v166, %v855
    %857 = vdwg.mxu0
    %858 = vmatprep.subr.bf16.mxu0 %v468
    %859 = vmatpush1.bf16.msra.mxu0 %v467
    %860 = vmatprep.subr.bf16.mxu0 %v474
    %861 = vmatpush1.bf16.msra.mxu0 %v473
    %862 = vmatprep.subr.bf16.mxu0 %v480
    %863 = vmatpush1.bf16.msra.mxu0 %v479
    %864 = vmatprep.subr.bf16.mxu0 %v486
    %865 = vmatpush1.bf16.msra.mxu0 %v485
    %866 = vmatprep.subr.bf16.mxu0 %v492
    %867 = vmatpush1.bf16.msra.mxu0 %v491
    %868 = vmatprep.subr.bf16.mxu0 %v498
    %869 = vmatpush1.bf16.msra.mxu0 %v497
    %870 = vmatprep.subr.bf16.mxu0 %v504
    %871 = vmatpush1.bf16.msra.mxu0 %v503
    %872 = vmatprep.subr.bf16.mxu0 %v510
    %873 = vmatpush1.bf16.msra.mxu0 %v509
    %874 = vmatprep.subr.bf16.mxu0 %v516
    %875 = vmatpush1.bf16.msra.mxu0 %v515
    %876 = vmatprep.subr.bf16.mxu0 %v522
    %877 = vmatpush1.bf16.msra.mxu0 %v521
    %878 = vmatprep.subr.bf16.mxu0 %v528
    %879 = vmatpush1.bf16.msra.mxu0 %v527
    %880 = vmatprep.subr.bf16.mxu0 %v534
    %881 = vmatpush1.bf16.msra.mxu0 %v533
    %882 = vmatprep.subr.bf16.mxu0 0
    %883 = vmatpush1.bf16.msra.mxu0 0
    %884 = vmatprep.subr.bf16.mxu0 0
    %885 = vmatpush1.bf16.msra.mxu0 0
    %886 = vmatprep.subr.bf16.mxu0 0
    %887 = vmatpush1.bf16.msra.mxu0 0
    %888 = vmatprep.subr.bf16.mxu0 0
    %889 = vmatpush1.bf16.msra.mxu0 0
    %890 = vmatprep.mubr.bf16.mxu0 %v609
    %891 = vmatmul.mubr.bf16.gmra.mrb[0].mxu0 %v223
    %v892 = vpop.f32.mrb[0].mxu0
    %v893 = vadd.f32 %v170, %v892
    %v894 = vpop.f32.mrb[0].mxu0
    %v895 = vadd.f32 %v174, %v894
    %v896 = vpop.f32.mrb[0].mxu0
    %v897 = vadd.f32 %v170, %v896
    %v898 = vpop.f32.mrb[0].mxu0
    %v899 = vadd.f32 %v174, %v898
    %900 = vmatprep.mubr.bf16.mxu0 %v612
    %901 = vmatmul.mubr.bf16.gmra.mrb[0].mxu0 %v225
    %v902 = vpop.f32.mrb[0].mxu0
    %v903 = vadd.f32 %v170, %v902
    %v904 = vpop.f32.mrb[0].mxu0
    %v905 = vadd.f32 %v174, %v904
    %v906 = vpop.f32.mrb[0].mxu0
    %v907 = vadd.f32 %v170, %v906
    %v908 = vpop.f32.mrb[0].mxu0
    %v909 = vadd.f32 %v174, %v908
    %910 = vmatprep.mubr.bf16.mxu0 %v615
    %911 = vmatmul.mubr.bf16.gmra.mrb[0].mxu0 %v227
    %v912 = vpop.f32.mrb[0].mxu0
    %v913 = vadd.f32 %v170, %v912
    %v914 = vpop.f32.mrb[0].mxu0
    %v915 = vadd.f32 %v174, %v914
    %v916 = vpop.f32.mrb[0].mxu0
    %v917 = vadd.f32 %v170, %v916
    %v918 = vpop.f32.mrb[0].mxu0
    %v919 = vadd.f32 %v174, %v918
    %920 = vmatprep.mubr.bf16.mxu0 %v618
    %921 = vmatmul.mubr.bf16.gmra.mrb[0].mxu0 %v229
    %v922 = vpop.f32.mrb[0].mxu0
    %v923 = vadd.f32 %v170, %v922
    %v924 = vpop.f32.mrb[0].mxu0
    %v925 = vadd.f32 %v174, %v924
    %v926 = vpop.f32.mrb[0].mxu0
    %v927 = vadd.f32 %v170, %v926
    %v928 = vpop.f32.mrb[0].mxu0
    %v929 = vadd.f32 %v174, %v928
    %930 = vmatprep.mubr.bf16.mxu0 %v621
    %931 = vmatmul.mubr.bf16.gmra.mrb[0].mxu0 %v231
    %v932 = vpop.f32.mrb[0].mxu0
    %v933 = vadd.f32 %v170, %v932
    %v934 = vpop.f32.mrb[0].mxu0
    %v935 = vadd.f32 %v174, %v934
    %v936 = vpop.f32.mrb[0].mxu0
    %v937 = vadd.f32 %v170, %v936
    %v938 = vpop.f32.mrb[0].mxu0
    %v939 = vadd.f32 %v174, %v938
    %940 = vmatprep.mubr.bf16.mxu0 %v624
    %941 = vmatmul.mubr.bf16.gmra.mrb[0].mxu0 %v233
    %v942 = vpop.f32.mrb[0].mxu0
    %v943 = vadd.f32 %v170, %v942
    %v944 = vpop.f32.mrb[0].mxu0
    %v945 = vadd.f32 %v174, %v944
    %v946 = vpop.f32.mrb[0].mxu0
    %v947 = vadd.f32 %v170, %v946
    %v948 = vpop.f32.mrb[0].mxu0
    %v949 = vadd.f32 %v174, %v948
    %950 = vmatprep.mubr.bf16.mxu0 %v627
    %951 = vmatmul.mubr.bf16.gmra.mrb[0].mxu0 %v235
    %v952 = vpop.f32.mrb[0].mxu0
    %v953 = vadd.f32 %v170, %v952
    %v954 = vpop.f32.mrb[0].mxu0
    %v955 = vadd.f32 %v174, %v954
    %v956 = vpop.f32.mrb[0].mxu0
    %v957 = vadd.f32 %v170, %v956
    %v958 = vpop.f32.mrb[0].mxu0
    %v959 = vadd.f32 %v174, %v958
    %960 = vmatprep.mubr.bf16.mxu0 %v630
    %961 = vmatmul.mubr.bf16.gmra.mrb[0].mxu0 %v237
    %v962 = vpop.f32.mrb[0].mxu0
    %v963 = vadd.f32 %v170, %v962
    %v964 = vpop.f32.mrb[0].mxu0
    %v965 = vadd.f32 %v174, %v964
    %v966 = vpop.f32.mrb[0].mxu0
    %v967 = vadd.f32 %v170, %v966
    %v968 = vpop.f32.mrb[0].mxu0
    %v969 = vadd.f32 %v174, %v968
    %970 = vdwg.mxu0
    %vm971 = vcmp.ge.f32.partialorder %v667, 0.0
    %vm972 = vcmp.ge.f32.partialorder %v669, 0.0
    %vm973 = vcmp.ge.f32.partialorder %v780, 0.0
    %vm974 = vcmp.ge.f32.partialorder %v782, 0.0
    %vm975 = vcmp.ge.f32.partialorder %v893, 0.0
    %vm976 = vcmp.ge.f32.partialorder %v895, 0.0
    %vm977 = vcmp.ge.f32.partialorder %v671, 0.0
    %vm978 = vcmp.ge.f32.partialorder %v673, 0.0
    %vm979 = vcmp.ge.f32.partialorder %v784, 0.0
    %vm980 = vcmp.ge.f32.partialorder %v786, 0.0
    %vm981 = vcmp.ge.f32.partialorder %v897, 0.0
    %vm982 = vcmp.ge.f32.partialorder %v899, 0.0
    %vm983 = vcmp.ge.f32.partialorder %v677, 0.0
    %vm984 = vcmp.ge.f32.partialorder %v679, 0.0
    %vm985 = vcmp.ge.f32.partialorder %v790, 0.0
    %vm986 = vcmp.ge.f32.partialorder %v792, 0.0
    %vm987 = vcmp.ge.f32.partialorder %v903, 0.0
    %vm988 = vcmp.ge.f32.partialorder %v905, 0.0
    %vm989 = vcmp.ge.f32.partialorder %v681, 0.0
    %vm990 = vcmp.ge.f32.partialorder %v683, 0.0
    %vm991 = vcmp.ge.f32.partialorder %v794, 0.0
    %vm992 = vcmp.ge.f32.partialorder %v796, 0.0
    %vm993 = vcmp.ge.f32.partialorder %v907, 0.0
    %vm994 = vcmp.ge.f32.partialorder %v909, 0.0
    %vm995 = vcmp.ge.f32.partialorder %v687, 0.0
    %vm996 = vcmp.ge.f32.partialorder %v689, 0.0
    %vm997 = vcmp.ge.f32.partialorder %v800, 0.0
    %vm998 = vcmp.ge.f32.partialorder %v802, 0.0
    %vm999 = vcmp.ge.f32.partialorder %v913, 0.0
    %vm1000 = vcmp.ge.f32.partialorder %v915, 0.0
    %vm1001 = vcmp.ge.f32.partialorder %v691, 0.0
    %vm1002 = vcmp.ge.f32.partialorder %v693, 0.0
    %vm1003 = vcmp.ge.f32.partialorder %v804, 0.0
    %vm1004 = vcmp.ge.f32.partialorder %v806, 0.0
    %vm1005 = vcmp.ge.f32.partialorder %v917, 0.0
    %vm1006 = vcmp.ge.f32.partialorder %v919, 0.0
    %vm1007 = vcmp.ge.f32.partialorder %v697, 0.0
    %vm1008 = vcmp.ge.f32.partialorder %v699, 0.0
    %vm1009 = vcmp.ge.f32.partialorder %v810, 0.0
    %vm1010 = vcmp.ge.f32.partialorder %v812, 0.0
    %vm1011 = vcmp.ge.f32.partialorder %v923, 0.0
    %vm1012 = vcmp.ge.f32.partialorder %v925, 0.0
    %vm1013 = vcmp.ge.f32.partialorder %v701, 0.0
    %vm1014 = vcmp.ge.f32.partialorder %v703, 0.0
    %vm1015 = vcmp.ge.f32.partialorder %v814, 0.0
    %vm1016 = vcmp.ge.f32.partialorder %v816, 0.0
    %vm1017 = vcmp.ge.f32.partialorder %v927, 0.0
    %vm1018 = vcmp.ge.f32.partialorder %v929, 0.0
    %vm1019 = vcmp.ge.f32.partialorder %v707, 0.0
    %vm1020 = vcmp.ge.f32.partialorder %v709, 0.0
    %vm1021 = vcmp.ge.f32.partialorder %v820, 0.0
    %vm1022 = vcmp.ge.f32.partialorder %v822, 0.0
    %vm1023 = vcmp.ge.f32.partialorder %v933, 0.0
    %vm1024 = vcmp.ge.f32.partialorder %v935, 0.0
    %vm1025 = vcmp.ge.f32.partialorder %v711, 0.0
    %vm1026 = vcmp.ge.f32.partialorder %v713, 0.0
    %vm1027 = vcmp.ge.f32.partialorder %v824, 0.0
    %vm1028 = vcmp.ge.f32.partialorder %v826, 0.0
    %vm1029 = vcmp.ge.f32.partialorder %v937, 0.0
    %vm1030 = vcmp.ge.f32.partialorder %v939, 0.0
    %vm1031 = vcmp.ge.f32.partialorder %v717, 0.0
    %vm1032 = vcmp.ge.f32.partialorder %v719, 0.0
    %vm1033 = vcmp.ge.f32.partialorder %v830, 0.0
    %vm1034 = vcmp.ge.f32.partialorder %v832, 0.0
    %vm1035 = vcmp.ge.f32.partialorder %v943, 0.0
    %vm1036 = vcmp.ge.f32.partialorder %v945, 0.0
    %vm1037 = vcmp.ge.f32.partialorder %v721, 0.0
    %vm1038 = vcmp.ge.f32.partialorder %v723, 0.0
    %vm1039 = vcmp.ge.f32.partialorder %v834, 0.0
    %vm1040 = vcmp.ge.f32.partialorder %v836, 0.0
    %vm1041 = vcmp.ge.f32.partialorder %v947, 0.0
    %vm1042 = vcmp.ge.f32.partialorder %v949, 0.0
    %vm1043 = vcmp.ge.f32.partialorder %v727, 0.0
    %vm1044 = vcmp.ge.f32.partialorder %v729, 0.0
    %vm1045 = vcmp.ge.f32.partialorder %v840, 0.0
    %vm1046 = vcmp.ge.f32.partialorder %v842, 0.0
    %vm1047 = vcmp.ge.f32.partialorder %v953, 0.0
    %vm1048 = vcmp.ge.f32.partialorder %v955, 0.0
    %vm1049 = vcmp.ge.f32.partialorder %v731, 0.0
    %vm1050 = vcmp.ge.f32.partialorder %v733, 0.0
    %vm1051 = vcmp.ge.f32.partialorder %v844, 0.0
    %vm1052 = vcmp.ge.f32.partialorder %v846, 0.0
    %vm1053 = vcmp.ge.f32.partialorder %v957, 0.0
    %vm1054 = vcmp.ge.f32.partialorder %v959, 0.0
    %vm1055 = vcmp.ge.f32.partialorder %v737, 0.0
    %vm1056 = vcmp.ge.f32.partialorder %v739, 0.0
    %vm1057 = vcmp.ge.f32.partialorder %v850, 0.0
    %vm1058 = vcmp.ge.f32.partialorder %v852, 0.0
    %vm1059 = vcmp.ge.f32.partialorder %v963, 0.0
    %vm1060 = vcmp.ge.f32.partialorder %v965, 0.0
    %vm1061 = vcmp.ge.f32.partialorder %v741, 0.0
    %vm1062 = vcmp.ge.f32.partialorder %v743, 0.0
    %vm1063 = vcmp.ge.f32.partialorder %v854, 0.0
    %vm1064 = vcmp.ge.f32.partialorder %v856, 0.0
    %vm1065 = vcmp.ge.f32.partialorder %v967, 0.0
    %vm1066 = vcmp.ge.f32.partialorder %v969, 0.0
    %v1067 = vmul.f32 %v667, 0.1
    %v1068 = vmul.f32 %v669, 0.1
    %v1069 = vmul.f32 %v780, 0.1
    %v1070 = vmul.f32 %v782, 0.1
    %v1071 = vmul.f32 %v893, 0.1
    %v1072 = vmul.f32 %v895, 0.1
    %v1073 = vmul.f32 %v671, 0.1
    %v1074 = vmul.f32 %v673, 0.1
    %v1075 = vmul.f32 %v784, 0.1
    %v1076 = vmul.f32 %v786, 0.1
    %v1077 = vmul.f32 %v897, 0.1
    %v1078 = vmul.f32 %v899, 0.1
    %v1079 = vmul.f32 %v677, 0.1
    %v1080 = vmul.f32 %v679, 0.1
    %v1081 = vmul.f32 %v790, 0.1
    %v1082 = vmul.f32 %v792, 0.1
    %v1083 = vmul.f32 %v903, 0.1
    %v1084 = vmul.f32 %v905, 0.1
    %v1085 = vmul.f32 %v681, 0.1
    %v1086 = vmul.f32 %v683, 0.1
    %v1087 = vmul.f32 %v794, 0.1
    %v1088 = vmul.f32 %v796, 0.1
    %v1089 = vmul.f32 %v907, 0.1
    %v1090 = vmul.f32 %v909, 0.1
    %v1091 = vmul.f32 %v687, 0.1
    %v1092 = vmul.f32 %v689, 0.1
    %v1093 = vmul.f32 %v800, 0.1
    %v1094 = vmul.f32 %v802, 0.1
    %v1095 = vmul.f32 %v913, 0.1
    %v1096 = vmul.f32 %v915, 0.1
    %v1097 = vmul.f32 %v691, 0.1
    %v1098 = vmul.f32 %v693, 0.1
    %v1099 = vmul.f32 %v804, 0.1
    %v1100 = vmul.f32 %v806, 0.1
    %v1101 = vmul.f32 %v917, 0.1
    %v1102 = vmul.f32 %v919, 0.1
    %v1103 = vmul.f32 %v697, 0.1
    %v1104 = vmul.f32 %v699, 0.1
    %v1105 = vmul.f32 %v810, 0.1
    %v1106 = vmul.f32 %v812, 0.1
    %v1107 = vmul.f32 %v923, 0.1
    %v1108 = vmul.f32 %v925, 0.1
    %v1109 = vmul.f32 %v701, 0.1
    %v1110 = vmul.f32 %v703, 0.1
    %v1111 = vmul.f32 %v814, 0.1
    %v1112 = vmul.f32 %v816, 0.1
    %v1113 = vmul.f32 %v927, 0.1
    %v1114 = vmul.f32 %v929, 0.1
    %v1115 = vmul.f32 %v707, 0.1
    %v1116 = vmul.f32 %v709, 0.1
    %v1117 = vmul.f32 %v820, 0.1
    %v1118 = vmul.f32 %v822, 0.1
    %v1119 = vmul.f32 %v933, 0.1
    %v1120 = vmul.f32 %v935, 0.1
    %v1121 = vmul.f32 %v711, 0.1
    %v1122 = vmul.f32 %v713, 0.1
    %v1123 = vmul.f32 %v824, 0.1
    %v1124 = vmul.f32 %v826, 0.1
    %v1125 = vmul.f32 %v937, 0.1
    %v1126 = vmul.f32 %v939, 0.1
    %v1127 = vmul.f32 %v717, 0.1
    %v1128 = vmul.f32 %v719, 0.1
    %v1129 = vmul.f32 %v830, 0.1
    %v1130 = vmul.f32 %v832, 0.1
    %v1131 = vmul.f32 %v943, 0.1
    %v1132 = vmul.f32 %v945, 0.1
    %v1133 = vmul.f32 %v721, 0.1
    %v1134 = vmul.f32 %v723, 0.1
    %v1135 = vmul.f32 %v834, 0.1
    %v1136 = vmul.f32 %v836, 0.1
    %v1137 = vmul.f32 %v947, 0.1
    %v1138 = vmul.f32 %v949, 0.1
    %v1139 = vmul.f32 %v727, 0.1
    %v1140 = vmul.f32 %v729, 0.1
    %v1141 = vmul.f32 %v840, 0.1
    %v1142 = vmul.f32 %v842, 0.1
    %v1143 = vmul.f32 %v953, 0.1
    %v1144 = vmul.f32 %v955, 0.1
    %v1145 = vmul.f32 %v731, 0.1
    %v1146 = vmul.f32 %v733, 0.1
    %v1147 = vmul.f32 %v844, 0.1
    %v1148 = vmul.f32 %v846, 0.1
    %v1149 = vmul.f32 %v957, 0.1
    %v1150 = vmul.f32 %v959, 0.1
    %v1151 = vmul.f32 %v737, 0.1
    %v1152 = vmul.f32 %v739, 0.1
    %v1153 = vmul.f32 %v850, 0.1
    %v1154 = vmul.f32 %v852, 0.1
    %v1155 = vmul.f32 %v963, 0.1
    %v1156 = vmul.f32 %v965, 0.1
    %v1157 = vmul.f32 %v741, 0.1
    %v1158 = vmul.f32 %v743, 0.1
    %v1159 = vmul.f32 %v854, 0.1
    %v1160 = vmul.f32 %v856, 0.1
    %v1161 = vmul.f32 %v967, 0.1
    %v1162 = vmul.f32 %v969, 0.1
    %v1163 = vsel %vm971, %v667, %v1067
    %v1164 = vsel %vm972, %v669, %v1068
    %v1165 = vsel %vm973, %v780, %v1069
    %v1166 = vsel %vm974, %v782, %v1070
    %v1167 = vsel %vm975, %v893, %v1071
    %v1168 = vsel %vm976, %v895, %v1072
    %v1169 = vsel %vm977, %v671, %v1073
    %v1170 = vsel %vm978, %v673, %v1074
    %v1171 = vsel %vm979, %v784, %v1075
    %v1172 = vsel %vm980, %v786, %v1076
    %v1173 = vsel %vm981, %v897, %v1077
    %v1174 = vsel %vm982, %v899, %v1078
    %v1175 = vsel %vm983, %v677, %v1079
    %v1176 = vsel %vm984, %v679, %v1080
    %v1177 = vsel %vm985, %v790, %v1081
    %v1178 = vsel %vm986, %v792, %v1082
    %v1179 = vsel %vm987, %v903, %v1083
    %v1180 = vsel %vm988, %v905, %v1084
    %v1181 = vsel %vm989, %v681, %v1085
    %v1182 = vsel %vm990, %v683, %v1086
    %v1183 = vsel %vm991, %v794, %v1087
    %v1184 = vsel %vm992, %v796, %v1088
    %v1185 = vsel %vm993, %v907, %v1089
    %v1186 = vsel %vm994, %v909, %v1090
    %v1187 = vsel %vm995, %v687, %v1091
    %v1188 = vsel %vm996, %v689, %v1092
    %v1189 = vsel %vm997, %v800, %v1093
    %v1190 = vsel %vm998, %v802, %v1094
    %v1191 = vsel %vm999, %v913, %v1095
    %v1192 = vsel %vm1000, %v915, %v1096
    %v1193 = vsel %vm1001, %v691, %v1097
    %v1194 = vsel %vm1002, %v693, %v1098
    %v1195 = vsel %vm1003, %v804, %v1099
    %v1196 = vsel %vm1004, %v806, %v1100
    %v1197 = vsel %vm1005, %v917, %v1101
    %v1198 = vsel %vm1006, %v919, %v1102
    %v1199 = vsel %vm1007, %v697, %v1103
    %v1200 = vsel %vm1008, %v699, %v1104
    %v1201 = vsel %vm1009, %v810, %v1105
    %v1202 = vsel %vm1010, %v812, %v1106
    %v1203 = vsel %vm1011, %v923, %v1107
    %v1204 = vsel %vm1012, %v925, %v1108
    %v1205 = vsel %vm1013, %v701, %v1109
    %v1206 = vsel %vm1014, %v703, %v1110
    %v1207 = vsel %vm1015, %v814, %v1111
    %v1208 = vsel %vm1016, %v816, %v1112
    %v1209 = vsel %vm1017, %v927, %v1113
    %v1210 = vsel %vm1018, %v929, %v1114
    %v1211 = vsel %vm1019, %v707, %v1115
    %v1212 = vsel %vm1020, %v709, %v1116
    %v1213 = vsel %vm1021, %v820, %v1117
    %v1214 = vsel %vm1022, %v822, %v1118
    %v1215 = vsel %vm1023, %v933, %v1119
    %v1216 = vsel %vm1024, %v935, %v1120
    %v1217 = vsel %vm1025, %v711, %v1121
    %v1218 = vsel %vm1026, %v713, %v1122
    %v1219 = vsel %vm1027, %v824, %v1123
    %v1220 = vsel %vm1028, %v826, %v1124
    %v1221 = vsel %vm1029, %v937, %v1125
    %v1222 = vsel %vm1030, %v939, %v1126
    %v1223 = vsel %vm1031, %v717, %v1127
    %v1224 = vsel %vm1032, %v719, %v1128
    %v1225 = vsel %vm1033, %v830, %v1129
    %v1226 = vsel %vm1034, %v832, %v1130
    %v1227 = vsel %vm1035, %v943, %v1131
    %v1228 = vsel %vm1036, %v945, %v1132
    %v1229 = vsel %vm1037, %v721, %v1133
    %v1230 = vsel %vm1038, %v723, %v1134
    %v1231 = vsel %vm1039, %v834, %v1135
    %v1232 = vsel %vm1040, %v836, %v1136
    %v1233 = vsel %vm1041, %v947, %v1137
    %v1234 = vsel %vm1042, %v949, %v1138
    %v1235 = vsel %vm1043, %v727, %v1139
    %v1236 = vsel %vm1044, %v729, %v1140
    %v1237 = vsel %vm1045, %v840, %v1141
    %v1238 = vsel %vm1046, %v842, %v1142
    %v1239 = vsel %vm1047, %v953, %v1143
    %v1240 = vsel %vm1048, %v955, %v1144
    %v1241 = vsel %vm1049, %v731, %v1145
    %v1242 = vsel %vm1050, %v733, %v1146
    %v1243 = vsel %vm1051, %v844, %v1147
    %v1244 = vsel %vm1052, %v846, %v1148
    %v1245 = vsel %vm1053, %v957, %v1149
    %v1246 = vsel %vm1054, %v959, %v1150
    %v1247 = vsel %vm1055, %v737, %v1151
    %v1248 = vsel %vm1056, %v739, %v1152
    %v1249 = vsel %vm1057, %v850, %v1153
    %v1250 = vsel %vm1058, %v852, %v1154
    %v1251 = vsel %vm1059, %v963, %v1155
    %v1252 = vsel %vm1060, %v965, %v1156
    %v1253 = vsel %vm1061, %v741, %v1157
    %v1254 = vsel %vm1062, %v743, %v1158
    %v1255 = vsel %vm1063, %v854, %v1159
    %v1256 = vsel %vm1064, %v856, %v1160
    %v1257 = vsel %vm1065, %v967, %v1161
    %v1258 = vsel %vm1066, %v969, %v1162
    %v1259 = vpack.c.bf16 %v1169, %v1163
    %v1260 = vpack.c.bf16 %v1170, %v1164
    %v1261 = vpack.c.bf16 %v1171, %v1165
    %v1262 = vpack.c.bf16 %v1172, %v1166
    %v1263 = vpack.c.bf16 %v1173, %v1167
    %v1264 = vpack.c.bf16 %v1174, %v1168
    %v1265 = vpack.c.bf16 %v1181, %v1175
    %v1266 = vpack.c.bf16 %v1182, %v1176
    %v1267 = vpack.c.bf16 %v1183, %v1177
    %v1268 = vpack.c.bf16 %v1184, %v1178
    %v1269 = vpack.c.bf16 %v1185, %v1179
    %v1270 = vpack.c.bf16 %v1186, %v1180
    %v1271 = vpack.c.bf16 %v1193, %v1187
    %v1272 = vpack.c.bf16 %v1194, %v1188
    %v1273 = vpack.c.bf16 %v1195, %v1189
    %v1274 = vpack.c.bf16 %v1196, %v1190
    %v1275 = vpack.c.bf16 %v1197, %v1191
    %v1276 = vpack.c.bf16 %v1198, %v1192
    %v1277 = vpack.c.bf16 %v1205, %v1199
    %v1278 = vpack.c.bf16 %v1206, %v1200
    %v1279 = vpack.c.bf16 %v1207, %v1201
    %v1280 = vpack.c.bf16 %v1208, %v1202
    %v1281 = vpack.c.bf16 %v1209, %v1203
    %v1282 = vpack.c.bf16 %v1210, %v1204
    %v1283 = vpack.c.bf16 %v1217, %v1211
    %v1284 = vpack.c.bf16 %v1218, %v1212
    %v1285 = vpack.c.bf16 %v1219, %v1213
    %v1286 = vpack.c.bf16 %v1220, %v1214
    %v1287 = vpack.c.bf16 %v1221, %v1215
    %v1288 = vpack.c.bf16 %v1222, %v1216
    %v1289 = vpack.c.bf16 %v1229, %v1223
    %v1290 = vpack.c.bf16 %v1230, %v1224
    %v1291 = vpack.c.bf16 %v1231, %v1225
    %v1292 = vpack.c.bf16 %v1232, %v1226
    %v1293 = vpack.c.bf16 %v1233, %v1227
    %v1294 = vpack.c.bf16 %v1234, %v1228
    %v1295 = vpack.c.bf16 %v1241, %v1235
    %v1296 = vpack.c.bf16 %v1242, %v1236
    %v1297 = vpack.c.bf16 %v1243, %v1237
    %v1298 = vpack.c.bf16 %v1244, %v1238
    %v1299 = vpack.c.bf16 %v1245, %v1239
    %v1300 = vpack.c.bf16 %v1246, %v1240
    %v1301 = vpack.c.bf16 %v1253, %v1247
    %v1302 = vpack.c.bf16 %v1254, %v1248
    %v1303 = vpack.c.bf16 %v1255, %v1249
    %v1304 = vpack.c.bf16 %v1256, %v1250
    %v1305 = vpack.c.bf16 %v1257, %v1251
    %v1306 = vpack.c.bf16 %v1258, %v1252
    %v1307 = vld [vmem:[%s3] sm:$0xff]
    %v1308 = vld [vmem:[%s3 + $0x8] sm:$0xff]
    %v1309 = vld [vmem:[%s3 + $0x10] sm:$0xff]
    %v1310 = vld [vmem:[%s3 + $0x18] sm:$0xff]
    %v1311 = vld [vmem:[%s3 + $0x20] sm:$0xff]
    %v1312 = vld [vmem:[%s3 + $0x28] sm:$0xff]
    %v1313 = vld [vmem:[%s3 + $0x30] sm:$0xff]
    %v1314 = vld [vmem:[%s3 + $0x38] sm:$0xff]
    %v1315 = vld [vmem:[%s3 + $0x40] sm:$0xff]
    %v1316 = vld [vmem:[%s3 + $0x48] sm:$0xff]
    %v1317 = vld [vmem:[%s3 + $0x50] sm:$0xff]
    %v1318 = vld [vmem:[%s3 + $0x58] sm:$0xff]
    %v1319 = vld [vmem:[%s3 + $0x60] sm:$0xff]
    %v1320 = vld [vmem:[%s3 + $0x68] sm:$0xff]
    %v1321 = vld [vmem:[%s3 + $0x70] sm:$0xff]
    %v1322 = vld [vmem:[%s3 + $0x78] sm:$0xff]
    %v1323 = vld [vmem:[%s3 + $0x80] sm:$0xff]
    %v1324 = vld [vmem:[%s3 + $0x88] sm:$0xff]
    %v1325 = vld [vmem:[%s3 + $0x90] sm:$0xff]
    %v1326 = vld [vmem:[%s3 + $0x98] sm:$0xff]
    %v1327 = vld [vmem:[%s3 + $0xa0] sm:$0xff]
    %v1328 = vld [vmem:[%s3 + $0xa8] sm:$0xff]
    %v1329 = vld [vmem:[%s3 + $0xb0] sm:$0xff]
    %v1330 = vld [vmem:[%s3 + $0xb8] sm:$0xff]
    %v1331 = vld [vmem:[%s3 + $0xc0] sm:$0xff]
    %v1332 = vld [vmem:[%s3 + $0xc8] sm:$0xff]
    %v1333 = vld [vmem:[%s3 + $0xd0] sm:$0xff]
    %v1334 = vld [vmem:[%s3 + $0xd8] sm:$0xff]
    %v1335 = vld [vmem:[%s3 + $0xe0] sm:$0xff]
    %v1336 = vld [vmem:[%s3 + $0xe8] sm:$0xff]
    %v1337 = vld [vmem:[%s3 + $0xf0] sm:$0xff]
    %v1338 = vld [vmem:[%s3 + $0xf8] sm:$0xff]
    %v1339 = vld [vmem:[%s3 + $0x100] sm:$0xff]
    %v1340 = vld [vmem:[%s3 + $0x108] sm:$0xff]
    %v1341 = vld [vmem:[%s3 + $0x110] sm:$0xff]
    %v1342 = vld [vmem:[%s3 + $0x118] sm:$0xff]
    %v1343 = vld [vmem:[%s3 + $0x120] sm:$0xff]
    %v1344 = vld [vmem:[%s3 + $0x128] sm:$0xff]
    %v1345 = vld [vmem:[%s3 + $0x130] sm:$0xff]
    %v1346 = vld [vmem:[%s3 + $0x138] sm:$0xff]
    %v1347 = vld [vmem:[%s3 + $0x140] sm:$0xff]
    %v1348 = vld [vmem:[%s3 + $0x148] sm:$0xff]
    %v1349 = vld [vmem:[%s3 + $0x150] sm:$0xff]
    %v1350 = vld [vmem:[%s3 + $0x158] sm:$0xff]
    %v1351 = vld [vmem:[%s3 + $0x160] sm:$0xff]
    %v1352 = vld [vmem:[%s3 + $0x168] sm:$0xff]
    %v1353 = vld [vmem:[%s3 + $0x170] sm:$0xff]
    %v1354 = vld [vmem:[%s3 + $0x178] sm:$0xff]
    %v1355 = vld [vmem:[%s3 + $0x180] sm:$0xff]
    %v1356 = vld [vmem:[%s3 + $0x188] sm:$0xff]
    %v1357 = vld [vmem:[%s3 + $0x190] sm:$0xff]
    %v1358 = vld [vmem:[%s3 + $0x198] sm:$0xff]
    %v1359 = vld [vmem:[%s3 + $0x1a0] sm:$0xff]
    %v1360 = vld [vmem:[%s3 + $0x1a8] sm:$0xff]
    %v1361 = vld [vmem:[%s3 + $0x1b0] sm:$0xff]
    %v1362 = vld [vmem:[%s3 + $0x1b8] sm:$0xff]
    %v1363 = vld [vmem:[%s3 + $0x1c0] sm:$0xff]
    %v1364 = vld [vmem:[%s3 + $0x1c8] sm:$0xff]
    %v1365 = vld [vmem:[%s3 + $0x1d0] sm:$0xff]
    %v1366 = vld [vmem:[%s3 + $0x1d8] sm:$0xff]
    %v1367 = vld [vmem:[%s3 + $0x1e0] sm:$0xff]
    %v1368 = vld [vmem:[%s3 + $0x1e8] sm:$0xff]
    %v1369 = vld [vmem:[%s3 + $0x1f0] sm:$0xff]
    %v1370 = vld [vmem:[%s3 + $0x1f8] sm:$0xff]
    %v1371 = vld [vmem:[%s3 + $0x200] sm:$0xff]
    %v1372 = vld [vmem:[%s3 + $0x208] sm:$0xff]
    %v1373 = vld [vmem:[%s3 + $0x210] sm:$0xff]
    %v1374 = vld [vmem:[%s3 + $0x218] sm:$0xff]
    %v1375 = vld [vmem:[%s3 + $0x220] sm:$0xff]
    %v1376 = vld [vmem:[%s3 + $0x228] sm:$0xff]
    %v1377 = vld [vmem:[%s3 + $0x230] sm:$0xff]
    %v1378 = vld [vmem:[%s3 + $0x238] sm:$0xff]
    %v1379 = vld [vmem:[%s3 + $0x240] sm:$0xff]
    %v1380 = vld [vmem:[%s3 + $0x248] sm:$0xff]
    %v1381 = vld [vmem:[%s3 + $0x250] sm:$0xff]
    %v1382 = vld [vmem:[%s3 + $0x258] sm:$0xff]
    %v1383 = vld [vmem:[%s3 + $0x260] sm:$0xff]
    %v1384 = vld [vmem:[%s3 + $0x268] sm:$0xff]
    %v1385 = vld [vmem:[%s3 + $0x270] sm:$0xff]
    %v1386 = vld [vmem:[%s3 + $0x278] sm:$0xff]
    %v1387 = vld [vmem:[%s3 + $0x280] sm:$0xff]
    %v1388 = vld [vmem:[%s3 + $0x288] sm:$0xff]
    %v1389 = vld [vmem:[%s3 + $0x290] sm:$0xff]
    %v1390 = vld [vmem:[%s3 + $0x298] sm:$0xff]
    %v1391 = vld [vmem:[%s3 + $0x2a0] sm:$0xff]
    %v1392 = vld [vmem:[%s3 + $0x2a8] sm:$0xff]
    %v1393 = vld [vmem:[%s3 + $0x2b0] sm:$0xff]
    %v1394 = vld [vmem:[%s3 + $0x2b8] sm:$0xff]
    %v1395 = vld [vmem:[%s3 + $0x2c0] sm:$0xff]
    %v1396 = vld [vmem:[%s3 + $0x2c8] sm:$0xff]
    %v1397 = vld [vmem:[%s3 + $0x2d0] sm:$0xff]
    %v1398 = vld [vmem:[%s3 + $0x2d8] sm:$0xff]
    %v1399 = vld [vmem:[%s3 + $0x2e0] sm:$0xff]
    %v1400 = vld [vmem:[%s3 + $0x2e8] sm:$0xff]
    %v1401 = vld [vmem:[%s3 + $0x2f0] sm:$0xff]
    %v1402 = vld [vmem:[%s3 + $0x2f8] sm:$0xff]
    %v1403 = vld [vmem:[%s4] sm:$0x3]
    %v1404 = vunpack.c.l.bf16 %v1403
    %v1406 = vlaneseq
    %v1407 = vshrl.u32 %v1406, 7
    %v1408 = vsub.s32 0, %v1407
    %v1409 = vrot.slane %v1404, %v1408
    %v1410 = vlaneseq
    %v1411 = vshrl.u32 %v1410, 7
    %v1412 = vsub.s32 2, %v1411
    %v1413 = vrot.slane %v1404, %v1412
    %v1416 = vlaneseq
    %v1417 = vshrl.u32 %v1416, 7
    %v1418 = vsub.s32 0, %v1417
    %v1419 = vrot.slane %v1409, %v1418
    %v1420 = vlaneseq
    %v1421 = vshrl.u32 %v1420, 7
    %v1422 = vsub.s32 0, %v1421
    %v1423 = vrot.slane %v1413, %v1422
    %v1520 = vunpack.c.l.b16 %v1307
    %v1521 = vunpack.c.h.b16 %v1307
    %v1522 = vunpack.c.l.b16 %v1308
    %v1523 = vunpack.c.h.b16 %v1308
    %v1524 = vunpack.c.l.b16 %v1309
    %v1525 = vunpack.c.h.b16 %v1309
    %v1526 = vunpack.c.l.b16 %v1310
    %v1527 = vunpack.c.h.b16 %v1310
    %v1528 = vunpack.c.l.b16 %v1311
    %v1529 = vunpack.c.h.b16 %v1311
    %v1530 = vunpack.c.l.b16 %v1312
    %v1531 = vunpack.c.h.b16 %v1312
    %v1532 = vunpack.c.l.b16 %v1313
    %v1533 = vunpack.c.h.b16 %v1313
    %v1534 = vunpack.c.l.b16 %v1314
    %v1535 = vunpack.c.h.b16 %v1314
    %v1536 = vunpack.c.l.b16 %v1315
    %v1537 = vunpack.c.h.b16 %v1315
    %v1538 = vunpack.c.l.b16 %v1316
    %v1539 = vunpack.c.h.b16 %v1316
    %v1540 = vunpack.c.l.b16 %v1317
    %v1541 = vunpack.c.h.b16 %v1317
    %v1542 = vunpack.c.l.b16 %v1318
    %v1543 = vunpack.c.h.b16 %v1318
    %v1544 = vunpack.c.l.b16 %v1319
    %v1545 = vunpack.c.h.b16 %v1319
    %v1546 = vunpack.c.l.b16 %v1320
    %v1547 = vunpack.c.h.b16 %v1320
    %v1548 = vunpack.c.l.b16 %v1321
    %v1549 = vunpack.c.h.b16 %v1321
    %v1550 = vunpack.c.l.b16 %v1322
    %v1551 = vunpack.c.h.b16 %v1322
    %v1552 = vunpack.c.l.b16 %v1323
    %v1553 = vunpack.c.h.b16 %v1323
    %v1554 = vunpack.c.l.b16 %v1324
    %v1555 = vunpack.c.h.b16 %v1324
    %v1556 = vunpack.c.l.b16 %v1325
    %v1557 = vunpack.c.h.b16 %v1325
    %v1558 = vunpack.c.l.b16 %v1326
    %v1559 = vunpack.c.h.b16 %v1326
    %v1560 = vunpack.c.l.b16 %v1327
    %v1561 = vunpack.c.h.b16 %v1327
    %v1562 = vunpack.c.l.b16 %v1328
    %v1563 = vunpack.c.h.b16 %v1328
    %v1564 = vunpack.c.l.b16 %v1329
    %v1565 = vunpack.c.h.b16 %v1329
    %v1566 = vunpack.c.l.b16 %v1330
    %v1567 = vunpack.c.h.b16 %v1330
    %v1568 = vunpack.c.l.b16 %v1331
    %v1569 = vunpack.c.h.b16 %v1331
    %v1570 = vunpack.c.l.b16 %v1332
    %v1571 = vunpack.c.h.b16 %v1332
    %v1572 = vunpack.c.l.b16 %v1333
    %v1573 = vunpack.c.h.b16 %v1333
    %v1574 = vunpack.c.l.b16 %v1334
    %v1575 = vunpack.c.h.b16 %v1334
    %v1576 = vunpack.c.l.b16 %v1335
    %v1577 = vunpack.c.h.b16 %v1335
    %v1578 = vunpack.c.l.b16 %v1336
    %v1579 = vunpack.c.h.b16 %v1336
    %v1580 = vunpack.c.l.b16 %v1337
    %v1581 = vunpack.c.h.b16 %v1337
    %v1582 = vunpack.c.l.b16 %v1338
    %v1583 = vunpack.c.h.b16 %v1338
    %v1584 = vunpack.c.l.b16 %v1339
    %v1585 = vunpack.c.h.b16 %v1339
    %v1586 = vunpack.c.l.b16 %v1340
    %v1587 = vunpack.c.h.b16 %v1340
    %v1588 = vunpack.c.l.b16 %v1341
    %v1589 = vunpack.c.h.b16 %v1341
    %v1590 = vunpack.c.l.b16 %v1342
    %v1591 = vunpack.c.h.b16 %v1342
    %v1592 = vunpack.c.l.b16 %v1343
    %v1593 = vunpack.c.h.b16 %v1343
    %v1594 = vunpack.c.l.b16 %v1344
    %v1595 = vunpack.c.h.b16 %v1344
    %v1596 = vunpack.c.l.b16 %v1345
    %v1597 = vunpack.c.h.b16 %v1345
    %v1598 = vunpack.c.l.b16 %v1346
    %v1599 = vunpack.c.h.b16 %v1346
    %v1600 = vunpack.c.l.b16 %v1347
    %v1601 = vunpack.c.h.b16 %v1347
    %v1602 = vunpack.c.l.b16 %v1348
    %v1603 = vunpack.c.h.b16 %v1348
    %v1604 = vunpack.c.l.b16 %v1349
    %v1605 = vunpack.c.h.b16 %v1349
    %v1606 = vunpack.c.l.b16 %v1350
    %v1607 = vunpack.c.h.b16 %v1350
    %v1608 = vunpack.c.l.b16 %v1351
    %v1609 = vunpack.c.h.b16 %v1351
    %v1610 = vunpack.c.l.b16 %v1352
    %v1611 = vunpack.c.h.b16 %v1352
    %v1612 = vunpack.c.l.b16 %v1353
    %v1613 = vunpack.c.h.b16 %v1353
    %v1614 = vunpack.c.l.b16 %v1354
    %v1615 = vunpack.c.h.b16 %v1354
    %v1616 = vunpack.c.l.b16 %v1355
    %v1617 = vunpack.c.h.b16 %v1355
    %v1618 = vunpack.c.l.b16 %v1356
    %v1619 = vunpack.c.h.b16 %v1356
    %v1620 = vunpack.c.l.b16 %v1357
    %v1621 = vunpack.c.h.b16 %v1357
    %v1622 = vunpack.c.l.b16 %v1358
    %v1623 = vunpack.c.h.b16 %v1358
    %v1624 = vunpack.c.l.b16 %v1359
    %v1625 = vunpack.c.h.b16 %v1359
    %v1626 = vunpack.c.l.b16 %v1360
    %v1627 = vunpack.c.h.b16 %v1360
    %v1628 = vunpack.c.l.b16 %v1361
    %v1629 = vunpack.c.h.b16 %v1361
    %v1630 = vunpack.c.l.b16 %v1362
    %v1631 = vunpack.c.h.b16 %v1362
    %v1632 = vunpack.c.l.b16 %v1363
    %v1633 = vunpack.c.h.b16 %v1363
    %v1634 = vunpack.c.l.b16 %v1364
    %v1635 = vunpack.c.h.b16 %v1364
    %v1636 = vunpack.c.l.b16 %v1365
    %v1637 = vunpack.c.h.b16 %v1365
    %v1638 = vunpack.c.l.b16 %v1366
    %v1639 = vunpack.c.h.b16 %v1366
    %v1640 = vunpack.c.l.b16 %v1367
    %v1641 = vunpack.c.h.b16 %v1367
    %v1642 = vunpack.c.l.b16 %v1368
    %v1643 = vunpack.c.h.b16 %v1368
    %v1644 = vunpack.c.l.b16 %v1369
    %v1645 = vunpack.c.h.b16 %v1369
    %v1646 = vunpack.c.l.b16 %v1370
    %v1647 = vunpack.c.h.b16 %v1370
    %v1648 = vunpack.c.l.b16 %v1371
    %v1649 = vunpack.c.h.b16 %v1371
    %v1650 = vunpack.c.l.b16 %v1372
    %v1651 = vunpack.c.h.b16 %v1372
    %v1652 = vunpack.c.l.b16 %v1373
    %v1653 = vunpack.c.h.b16 %v1373
    %v1654 = vunpack.c.l.b16 %v1374
    %v1655 = vunpack.c.h.b16 %v1374
    %v1656 = vunpack.c.l.b16 %v1375
    %v1657 = vunpack.c.h.b16 %v1375
    %v1658 = vunpack.c.l.b16 %v1376
    %v1659 = vunpack.c.h.b16 %v1376
    %v1660 = vunpack.c.l.b16 %v1377
    %v1661 = vunpack.c.h.b16 %v1377
    %v1662 = vunpack.c.l.b16 %v1378
    %v1663 = vunpack.c.h.b16 %v1378
    %v1664 = vunpack.c.l.b16 %v1379
    %v1665 = vunpack.c.h.b16 %v1379
    %v1666 = vunpack.c.l.b16 %v1380
    %v1667 = vunpack.c.h.b16 %v1380
    %v1668 = vunpack.c.l.b16 %v1381
    %v1669 = vunpack.c.h.b16 %v1381
    %v1670 = vunpack.c.l.b16 %v1382
    %v1671 = vunpack.c.h.b16 %v1382
    %v1672 = vunpack.c.l.b16 %v1383
    %v1673 = vunpack.c.h.b16 %v1383
    %v1674 = vunpack.c.l.b16 %v1384
    %v1675 = vunpack.c.h.b16 %v1384
    %v1676 = vunpack.c.l.b16 %v1385
    %v1677 = vunpack.c.h.b16 %v1385
    %v1678 = vunpack.c.l.b16 %v1386
    %v1679 = vunpack.c.h.b16 %v1386
    %v1680 = vunpack.c.l.b16 %v1387
    %v1681 = vunpack.c.h.b16 %v1387
    %v1682 = vunpack.c.l.b16 %v1388
    %v1683 = vunpack.c.h.b16 %v1388
    %v1684 = vunpack.c.l.b16 %v1389
    %v1685 = vunpack.c.h.b16 %v1389
    %v1686 = vunpack.c.l.b16 %v1390
    %v1687 = vunpack.c.h.b16 %v1390
    %v1688 = vunpack.c.l.b16 %v1391
    %v1689 = vunpack.c.h.b16 %v1391
    %v1690 = vunpack.c.l.b16 %v1392
    %v1691 = vunpack.c.h.b16 %v1392
    %v1692 = vunpack.c.l.b16 %v1393
    %v1693 = vunpack.c.h.b16 %v1393
    %v1694 = vunpack.c.l.b16 %v1394
    %v1695 = vunpack.c.h.b16 %v1394
    %v1696 = vunpack.c.l.b16 %v1395
    %v1697 = vunpack.c.h.b16 %v1395
    %v1698 = vunpack.c.l.b16 %v1396
    %v1699 = vunpack.c.h.b16 %v1396
    %v1700 = vunpack.c.l.b16 %v1397
    %v1701 = vunpack.c.h.b16 %v1397
    %v1702 = vunpack.c.l.b16 %v1398
    %v1703 = vunpack.c.h.b16 %v1398
    %v1704 = vunpack.c.l.b16 %v1399
    %v1705 = vunpack.c.h.b16 %v1399
    %v1706 = vunpack.c.l.b16 %v1400
    %v1707 = vunpack.c.h.b16 %v1400
    %v1708 = vunpack.c.l.b16 %v1401
    %v1709 = vunpack.c.h.b16 %v1401
    %v1710 = vunpack.c.l.b16 %v1402
    %v1711 = vunpack.c.h.b16 %v1402
    %v1712 = vpack.c.b16 %v1522, %v1520
    %v1713 = vpack.c.b16 %v1523, %v1521
    %v1714 = vpack.c.b16 %v1526, %v1524
    %v1715 = vpack.c.b16 %v1527, %v1525
    %v1716 = vpack.c.b16 %v1530, %v1528
    %v1717 = vpack.c.b16 %v1531, %v1529
    %v1718 = vpack.c.b16 %v1534, %v1532
    %v1719 = vpack.c.b16 %v1535, %v1533
    %v1720 = vpack.c.b16 %v1538, %v1536
    %v1721 = vpack.c.b16 %v1539, %v1537
    %v1722 = vpack.c.b16 %v1542, %v1540
    %v1723 = vpack.c.b16 %v1543, %v1541
    %v1724 = vpack.c.b16 %v1546, %v1544
    %v1725 = vpack.c.b16 %v1547, %v1545
    %v1726 = vpack.c.b16 %v1550, %v1548
    %v1727 = vpack.c.b16 %v1551, %v1549
    %v1728 = vpack.c.b16 %v1554, %v1552
    %v1729 = vpack.c.b16 %v1555, %v1553
    %v1730 = vpack.c.b16 %v1558, %v1556
    %v1731 = vpack.c.b16 %v1559, %v1557
    %v1732 = vpack.c.b16 %v1562, %v1560
    %v1733 = vpack.c.b16 %v1563, %v1561
    %v1734 = vpack.c.b16 %v1566, %v1564
    %v1735 = vpack.c.b16 %v1567, %v1565
    %v1736 = vpack.c.b16 %v1570, %v1568
    %v1737 = vpack.c.b16 %v1571, %v1569
    %v1738 = vpack.c.b16 %v1574, %v1572
    %v1739 = vpack.c.b16 %v1575, %v1573
    %v1740 = vpack.c.b16 %v1578, %v1576
    %v1741 = vpack.c.b16 %v1579, %v1577
    %v1742 = vpack.c.b16 %v1582, %v1580
    %v1743 = vpack.c.b16 %v1583, %v1581
    %v1744 = vpack.c.b16 %v1586, %v1584
    %v1745 = vpack.c.b16 %v1587, %v1585
    %v1746 = vpack.c.b16 %v1590, %v1588
    %v1747 = vpack.c.b16 %v1591, %v1589
    %v1748 = vpack.c.b16 %v1594, %v1592
    %v1749 = vpack.c.b16 %v1595, %v1593
    %v1750 = vpack.c.b16 %v1598, %v1596
    %v1751 = vpack.c.b16 %v1599, %v1597
    %v1752 = vpack.c.b16 %v1602, %v1600
    %v1753 = vpack.c.b16 %v1603, %v1601
    %v1754 = vpack.c.b16 %v1606, %v1604
    %v1755 = vpack.c.b16 %v1607, %v1605
    %v1756 = vpack.c.b16 %v1610, %v1608
    %v1757 = vpack.c.b16 %v1611, %v1609
    %v1758 = vpack.c.b16 %v1614, %v1612
    %v1759 = vpack.c.b16 %v1615, %v1613
    %v1760 = vpack.c.b16 %v1618, %v1616
    %v1761 = vpack.c.b16 %v1619, %v1617
    %v1762 = vpack.c.b16 %v1622, %v1620
    %v1763 = vpack.c.b16 %v1623, %v1621
    %v1764 = vpack.c.b16 %v1626, %v1624
    %v1765 = vpack.c.b16 %v1627, %v1625
    %v1766 = vpack.c.b16 %v1630, %v1628
    %v1767 = vpack.c.b16 %v1631, %v1629
    %v1768 = vpack.c.b16 %v1634, %v1632
    %v1769 = vpack.c.b16 %v1635, %v1633
    %v1770 = vpack.c.b16 %v1638, %v1636
    %v1771 = vpack.c.b16 %v1639, %v1637
    %v1772 = vpack.c.b16 %v1642, %v1640
    %v1773 = vpack.c.b16 %v1643, %v1641
    %v1774 = vpack.c.b16 %v1646, %v1644
    %v1775 = vpack.c.b16 %v1647, %v1645
    %v1776 = vpack.c.b16 %v1650, %v1648
    %v1777 = vpack.c.b16 %v1651, %v1649
    %v1778 = vpack.c.b16 %v1654, %v1652
    %v1779 = vpack.c.b16 %v1655, %v1653
    %v1780 = vpack.c.b16 %v1658, %v1656
    %v1781 = vpack.c.b16 %v1659, %v1657
    %v1782 = vpack.c.b16 %v1662, %v1660
    %v1783 = vpack.c.b16 %v1663, %v1661
    %v1784 = vpack.c.b16 %v1666, %v1664
    %v1785 = vpack.c.b16 %v1667, %v1665
    %v1786 = vpack.c.b16 %v1670, %v1668
    %v1787 = vpack.c.b16 %v1671, %v1669
    %v1788 = vpack.c.b16 %v1674, %v1672
    %v1789 = vpack.c.b16 %v1675, %v1673
    %v1790 = vpack.c.b16 %v1678, %v1676
    %v1791 = vpack.c.b16 %v1679, %v1677
    %v1792 = vpack.c.b16 %v1682, %v1680
    %v1793 = vpack.c.b16 %v1683, %v1681
    %v1794 = vpack.c.b16 %v1686, %v1684
    %v1795 = vpack.c.b16 %v1687, %v1685
    %v1796 = vpack.c.b16 %v1690, %v1688
    %v1797 = vpack.c.b16 %v1691, %v1689
    %v1798 = vpack.c.b16 %v1694, %v1692
    %v1799 = vpack.c.b16 %v1695, %v1693
    %v1800 = vpack.c.b16 %v1698, %v1696
    %v1801 = vpack.c.b16 %v1699, %v1697
    %v1802 = vpack.c.b16 %v1702, %v1700
    %v1803 = vpack.c.b16 %v1703, %v1701
    %v1804 = vpack.c.b16 %v1706, %v1704
    %v1805 = vpack.c.b16 %v1707, %v1705
    %v1806 = vpack.c.b16 %v1710, %v1708
    %v1807 = vpack.c.b16 %v1711, %v1709
    %1904 = vmatprep.subr.bf16.mxu0 %v1713
    %1905 = vmatpush1.bf16.msra.mxu0 %v1712
    %1906 = vmatprep.subr.bf16.mxu0 %v1715
    %1907 = vmatpush1.bf16.msra.mxu0 %v1714
    %1908 = vmatprep.subr.bf16.mxu0 %v1717
    %1909 = vmatpush1.bf16.msra.mxu0 %v1716
    %1910 = vmatprep.subr.bf16.mxu0 %v1719
    %1911 = vmatpush1.bf16.msra.mxu0 %v1718
    %1912 = vmatprep.subr.bf16.mxu0 %v1721
    %1913 = vmatpush1.bf16.msra.mxu0 %v1720
    %1914 = vmatprep.subr.bf16.mxu0 %v1723
    %1915 = vmatpush1.bf16.msra.mxu0 %v1722
    %1916 = vmatprep.subr.bf16.mxu0 %v1725
    %1917 = vmatpush1.bf16.msra.mxu0 %v1724
    %1918 = vmatprep.subr.bf16.mxu0 %v1727
    %1919 = vmatpush1.bf16.msra.mxu0 %v1726
    %1920 = vmatprep.subr.bf16.mxu0 %v1729
    %1921 = vmatpush1.bf16.msra.mxu0 %v1728
    %1922 = vmatprep.subr.bf16.mxu0 %v1731
    %1923 = vmatpush1.bf16.msra.mxu0 %v1730
    %1924 = vmatprep.subr.bf16.mxu0 %v1733
    %1925 = vmatpush1.bf16.msra.mxu0 %v1732
    %1926 = vmatprep.subr.bf16.mxu0 %v1735
    %1927 = vmatpush1.bf16.msra.mxu0 %v1734
    %1928 = vmatprep.subr.bf16.mxu0 %v1737
    %1929 = vmatpush1.bf16.msra.mxu0 %v1736
    %1930 = vmatprep.subr.bf16.mxu0 %v1739
    %1931 = vmatpush1.bf16.msra.mxu0 %v1738
    %1932 = vmatprep.subr.bf16.mxu0 %v1741
    %1933 = vmatpush1.bf16.msra.mxu0 %v1740
    %1934 = vmatprep.subr.bf16.mxu0 %v1743
    %1935 = vmatpush1.bf16.msra.mxu0 %v1742
    %1936 = vmatprep.mubr.bf16.mxu0 %v1260
    %1937 = vmatmul.mubr.bf16.gmra.mrb[0].mxu0 %v1259
    %v1938 = vpop.f32.mrb[0].mxu0
    %v1939 = vadd.f32 %v1419, %v1938
    %v1940 = vpop.f32.mrb[0].mxu0
    %v1941 = vadd.f32 %v1423, %v1940
    %v1942 = vpop.f32.mrb[0].mxu0
    %v1943 = vadd.f32 %v1419, %v1942
    %v1944 = vpop.f32.mrb[0].mxu0
    %v1945 = vadd.f32 %v1423, %v1944
    %1946 = vmatprep.mubr.bf16.mxu0 %v1266
    %1947 = vmatmul.mubr.bf16.gmra.mrb[0].mxu0 %v1265
    %v1948 = vpop.f32.mrb[0].mxu0
    %v1949 = vadd.f32 %v1419, %v1948
    %v1950 = vpop.f32.mrb[0].mxu0
    %v1951 = vadd.f32 %v1423, %v1950
    %v1952 = vpop.f32.mrb[0].mxu0
    %v1953 = vadd.f32 %v1419, %v1952
    %v1954 = vpop.f32.mrb[0].mxu0
    %v1955 = vadd.f32 %v1423, %v1954
    %1956 = vmatprep.mubr.bf16.mxu0 %v1272
    %1957 = vmatmul.mubr.bf16.gmra.mrb[0].mxu0 %v1271
    %v1958 = vpop.f32.mrb[0].mxu0
    %v1959 = vadd.f32 %v1419, %v1958
    %v1960 = vpop.f32.mrb[0].mxu0
    %v1961 = vadd.f32 %v1423, %v1960
    %v1962 = vpop.f32.mrb[0].mxu0
    %v1963 = vadd.f32 %v1419, %v1962
    %v1964 = vpop.f32.mrb[0].mxu0
    %v1965 = vadd.f32 %v1423, %v1964
    %1966 = vmatprep.mubr.bf16.mxu0 %v1278
    %1967 = vmatmul.mubr.bf16.gmra.mrb[0].mxu0 %v1277
    %v1968 = vpop.f32.mrb[0].mxu0
    %v1969 = vadd.f32 %v1419, %v1968
    %v1970 = vpop.f32.mrb[0].mxu0
    %v1971 = vadd.f32 %v1423, %v1970
    %v1972 = vpop.f32.mrb[0].mxu0
    %v1973 = vadd.f32 %v1419, %v1972
    %v1974 = vpop.f32.mrb[0].mxu0
    %v1975 = vadd.f32 %v1423, %v1974
    %1976 = vmatprep.mubr.bf16.mxu0 %v1284
    %1977 = vmatmul.mubr.bf16.gmra.mrb[0].mxu0 %v1283
    %v1978 = vpop.f32.mrb[0].mxu0
    %v1979 = vadd.f32 %v1419, %v1978
    %v1980 = vpop.f32.mrb[0].mxu0
    %v1981 = vadd.f32 %v1423, %v1980
    %v1982 = vpop.f32.mrb[0].mxu0
    %v1983 = vadd.f32 %v1419, %v1982
    %v1984 = vpop.f32.mrb[0].mxu0
    %v1985 = vadd.f32 %v1423, %v1984
    %1986 = vmatprep.mubr.bf16.mxu0 %v1290
    %1987 = vmatmul.mubr.bf16.gmra.mrb[0].mxu0 %v1289
    %v1988 = vpop.f32.mrb[0].mxu0
    %v1989 = vadd.f32 %v1419, %v1988
    %v1990 = vpop.f32.mrb[0].mxu0
    %v1991 = vadd.f32 %v1423, %v1990
    %v1992 = vpop.f32.mrb[0].mxu0
    %v1993 = vadd.f32 %v1419, %v1992
    %v1994 = vpop.f32.mrb[0].mxu0
    %v1995 = vadd.f32 %v1423, %v1994
    %1996 = vmatprep.mubr.bf16.mxu0 %v1296
    %1997 = vmatmul.mubr.bf16.gmra.mrb[0].mxu0 %v1295
    %v1998 = vpop.f32.mrb[0].mxu0
    %v1999 = vadd.f32 %v1419, %v1998
    %v2000 = vpop.f32.mrb[0].mxu0
    %v2001 = vadd.f32 %v1423, %v2000
    %v2002 = vpop.f32.mrb[0].mxu0
    %v2003 = vadd.f32 %v1419, %v2002
    %v2004 = vpop.f32.mrb[0].mxu0
    %v2005 = vadd.f32 %v1423, %v2004
    %2006 = vmatprep.mubr.bf16.mxu0 %v1302
    %2007 = vmatmul.mubr.bf16.gmra.mrb[0].mxu0 %v1301
    %v2008 = vpop.f32.mrb[0].mxu0
    %v2009 = vadd.f32 %v1419, %v2008
    %v2010 = vpop.f32.mrb[0].mxu0
    %v2011 = vadd.f32 %v1423, %v2010
    %v2012 = vpop.f32.mrb[0].mxu0
    %v2013 = vadd.f32 %v1419, %v2012
    %v2014 = vpop.f32.mrb[0].mxu0
    %v2015 = vadd.f32 %v1423, %v2014
    %2016 = vdwg.mxu0
    %2017 = vmatprep.subr.bf16.mxu0 %v1745
    %2018 = vmatpush1.bf16.msra.mxu0 %v1744
    %2019 = vmatprep.subr.bf16.mxu0 %v1747
    %2020 = vmatpush1.bf16.msra.mxu0 %v1746
    %2021 = vmatprep.subr.bf16.mxu0 %v1749
    %2022 = vmatpush1.bf16.msra.mxu0 %v1748
    %2023 = vmatprep.subr.bf16.mxu0 %v1751
    %2024 = vmatpush1.bf16.msra.mxu0 %v1750
    %2025 = vmatprep.subr.bf16.mxu0 %v1753
    %2026 = vmatpush1.bf16.msra.mxu0 %v1752
    %2027 = vmatprep.subr.bf16.mxu0 %v1755
    %2028 = vmatpush1.bf16.msra.mxu0 %v1754
    %2029 = vmatprep.subr.bf16.mxu0 %v1757
    %2030 = vmatpush1.bf16.msra.mxu0 %v1756
    %2031 = vmatprep.subr.bf16.mxu0 %v1759
    %2032 = vmatpush1.bf16.msra.mxu0 %v1758
    %2033 = vmatprep.subr.bf16.mxu0 %v1761
    %2034 = vmatpush1.bf16.msra.mxu0 %v1760
    %2035 = vmatprep.subr.bf16.mxu0 %v1763
    %2036 = vmatpush1.bf16.msra.mxu0 %v1762
    %2037 = vmatprep.subr.bf16.mxu0 %v1765
    %2038 = vmatpush1.bf16.msra.mxu0 %v1764
    %2039 = vmatprep.subr.bf16.mxu0 %v1767
    %2040 = vmatpush1.bf16.msra.mxu0 %v1766
    %2041 = vmatprep.subr.bf16.mxu0 %v1769
    %2042 = vmatpush1.bf16.msra.mxu0 %v1768
    %2043 = vmatprep.subr.bf16.mxu0 %v1771
    %2044 = vmatpush1.bf16.msra.mxu0 %v1770
    %2045 = vmatprep.subr.bf16.mxu0 %v1773
    %2046 = vmatpush1.bf16.msra.mxu0 %v1772
    %2047 = vmatprep.subr.bf16.mxu0 %v1775
    %2048 = vmatpush1.bf16.msra.mxu0 %v1774
    %2049 = vmatprep.mubr.bf16.mxu0 %v1262
    %2050 = vmatmul.mubr.bf16.gmra.mrb[0].mxu0 %v1261
    %v2051 = vpop.f32.mrb[0].mxu0
    %v2052 = vadd.f32 %v1939, %v2051
    %v2053 = vpop.f32.mrb[0].mxu0
    %v2054 = vadd.f32 %v1941, %v2053
    %v2055 = vpop.f32.mrb[0].mxu0
    %v2056 = vadd.f32 %v1943, %v2055
    %v2057 = vpop.f32.mrb[0].mxu0
    %v2058 = vadd.f32 %v1945, %v2057
    %2059 = vmatprep.mubr.bf16.mxu0 %v1268
    %2060 = vmatmul.mubr.bf16.gmra.mrb[0].mxu0 %v1267
    %v2061 = vpop.f32.mrb[0].mxu0
    %v2062 = vadd.f32 %v1949, %v2061
    %v2063 = vpop.f32.mrb[0].mxu0
    %v2064 = vadd.f32 %v1951, %v2063
    %v2065 = vpop.f32.mrb[0].mxu0
    %v2066 = vadd.f32 %v1953, %v2065
    %v2067 = vpop.f32.mrb[0].mxu0
    %v2068 = vadd.f32 %v1955, %v2067
    %2069 = vmatprep.mubr.bf16.mxu0 %v1274
    %2070 = vmatmul.mubr.bf16.gmra.mrb[0].mxu0 %v1273
    %v2071 = vpop.f32.mrb[0].mxu0
    %v2072 = vadd.f32 %v1959, %v2071
    %v2073 = vpop.f32.mrb[0].mxu0
    %v2074 = vadd.f32 %v1961, %v2073
    %v2075 = vpop.f32.mrb[0].mxu0
    %v2076 = vadd.f32 %v1963, %v2075
    %v2077 = vpop.f32.mrb[0].mxu0
    %v2078 = vadd.f32 %v1965, %v2077
    %2079 = vmatprep.mubr.bf16.mxu0 %v1280
    %2080 = vmatmul.mubr.bf16.gmra.mrb[0].mxu0 %v1279
    %v2081 = vpop.f32.mrb[0].mxu0
    %v2082 = vadd.f32 %v1969, %v2081
    %v2083 = vpop.f32.mrb[0].mxu0
    %v2084 = vadd.f32 %v1971, %v2083
    %v2085 = vpop.f32.mrb[0].mxu0
    %v2086 = vadd.f32 %v1973, %v2085
    %v2087 = vpop.f32.mrb[0].mxu0
    %v2088 = vadd.f32 %v1975, %v2087
    %2089 = vmatprep.mubr.bf16.mxu0 %v1286
    %2090 = vmatmul.mubr.bf16.gmra.mrb[0].mxu0 %v1285
    %v2091 = vpop.f32.mrb[0].mxu0
    %v2092 = vadd.f32 %v1979, %v2091
    %v2093 = vpop.f32.mrb[0].mxu0
    %v2094 = vadd.f32 %v1981, %v2093
    %v2095 = vpop.f32.mrb[0].mxu0
    %v2096 = vadd.f32 %v1983, %v2095
    %v2097 = vpop.f32.mrb[0].mxu0
    %v2098 = vadd.f32 %v1985, %v2097
    %2099 = vmatprep.mubr.bf16.mxu0 %v1292
    %2100 = vmatmul.mubr.bf16.gmra.mrb[0].mxu0 %v1291
    %v2101 = vpop.f32.mrb[0].mxu0
    %v2102 = vadd.f32 %v1989, %v2101
    %v2103 = vpop.f32.mrb[0].mxu0
    %v2104 = vadd.f32 %v1991, %v2103
    %v2105 = vpop.f32.mrb[0].mxu0
    %v2106 = vadd.f32 %v1993, %v2105
    %v2107 = vpop.f32.mrb[0].mxu0
    %v2108 = vadd.f32 %v1995, %v2107
    %2109 = vmatprep.mubr.bf16.mxu0 %v1298
    %2110 = vmatmul.mubr.bf16.gmra.mrb[0].mxu0 %v1297
    %v2111 = vpop.f32.mrb[0].mxu0
    %v2112 = vadd.f32 %v1999, %v2111
    %v2113 = vpop.f32.mrb[0].mxu0
    %v2114 = vadd.f32 %v2001, %v2113
    %v2115 = vpop.f32.mrb[0].mxu0
    %v2116 = vadd.f32 %v2003, %v2115
    %v2117 = vpop.f32.mrb[0].mxu0
    %v2118 = vadd.f32 %v2005, %v2117
    %2119 = vmatprep.mubr.bf16.mxu0 %v1304
    %2120 = vmatmul.mubr.bf16.gmra.mrb[0].mxu0 %v1303
    %v2121 = vpop.f32.mrb[0].mxu0
    %v2122 = vadd.f32 %v2009, %v2121
    %v2123 = vpop.f32.mrb[0].mxu0
    %v2124 = vadd.f32 %v2011, %v2123
    %v2125 = vpop.f32.mrb[0].mxu0
    %v2126 = vadd.f32 %v2013, %v2125
    %v2127 = vpop.f32.mrb[0].mxu0
    %v2128 = vadd.f32 %v2015, %v2127
    %2129 = vdwg.mxu0
    %2130 = vmatprep.subr.bf16.mxu0 %v1777
    %2131 = vmatpush1.bf16.msra.mxu0 %v1776
    %2132 = vmatprep.subr.bf16.mxu0 %v1779
    %2133 = vmatpush1.bf16.msra.mxu0 %v1778
    %2134 = vmatprep.subr.bf16.mxu0 %v1781
    %2135 = vmatpush1.bf16.msra.mxu0 %v1780
    %2136 = vmatprep.subr.bf16.mxu0 %v1783
    %2137 = vmatpush1.bf16.msra.mxu0 %v1782
    %2138 = vmatprep.subr.bf16.mxu0 %v1785
    %2139 = vmatpush1.bf16.msra.mxu0 %v1784
    %2140 = vmatprep.subr.bf16.mxu0 %v1787
    %2141 = vmatpush1.bf16.msra.mxu0 %v1786
    %2142 = vmatprep.subr.bf16.mxu0 %v1789
    %2143 = vmatpush1.bf16.msra.mxu0 %v1788
    %2144 = vmatprep.subr.bf16.mxu0 %v1791
    %2145 = vmatpush1.bf16.msra.mxu0 %v1790
    %2146 = vmatprep.subr.bf16.mxu0 %v1793
    %2147 = vmatpush1.bf16.msra.mxu0 %v1792
    %2148 = vmatprep.subr.bf16.mxu0 %v1795
    %2149 = vmatpush1.bf16.msra.mxu0 %v1794
    %2150 = vmatprep.subr.bf16.mxu0 %v1797
    %2151 = vmatpush1.bf16.msra.mxu0 %v1796
    %2152 = vmatprep.subr.bf16.mxu0 %v1799
    %2153 = vmatpush1.bf16.msra.mxu0 %v1798
    %2154 = vmatprep.subr.bf16.mxu0 %v1801
    %2155 = vmatpush1.bf16.msra.mxu0 %v1800
    %2156 = vmatprep.subr.bf16.mxu0 %v1803
    %2157 = vmatpush1.bf16.msra.mxu0 %v1802
    %2158 = vmatprep.subr.bf16.mxu0 %v1805
    %2159 = vmatpush1.bf16.msra.mxu0 %v1804
    %2160 = vmatprep.subr.bf16.mxu0 %v1807
    %2161 = vmatpush1.bf16.msra.mxu0 %v1806
    %2162 = vmatprep.mubr.bf16.mxu0 %v1264
    %2163 = vmatmul.mubr.bf16.gmra.mrb[0].mxu0 %v1263
    %v2164 = vpop.f32.mrb[0].mxu0
    %v2165 = vadd.f32 %v2052, %v2164
    %v2166 = vpop.f32.mrb[0].mxu0
    %v2167 = vadd.f32 %v2054, %v2166
    %v2168 = vpop.f32.mrb[0].mxu0
    %v2169 = vadd.f32 %v2056, %v2168
    %v2170 = vpop.f32.mrb[0].mxu0
    %v2171 = vadd.f32 %v2058, %v2170
    %2172 = vmatprep.mubr.bf16.mxu0 %v1270
    %2173 = vmatmul.mubr.bf16.gmra.mrb[0].mxu0 %v1269
    %v2174 = vpop.f32.mrb[0].mxu0
    %v2175 = vadd.f32 %v2062, %v2174
    %v2176 = vpop.f32.mrb[0].mxu0
    %v2177 = vadd.f32 %v2064, %v2176
    %v2178 = vpop.f32.mrb[0].mxu0
    %v2179 = vadd.f32 %v2066, %v2178
    %v2180 = vpop.f32.mrb[0].mxu0
    %v2181 = vadd.f32 %v2068, %v2180
    %2182 = vmatprep.mubr.bf16.mxu0 %v1276
    %2183 = vmatmul.mubr.bf16.gmra.mrb[0].mxu0 %v1275
    %v2184 = vpop.f32.mrb[0].mxu0
    %v2185 = vadd.f32 %v2072, %v2184
    %v2186 = vpop.f32.mrb[0].mxu0
    %v2187 = vadd.f32 %v2074, %v2186
    %v2188 = vpop.f32.mrb[0].mxu0
    %v2189 = vadd.f32 %v2076, %v2188
    %v2190 = vpop.f32.mrb[0].mxu0
    %v2191 = vadd.f32 %v2078, %v2190
    %2192 = vmatprep.mubr.bf16.mxu0 %v1282
    %2193 = vmatmul.mubr.bf16.gmra.mrb[0].mxu0 %v1281
    %v2194 = vpop.f32.mrb[0].mxu0
    %v2195 = vadd.f32 %v2082, %v2194
    %v2196 = vpop.f32.mrb[0].mxu0
    %v2197 = vadd.f32 %v2084, %v2196
    %v2198 = vpop.f32.mrb[0].mxu0
    %v2199 = vadd.f32 %v2086, %v2198
    %v2200 = vpop.f32.mrb[0].mxu0
    %v2201 = vadd.f32 %v2088, %v2200
    %2202 = vmatprep.mubr.bf16.mxu0 %v1288
    %2203 = vmatmul.mubr.bf16.gmra.mrb[0].mxu0 %v1287
    %v2204 = vpop.f32.mrb[0].mxu0
    %v2205 = vadd.f32 %v2092, %v2204
    %v2206 = vpop.f32.mrb[0].mxu0
    %v2207 = vadd.f32 %v2094, %v2206
    %v2208 = vpop.f32.mrb[0].mxu0
    %v2209 = vadd.f32 %v2096, %v2208
    %v2210 = vpop.f32.mrb[0].mxu0
    %v2211 = vadd.f32 %v2098, %v2210
    %2212 = vmatprep.mubr.bf16.mxu0 %v1294
    %2213 = vmatmul.mubr.bf16.gmra.mrb[0].mxu0 %v1293
    %v2214 = vpop.f32.mrb[0].mxu0
    %v2215 = vadd.f32 %v2102, %v2214
    %v2216 = vpop.f32.mrb[0].mxu0
    %v2217 = vadd.f32 %v2104, %v2216
    %v2218 = vpop.f32.mrb[0].mxu0
    %v2219 = vadd.f32 %v2106, %v2218
    %v2220 = vpop.f32.mrb[0].mxu0
    %v2221 = vadd.f32 %v2108, %v2220
    %2222 = vmatprep.mubr.bf16.mxu0 %v1300
    %2223 = vmatmul.mubr.bf16.gmra.mrb[0].mxu0 %v1299
    %v2224 = vpop.f32.mrb[0].mxu0
    %v2225 = vadd.f32 %v2112, %v2224
    %v2226 = vpop.f32.mrb[0].mxu0
    %v2227 = vadd.f32 %v2114, %v2226
    %v2228 = vpop.f32.mrb[0].mxu0
    %v2229 = vadd.f32 %v2116, %v2228
    %v2230 = vpop.f32.mrb[0].mxu0
    %v2231 = vadd.f32 %v2118, %v2230
    %2232 = vmatprep.mubr.bf16.mxu0 %v1306
    %2233 = vmatmul.mubr.bf16.gmra.mrb[0].mxu0 %v1305
    %v2234 = vpop.f32.mrb[0].mxu0
    %v2235 = vadd.f32 %v2122, %v2234
    %v2236 = vpop.f32.mrb[0].mxu0
    %v2237 = vadd.f32 %v2124, %v2236
    %v2238 = vpop.f32.mrb[0].mxu0
    %v2239 = vadd.f32 %v2126, %v2238
    %v2240 = vpop.f32.mrb[0].mxu0
    %v2241 = vadd.f32 %v2128, %v2240
    %2242 = vdwg.mxu0
    %vm2243 = vcmp.ge.f32.partialorder %v2165, 0.0
    %vm2244 = vcmp.ge.f32.partialorder %v2167, 0.0
    %vm2245 = vcmp.ge.f32.partialorder %v2169, 0.0
    %vm2246 = vcmp.ge.f32.partialorder %v2171, 0.0
    %vm2247 = vcmp.ge.f32.partialorder %v2175, 0.0
    %vm2248 = vcmp.ge.f32.partialorder %v2177, 0.0
    %vm2249 = vcmp.ge.f32.partialorder %v2179, 0.0
    %vm2250 = vcmp.ge.f32.partialorder %v2181, 0.0
    %vm2251 = vcmp.ge.f32.partialorder %v2185, 0.0
    %vm2252 = vcmp.ge.f32.partialorder %v2187, 0.0
    %vm2253 = vcmp.ge.f32.partialorder %v2189, 0.0
    %vm2254 = vcmp.ge.f32.partialorder %v2191, 0.0
    %vm2255 = vcmp.ge.f32.partialorder %v2195, 0.0
    %vm2256 = vcmp.ge.f32.partialorder %v2197, 0.0
    %vm2257 = vcmp.ge.f32.partialorder %v2199, 0.0
    %vm2258 = vcmp.ge.f32.partialorder %v2201, 0.0
    %vm2259 = vcmp.ge.f32.partialorder %v2205, 0.0
    %vm2260 = vcmp.ge.f32.partialorder %v2207, 0.0
    %vm2261 = vcmp.ge.f32.partialorder %v2209, 0.0
    %vm2262 = vcmp.ge.f32.partialorder %v2211, 0.0
    %vm2263 = vcmp.ge.f32.partialorder %v2215, 0.0
    %vm2264 = vcmp.ge.f32.partialorder %v2217, 0.0
    %vm2265 = vcmp.ge.f32.partialorder %v2219, 0.0
    %vm2266 = vcmp.ge.f32.partialorder %v2221, 0.0
    %vm2267 = vcmp.ge.f32.partialorder %v2225, 0.0
    %vm2268 = vcmp.ge.f32.partialorder %v2227, 0.0
    %vm2269 = vcmp.ge.f32.partialorder %v2229, 0.0
    %vm2270 = vcmp.ge.f32.partialorder %v2231, 0.0
    %vm2271 = vcmp.ge.f32.partialorder %v2235, 0.0
    %vm2272 = vcmp.ge.f32.partialorder %v2237, 0.0
    %vm2273 = vcmp.ge.f32.partialorder %v2239, 0.0
    %vm2274 = vcmp.ge.f32.partialorder %v2241, 0.0
    %v2275 = vmul.f32 %v2165, 0.1
    %v2276 = vmul.f32 %v2167, 0.1
    %v2277 = vmul.f32 %v2169, 0.1
    %v2278 = vmul.f32 %v2171, 0.1
    %v2279 = vmul.f32 %v2175, 0.1
    %v2280 = vmul.f32 %v2177, 0.1
    %v2281 = vmul.f32 %v2179, 0.1
    %v2282 = vmul.f32 %v2181, 0.1
    %v2283 = vmul.f32 %v2185, 0.1
    %v2284 = vmul.f32 %v2187, 0.1
    %v2285 = vmul.f32 %v2189, 0.1
    %v2286 = vmul.f32 %v2191, 0.1
    %v2287 = vmul.f32 %v2195, 0.1
    %v2288 = vmul.f32 %v2197, 0.1
    %v2289 = vmul.f32 %v2199, 0.1
    %v2290 = vmul.f32 %v2201, 0.1
    %v2291 = vmul.f32 %v2205, 0.1
    %v2292 = vmul.f32 %v2207, 0.1
    %v2293 = vmul.f32 %v2209, 0.1
    %v2294 = vmul.f32 %v2211, 0.1
    %v2295 = vmul.f32 %v2215, 0.1
    %v2296 = vmul.f32 %v2217, 0.1
    %v2297 = vmul.f32 %v2219, 0.1
    %v2298 = vmul.f32 %v2221, 0.1
    %v2299 = vmul.f32 %v2225, 0.1
    %v2300 = vmul.f32 %v2227, 0.1
    %v2301 = vmul.f32 %v2229, 0.1
    %v2302 = vmul.f32 %v2231, 0.1
    %v2303 = vmul.f32 %v2235, 0.1
    %v2304 = vmul.f32 %v2237, 0.1
    %v2305 = vmul.f32 %v2239, 0.1
    %v2306 = vmul.f32 %v2241, 0.1
    %v2307 = vsel %vm2243, %v2165, %v2275
    %v2308 = vsel %vm2244, %v2167, %v2276
    %v2309 = vsel %vm2245, %v2169, %v2277
    %v2310 = vsel %vm2246, %v2171, %v2278
    %v2311 = vsel %vm2247, %v2175, %v2279
    %v2312 = vsel %vm2248, %v2177, %v2280
    %v2313 = vsel %vm2249, %v2179, %v2281
    %v2314 = vsel %vm2250, %v2181, %v2282
    %v2315 = vsel %vm2251, %v2185, %v2283
    %v2316 = vsel %vm2252, %v2187, %v2284
    %v2317 = vsel %vm2253, %v2189, %v2285
    %v2318 = vsel %vm2254, %v2191, %v2286
    %v2319 = vsel %vm2255, %v2195, %v2287
    %v2320 = vsel %vm2256, %v2197, %v2288
    %v2321 = vsel %vm2257, %v2199, %v2289
    %v2322 = vsel %vm2258, %v2201, %v2290
    %v2323 = vsel %vm2259, %v2205, %v2291
    %v2324 = vsel %vm2260, %v2207, %v2292
    %v2325 = vsel %vm2261, %v2209, %v2293
    %v2326 = vsel %vm2262, %v2211, %v2294
    %v2327 = vsel %vm2263, %v2215, %v2295
    %v2328 = vsel %vm2264, %v2217, %v2296
    %v2329 = vsel %vm2265, %v2219, %v2297
    %v2330 = vsel %vm2266, %v2221, %v2298
    %v2331 = vsel %vm2267, %v2225, %v2299
    %v2332 = vsel %vm2268, %v2227, %v2300
    %v2333 = vsel %vm2269, %v2229, %v2301
    %v2334 = vsel %vm2270, %v2231, %v2302
    %v2335 = vsel %vm2271, %v2235, %v2303
    %v2336 = vsel %vm2272, %v2237, %v2304
    %v2337 = vsel %vm2273, %v2239, %v2305
    %v2338 = vsel %vm2274, %v2241, %v2306
    %v2339 = vunpack.c.l.bf16 %v28
    %v2340 = vunpack.c.h.bf16 %v28
    %v2341 = vunpack.c.l.bf16 %v29
    %v2342 = vunpack.c.h.bf16 %v29
    %v2343 = vunpack.c.l.bf16 %v30
    %v2344 = vunpack.c.h.bf16 %v30
    %v2345 = vunpack.c.l.bf16 %v31
    %v2346 = vunpack.c.h.bf16 %v31
    %v2347 = vunpack.c.l.bf16 %v32
    %v2348 = vunpack.c.h.bf16 %v32
    %v2349 = vunpack.c.l.bf16 %v33
    %v2350 = vunpack.c.h.bf16 %v33
    %v2351 = vunpack.c.l.bf16 %v34
    %v2352 = vunpack.c.h.bf16 %v34
    %v2353 = vunpack.c.l.bf16 %v35
    %v2354 = vunpack.c.h.bf16 %v35
    %v2355 = vunpack.c.l.bf16 %v36
    %v2356 = vunpack.c.h.bf16 %v36
    %v2357 = vunpack.c.l.bf16 %v37
    %v2358 = vunpack.c.h.bf16 %v37
    %v2359 = vunpack.c.l.bf16 %v38
    %v2360 = vunpack.c.h.bf16 %v38
    %v2361 = vunpack.c.l.bf16 %v39
    %v2362 = vunpack.c.h.bf16 %v39
    %v2363 = vunpack.c.l.bf16 %v40
    %v2364 = vunpack.c.h.bf16 %v40
    %v2365 = vunpack.c.l.bf16 %v41
    %v2366 = vunpack.c.h.bf16 %v41
    %v2367 = vunpack.c.l.bf16 %v42
    %v2368 = vunpack.c.h.bf16 %v42
    %v2369 = vunpack.c.l.bf16 %v43
    %v2370 = vunpack.c.h.bf16 %v43
    %v2371 = vadd.f32 %v2307, %v2339
    %v2372 = vadd.f32 %v2308, %v2340
    %v2373 = vadd.f32 %v2309, %v2341
    %v2374 = vadd.f32 %v2310, %v2342
    %v2375 = vadd.f32 %v2311, %v2343
    %v2376 = vadd.f32 %v2312, %v2344
    %v2377 = vadd.f32 %v2313, %v2345
    %v2378 = vadd.f32 %v2314, %v2346
    %v2379 = vadd.f32 %v2315, %v2347
    %v2380 = vadd.f32 %v2316, %v2348
    %v2381 = vadd.f32 %v2317, %v2349
    %v2382 = vadd.f32 %v2318, %v2350
    %v2383 = vadd.f32 %v2319, %v2351
    %v2384 = vadd.f32 %v2320, %v2352
    %v2385 = vadd.f32 %v2321, %v2353
    %v2386 = vadd.f32 %v2322, %v2354
    %v2387 = vadd.f32 %v2323, %v2355
    %v2388 = vadd.f32 %v2324, %v2356
    %v2389 = vadd.f32 %v2325, %v2357
    %v2390 = vadd.f32 %v2326, %v2358
    %v2391 = vadd.f32 %v2327, %v2359
    %v2392 = vadd.f32 %v2328, %v2360
    %v2393 = vadd.f32 %v2329, %v2361
    %v2394 = vadd.f32 %v2330, %v2362
    %v2395 = vadd.f32 %v2331, %v2363
    %v2396 = vadd.f32 %v2332, %v2364
    %v2397 = vadd.f32 %v2333, %v2365
    %v2398 = vadd.f32 %v2334, %v2366
    %v2399 = vadd.f32 %v2335, %v2367
    %v2400 = vadd.f32 %v2336, %v2368
    %v2401 = vadd.f32 %v2337, %v2369
    %v2402 = vadd.f32 %v2338, %v2370
    %v2403 = vpack.c.bf16 %v2373, %v2371
    %v2404 = vpack.c.bf16 %v2374, %v2372
    %v2405 = vpack.c.bf16 %v2377, %v2375
    %v2406 = vpack.c.bf16 %v2378, %v2376
    %v2407 = vpack.c.bf16 %v2381, %v2379
    %v2408 = vpack.c.bf16 %v2382, %v2380
    %v2409 = vpack.c.bf16 %v2385, %v2383
    %v2410 = vpack.c.bf16 %v2386, %v2384
    %v2411 = vpack.c.bf16 %v2389, %v2387
    %v2412 = vpack.c.bf16 %v2390, %v2388
    %v2413 = vpack.c.bf16 %v2393, %v2391
    %v2414 = vpack.c.bf16 %v2394, %v2392
    %v2415 = vpack.c.bf16 %v2397, %v2395
    %v2416 = vpack.c.bf16 %v2398, %v2396
    %v2417 = vpack.c.bf16 %v2401, %v2399
    %v2418 = vpack.c.bf16 %v2402, %v2400
    %v2419 = vld [vmem:[%s5] sm:$0xf]
    %v2420 = vld [vmem:[%s5 + $0x4] sm:$0xf]
    %v2421 = vld [vmem:[%s5 + $0x8] sm:$0xf]
    %v2422 = vld [vmem:[%s5 + $0xc] sm:$0xf]
    %v2423 = vld [vmem:[%s5 + $0x10] sm:$0xf]
    %v2424 = vld [vmem:[%s5 + $0x14] sm:$0xf]
    %v2425 = vld [vmem:[%s5 + $0x18] sm:$0xf]
    %v2426 = vld [vmem:[%s5 + $0x1c] sm:$0xf]
    %v2427 = vld [vmem:[%s5 + $0x20] sm:$0xf]
    %v2428 = vld [vmem:[%s5 + $0x24] sm:$0xf]
    %v2429 = vld [vmem:[%s5 + $0x28] sm:$0xf]
    %v2430 = vld [vmem:[%s5 + $0x2c] sm:$0xf]
    %v2431 = vld [vmem:[%s5 + $0x30] sm:$0xf]
    %v2432 = vld [vmem:[%s5 + $0x34] sm:$0xf]
    %v2433 = vld [vmem:[%s5 + $0x38] sm:$0xf]
    %v2434 = vld [vmem:[%s5 + $0x3c] sm:$0xf]
    %v2435 = vld [vmem:[%s5 + $0x40] sm:$0xf]
    %v2436 = vld [vmem:[%s5 + $0x44] sm:$0xf]
    %v2437 = vld [vmem:[%s5 + $0x48] sm:$0xf]
    %v2438 = vld [vmem:[%s5 + $0x4c] sm:$0xf]
    %v2439 = vld [vmem:[%s5 + $0x50] sm:$0xf]
    %v2440 = vld [vmem:[%s5 + $0x54] sm:$0xf]
    %v2441 = vld [vmem:[%s5 + $0x58] sm:$0xf]
    %v2442 = vld [vmem:[%s5 + $0x5c] sm:$0xf]
    %v2443 = vld [vmem:[%s6] sm:$0x1]
    %v2444 = vunpack.c.l.bf16 %v2443
    %v2445 = vlaneseq
    %v2446 = vshrl.u32 %v2445, 7
    %v2447 = vsub.s32 0, %v2446
    %v2448 = vrot.slane %v2444, %v2447
    %v2473 = vunpack.c.l.b16 %v2419
    %v2474 = vunpack.c.l.b16 %v2420
    %v2475 = vunpack.c.l.b16 %v2421
    %v2476 = vunpack.c.l.b16 %v2422
    %v2477 = vunpack.c.l.b16 %v2423
    %v2478 = vunpack.c.l.b16 %v2424
    %v2479 = vunpack.c.l.b16 %v2425
    %v2480 = vunpack.c.l.b16 %v2426
    %v2481 = vunpack.c.l.b16 %v2427
    %v2482 = vunpack.c.l.b16 %v2428
    %v2483 = vunpack.c.l.b16 %v2429
    %v2484 = vunpack.c.l.b16 %v2430
    %v2485 = vunpack.c.l.b16 %v2431
    %v2486 = vunpack.c.l.b16 %v2432
    %v2487 = vunpack.c.l.b16 %v2433
    %v2488 = vunpack.c.l.b16 %v2434
    %v2489 = vunpack.c.l.b16 %v2435
    %v2490 = vunpack.c.l.b16 %v2436
    %v2491 = vunpack.c.l.b16 %v2437
    %v2492 = vunpack.c.l.b16 %v2438
    %v2493 = vunpack.c.l.b16 %v2439
    %v2494 = vunpack.c.l.b16 %v2440
    %v2495 = vunpack.c.l.b16 %v2441
    %v2496 = vunpack.c.l.b16 %v2442
    %v2497 = vpack.c.b16 %v2474, %v2473
    %v2498 = vpack.c.b16 %v2476, %v2475
    %v2499 = vpack.c.b16 %v2478, %v2477
    %v2500 = vpack.c.b16 %v2480, %v2479
    %v2501 = vpack.c.b16 %v2482, %v2481
    %v2502 = vpack.c.b16 %v2484, %v2483
    %v2503 = vpack.c.b16 %v2486, %v2485
    %v2504 = vpack.c.b16 %v2488, %v2487
    %v2505 = vpack.c.b16 %v2490, %v2489
    %v2506 = vpack.c.b16 %v2492, %v2491
    %v2507 = vpack.c.b16 %v2494, %v2493
    %v2508 = vpack.c.b16 %v2496, %v2495
    %v2522 = vsel %vm607, %v2404, 0
    %v2525 = vsel %vm607, %v2406, 0
    %v2528 = vsel %vm607, %v2408, 0
    %v2531 = vsel %vm607, %v2410, 0
    %v2534 = vsel %vm607, %v2412, 0
    %v2537 = vsel %vm607, %v2414, 0
    %v2540 = vsel %vm607, %v2416, 0
    %v2543 = vsel %vm607, %v2418, 0
    %2545 = vmatprep.subr.bf16.mxu0 0
    %2546 = vmatpush1.bf16.msra.mxu0 %v2497
    %2547 = vmatprep.subr.bf16.mxu0 0
    %2548 = vmatpush1.bf16.msra.mxu0 %v2498
    %2549 = vmatprep.subr.bf16.mxu0 0
    %2550 = vmatpush1.bf16.msra.mxu0 %v2499
    %2551 = vmatprep.subr.bf16.mxu0 0
    %2552 = vmatpush1.bf16.msra.mxu0 %v2500
    %2553 = vmatprep.subr.bf16.mxu0 0
    %2554 = vmatpush1.bf16.msra.mxu0 %v2501
    %2555 = vmatprep.subr.bf16.mxu0 0
    %2556 = vmatpush1.bf16.msra.mxu0 %v2502
    %2557 = vmatprep.subr.bf16.mxu0 0
    %2558 = vmatpush1.bf16.msra.mxu0 %v2503
    %2559 = vmatprep.subr.bf16.mxu0 0
    %2560 = vmatpush1.bf16.msra.mxu0 %v2504
    %2561 = vmatprep.subr.bf16.mxu0 0
    %2562 = vmatpush1.bf16.msra.mxu0 %v2505
    %2563 = vmatprep.subr.bf16.mxu0 0
    %2564 = vmatpush1.bf16.msra.mxu0 %v2506
    %2565 = vmatprep.subr.bf16.mxu0 0
    %2566 = vmatpush1.bf16.msra.mxu0 %v2507
    %2567 = vmatprep.subr.bf16.mxu0 0
    %2568 = vmatpush1.bf16.msra.mxu0 %v2508
    %2569 = vmatprep.subr.bf16.mxu0 0
    %2570 = vmatpush1.bf16.msra.mxu0 0
    %2571 = vmatprep.subr.bf16.mxu0 0
    %2572 = vmatpush1.bf16.msra.mxu0 0
    %2573 = vmatprep.subr.bf16.mxu0 0
    %2574 = vmatpush1.bf16.msra.mxu0 0
    %2575 = vmatprep.subr.bf16.mxu0 0
    %2576 = vmatpush1.bf16.msra.mxu0 0
    %2577 = vmatprep.mubr.bf16.mxu0 %v2522
    %2578 = vmatmul.mubr.bf16.gmra.mrb[0].mxu0 %v2403
    %v2579 = vpop.f32.mrb[0].mxu0
    %v2580 = vadd.f32 %v2448, %v2579
    %v2581 = vpop.f32.mrb[0].mxu0
    %v2582 = vpop.f32.mrb[0].mxu0
    %v2583 = vadd.f32 %v2448, %v2582
    %v2584 = vpop.f32.mrb[0].mxu0
    %2585 = vmatprep.mubr.bf16.mxu0 %v2525
    %2586 = vmatmul.mubr.bf16.gmra.mrb[0].mxu0 %v2405
    %v2587 = vpop.f32.mrb[0].mxu0
    %v2588 = vadd.f32 %v2448, %v2587
    %v2589 = vpop.f32.mrb[0].mxu0
    %v2590 = vpop.f32.mrb[0].mxu0
    %v2591 = vadd.f32 %v2448, %v2590
    %v2592 = vpop.f32.mrb[0].mxu0
    %2593 = vmatprep.mubr.bf16.mxu0 %v2528
    %2594 = vmatmul.mubr.bf16.gmra.mrb[0].mxu0 %v2407
    %v2595 = vpop.f32.mrb[0].mxu0
    %v2596 = vadd.f32 %v2448, %v2595
    %v2597 = vpop.f32.mrb[0].mxu0
    %v2598 = vpop.f32.mrb[0].mxu0
    %v2599 = vadd.f32 %v2448, %v2598
    %v2600 = vpop.f32.mrb[0].mxu0
    %2601 = vmatprep.mubr.bf16.mxu0 %v2531
    %2602 = vmatmul.mubr.bf16.gmra.mrb[0].mxu0 %v2409
    %v2603 = vpop.f32.mrb[0].mxu0
    %v2604 = vadd.f32 %v2448, %v2603
    %v2605 = vpop.f32.mrb[0].mxu0
    %v2606 = vpop.f32.mrb[0].mxu0
    %v2607 = vadd.f32 %v2448, %v2606
    %v2608 = vpop.f32.mrb[0].mxu0
    %2609 = vmatprep.mubr.bf16.mxu0 %v2534
    %2610 = vmatmul.mubr.bf16.gmra.mrb[0].mxu0 %v2411
    %v2611 = vpop.f32.mrb[0].mxu0
    %v2612 = vadd.f32 %v2448, %v2611
    %v2613 = vpop.f32.mrb[0].mxu0
    %v2614 = vpop.f32.mrb[0].mxu0
    %v2615 = vadd.f32 %v2448, %v2614
    %v2616 = vpop.f32.mrb[0].mxu0
    %2617 = vmatprep.mubr.bf16.mxu0 %v2537
    %2618 = vmatmul.mubr.bf16.gmra.mrb[0].mxu0 %v2413
    %v2619 = vpop.f32.mrb[0].mxu0
    %v2620 = vadd.f32 %v2448, %v2619
    %v2621 = vpop.f32.mrb[0].mxu0
    %v2622 = vpop.f32.mrb[0].mxu0
    %v2623 = vadd.f32 %v2448, %v2622
    %v2624 = vpop.f32.mrb[0].mxu0
    %2625 = vmatprep.mubr.bf16.mxu0 %v2540
    %2626 = vmatmul.mubr.bf16.gmra.mrb[0].mxu0 %v2415
    %v2627 = vpop.f32.mrb[0].mxu0
    %v2628 = vadd.f32 %v2448, %v2627
    %v2629 = vpop.f32.mrb[0].mxu0
    %v2630 = vpop.f32.mrb[0].mxu0
    %v2631 = vadd.f32 %v2448, %v2630
    %v2632 = vpop.f32.mrb[0].mxu0
    %2633 = vmatprep.mubr.bf16.mxu0 %v2543
    %2634 = vmatmul.mubr.bf16.gmra.mrb[0].mxu0 %v2417
    %v2635 = vpop.f32.mrb[0].mxu0
    %v2636 = vadd.f32 %v2448, %v2635
    %v2637 = vpop.f32.mrb[0].mxu0
    %v2638 = vpop.f32.mrb[0].mxu0
    %v2639 = vadd.f32 %v2448, %v2638
    %v2640 = vpop.f32.mrb[0].mxu0
    %2641 = vdwg.mxu0
    %2642 = vst [vmem:[#allocation2] sm:$0xff] %v2580
    %2643 = vst [vmem:[#allocation2 + $0x8] sm:$0xff] %v2583
    %2644 = vst [vmem:[#allocation2 + $0x10] sm:$0xff] %v2588
    %2645 = vst [vmem:[#allocation2 + $0x18] sm:$0xff] %v2591
    %2646 = vst [vmem:[#allocation2 + $0x20] sm:$0xff] %v2596
    %2647 = vst [vmem:[#allocation2 + $0x28] sm:$0xff] %v2599
    %2648 = vst [vmem:[#allocation2 + $0x30] sm:$0xff] %v2604
    %2649 = vst [vmem:[#allocation2 + $0x38] sm:$0xff] %v2607
    %2650 = vst [vmem:[#allocation2 + $0x40] sm:$0xff] %v2612
    %2651 = vst [vmem:[#allocation2 + $0x48] sm:$0xff] %v2615
    %2652 = vst [vmem:[#allocation2 + $0x50] sm:$0xff] %v2620
    %2653 = vst [vmem:[#allocation2 + $0x58] sm:$0xff] %v2623
    %2654 = vst [vmem:[#allocation2 + $0x60] sm:$0xff] %v2628
    %2655 = vst [vmem:[#allocation2 + $0x68] sm:$0xff] %v2631
    %2656 = vst [vmem:[#allocation2 + $0x70] sm:$0xff] %v2636
    %2657 = vst [vmem:[#allocation2 + $0x78] sm:$0xff] %v2639
    // Predicated region
    $region30: #{spatial_prior.7} parent=1 // pred_check
      _
    $region31: #{spatial_prior.7} parent=1 // pred_check_branch
      %2659 = sbr.rel (0) target = $region33
    $region32: #{spatial_prior.7} parent=1 // pred_region
      %s2661 = ssub.s32 2048, 2048
      %2662 = vsyncadd [#allocation3], %s2661
      %s2663 = sshll.u32 [#allocation2], 4
      %s2664 = int_to_ptr.vmem [resolvable:$true] %s2663
      %2669 = dma.vmem_to_hbm [thread:$0]  %s2664, 2048, %s7, [#allocation3], 128, 128, 8
    $region33: #{spatial_prior.7} parent=1 // pred_fallthru
      _
    // Predicated region
    $region34: #{spatial_prior.7} parent=1 // pred_check
      _
    $region35: #{spatial_prior.7} parent=1 // pred_check_branch
      %2671 = sbr.rel (0) target = $region37
    $region36: #{spatial_prior.7} parent=1 // pred_region
      %2672 = dma.done [#allocation3], 2048
    $region37: #{spatial_prior.7} parent=1 // pred_fallthru
      _
    %2673 = vsyncpa [#allocation3], 1

</llo_original>
